<compile_context>
chip_gen: v7x
topology: tpu7x:2x2x1
jax: 0.10.0
libtpu: 0.0.40
codegen_flags: <defaults>
</compile_context>

<pallas_src>
import jax
import jax.numpy as jnp
from jax import lax
from jax.experimental import pallas as pl
from jax.experimental.pallas import tpu as pltpu


# ----------------------------------------------------------------------------
# Fused kernel: spatial conv3x3+ReLU  ->  angular re-interleave (in VMEM)
#               ->  angular conv3x3+ReLU, for a chunk of `bn` samples.
# ----------------------------------------------------------------------------
def _alt_filter_kernel(xs_ref, ws_ref, bs_ref, wa_ref, ba_ref, o_ref, inter_ref):
    """
    xs_ref:    (bn, a*a, h+2, w+2, c)  zero-padded NHWC spatial input views
    ws_ref:    (9*c, c)                spatial conv weights, rows = (dy,dx,ci)
    bs_ref:    (1, c)                  spatial conv bias
    wa_ref:    (9*c, c)                angular conv weights, rows = (du,dv,ci)
    ba_ref:    (1, c)                  angular conv bias
    o_ref:     (bn*a*a*h*w, c)         output rows ordered (n, u, v, y, x)
    inter_ref: (bn, a+2, a+2, h*w, c)  zero-padded angular staging buffer
    """
    bn, a2, hp, wp, c = xs_ref.shape
    h, w = hp - 2, wp - 2
    hw = h * w
    a = inter_ref.shape[1] - 2
    m = bn * a2 * hw

    # ---- spatial 3x3 conv: 9 shifted-view matmuls, f32 accumulation --------
    acc = None
    for dy in range(3):
        for dx in range(3):
            t = dy * 3 + dx
            tap = xs_ref[:, :, dy:dy + h, dx:dx + w, :].reshape(m, c)
            part = jnp.dot(tap, ws_ref[t * c:(t + 1) * c, :],
                           preferred_element_type=jnp.float32)
            acc = part if acc is None else acc + part
    hid = jnp.maximum(acc + bs_ref[...], 0.0)                 # bias + ReLU

    # ---- stage into zero-padded angular buffer ------------------------------
    # The padding ring is re-zeroed every step (not only at program_id==0) so
    # the kernel stays correct when the "parallel" grid axis is split across
    # TensorCores with per-core scratch.
    zr = jnp.zeros((bn, 1, a + 2, hw, c), jnp.float32)
    inter_ref[:, 0:1, :, :, :] = zr
    inter_ref[:, a + 1:a + 2, :, :, :] = zr
    zc = jnp.zeros((bn, a, 1, hw, c), jnp.float32)
    inter_ref[:, 1:1 + a, 0:1, :, :] = zc
    inter_ref[:, 1:1 + a, a + 1:a + 2, :, :] = zc
    inter_ref[:, 1:1 + a, 1:1 + a, :, :] = hid.reshape(bn, a, a, hw, c)

    # ---- angular 3x3 conv: 9 shifted-view matmuls, f32 accumulation --------
    acc2 = None
    for du in range(3):
        for dv in range(3):
            t = du * 3 + dv
            tap = inter_ref[:, du:du + a, dv:dv + a, :, :].reshape(m, c)
            part = jnp.dot(tap, wa_ref[t * c:(t + 1) * c, :],
                           preferred_element_type=jnp.float32)
            acc2 = part if acc2 is None else acc2 + part
    o_ref[...] = jnp.maximum(acc2 + ba_ref[...], 0.0).astype(o_ref.dtype)


# ----------------------------------------------------------------------------
# Block-batch picker: VMEM-capped, generation-aware.
# ----------------------------------------------------------------------------
def _num_tensorcores():
    """2 on megacore / multi-TC parts (v3/v4/v5p/v7), else 1."""
    try:
        kind = jax.devices()[0].device_kind.lower()
    except Exception:
        return 1
    return 2 if any(t in kind for t in ("v3", "v4", "v5p", "v7")) else 1


def _pick_block_n(n_samples, a, h, w, c, vmem_cap_bytes=12 << 20):
    """Pick the per-grid-step sample chunk `bn` (divides n_samples).

    Keeps the per-step VMEM footprint under ~12 MiB (below v5e's 16 MiB scoped
    default), keeps the flattened matmul M = bn*a*a*h*w reasonably large, and
    prefers >=2 parallel grid steps only on multi-TensorCore generations.
    """
    per_m = a * a * h * w

    def vmem_bytes(bn):
        inb = bn * a * a * (h + 2) * (w + 2) * c * 4 * 2       # dbl-buffered input
        outb = bn * per_m * c * 4 * 2                          # dbl-buffered output
        scr = bn * (a + 2) * (a + 2) * h * w * max(c, 128) * 4  # lane-padded scratch
        acc = 2 * bn * per_m * c * 4                           # live accumulators
        wts = 2 * (9 * c * c + c) * 4 * 2
        return inb + outb + scr + acc + wts

    divisors = [d for d in range(1, n_samples + 1) if n_samples % d == 0]
    legal = [d for d in divisors
             if ((d * per_m) % 8 == 0 or d == n_samples)
             and vmem_bytes(d) <= vmem_cap_bytes]
    if not legal:
        # TODO(synk): add an h-tiling grid axis for samples too large for VMEM;
        # fall back to a full-array block (always shape-legal) for now.
        return n_samples

    fitting = [d for d in legal if d * per_m <= max(2048, per_m)]
    bn = max(fitting) if fitting else min(legal)
    if _num_tensorcores() >= 2 and n_samples // bn < 2:
        smaller = [d for d in legal
                   if n_samples // d >= 2 and d * per_m <= max(2048, per_m)]
        if smaller:
            bn = max(smaller)
    return bn


# ----------------------------------------------------------------------------
# AltFilter forward (exact PyTorch semantics; only the unavoidable
# NCHW<->NHWC boundary transposes are left to XLA).
# ----------------------------------------------------------------------------
def alt_filter_forward(x, ang_res, w_spa, b_spa, w_ang, b_ang):
    """x: (N*angRes^2, c, h, w) NCHW; c is 64 as fixed by the module."""
    Na2, c, h, w = x.shape
    a = ang_res
    N = Na2 // (a * a)
    hw = h * w

    # NCHW -> NHWC once at the boundary; group sub-views per sample; pad once.
    xs = jnp.transpose(x, (0, 2, 3, 1)).reshape(N, a * a, h, w, c)
    xs = jnp.pad(xs, ((0, 0), (0, 0), (1, 1), (1, 1), (0, 0)))

    ws = w_spa.reshape(9 * c, c)      # rows ordered (dy, dx, ci)
    wa = w_ang.reshape(9 * c, c)      # rows ordered (du, dv, ci)
    bs = b_spa.reshape(1, c)
    ba = b_ang.reshape(1, c)

    bn = _pick_block_n(N, a, h, w, c)
    m_blk = bn * a * a * hw
    m_tot = N * a * a * hw

    flops = 2 * 2 * 9 * m_tot * c * c                  # two convs, 9 taps each
    bytes_accessed = 4 * (xs.size + m_tot * c + 2 * (9 * c * c + c))

    out = pl.pallas_call(
        _alt_filter_kernel,
        out_shape=jax.ShapeDtypeStruct((m_tot, c), x.dtype),
        grid=(N // bn,),
        in_specs=[
            pl.BlockSpec((bn, a * a, h + 2, w + 2, c),
                         lambda i: (i, 0, 0, 0, 0)),
            pl.BlockSpec((9 * c, c), lambda i: (0, 0)),
            pl.BlockSpec((1, c), lambda i: (0, 0)),
            pl.BlockSpec((9 * c, c), lambda i: (0, 0)),
            pl.BlockSpec((1, c), lambda i: (0, 0)),
        ],
        out_specs=pl.BlockSpec((m_blk, c), lambda i: (i, 0)),
        scratch_shapes=[pltpu.VMEM((bn, a + 2, a + 2, hw, c), jnp.float32)],
        compiler_params=pltpu.CompilerParams(
            dimension_semantics=("parallel",)),
        cost_estimate=pl.CostEstimate(
            flops=int(flops), transcendentals=0,
            bytes_accessed=int(bytes_accessed)),
    )(xs, ws, bs, wa, ba)

    # Rows are ordered (n, u, v, y, x, c): reshape + single NHWC->NCHW transpose.
    out = out.reshape(N * a * a, h, w, c)
    return jnp.transpose(out, (0, 3, 1, 2))


# ----------------------------------------------------------------------------
# Pure-JAX reference (follows the PyTorch view/transpose chain literally).
# ----------------------------------------------------------------------------
def _conv3x3_relu_ref(x_nhwc, w_hwio, bias):
    y = lax.conv_general_dilated(
        x_nhwc, w_hwio, window_strides=(1, 1), padding="SAME",
        dimension_numbers=("NHWC", "HWIO", "NHWC"))
    return jnp.maximum(y + bias, 0.0)


def _alt_filter_ref(x, ang_res, w_spa, b_spa, w_ang, b_ang):
    Na2, c, h, w = x.shape
    N = Na2 // (ang_res * ang_res)
    out = _conv3x3_relu_ref(jnp.transpose(x, (0, 2, 3, 1)), w_spa, b_spa)
    out = jnp.transpose(out, (0, 3, 1, 2))
    out = out.reshape(N, ang_res * ang_res, c, h * w)
    out = jnp.swapaxes(out, 1, 3)
    out = out.reshape(N * h * w, c, ang_res, ang_res)
    out = _conv3x3_relu_ref(jnp.transpose(out, (0, 2, 3, 1)), w_ang, b_ang)
    out = jnp.transpose(out, (0, 3, 1, 2))
    out = out.reshape(N, h * w, c, ang_res * ang_res)
    out = jnp.swapaxes(out, 1, 3)
    return out.reshape(N * ang_res * ang_res, c, h, w)


if __name__ == "__main__":
    ANG_RES = 2
    N, C, H, W = 2, 64, 8, 8          # channels fixed at 64 by the module
    B = N * ANG_RES * ANG_RES         # input batch = N * angRes^2

    key = jax.random.PRNGKey(0)
    kx, kws, kbs, kwa, kba = jax.random.split(key, 5)

    x = jax.random.normal(kx, (B, C, H, W), dtype=jnp.float32)
    # deterministic synthetic parameters, HWIO layout (3, 3, Cin, Cout)
    w_spa = jax.random.normal(kws, (3, 3, C, C), dtype=jnp.float32) * 0.05
    b_spa = jax.random.normal(kbs, (C,), dtype=jnp.float32) * 0.05
    w_ang = jax.random.normal(kwa, (3, 3, C, C), dtype=jnp.float32) * 0.05
    b_ang = jax.random.normal(kba, (C,), dtype=jnp.float32) * 0.05

    fwd = jax.jit(alt_filter_forward, static_argnums=1)
    out = jax.block_until_ready(fwd(x, ANG_RES, w_spa, b_spa, w_ang, b_ang))

    ref = _alt_filter_ref(x, ANG_RES, w_spa, b_spa, w_ang, b_ang)
    assert out.shape == (B, C, H, W)
    err = float(jnp.max(jnp.abs(out - ref)))
    assert jnp.allclose(out, ref, atol=5e-4, rtol=5e-4), err

    print("KERNEL_OK")
</pallas_src>

<mosaic_0001>
module attributes {stable_mosaic.version = 11 : i64} {
  func.func @_alt_filter_kernel(%arg0: i32, %arg1: memref<2x4x10x10x64xf32, #tpu.memory_space<vmem>>, %arg2: memref<576x64xf32, #tpu.memory_space<vmem>>, %arg3: memref<1x64xf32, #tpu.memory_space<vmem>>, %arg4: memref<576x64xf32, #tpu.memory_space<vmem>>, %arg5: memref<1x64xf32, #tpu.memory_space<vmem>>, %arg6: memref<512x64xf32, #tpu.memory_space<vmem>>, %arg7: memref<2x4x4x64x64xf32, #tpu.memory_space<vmem>>) attributes {dimension_semantics = [#tpu.dimension_semantics<parallel>], iteration_bounds = array<i64: 1>, scalar_prefetch = 0 : i64, scratch_operands = 1 : i64, tpu.core_type = #tpu.core_type<tc>, window_params = [{transform_indices = @transform_0, window_bounds = array<i64: 2, 4, 10, 10, 64>}, {pipeline_mode = #tpu.pipeline_mode<synchronous>, transform_indices = @transform_1, window_bounds = array<i64: 576, 64>}, {pipeline_mode = #tpu.pipeline_mode<synchronous>, transform_indices = @transform_2, window_bounds = array<i64: 1, 64>}, {pipeline_mode = #tpu.pipeline_mode<synchronous>, transform_indices = @transform_3, window_bounds = array<i64: 576, 64>}, {pipeline_mode = #tpu.pipeline_mode<synchronous>, transform_indices = @transform_4, window_bounds = array<i64: 1, 64>}, {transform_indices = @transform_5, window_bounds = array<i64: 512, 64>}]} {
    %c0 = arith.constant 0 : index
    %c0_0 = arith.constant 0 : index
    %c0_1 = arith.constant 0 : index
    %c0_2 = arith.constant 0 : index
    %c0_3 = arith.constant 0 : index
    %0 = vector.load %arg1[%c0, %c0_0, %c0_1, %c0_2, %c0_3] : memref<2x4x10x10x64xf32, #tpu.memory_space<vmem>>, vector<2x4x8x8x64xf32>
    %1 = vector.shape_cast %0 : vector<2x4x8x8x64xf32> to vector<512x64xf32>
    %c0_4 = arith.constant 0 : index
    %c0_5 = arith.constant 0 : index
    %2 = vector.load %arg2[%c0_4, %c0_5] : memref<576x64xf32, #tpu.memory_space<vmem>>, vector<64x64xf32>
    %cst = arith.constant dense<0.000000e+00> : vector<512x64xf32>
    %3 = tpu.matmul %1, %2, %cst {dimension_numbers = #tpu.dot_dimension_numbers<[1], [0], [0], [1], [0, 0, 1, 1], [], []>} : vector<512x64xf32>, vector<64x64xf32>, vector<512x64xf32> -> vector<512x64xf32>
    %c0_6 = arith.constant 0 : index
    %c0_7 = arith.constant 0 : index
    %c0_8 = arith.constant 0 : index
    %c1 = arith.constant 1 : index
    %c0_9 = arith.constant 0 : index
    %4 = vector.load %arg1[%c0_6, %c0_7, %c0_8, %c1, %c0_9] : memref<2x4x10x10x64xf32, #tpu.memory_space<vmem>>, vector<2x4x8x8x64xf32>
    %5 = vector.shape_cast %4 : vector<2x4x8x8x64xf32> to vector<512x64xf32>
    %c64 = arith.constant 64 : index
    %c0_10 = arith.constant 0 : index
    %6 = vector.load %arg2[%c64, %c0_10] : memref<576x64xf32, #tpu.memory_space<vmem>>, vector<64x64xf32>
    %cst_11 = arith.constant dense<0.000000e+00> : vector<512x64xf32>
    %7 = tpu.matmul %5, %6, %cst_11 {dimension_numbers = #tpu.dot_dimension_numbers<[1], [0], [0], [1], [0, 0, 1, 1], [], []>} : vector<512x64xf32>, vector<64x64xf32>, vector<512x64xf32> -> vector<512x64xf32>
    %8 = arith.addf %3, %7 : vector<512x64xf32>
    %c0_12 = arith.constant 0 : index
    %c0_13 = arith.constant 0 : index
    %c0_14 = arith.constant 0 : index
    %c2 = arith.constant 2 : index
    %c0_15 = arith.constant 0 : index
    %9 = vector.load %arg1[%c0_12, %c0_13, %c0_14, %c2, %c0_15] : memref<2x4x10x10x64xf32, #tpu.memory_space<vmem>>, vector<2x4x8x8x64xf32>
    %10 = vector.shape_cast %9 : vector<2x4x8x8x64xf32> to vector<512x64xf32>
    %c128 = arith.constant 128 : index
    %c0_16 = arith.constant 0 : index
    %11 = vector.load %arg2[%c128, %c0_16] : memref<576x64xf32, #tpu.memory_space<vmem>>, vector<64x64xf32>
    %cst_17 = arith.constant dense<0.000000e+00> : vector<512x64xf32>
    %12 = tpu.matmul %10, %11, %cst_17 {dimension_numbers = #tpu.dot_dimension_numbers<[1], [0], [0], [1], [0, 0, 1, 1], [], []>} : vector<512x64xf32>, vector<64x64xf32>, vector<512x64xf32> -> vector<512x64xf32>
    %13 = arith.addf %8, %12 : vector<512x64xf32>
    %c0_18 = arith.constant 0 : index
    %c0_19 = arith.constant 0 : index
    %c1_20 = arith.constant 1 : index
    %c0_21 = arith.constant 0 : index
    %c0_22 = arith.constant 0 : index
    %14 = vector.load %arg1[%c0_18, %c0_19, %c1_20, %c0_21, %c0_22] : memref<2x4x10x10x64xf32, #tpu.memory_space<vmem>>, vector<2x4x8x8x64xf32>
    %15 = vector.shape_cast %14 : vector<2x4x8x8x64xf32> to vector<512x64xf32>
    %c192 = arith.constant 192 : index
    %c0_23 = arith.constant 0 : index
    %16 = vector.load %arg2[%c192, %c0_23] : memref<576x64xf32, #tpu.memory_space<vmem>>, vector<64x64xf32>
    %cst_24 = arith.constant dense<0.000000e+00> : vector<512x64xf32>
    %17 = tpu.matmul %15, %16, %cst_24 {dimension_numbers = #tpu.dot_dimension_numbers<[1], [0], [0], [1], [0, 0, 1, 1], [], []>} : vector<512x64xf32>, vector<64x64xf32>, vector<512x64xf32> -> vector<512x64xf32>
    %18 = arith.addf %13, %17 : vector<512x64xf32>
    %c0_25 = arith.constant 0 : index
    %c0_26 = arith.constant 0 : index
    %c1_27 = arith.constant 1 : index
    %c1_28 = arith.constant 1 : index
    %c0_29 = arith.constant 0 : index
    %19 = vector.load %arg1[%c0_25, %c0_26, %c1_27, %c1_28, %c0_29] : memref<2x4x10x10x64xf32, #tpu.memory_space<vmem>>, vector<2x4x8x8x64xf32>
    %20 = vector.shape_cast %19 : vector<2x4x8x8x64xf32> to vector<512x64xf32>
    %c256 = arith.constant 256 : index
    %c0_30 = arith.constant 0 : index
    %21 = vector.load %arg2[%c256, %c0_30] : memref<576x64xf32, #tpu.memory_space<vmem>>, vector<64x64xf32>
    %cst_31 = arith.constant dense<0.000000e+00> : vector<512x64xf32>
    %22 = tpu.matmul %20, %21, %cst_31 {dimension_numbers = #tpu.dot_dimension_numbers<[1], [0], [0], [1], [0, 0, 1, 1], [], []>} : vector<512x64xf32>, vector<64x64xf32>, vector<512x64xf32> -> vector<512x64xf32>
    %23 = arith.addf %18, %22 : vector<512x64xf32>
    %c0_32 = arith.constant 0 : index
    %c0_33 = arith.constant 0 : index
    %c1_34 = arith.constant 1 : index
    %c2_35 = arith.constant 2 : index
    %c0_36 = arith.constant 0 : index
    %24 = vector.load %arg1[%c0_32, %c0_33, %c1_34, %c2_35, %c0_36] : memref<2x4x10x10x64xf32, #tpu.memory_space<vmem>>, vector<2x4x8x8x64xf32>
    %25 = vector.shape_cast %24 : vector<2x4x8x8x64xf32> to vector<512x64xf32>
    %c320 = arith.constant 320 : index
    %c0_37 = arith.constant 0 : index
    %26 = vector.load %arg2[%c320, %c0_37] : memref<576x64xf32, #tpu.memory_space<vmem>>, vector<64x64xf32>
    %cst_38 = arith.constant dense<0.000000e+00> : vector<512x64xf32>
    %27 = tpu.matmul %25, %26, %cst_38 {dimension_numbers = #tpu.dot_dimension_numbers<[1], [0], [0], [1], [0, 0, 1, 1], [], []>} : vector<512x64xf32>, vector<64x64xf32>, vector<512x64xf32> -> vector<512x64xf32>
    %28 = arith.addf %23, %27 : vector<512x64xf32>
    %c0_39 = arith.constant 0 : index
    %c0_40 = arith.constant 0 : index
    %c2_41 = arith.constant 2 : index
    %c0_42 = arith.constant 0 : index
    %c0_43 = arith.constant 0 : index
    %29 = vector.load %arg1[%c0_39, %c0_40, %c2_41, %c0_42, %c0_43] : memref<2x4x10x10x64xf32, #tpu.memory_space<vmem>>, vector<2x4x8x8x64xf32>
    %30 = vector.shape_cast %29 : vector<2x4x8x8x64xf32> to vector<512x64xf32>
    %c384 = arith.constant 384 : index
    %c0_44 = arith.constant 0 : index
    %31 = vector.load %arg2[%c384, %c0_44] : memref<576x64xf32, #tpu.memory_space<vmem>>, vector<64x64xf32>
    %cst_45 = arith.constant dense<0.000000e+00> : vector<512x64xf32>
    %32 = tpu.matmul %30, %31, %cst_45 {dimension_numbers = #tpu.dot_dimension_numbers<[1], [0], [0], [1], [0, 0, 1, 1], [], []>} : vector<512x64xf32>, vector<64x64xf32>, vector<512x64xf32> -> vector<512x64xf32>
    %33 = arith.addf %28, %32 : vector<512x64xf32>
    %c0_46 = arith.constant 0 : index
    %c0_47 = arith.constant 0 : index
    %c2_48 = arith.constant 2 : index
    %c1_49 = arith.constant 1 : index
    %c0_50 = arith.constant 0 : index
    %34 = vector.load %arg1[%c0_46, %c0_47, %c2_48, %c1_49, %c0_50] : memref<2x4x10x10x64xf32, #tpu.memory_space<vmem>>, vector<2x4x8x8x64xf32>
    %35 = vector.shape_cast %34 : vector<2x4x8x8x64xf32> to vector<512x64xf32>
    %c448 = arith.constant 448 : index
    %c0_51 = arith.constant 0 : index
    %36 = vector.load %arg2[%c448, %c0_51] : memref<576x64xf32, #tpu.memory_space<vmem>>, vector<64x64xf32>
    %cst_52 = arith.constant dense<0.000000e+00> : vector<512x64xf32>
    %37 = tpu.matmul %35, %36, %cst_52 {dimension_numbers = #tpu.dot_dimension_numbers<[1], [0], [0], [1], [0, 0, 1, 1], [], []>} : vector<512x64xf32>, vector<64x64xf32>, vector<512x64xf32> -> vector<512x64xf32>
    %38 = arith.addf %33, %37 : vector<512x64xf32>
    %c0_53 = arith.constant 0 : index
    %c0_54 = arith.constant 0 : index
    %c2_55 = arith.constant 2 : index
    %c2_56 = arith.constant 2 : index
    %c0_57 = arith.constant 0 : index
    %39 = vector.load %arg1[%c0_53, %c0_54, %c2_55, %c2_56, %c0_57] : memref<2x4x10x10x64xf32, #tpu.memory_space<vmem>>, vector<2x4x8x8x64xf32>
    %40 = vector.shape_cast %39 : vector<2x4x8x8x64xf32> to vector<512x64xf32>
    %c512 = arith.constant 512 : index
    %c0_58 = arith.constant 0 : index
    %41 = vector.load %arg2[%c512, %c0_58] : memref<576x64xf32, #tpu.memory_space<vmem>>, vector<64x64xf32>
    %cst_59 = arith.constant dense<0.000000e+00> : vector<512x64xf32>
    %42 = tpu.matmul %40, %41, %cst_59 {dimension_numbers = #tpu.dot_dimension_numbers<[1], [0], [0], [1], [0, 0, 1, 1], [], []>} : vector<512x64xf32>, vector<64x64xf32>, vector<512x64xf32> -> vector<512x64xf32>
    %43 = arith.addf %38, %42 : vector<512x64xf32>
    %c0_60 = arith.constant 0 : index
    %c0_61 = arith.constant 0 : index
    %44 = vector.load %arg3[%c0_60, %c0_61] : memref<1x64xf32, #tpu.memory_space<vmem>>, vector<1x64xf32>
    %45 = vector.broadcast %44 : vector<1x64xf32> to vector<512x64xf32>
    %46 = arith.addf %43, %45 : vector<512x64xf32>
    %cst_62 = arith.constant 0.000000e+00 : f32
    %47 = vector.broadcast %cst_62 : f32 to vector<512x64xf32>
    %48 = arith.maximumf %46, %47 : vector<512x64xf32>
    %cst_63 = arith.constant 0.000000e+00 : f32
    %49 = vector.broadcast %cst_63 : f32 to vector<2x1x4x64x64xf32>
    %c0_64 = arith.constant 0 : index
    %c0_65 = arith.constant 0 : index
    %c0_66 = arith.constant 0 : index
    %c0_67 = arith.constant 0 : index
    %c0_68 = arith.constant 0 : index
    %50 = vector.load %arg7[%c0_64, %c0_65, %c0_66, %c0_67, %c0_68] : memref<2x4x4x64x64xf32, #tpu.memory_space<vmem>>, vector<2x1x4x64x64xf32>
    tpu.vector_store %arg7[%c0_64, %c0_65, %c0_66, %c0_67, %c0_68], %49 {strides = array<i32>} : memref<2x4x4x64x64xf32, #tpu.memory_space<vmem>>, vector<2x1x4x64x64xf32>,
    %c0_69 = arith.constant 0 : index
    %c3 = arith.constant 3 : index
    %c0_70 = arith.constant 0 : index
    %c0_71 = arith.constant 0 : index
    %c0_72 = arith.constant 0 : index
    %51 = vector.load %arg7[%c0_69, %c3, %c0_70, %c0_71, %c0_72] : memref<2x4x4x64x64xf32, #tpu.memory_space<vmem>>, vector<2x1x4x64x64xf32>
    tpu.vector_store %arg7[%c0_69, %c3, %c0_70, %c0_71, %c0_72], %49 {strides = array<i32>} : memref<2x4x4x64x64xf32, #tpu.memory_space<vmem>>, vector<2x1x4x64x64xf32>,
    %cst_73 = arith.constant 0.000000e+00 : f32
    %52 = vector.broadcast %cst_73 : f32 to vector<2x2x1x64x64xf32>
    %c0_74 = arith.constant 0 : index
    %c1_75 = arith.constant 1 : index
    %c0_76 = arith.constant 0 : index
    %c0_77 = arith.constant 0 : index
    %c0_78 = arith.constant 0 : index
    %53 = vector.load %arg7[%c0_74, %c1_75, %c0_76, %c0_77, %c0_78] : memref<2x4x4x64x64xf32, #tpu.memory_space<vmem>>, vector<2x2x1x64x64xf32>
    tpu.vector_store %arg7[%c0_74, %c1_75, %c0_76, %c0_77, %c0_78], %52 {strides = array<i32>} : memref<2x4x4x64x64xf32, #tpu.memory_space<vmem>>, vector<2x2x1x64x64xf32>,
    %c0_79 = arith.constant 0 : index
    %c1_80 = arith.constant 1 : index
    %c3_81 = arith.constant 3 : index
    %c0_82 = arith.constant 0 : index
    %c0_83 = arith.constant 0 : index
    %54 = vector.load %arg7[%c0_79, %c1_80, %c3_81, %c0_82, %c0_83] : memref<2x4x4x64x64xf32, #tpu.memory_space<vmem>>, vector<2x2x1x64x64xf32>
    tpu.vector_store %arg7[%c0_79, %c1_80, %c3_81, %c0_82, %c0_83], %52 {strides = array<i32>} : memref<2x4x4x64x64xf32, #tpu.memory_space<vmem>>, vector<2x2x1x64x64xf32>,
    %55 = vector.shape_cast %48 : vector<512x64xf32> to vector<2x2x2x64x64xf32>
    %c0_84 = arith.constant 0 : index
    %c1_85 = arith.constant 1 : index
    %c1_86 = arith.constant 1 : index
    %c0_87 = arith.constant 0 : index
    %c0_88 = arith.constant 0 : index
    %56 = vector.load %arg7[%c0_84, %c1_85, %c1_86, %c0_87, %c0_88] : memref<2x4x4x64x64xf32, #tpu.memory_space<vmem>>, vector<2x2x2x64x64xf32>
    tpu.vector_store %arg7[%c0_84, %c1_85, %c1_86, %c0_87, %c0_88], %55 {strides = array<i32>} : memref<2x4x4x64x64xf32, #tpu.memory_space<vmem>>, vector<2x2x2x64x64xf32>,
    %c0_89 = arith.constant 0 : index
    %c0_90 = arith.constant 0 : index
    %c0_91 = arith.constant 0 : index
    %c0_92 = arith.constant 0 : index
    %c0_93 = arith.constant 0 : index
    %57 = vector.load %arg7[%c0_89, %c0_90, %c0_91, %c0_92, %c0_93] : memref<2x4x4x64x64xf32, #tpu.memory_space<vmem>>, vector<2x2x2x64x64xf32>
    %58 = vector.shape_cast %57 : vector<2x2x2x64x64xf32> to vector<512x64xf32>
    %c0_94 = arith.constant 0 : index
    %c0_95 = arith.constant 0 : index
    %59 = vector.load %arg4[%c0_94, %c0_95] : memref<576x64xf32, #tpu.memory_space<vmem>>, vector<64x64xf32>
    %cst_96 = arith.constant dense<0.000000e+00> : vector<512x64xf32>
    %60 = tpu.matmul %58, %59, %cst_96 {dimension_numbers = #tpu.dot_dimension_numbers<[1], [0], [0], [1], [0, 0, 1, 1], [], []>} : vector<512x64xf32>, vector<64x64xf32>, vector<512x64xf32> -> vector<512x64xf32>
    %c0_97 = arith.constant 0 : index
    %c0_98 = arith.constant 0 : index
    %c1_99 = arith.constant 1 : index
    %c0_100 = arith.constant 0 : index
    %c0_101 = arith.constant 0 : index
    %61 = vector.load %arg7[%c0_97, %c0_98, %c1_99, %c0_100, %c0_101] : memref<2x4x4x64x64xf32, #tpu.memory_space<vmem>>, vector<2x2x2x64x64xf32>
    %62 = vector.shape_cast %61 : vector<2x2x2x64x64xf32> to vector<512x64xf32>
    %c64_102 = arith.constant 64 : index
    %c0_103 = arith.constant 0 : index
    %63 = vector.load %arg4[%c64_102, %c0_103] : memref<576x64xf32, #tpu.memory_space<vmem>>, vector<64x64xf32>
    %cst_104 = arith.constant dense<0.000000e+00> : vector<512x64xf32>
    %64 = tpu.matmul %62, %63, %cst_104 {dimension_numbers = #tpu.dot_dimension_numbers<[1], [0], [0], [1], [0, 0, 1, 1], [], []>} : vector<512x64xf32>, vector<64x64xf32>, vector<512x64xf32> -> vector<512x64xf32>
    %65 = arith.addf %60, %64 : vector<512x64xf32>
    %c0_105 = arith.constant 0 : index
    %c0_106 = arith.constant 0 : index
    %c2_107 = arith.constant 2 : index
    %c0_108 = arith.constant 0 : index
    %c0_109 = arith.constant 0 : index
    %66 = vector.load %arg7[%c0_105, %c0_106, %c2_107, %c0_108, %c0_109] : memref<2x4x4x64x64xf32, #tpu.memory_space<vmem>>, vector<2x2x2x64x64xf32>
    %67 = vector.shape_cast %66 : vector<2x2x2x64x64xf32> to vector<512x64xf32>
    %c128_110 = arith.constant 128 : index
    %c0_111 = arith.constant 0 : index
    %68 = vector.load %arg4[%c128_110, %c0_111] : memref<576x64xf32, #tpu.memory_space<vmem>>, vector<64x64xf32>
    %cst_112 = arith.constant dense<0.000000e+00> : vector<512x64xf32>
    %69 = tpu.matmul %67, %68, %cst_112 {dimension_numbers = #tpu.dot_dimension_numbers<[1], [0], [0], [1], [0, 0, 1, 1], [], []>} : vector<512x64xf32>, vector<64x64xf32>, vector<512x64xf32> -> vector<512x64xf32>
    %70 = arith.addf %65, %69 : vector<512x64xf32>
    %c0_113 = arith.constant 0 : index
    %c1_114 = arith.constant 1 : index
    %c0_115 = arith.constant 0 : index
    %c0_116 = arith.constant 0 : index
    %c0_117 = arith.constant 0 : index
    %71 = vector.load %arg7[%c0_113, %c1_114, %c0_115, %c0_116, %c0_117] : memref<2x4x4x64x64xf32, #tpu.memory_space<vmem>>, vector<2x2x2x64x64xf32>
    %72 = vector.shape_cast %71 : vector<2x2x2x64x64xf32> to vector<512x64xf32>
    %c192_118 = arith.constant 192 : index
    %c0_119 = arith.constant 0 : index
    %73 = vector.load %arg4[%c192_118, %c0_119] : memref<576x64xf32, #tpu.memory_space<vmem>>, vector<64x64xf32>
    %cst_120 = arith.constant dense<0.000000e+00> : vector<512x64xf32>
    %74 = tpu.matmul %72, %73, %cst_120 {dimension_numbers = #tpu.dot_dimension_numbers<[1], [0], [0], [1], [0, 0, 1, 1], [], []>} : vector<512x64xf32>, vector<64x64xf32>, vector<512x64xf32> -> vector<512x64xf32>
    %75 = arith.addf %70, %74 : vector<512x64xf32>
    %c0_121 = arith.constant 0 : index
    %c1_122 = arith.constant 1 : index
    %c1_123 = arith.constant 1 : index
    %c0_124 = arith.constant 0 : index
    %c0_125 = arith.constant 0 : index
    %76 = vector.load %arg7[%c0_121, %c1_122, %c1_123, %c0_124, %c0_125] : memref<2x4x4x64x64xf32, #tpu.memory_space<vmem>>, vector<2x2x2x64x64xf32>
    %77 = vector.shape_cast %76 : vector<2x2x2x64x64xf32> to vector<512x64xf32>
    %c256_126 = arith.constant 256 : index
    %c0_127 = arith.constant 0 : index
    %78 = vector.load %arg4[%c256_126, %c0_127] : memref<576x64xf32, #tpu.memory_space<vmem>>, vector<64x64xf32>
    %cst_128 = arith.constant dense<0.000000e+00> : vector<512x64xf32>
    %79 = tpu.matmul %77, %78, %cst_128 {dimension_numbers = #tpu.dot_dimension_numbers<[1], [0], [0], [1], [0, 0, 1, 1], [], []>} : vector<512x64xf32>, vector<64x64xf32>, vector<512x64xf32> -> vector<512x64xf32>
    %80 = arith.addf %75, %79 : vector<512x64xf32>
    %c0_129 = arith.constant 0 : index
    %c1_130 = arith.constant 1 : index
    %c2_131 = arith.constant 2 : index
    %c0_132 = arith.constant 0 : index
    %c0_133 = arith.constant 0 : index
    %81 = vector.load %arg7[%c0_129, %c1_130, %c2_131, %c0_132, %c0_133] : memref<2x4x4x64x64xf32, #tpu.memory_space<vmem>>, vector<2x2x2x64x64xf32>
    %82 = vector.shape_cast %81 : vector<2x2x2x64x64xf32> to vector<512x64xf32>
    %c320_134 = arith.constant 320 : index
    %c0_135 = arith.constant 0 : index
    %83 = vector.load %arg4[%c320_134, %c0_135] : memref<576x64xf32, #tpu.memory_space<vmem>>, vector<64x64xf32>
    %cst_136 = arith.constant dense<0.000000e+00> : vector<512x64xf32>
    %84 = tpu.matmul %82, %83, %cst_136 {dimension_numbers = #tpu.dot_dimension_numbers<[1], [0], [0], [1], [0, 0, 1, 1], [], []>} : vector<512x64xf32>, vector<64x64xf32>, vector<512x64xf32> -> vector<512x64xf32>
    %85 = arith.addf %80, %84 : vector<512x64xf32>
    %c0_137 = arith.constant 0 : index
    %c2_138 = arith.constant 2 : index
    %c0_139 = arith.constant 0 : index
    %c0_140 = arith.constant 0 : index
    %c0_141 = arith.constant 0 : index
    %86 = vector.load %arg7[%c0_137, %c2_138, %c0_139, %c0_140, %c0_141] : memref<2x4x4x64x64xf32, #tpu.memory_space<vmem>>, vector<2x2x2x64x64xf32>
    %87 = vector.shape_cast %86 : vector<2x2x2x64x64xf32> to vector<512x64xf32>
    %c384_142 = arith.constant 384 : index
    %c0_143 = arith.constant 0 : index
    %88 = vector.load %arg4[%c384_142, %c0_143] : memref<576x64xf32, #tpu.memory_space<vmem>>, vector<64x64xf32>
    %cst_144 = arith.constant dense<0.000000e+00> : vector<512x64xf32>
    %89 = tpu.matmul %87, %88, %cst_144 {dimension_numbers = #tpu.dot_dimension_numbers<[1], [0], [0], [1], [0, 0, 1, 1], [], []>} : vector<512x64xf32>, vector<64x64xf32>, vector<512x64xf32> -> vector<512x64xf32>
    %90 = arith.addf %85, %89 : vector<512x64xf32>
    %c0_145 = arith.constant 0 : index
    %c2_146 = arith.constant 2 : index
    %c1_147 = arith.constant 1 : index
    %c0_148 = arith.constant 0 : index
    %c0_149 = arith.constant 0 : index
    %91 = vector.load %arg7[%c0_145, %c2_146, %c1_147, %c0_148, %c0_149] : memref<2x4x4x64x64xf32, #tpu.memory_space<vmem>>, vector<2x2x2x64x64xf32>
    %92 = vector.shape_cast %91 : vector<2x2x2x64x64xf32> to vector<512x64xf32>
    %c448_150 = arith.constant 448 : index
    %c0_151 = arith.constant 0 : index
    %93 = vector.load %arg4[%c448_150, %c0_151] : memref<576x64xf32, #tpu.memory_space<vmem>>, vector<64x64xf32>
    %cst_152 = arith.constant dense<0.000000e+00> : vector<512x64xf32>
    %94 = tpu.matmul %92, %93, %cst_152 {dimension_numbers = #tpu.dot_dimension_numbers<[1], [0], [0], [1], [0, 0, 1, 1], [], []>} : vector<512x64xf32>, vector<64x64xf32>, vector<512x64xf32> -> vector<512x64xf32>
    %95 = arith.addf %90, %94 : vector<512x64xf32>
    %c0_153 = arith.constant 0 : index
    %c2_154 = arith.constant 2 : index
    %c2_155 = arith.constant 2 : index
    %c0_156 = arith.constant 0 : index
    %c0_157 = arith.constant 0 : index
    %96 = vector.load %arg7[%c0_153, %c2_154, %c2_155, %c0_156, %c0_157] : memref<2x4x4x64x64xf32, #tpu.memory_space<vmem>>, vector<2x2x2x64x64xf32>
    %97 = vector.shape_cast %96 : vector<2x2x2x64x64xf32> to vector<512x64xf32>
    %c512_158 = arith.constant 512 : index
    %c0_159 = arith.constant 0 : index
    %98 = vector.load %arg4[%c512_158, %c0_159] : memref<576x64xf32, #tpu.memory_space<vmem>>, vector<64x64xf32>
    %cst_160 = arith.constant dense<0.000000e+00> : vector<512x64xf32>
    %99 = tpu.matmul %97, %98, %cst_160 {dimension_numbers = #tpu.dot_dimension_numbers<[1], [0], [0], [1], [0, 0, 1, 1], [], []>} : vector<512x64xf32>, vector<64x64xf32>, vector<512x64xf32> -> vector<512x64xf32>
    %100 = arith.addf %95, %99 : vector<512x64xf32>
    %c0_161 = arith.constant 0 : index
    %c0_162 = arith.constant 0 : index
    %101 = vector.load %arg5[%c0_161, %c0_162] : memref<1x64xf32, #tpu.memory_space<vmem>>, vector<1x64xf32>
    %102 = vector.broadcast %101 : vector<1x64xf32> to vector<512x64xf32>
    %103 = arith.addf %100, %102 : vector<512x64xf32>
    %cst_163 = arith.constant 0.000000e+00 : f32
    %104 = vector.broadcast %cst_163 : f32 to vector<512x64xf32>
    %105 = arith.maximumf %103, %104 : vector<512x64xf32>
    %c0_164 = arith.constant 0 : index
    %c0_165 = arith.constant 0 : index
    %106 = vector.load %arg6[%c0_164, %c0_165] : memref<512x64xf32, #tpu.memory_space<vmem>>, vector<512x64xf32>
    tpu.vector_store %arg6[%c0_164, %c0_165], %105 {strides = array<i32>} : memref<512x64xf32, #tpu.memory_space<vmem>>, vector<512x64xf32>,
    return
  }
  func.func @transform_0(%arg0: i32) -> (i32, i32, i32, i32, i32) {
    %c0_i32 = arith.constant 0 : i32
    %c0_i32_0 = arith.constant 0 : i32
    %c0_i32_1 = arith.constant 0 : i32
    %c0_i32_2 = arith.constant 0 : i32
    %c0_i32_3 = arith.constant 0 : i32
    return %arg0, %c0_i32, %c0_i32_0, %c0_i32_1, %c0_i32_2 : i32, i32, i32, i32, i32
  }
  func.func @transform_1(%arg0: i32) -> (i32, i32) {
    %c0_i32 = arith.constant 0 : i32
    %c0_i32_0 = arith.constant 0 : i32
    %c0_i32_1 = arith.constant 0 : i32
    return %c0_i32, %c0_i32_0 : i32, i32
  }
  func.func @transform_2(%arg0: i32) -> (i32, i32) {
    %c0_i32 = arith.constant 0 : i32
    %c0_i32_0 = arith.constant 0 : i32
    %c0_i32_1 = arith.constant 0 : i32
    return %c0_i32, %c0_i32_0 : i32, i32
  }
  func.func @transform_3(%arg0: i32) -> (i32, i32) {
    %c0_i32 = arith.constant 0 : i32
    %c0_i32_0 = arith.constant 0 : i32
    %c0_i32_1 = arith.constant 0 : i32
    return %c0_i32, %c0_i32_0 : i32, i32
  }
  func.func @transform_4(%arg0: i32) -> (i32, i32) {
    %c0_i32 = arith.constant 0 : i32
    %c0_i32_0 = arith.constant 0 : i32
    %c0_i32_1 = arith.constant 0 : i32
    return %c0_i32, %c0_i32_0 : i32, i32
  }
  func.func @transform_5(%arg0: i32) -> (i32, i32) {
    %c0_i32 = arith.constant 0 : i32
    %c0_i32_0 = arith.constant 0 : i32
    return %arg0, %c0_i32 : i32, i32
  }
}

</mosaic_0001>

<llo_original>
// kernel: alt_filter_forward.1
$region0: #{alt_filter_forward.1}
  #allocation0 [shape = 'u32[]', space=smem, size = 0x4, offset = 0x4, fixed_abs, tag = 'smem constant byte address 0x4 - core index']
  #allocation1 [shape = 'u32[144,128]{1,0:T(1,128)}', space=vmem, size = 0x12000, scoped, tag = 'internal scratch']
  #allocation2 [shape = 'f32[2,4,4,64,64]{4,3,2,1,0:T(8,128)}', space=vmem, size = 0x100000, scoped, tag = 'scratch operand']
  %s0 = inlined_call_operand.vmem [shape: f32[2,4,10,10,64], index: 0, kind: input, shape index: {}]
  %s1 = inlined_call_operand.vmem [shape: f32[576,64], index: 1, kind: input, shape index: {}]
  %s2 = inlined_call_operand.vmem [shape: f32[1,64], index: 2, kind: input, shape index: {}]
  %s3 = inlined_call_operand.vmem [shape: f32[576,64], index: 3, kind: input, shape index: {}]
  %s4 = inlined_call_operand.vmem [shape: f32[1,64], index: 4, kind: input, shape index: {}]
  %s5 = inlined_call_operand.hbm [shape: f32[512,64], index: 5, kind: output, shape index: {}]
  %s6 = sld [smem:[#allocation0]]
  $region30: #{alt_filter_forward.1} parent=0
    _
  %s8 = ssub.s32 1, %s6
  %s9 = scalar_select 0, %s8, %s6
  $region1: #{alt_filter_forward.1} parent=0
    #allocation3 [shape = 'u8[262144]{0}', space=vmem, size = 0x40000, scoped, tag = 'output window, operand 0, single buffered']
    #allocation4 [shape = 's32[1]{0}', space=sflag, size = 0x4, scoped, tag = 'scoped memory for alt_filter_forward.1']
    %10 = vsyncpa [#allocation4], 0
    // Predicated region
    $region2: #{alt_filter_forward.1} parent=1 // pred_check
      _
    $region3: #{alt_filter_forward.1} parent=1 // pred_check_branch
      %12 = sbr.rel (0) target = $region5
    $region4: #{alt_filter_forward.1} parent=1 // pred_region
      _
    $region5: #{alt_filter_forward.1} parent=1 // pred_fallthru
      _
    // Predicated region
    $region6: #{alt_filter_forward.1} parent=1 // pred_check
      _
    $region7: #{alt_filter_forward.1} parent=1 // pred_check_branch
      %14 = sbr.rel (0) target = $region9
    $region8: #{alt_filter_forward.1} parent=1 // pred_region
      _
    $region9: #{alt_filter_forward.1} parent=1 // pred_fallthru
      _
    // Predicated region
    $region10: #{alt_filter_forward.1} parent=1 // pred_check
      _
    $region11: #{alt_filter_forward.1} parent=1 // pred_check_branch
      %16 = sbr.rel (0) target = $region13
    $region12: #{alt_filter_forward.1} parent=1 // pred_region
      _
    $region13: #{alt_filter_forward.1} parent=1 // pred_fallthru
      _
    // Predicated region
    $region14: #{alt_filter_forward.1} parent=1 // pred_check
      _
    $region15: #{alt_filter_forward.1} parent=1 // pred_check_branch
      %18 = sbr.rel (0) target = $region17
    $region16: #{alt_filter_forward.1} parent=1 // pred_region
      _
    $region17: #{alt_filter_forward.1} parent=1 // pred_fallthru
      _
    // Predicated region
    $region18: #{alt_filter_forward.1} parent=1 // pred_check
      _
    $region19: #{alt_filter_forward.1} parent=1 // pred_check_branch
      %20 = sbr.rel (0) target = $region21
    $region20: #{alt_filter_forward.1} parent=1 // pred_region
      _
    $region21: #{alt_filter_forward.1} parent=1 // pred_fallthru
      _
    %v21 = vld [vmem:[%s0] sm:$0xff]
    %v22 = vld [vmem:[%s0 + $0x10] sm:$0xff]
    %v23 = vld [vmem:[%s0 + $0x20] sm:$0xff]
    %v24 = vld [vmem:[%s0 + $0x30] sm:$0xff]
    %v25 = vld [vmem:[%s0 + $0x40] sm:$0xff]
    %v26 = vld [vmem:[%s0 + $0x50] sm:$0xff]
    %v27 = vld [vmem:[%s0 + $0x60] sm:$0xff]
    %v28 = vld [vmem:[%s0 + $0x70] sm:$0xff]
    %v29 = vld [vmem:[%s0 + $0xa0] sm:$0xff]
    %v30 = vld [vmem:[%s0 + $0xb0] sm:$0xff]
    %v31 = vld [vmem:[%s0 + $0xc0] sm:$0xff]
    %v32 = vld [vmem:[%s0 + $0xd0] sm:$0xff]
    %v33 = vld [vmem:[%s0 + $0xe0] sm:$0xff]
    %v34 = vld [vmem:[%s0 + $0xf0] sm:$0xff]
    %v35 = vld [vmem:[%s0 + $0x100] sm:$0xff]
    %v36 = vld [vmem:[%s0 + $0x110] sm:$0xff]
    %v37 = vld [vmem:[%s0 + $0x140] sm:$0xff]
    %v38 = vld [vmem:[%s0 + $0x150] sm:$0xff]
    %v39 = vld [vmem:[%s0 + $0x160] sm:$0xff]
    %v40 = vld [vmem:[%s0 + $0x170] sm:$0xff]
    %v41 = vld [vmem:[%s0 + $0x180] sm:$0xff]
    %v42 = vld [vmem:[%s0 + $0x190] sm:$0xff]
    %v43 = vld [vmem:[%s0 + $0x1a0] sm:$0xff]
    %v44 = vld [vmem:[%s0 + $0x1b0] sm:$0xff]
    %v45 = vld [vmem:[%s0 + $0x1e0] sm:$0xff]
    %v46 = vld [vmem:[%s0 + $0x1f0] sm:$0xff]
    %v47 = vld [vmem:[%s0 + $0x200] sm:$0xff]
    %v48 = vld [vmem:[%s0 + $0x210] sm:$0xff]
    %v49 = vld [vmem:[%s0 + $0x220] sm:$0xff]
    %v50 = vld [vmem:[%s0 + $0x230] sm:$0xff]
    %v51 = vld [vmem:[%s0 + $0x240] sm:$0xff]
    %v52 = vld [vmem:[%s0 + $0x250] sm:$0xff]
    %v53 = vld [vmem:[%s0 + $0x280] sm:$0xff]
    %v54 = vld [vmem:[%s0 + $0x290] sm:$0xff]
    %v55 = vld [vmem:[%s0 + $0x2a0] sm:$0xff]
    %v56 = vld [vmem:[%s0 + $0x2b0] sm:$0xff]
    %v57 = vld [vmem:[%s0 + $0x2c0] sm:$0xff]
    %v58 = vld [vmem:[%s0 + $0x2d0] sm:$0xff]
    %v59 = vld [vmem:[%s0 + $0x2e0] sm:$0xff]
    %v60 = vld [vmem:[%s0 + $0x2f0] sm:$0xff]
    %v61 = vld [vmem:[%s0 + $0x320] sm:$0xff]
    %v62 = vld [vmem:[%s0 + $0x330] sm:$0xff]
    %v63 = vld [vmem:[%s0 + $0x340] sm:$0xff]
    %v64 = vld [vmem:[%s0 + $0x350] sm:$0xff]
    %v65 = vld [vmem:[%s0 + $0x360] sm:$0xff]
    %v66 = vld [vmem:[%s0 + $0x370] sm:$0xff]
    %v67 = vld [vmem:[%s0 + $0x380] sm:$0xff]
    %v68 = vld [vmem:[%s0 + $0x390] sm:$0xff]
    %v69 = vld [vmem:[%s0 + $0x3c0] sm:$0xff]
    %v70 = vld [vmem:[%s0 + $0x3d0] sm:$0xff]
    %v71 = vld [vmem:[%s0 + $0x3e0] sm:$0xff]
    %v72 = vld [vmem:[%s0 + $0x3f0] sm:$0xff]
    %v73 = vld [vmem:[%s0 + $0x400] sm:$0xff]
    %v74 = vld [vmem:[%s0 + $0x410] sm:$0xff]
    %v75 = vld [vmem:[%s0 + $0x420] sm:$0xff]
    %v76 = vld [vmem:[%s0 + $0x430] sm:$0xff]
    %v77 = vld [vmem:[%s0 + $0x460] sm:$0xff]
    %v78 = vld [vmem:[%s0 + $0x470] sm:$0xff]
    %v79 = vld [vmem:[%s0 + $0x480] sm:$0xff]
    %v80 = vld [vmem:[%s0 + $0x490] sm:$0xff]
    %v81 = vld [vmem:[%s0 + $0x4a0] sm:$0xff]
    %v82 = vld [vmem:[%s0 + $0x4b0] sm:$0xff]
    %v83 = vld [vmem:[%s0 + $0x4c0] sm:$0xff]
    %v84 = vld [vmem:[%s0 + $0x4d0] sm:$0xff]
    %v85 = vld [vmem:[%s1] sm:$0xff]
    %v86 = vld [vmem:[%s1 + $0x8] sm:$0xff]
    %v87 = vld [vmem:[%s1 + $0x10] sm:$0xff]
    %v88 = vld [vmem:[%s1 + $0x18] sm:$0xff]
    %v89 = vld [vmem:[%s1 + $0x20] sm:$0xff]
    %v90 = vld [vmem:[%s1 + $0x28] sm:$0xff]
    %v91 = vld [vmem:[%s1 + $0x30] sm:$0xff]
    %v92 = vld [vmem:[%s1 + $0x38] sm:$0xff]
    %v93 = vld [vmem:[%s0 + $0x1] sm:$0xff]
    %v94 = vld [vmem:[%s0 + $0x11] sm:$0xff]
    %v95 = vld [vmem:[%s0 + $0x21] sm:$0xff]
    %v96 = vld [vmem:[%s0 + $0x31] sm:$0xff]
    %v97 = vld [vmem:[%s0 + $0x41] sm:$0xff]
    %v98 = vld [vmem:[%s0 + $0x51] sm:$0xff]
    %v99 = vld [vmem:[%s0 + $0x61] sm:$0xff]
    %v100 = vld [vmem:[%s0 + $0x71] sm:$0xff]
    %v101 = vld [vmem:[%s0 + $0xa1] sm:$0xff]
    %v102 = vld [vmem:[%s0 + $0xb1] sm:$0xff]
    %v103 = vld [vmem:[%s0 + $0xc1] sm:$0xff]
    %v104 = vld [vmem:[%s0 + $0xd1] sm:$0xff]
    %v105 = vld [vmem:[%s0 + $0xe1] sm:$0xff]
    %v106 = vld [vmem:[%s0 + $0xf1] sm:$0xff]
    %v107 = vld [vmem:[%s0 + $0x101] sm:$0xff]
    %v108 = vld [vmem:[%s0 + $0x111] sm:$0xff]
    %v109 = vld [vmem:[%s0 + $0x141] sm:$0xff]
    %v110 = vld [vmem:[%s0 + $0x151] sm:$0xff]
    %v111 = vld [vmem:[%s0 + $0x161] sm:$0xff]
    %v112 = vld [vmem:[%s0 + $0x171] sm:$0xff]
    %v113 = vld [vmem:[%s0 + $0x181] sm:$0xff]
    %v114 = vld [vmem:[%s0 + $0x191] sm:$0xff]
    %v115 = vld [vmem:[%s0 + $0x1a1] sm:$0xff]
    %v116 = vld [vmem:[%s0 + $0x1b1] sm:$0xff]
    %v117 = vld [vmem:[%s0 + $0x1e1] sm:$0xff]
    %v118 = vld [vmem:[%s0 + $0x1f1] sm:$0xff]
    %v119 = vld [vmem:[%s0 + $0x201] sm:$0xff]
    %v120 = vld [vmem:[%s0 + $0x211] sm:$0xff]
    %v121 = vld [vmem:[%s0 + $0x221] sm:$0xff]
    %v122 = vld [vmem:[%s0 + $0x231] sm:$0xff]
    %v123 = vld [vmem:[%s0 + $0x241] sm:$0xff]
    %v124 = vld [vmem:[%s0 + $0x251] sm:$0xff]
    %v125 = vld [vmem:[%s0 + $0x281] sm:$0xff]
    %v126 = vld [vmem:[%s0 + $0x291] sm:$0xff]
    %v127 = vld [vmem:[%s0 + $0x2a1] sm:$0xff]
    %v128 = vld [vmem:[%s0 + $0x2b1] sm:$0xff]
    %v129 = vld [vmem:[%s0 + $0x2c1] sm:$0xff]
    %v130 = vld [vmem:[%s0 + $0x2d1] sm:$0xff]
    %v131 = vld [vmem:[%s0 + $0x2e1] sm:$0xff]
    %v132 = vld [vmem:[%s0 + $0x2f1] sm:$0xff]
    %v133 = vld [vmem:[%s0 + $0x321] sm:$0xff]
    %v134 = vld [vmem:[%s0 + $0x331] sm:$0xff]
    %v135 = vld [vmem:[%s0 + $0x341] sm:$0xff]
    %v136 = vld [vmem:[%s0 + $0x351] sm:$0xff]
    %v137 = vld [vmem:[%s0 + $0x361] sm:$0xff]
    %v138 = vld [vmem:[%s0 + $0x371] sm:$0xff]
    %v139 = vld [vmem:[%s0 + $0x381] sm:$0xff]
    %v140 = vld [vmem:[%s0 + $0x391] sm:$0xff]
    %v141 = vld [vmem:[%s0 + $0x3c1] sm:$0xff]
    %v142 = vld [vmem:[%s0 + $0x3d1] sm:$0xff]
    %v143 = vld [vmem:[%s0 + $0x3e1] sm:$0xff]
    %v144 = vld [vmem:[%s0 + $0x3f1] sm:$0xff]
    %v145 = vld [vmem:[%s0 + $0x401] sm:$0xff]
    %v146 = vld [vmem:[%s0 + $0x411] sm:$0xff]
    %v147 = vld [vmem:[%s0 + $0x421] sm:$0xff]
    %v148 = vld [vmem:[%s0 + $0x431] sm:$0xff]
    %v149 = vld [vmem:[%s0 + $0x461] sm:$0xff]
    %v150 = vld [vmem:[%s0 + $0x471] sm:$0xff]
    %v151 = vld [vmem:[%s0 + $0x481] sm:$0xff]
    %v152 = vld [vmem:[%s0 + $0x491] sm:$0xff]
    %v153 = vld [vmem:[%s0 + $0x4a1] sm:$0xff]
    %v154 = vld [vmem:[%s0 + $0x4b1] sm:$0xff]
    %v155 = vld [vmem:[%s0 + $0x4c1] sm:$0xff]
    %v156 = vld [vmem:[%s0 + $0x4d1] sm:$0xff]
    %v157 = vld [vmem:[%s1 + $0x40] sm:$0xff]
    %v158 = vld [vmem:[%s1 + $0x48] sm:$0xff]
    %v159 = vld [vmem:[%s1 + $0x50] sm:$0xff]
    %v160 = vld [vmem:[%s1 + $0x58] sm:$0xff]
    %v161 = vld [vmem:[%s1 + $0x60] sm:$0xff]
    %v162 = vld [vmem:[%s1 + $0x68] sm:$0xff]
    %v163 = vld [vmem:[%s1 + $0x70] sm:$0xff]
    %v164 = vld [vmem:[%s1 + $0x78] sm:$0xff]
    %vm165 = vcmask 523264
    %v167 = vsel %vm165, %v93, 0
    %v170 = vsel %vm165, %v94, 0
    %v173 = vsel %vm165, %v95, 0
    %v176 = vsel %vm165, %v96, 0
    %v179 = vsel %vm165, %v97, 0
    %v182 = vsel %vm165, %v98, 0
    %v185 = vsel %vm165, %v99, 0
    %v188 = vsel %vm165, %v100, 0
    %v191 = vsel %vm165, %v101, 0
    %v194 = vsel %vm165, %v102, 0
    %v197 = vsel %vm165, %v103, 0
    %v200 = vsel %vm165, %v104, 0
    %v203 = vsel %vm165, %v105, 0
    %v206 = vsel %vm165, %v106, 0
    %v209 = vsel %vm165, %v107, 0
    %v212 = vsel %vm165, %v108, 0
    %v215 = vsel %vm165, %v109, 0
    %v218 = vsel %vm165, %v110, 0
    %v221 = vsel %vm165, %v111, 0
    %v224 = vsel %vm165, %v112, 0
    %v227 = vsel %vm165, %v113, 0
    %v230 = vsel %vm165, %v114, 0
    %v233 = vsel %vm165, %v115, 0
    %v236 = vsel %vm165, %v116, 0
    %v239 = vsel %vm165, %v117, 0
    %v242 = vsel %vm165, %v118, 0
    %v245 = vsel %vm165, %v119, 0
    %v248 = vsel %vm165, %v120, 0
    %v251 = vsel %vm165, %v121, 0
    %v254 = vsel %vm165, %v122, 0
    %v257 = vsel %vm165, %v123, 0
    %v260 = vsel %vm165, %v124, 0
    %v263 = vsel %vm165, %v125, 0
    %v266 = vsel %vm165, %v126, 0
    %v269 = vsel %vm165, %v127, 0
    %v272 = vsel %vm165, %v128, 0
    %v275 = vsel %vm165, %v129, 0
    %v278 = vsel %vm165, %v130, 0
    %v281 = vsel %vm165, %v131, 0
    %v284 = vsel %vm165, %v132, 0
    %v287 = vsel %vm165, %v133, 0
    %v290 = vsel %vm165, %v134, 0
    %v293 = vsel %vm165, %v135, 0
    %v296 = vsel %vm165, %v136, 0
    %v299 = vsel %vm165, %v137, 0
    %v302 = vsel %vm165, %v138, 0
    %v305 = vsel %vm165, %v139, 0
    %v308 = vsel %vm165, %v140, 0
    %v311 = vsel %vm165, %v141, 0
    %v314 = vsel %vm165, %v142, 0
    %v317 = vsel %vm165, %v143, 0
    %v320 = vsel %vm165, %v144, 0
    %v323 = vsel %vm165, %v145, 0
    %v326 = vsel %vm165, %v146, 0
    %v329 = vsel %vm165, %v147, 0
    %v332 = vsel %vm165, %v148, 0
    %v335 = vsel %vm165, %v149, 0
    %v338 = vsel %vm165, %v150, 0
    %v341 = vsel %vm165, %v151, 0
    %v344 = vsel %vm165, %v152, 0
    %v347 = vsel %vm165, %v153, 0
    %v350 = vsel %vm165, %v154, 0
    %v353 = vsel %vm165, %v155, 0
    %v356 = vsel %vm165, %v156, 0
    %358 = vmatprep.subr.mxu0 0.0
    %359 = vmatpush1.msra.mxu0 %v157
    %360 = vmatprep.subr.mxu0 0.0
    %361 = vmatpush1.msra.mxu0 %v158
    %362 = vmatprep.subr.mxu0 0.0
    %363 = vmatpush1.msra.mxu0 %v159
    %364 = vmatprep.subr.mxu0 0.0
    %365 = vmatpush1.msra.mxu0 %v160
    %366 = vmatprep.subr.mxu0 0.0
    %367 = vmatpush1.msra.mxu0 %v161
    %368 = vmatprep.subr.mxu0 0.0
    %369 = vmatpush1.msra.mxu0 %v162
    %370 = vmatprep.subr.mxu0 0.0
    %371 = vmatpush1.msra.mxu0 %v163
    %372 = vmatprep.subr.mxu0 0.0
    %373 = vmatpush1.msra.mxu0 %v164
    %374 = vmatprep.subr.mxu0 0.0
    %375 = vmatpush1.msra.mxu0 0.0
    %376 = vmatprep.subr.mxu0 0.0
    %377 = vmatpush1.msra.mxu0 0.0
    %378 = vmatprep.subr.mxu0 0.0
    %379 = vmatpush1.msra.mxu0 0.0
    %380 = vmatprep.subr.mxu0 0.0
    %381 = vmatpush1.msra.mxu0 0.0
    %382 = vmatprep.subr.mxu0 0.0
    %383 = vmatpush1.msra.mxu0 0.0
    %384 = vmatprep.subr.mxu0 0.0
    %385 = vmatpush1.msra.mxu0 0.0
    %386 = vmatprep.subr.mxu0 0.0
    %387 = vmatpush1.msra.mxu0 0.0
    %388 = vmatprep.subr.mxu0 0.0
    %389 = vmatpush1.msra.mxu0 0.0
    %390 = vmatprep.subr.mxu0 0.0
    %391 = vmatpush1.msra.mxu0 0.0
    %392 = vmatprep.subr.mxu0 0.0
    %393 = vmatpush1.msra.mxu0 0.0
    %394 = vmatprep.subr.mxu0 0.0
    %395 = vmatpush1.msra.mxu0 0.0
    %396 = vmatprep.subr.mxu0 0.0
    %397 = vmatpush1.msra.mxu0 0.0
    %398 = vmatprep.subr.mxu0 0.0
    %399 = vmatpush1.msra.mxu0 0.0
    %400 = vmatprep.subr.mxu0 0.0
    %401 = vmatpush1.msra.mxu0 0.0
    %402 = vmatprep.subr.mxu0 0.0
    %403 = vmatpush1.msra.mxu0 0.0
    %404 = vmatprep.subr.mxu0 0.0
    %405 = vmatpush1.msra.mxu0 0.0
    %406 = vmatprep.subr.mxu0 0.0
    %407 = vmatpush1.msra.mxu0 0.0
    %408 = vmatprep.subr.mxu0 0.0
    %409 = vmatpush1.msra.mxu0 0.0
    %410 = vmatprep.subr.mxu0 0.0
    %411 = vmatpush1.msra.mxu0 0.0
    %412 = vmatprep.subr.mxu0 0.0
    %413 = vmatpush1.msra.mxu0 0.0
    %414 = vmatprep.subr.mxu0 0.0
    %415 = vmatpush1.msra.mxu0 0.0
    %416 = vmatprep.subr.mxu0 0.0
    %417 = vmatpush1.msra.mxu0 0.0
    %418 = vmatprep.subr.mxu0 0.0
    %419 = vmatpush1.msra.mxu0 0.0
    %420 = vmatprep.subr.mxu0 0.0
    %421 = vmatpush1.msra.mxu0 0.0
    %422 = vmatprep.mubr.f32.mxu0 0.0
    %423 = vmatmul.mubr.f32.gmra.mrb[0].mxu0 %v167
    %v424 = vpop.f32.mrb[0].mxu0
    %v425 = vadd.f32 0.0, %v424
    %v426 = vpop.f32.mrb[0].mxu0
    %427 = vmatprep.mubr.f32.mxu0 0.0
    %428 = vmatmul.mubr.f32.gmra.mrb[0].mxu0 %v170
    %v429 = vpop.f32.mrb[0].mxu0
    %v430 = vadd.f32 0.0, %v429
    %v431 = vpop.f32.mrb[0].mxu0
    %432 = vmatprep.mubr.f32.mxu0 0.0
    %433 = vmatmul.mubr.f32.gmra.mrb[0].mxu0 %v173
    %v434 = vpop.f32.mrb[0].mxu0
    %v435 = vadd.f32 0.0, %v434
    %v436 = vpop.f32.mrb[0].mxu0
    %437 = vmatprep.mubr.f32.mxu0 0.0
    %438 = vmatmul.mubr.f32.gmra.mrb[0].mxu0 %v176
    %v439 = vpop.f32.mrb[0].mxu0
    %v440 = vadd.f32 0.0, %v439
    %v441 = vpop.f32.mrb[0].mxu0
    %442 = vmatprep.mubr.f32.mxu0 0.0
    %443 = vmatmul.mubr.f32.gmra.mrb[0].mxu0 %v179
    %v444 = vpop.f32.mrb[0].mxu0
    %v445 = vadd.f32 0.0, %v444
    %v446 = vpop.f32.mrb[0].mxu0
    %447 = vmatprep.mubr.f32.mxu0 0.0
    %448 = vmatmul.mubr.f32.gmra.mrb[0].mxu0 %v182
    %v449 = vpop.f32.mrb[0].mxu0
    %v450 = vadd.f32 0.0, %v449
    %v451 = vpop.f32.mrb[0].mxu0
    %452 = vmatprep.mubr.f32.mxu0 0.0
    %453 = vmatmul.mubr.f32.gmra.mrb[0].mxu0 %v185
    %v454 = vpop.f32.mrb[0].mxu0
    %v455 = vadd.f32 0.0, %v454
    %v456 = vpop.f32.mrb[0].mxu0
    %457 = vmatprep.mubr.f32.mxu0 0.0
    %458 = vmatmul.mubr.f32.gmra.mrb[0].mxu0 %v188
    %v459 = vpop.f32.mrb[0].mxu0
    %v460 = vadd.f32 0.0, %v459
    %v461 = vpop.f32.mrb[0].mxu0
    %462 = vmatprep.mubr.f32.mxu0 0.0
    %463 = vmatmul.mubr.f32.gmra.mrb[0].mxu0 %v191
    %v464 = vpop.f32.mrb[0].mxu0
    %v465 = vadd.f32 0.0, %v464
    %v466 = vpop.f32.mrb[0].mxu0
    %467 = vmatprep.mubr.f32.mxu0 0.0
    %468 = vmatmul.mubr.f32.gmra.mrb[0].mxu0 %v194
    %v469 = vpop.f32.mrb[0].mxu0
    %v470 = vadd.f32 0.0, %v469
    %v471 = vpop.f32.mrb[0].mxu0
    %472 = vmatprep.mubr.f32.mxu0 0.0
    %473 = vmatmul.mubr.f32.gmra.mrb[0].mxu0 %v197
    %v474 = vpop.f32.mrb[0].mxu0
    %v475 = vadd.f32 0.0, %v474
    %v476 = vpop.f32.mrb[0].mxu0
    %477 = vmatprep.mubr.f32.mxu0 0.0
    %478 = vmatmul.mubr.f32.gmra.mrb[0].mxu0 %v200
    %v479 = vpop.f32.mrb[0].mxu0
    %v480 = vadd.f32 0.0, %v479
    %v481 = vpop.f32.mrb[0].mxu0
    %482 = vmatprep.mubr.f32.mxu0 0.0
    %483 = vmatmul.mubr.f32.gmra.mrb[0].mxu0 %v203
    %v484 = vpop.f32.mrb[0].mxu0
    %v485 = vadd.f32 0.0, %v484
    %v486 = vpop.f32.mrb[0].mxu0
    %487 = vmatprep.mubr.f32.mxu0 0.0
    %488 = vmatmul.mubr.f32.gmra.mrb[0].mxu0 %v206
    %v489 = vpop.f32.mrb[0].mxu0
    %v490 = vadd.f32 0.0, %v489
    %v491 = vpop.f32.mrb[0].mxu0
    %492 = vmatprep.mubr.f32.mxu0 0.0
    %493 = vmatmul.mubr.f32.gmra.mrb[0].mxu0 %v209
    %v494 = vpop.f32.mrb[0].mxu0
    %v495 = vadd.f32 0.0, %v494
    %v496 = vpop.f32.mrb[0].mxu0
    %497 = vmatprep.mubr.f32.mxu0 0.0
    %498 = vmatmul.mubr.f32.gmra.mrb[0].mxu0 %v212
    %v499 = vpop.f32.mrb[0].mxu0
    %v500 = vadd.f32 0.0, %v499
    %v501 = vpop.f32.mrb[0].mxu0
    %502 = vmatprep.mubr.f32.mxu0 0.0
    %503 = vmatmul.mubr.f32.gmra.mrb[0].mxu0 %v215
    %v504 = vpop.f32.mrb[0].mxu0
    %v505 = vadd.f32 0.0, %v504
    %v506 = vpop.f32.mrb[0].mxu0
    %507 = vmatprep.mubr.f32.mxu0 0.0
    %508 = vmatmul.mubr.f32.gmra.mrb[0].mxu0 %v218
    %v509 = vpop.f32.mrb[0].mxu0
    %v510 = vadd.f32 0.0, %v509
    %v511 = vpop.f32.mrb[0].mxu0
    %512 = vmatprep.mubr.f32.mxu0 0.0
    %513 = vmatmul.mubr.f32.gmra.mrb[0].mxu0 %v221
    %v514 = vpop.f32.mrb[0].mxu0
    %v515 = vadd.f32 0.0, %v514
    %v516 = vpop.f32.mrb[0].mxu0
    %517 = vmatprep.mubr.f32.mxu0 0.0
    %518 = vmatmul.mubr.f32.gmra.mrb[0].mxu0 %v224
    %v519 = vpop.f32.mrb[0].mxu0
    %v520 = vadd.f32 0.0, %v519
    %v521 = vpop.f32.mrb[0].mxu0
    %522 = vmatprep.mubr.f32.mxu0 0.0
    %523 = vmatmul.mubr.f32.gmra.mrb[0].mxu0 %v227
    %v524 = vpop.f32.mrb[0].mxu0
    %v525 = vadd.f32 0.0, %v524
    %v526 = vpop.f32.mrb[0].mxu0
    %527 = vmatprep.mubr.f32.mxu0 0.0
    %528 = vmatmul.mubr.f32.gmra.mrb[0].mxu0 %v230
    %v529 = vpop.f32.mrb[0].mxu0
    %v530 = vadd.f32 0.0, %v529
    %v531 = vpop.f32.mrb[0].mxu0
    %532 = vmatprep.mubr.f32.mxu0 0.0
    %533 = vmatmul.mubr.f32.gmra.mrb[0].mxu0 %v233
    %v534 = vpop.f32.mrb[0].mxu0
    %v535 = vadd.f32 0.0, %v534
    %v536 = vpop.f32.mrb[0].mxu0
    %537 = vmatprep.mubr.f32.mxu0 0.0
    %538 = vmatmul.mubr.f32.gmra.mrb[0].mxu0 %v236
    %v539 = vpop.f32.mrb[0].mxu0
    %v540 = vadd.f32 0.0, %v539
    %v541 = vpop.f32.mrb[0].mxu0
    %542 = vmatprep.mubr.f32.mxu0 0.0
    %543 = vmatmul.mubr.f32.gmra.mrb[0].mxu0 %v239
    %v544 = vpop.f32.mrb[0].mxu0
    %v545 = vadd.f32 0.0, %v544
    %v546 = vpop.f32.mrb[0].mxu0
    %547 = vmatprep.mubr.f32.mxu0 0.0
    %548 = vmatmul.mubr.f32.gmra.mrb[0].mxu0 %v242
    %v549 = vpop.f32.mrb[0].mxu0
    %v550 = vadd.f32 0.0, %v549
    %v551 = vpop.f32.mrb[0].mxu0
    %552 = vmatprep.mubr.f32.mxu0 0.0
    %553 = vmatmul.mubr.f32.gmra.mrb[0].mxu0 %v245
    %v554 = vpop.f32.mrb[0].mxu0
    %v555 = vadd.f32 0.0, %v554
    %v556 = vpop.f32.mrb[0].mxu0
    %557 = vmatprep.mubr.f32.mxu0 0.0
    %558 = vmatmul.mubr.f32.gmra.mrb[0].mxu0 %v248
    %v559 = vpop.f32.mrb[0].mxu0
    %v560 = vadd.f32 0.0, %v559
    %v561 = vpop.f32.mrb[0].mxu0
    %562 = vmatprep.mubr.f32.mxu0 0.0
    %563 = vmatmul.mubr.f32.gmra.mrb[0].mxu0 %v251
    %v564 = vpop.f32.mrb[0].mxu0
    %v565 = vadd.f32 0.0, %v564
    %v566 = vpop.f32.mrb[0].mxu0
    %567 = vmatprep.mubr.f32.mxu0 0.0
    %568 = vmatmul.mubr.f32.gmra.mrb[0].mxu0 %v254
    %v569 = vpop.f32.mrb[0].mxu0
    %v570 = vadd.f32 0.0, %v569
    %v571 = vpop.f32.mrb[0].mxu0
    %572 = vmatprep.mubr.f32.mxu0 0.0
    %573 = vmatmul.mubr.f32.gmra.mrb[0].mxu0 %v257
    %v574 = vpop.f32.mrb[0].mxu0
    %v575 = vadd.f32 0.0, %v574
    %v576 = vpop.f32.mrb[0].mxu0
    %577 = vmatprep.mubr.f32.mxu0 0.0
    %578 = vmatmul.mubr.f32.gmra.mrb[0].mxu0 %v260
    %v579 = vpop.f32.mrb[0].mxu0
    %v580 = vadd.f32 0.0, %v579
    %v581 = vpop.f32.mrb[0].mxu0
    %582 = vmatprep.mubr.f32.mxu0 0.0
    %583 = vmatmul.mubr.f32.gmra.mrb[0].mxu0 %v263
    %v584 = vpop.f32.mrb[0].mxu0
    %v585 = vadd.f32 0.0, %v584
    %v586 = vpop.f32.mrb[0].mxu0
    %587 = vmatprep.mubr.f32.mxu0 0.0
    %588 = vmatmul.mubr.f32.gmra.mrb[0].mxu0 %v266
    %v589 = vpop.f32.mrb[0].mxu0
    %v590 = vadd.f32 0.0, %v589
    %v591 = vpop.f32.mrb[0].mxu0
    %592 = vmatprep.mubr.f32.mxu0 0.0
    %593 = vmatmul.mubr.f32.gmra.mrb[0].mxu0 %v269
    %v594 = vpop.f32.mrb[0].mxu0
    %v595 = vadd.f32 0.0, %v594
    %v596 = vpop.f32.mrb[0].mxu0
    %597 = vmatprep.mubr.f32.mxu0 0.0
    %598 = vmatmul.mubr.f32.gmra.mrb[0].mxu0 %v272
    %v599 = vpop.f32.mrb[0].mxu0
    %v600 = vadd.f32 0.0, %v599
    %v601 = vpop.f32.mrb[0].mxu0
    %602 = vmatprep.mubr.f32.mxu0 0.0
    %603 = vmatmul.mubr.f32.gmra.mrb[0].mxu0 %v275
    %v604 = vpop.f32.mrb[0].mxu0
    %v605 = vadd.f32 0.0, %v604
    %v606 = vpop.f32.mrb[0].mxu0
    %607 = vmatprep.mubr.f32.mxu0 0.0
    %608 = vmatmul.mubr.f32.gmra.mrb[0].mxu0 %v278
    %v609 = vpop.f32.mrb[0].mxu0
    %v610 = vadd.f32 0.0, %v609
    %v611 = vpop.f32.mrb[0].mxu0
    %612 = vmatprep.mubr.f32.mxu0 0.0
    %613 = vmatmul.mubr.f32.gmra.mrb[0].mxu0 %v281
    %v614 = vpop.f32.mrb[0].mxu0
    %v615 = vadd.f32 0.0, %v614
    %v616 = vpop.f32.mrb[0].mxu0
    %617 = vmatprep.mubr.f32.mxu0 0.0
    %618 = vmatmul.mubr.f32.gmra.mrb[0].mxu0 %v284
    %v619 = vpop.f32.mrb[0].mxu0
    %v620 = vadd.f32 0.0, %v619
    %v621 = vpop.f32.mrb[0].mxu0
    %622 = vmatprep.mubr.f32.mxu0 0.0
    %623 = vmatmul.mubr.f32.gmra.mrb[0].mxu0 %v287
    %v624 = vpop.f32.mrb[0].mxu0
    %v625 = vadd.f32 0.0, %v624
    %v626 = vpop.f32.mrb[0].mxu0
    %627 = vmatprep.mubr.f32.mxu0 0.0
    %628 = vmatmul.mubr.f32.gmra.mrb[0].mxu0 %v290
    %v629 = vpop.f32.mrb[0].mxu0
    %v630 = vadd.f32 0.0, %v629
    %v631 = vpop.f32.mrb[0].mxu0
    %632 = vmatprep.mubr.f32.mxu0 0.0
    %633 = vmatmul.mubr.f32.gmra.mrb[0].mxu0 %v293
    %v634 = vpop.f32.mrb[0].mxu0
    %v635 = vadd.f32 0.0, %v634
    %v636 = vpop.f32.mrb[0].mxu0
    %637 = vmatprep.mubr.f32.mxu0 0.0
    %638 = vmatmul.mubr.f32.gmra.mrb[0].mxu0 %v296
    %v639 = vpop.f32.mrb[0].mxu0
    %v640 = vadd.f32 0.0, %v639
    %v641 = vpop.f32.mrb[0].mxu0
    %642 = vmatprep.mubr.f32.mxu0 0.0
    %643 = vmatmul.mubr.f32.gmra.mrb[0].mxu0 %v299
    %v644 = vpop.f32.mrb[0].mxu0
    %v645 = vadd.f32 0.0, %v644
    %v646 = vpop.f32.mrb[0].mxu0
    %647 = vmatprep.mubr.f32.mxu0 0.0
    %648 = vmatmul.mubr.f32.gmra.mrb[0].mxu0 %v302
    %v649 = vpop.f32.mrb[0].mxu0
    %v650 = vadd.f32 0.0, %v649
    %v651 = vpop.f32.mrb[0].mxu0
    %652 = vmatprep.mubr.f32.mxu0 0.0
    %653 = vmatmul.mubr.f32.gmra.mrb[0].mxu0 %v305
    %v654 = vpop.f32.mrb[0].mxu0
    %v655 = vadd.f32 0.0, %v654
    %v656 = vpop.f32.mrb[0].mxu0
    %657 = vmatprep.mubr.f32.mxu0 0.0
    %658 = vmatmul.mubr.f32.gmra.mrb[0].mxu0 %v308
    %v659 = vpop.f32.mrb[0].mxu0
    %v660 = vadd.f32 0.0, %v659
    %v661 = vpop.f32.mrb[0].mxu0
    %662 = vmatprep.mubr.f32.mxu0 0.0
    %663 = vmatmul.mubr.f32.gmra.mrb[0].mxu0 %v311
    %v664 = vpop.f32.mrb[0].mxu0
    %v665 = vadd.f32 0.0, %v664
    %v666 = vpop.f32.mrb[0].mxu0
    %667 = vmatprep.mubr.f32.mxu0 0.0
    %668 = vmatmul.mubr.f32.gmra.mrb[0].mxu0 %v314
    %v669 = vpop.f32.mrb[0].mxu0
    %v670 = vadd.f32 0.0, %v669
    %v671 = vpop.f32.mrb[0].mxu0
    %672 = vmatprep.mubr.f32.mxu0 0.0
    %673 = vmatmul.mubr.f32.gmra.mrb[0].mxu0 %v317
    %v674 = vpop.f32.mrb[0].mxu0
    %v675 = vadd.f32 0.0, %v674
    %v676 = vpop.f32.mrb[0].mxu0
    %677 = vmatprep.mubr.f32.mxu0 0.0
    %678 = vmatmul.mubr.f32.gmra.mrb[0].mxu0 %v320
    %v679 = vpop.f32.mrb[0].mxu0
    %v680 = vadd.f32 0.0, %v679
    %v681 = vpop.f32.mrb[0].mxu0
    %682 = vmatprep.mubr.f32.mxu0 0.0
    %683 = vmatmul.mubr.f32.gmra.mrb[0].mxu0 %v323
    %v684 = vpop.f32.mrb[0].mxu0
    %v685 = vadd.f32 0.0, %v684
    %v686 = vpop.f32.mrb[0].mxu0
    %687 = vmatprep.mubr.f32.mxu0 0.0
    %688 = vmatmul.mubr.f32.gmra.mrb[0].mxu0 %v326
    %v689 = vpop.f32.mrb[0].mxu0
    %v690 = vadd.f32 0.0, %v689
    %v691 = vpop.f32.mrb[0].mxu0
    %692 = vmatprep.mubr.f32.mxu0 0.0
    %693 = vmatmul.mubr.f32.gmra.mrb[0].mxu0 %v329
    %v694 = vpop.f32.mrb[0].mxu0
    %v695 = vadd.f32 0.0, %v694
    %v696 = vpop.f32.mrb[0].mxu0
    %697 = vmatprep.mubr.f32.mxu0 0.0
    %698 = vmatmul.mubr.f32.gmra.mrb[0].mxu0 %v332
    %v699 = vpop.f32.mrb[0].mxu0
    %v700 = vadd.f32 0.0, %v699
    %v701 = vpop.f32.mrb[0].mxu0
    %702 = vmatprep.mubr.f32.mxu0 0.0
    %703 = vmatmul.mubr.f32.gmra.mrb[0].mxu0 %v335
    %v704 = vpop.f32.mrb[0].mxu0
    %v705 = vadd.f32 0.0, %v704
    %v706 = vpop.f32.mrb[0].mxu0
    %707 = vmatprep.mubr.f32.mxu0 0.0
    %708 = vmatmul.mubr.f32.gmra.mrb[0].mxu0 %v338
    %v709 = vpop.f32.mrb[0].mxu0
    %v710 = vadd.f32 0.0, %v709
    %v711 = vpop.f32.mrb[0].mxu0
    %712 = vmatprep.mubr.f32.mxu0 0.0
    %713 = vmatmul.mubr.f32.gmra.mrb[0].mxu0 %v341
    %v714 = vpop.f32.mrb[0].mxu0
    %v715 = vadd.f32 0.0, %v714
    %v716 = vpop.f32.mrb[0].mxu0
    %717 = vmatprep.mubr.f32.mxu0 0.0
    %718 = vmatmul.mubr.f32.gmra.mrb[0].mxu0 %v344
    %v719 = vpop.f32.mrb[0].mxu0
    %v720 = vadd.f32 0.0, %v719
    %v721 = vpop.f32.mrb[0].mxu0
    %722 = vmatprep.mubr.f32.mxu0 0.0
    %723 = vmatmul.mubr.f32.gmra.mrb[0].mxu0 %v347
    %v724 = vpop.f32.mrb[0].mxu0
    %v725 = vadd.f32 0.0, %v724
    %v726 = vpop.f32.mrb[0].mxu0
    %727 = vmatprep.mubr.f32.mxu0 0.0
    %728 = vmatmul.mubr.f32.gmra.mrb[0].mxu0 %v350
    %v729 = vpop.f32.mrb[0].mxu0
    %v730 = vadd.f32 0.0, %v729
    %v731 = vpop.f32.mrb[0].mxu0
    %732 = vmatprep.mubr.f32.mxu0 0.0
    %733 = vmatmul.mubr.f32.gmra.mrb[0].mxu0 %v353
    %v734 = vpop.f32.mrb[0].mxu0
    %v735 = vadd.f32 0.0, %v734
    %v736 = vpop.f32.mrb[0].mxu0
    %737 = vmatprep.mubr.f32.mxu0 0.0
    %738 = vmatmul.mubr.f32.gmra.mrb[0].mxu0 %v356
    %v739 = vpop.f32.mrb[0].mxu0
    %v740 = vadd.f32 0.0, %v739
    %v741 = vpop.f32.mrb[0].mxu0
    %742 = vdwg.mxu0
    %v744 = vsel %vm165, %v21, 0
    %v747 = vsel %vm165, %v22, 0
    %v750 = vsel %vm165, %v23, 0
    %v753 = vsel %vm165, %v24, 0
    %v756 = vsel %vm165, %v25, 0
    %v759 = vsel %vm165, %v26, 0
    %v762 = vsel %vm165, %v27, 0
    %v765 = vsel %vm165, %v28, 0
    %v768 = vsel %vm165, %v29, 0
    %v771 = vsel %vm165, %v30, 0
    %v774 = vsel %vm165, %v31, 0
    %v777 = vsel %vm165, %v32, 0
    %v780 = vsel %vm165, %v33, 0
    %v783 = vsel %vm165, %v34, 0
    %v786 = vsel %vm165, %v35, 0
    %v789 = vsel %vm165, %v36, 0
    %v792 = vsel %vm165, %v37, 0
    %v795 = vsel %vm165, %v38, 0
    %v798 = vsel %vm165, %v39, 0
    %v801 = vsel %vm165, %v40, 0
    %v804 = vsel %vm165, %v41, 0
    %v807 = vsel %vm165, %v42, 0
    %v810 = vsel %vm165, %v43, 0
    %v813 = vsel %vm165, %v44, 0
    %v816 = vsel %vm165, %v45, 0
    %v819 = vsel %vm165, %v46, 0
    %v822 = vsel %vm165, %v47, 0
    %v825 = vsel %vm165, %v48, 0
    %v828 = vsel %vm165, %v49, 0
    %v831 = vsel %vm165, %v50, 0
    %v834 = vsel %vm165, %v51, 0
    %v837 = vsel %vm165, %v52, 0
    %v840 = vsel %vm165, %v53, 0
    %v843 = vsel %vm165, %v54, 0
    %v846 = vsel %vm165, %v55, 0
    %v849 = vsel %vm165, %v56, 0
    %v852 = vsel %vm165, %v57, 0
    %v855 = vsel %vm165, %v58, 0
    %v858 = vsel %vm165, %v59, 0
    %v861 = vsel %vm165, %v60, 0
    %v864 = vsel %vm165, %v61, 0
    %v867 = vsel %vm165, %v62, 0
    %v870 = vsel %vm165, %v63, 0
    %v873 = vsel %vm165, %v64, 0
    %v876 = vsel %vm165, %v65, 0
    %v879 = vsel %vm165, %v66, 0
    %v882 = vsel %vm165, %v67, 0
    %v885 = vsel %vm165, %v68, 0
    %v888 = vsel %vm165, %v69, 0
    %v891 = vsel %vm165, %v70, 0
    %v894 = vsel %vm165, %v71, 0
    %v897 = vsel %vm165, %v72, 0
    %v900 = vsel %vm165, %v73, 0
    %v903 = vsel %vm165, %v74, 0
    %v906 = vsel %vm165, %v75, 0
    %v909 = vsel %vm165, %v76, 0
    %v912 = vsel %vm165, %v77, 0
    %v915 = vsel %vm165, %v78, 0
    %v918 = vsel %vm165, %v79, 0
    %v921 = vsel %vm165, %v80, 0
    %v924 = vsel %vm165, %v81, 0
    %v927 = vsel %vm165, %v82, 0
    %v930 = vsel %vm165, %v83, 0
    %v933 = vsel %vm165, %v84, 0
    %935 = vmatprep.subr.mxu0 0.0
    %936 = vmatpush1.msra.mxu0 %v85
    %937 = vmatprep.subr.mxu0 0.0
    %938 = vmatpush1.msra.mxu0 %v86
    %939 = vmatprep.subr.mxu0 0.0
    %940 = vmatpush1.msra.mxu0 %v87
    %941 = vmatprep.subr.mxu0 0.0
    %942 = vmatpush1.msra.mxu0 %v88
    %943 = vmatprep.subr.mxu0 0.0
    %944 = vmatpush1.msra.mxu0 %v89
    %945 = vmatprep.subr.mxu0 0.0
    %946 = vmatpush1.msra.mxu0 %v90
    %947 = vmatprep.subr.mxu0 0.0
    %948 = vmatpush1.msra.mxu0 %v91
    %949 = vmatprep.subr.mxu0 0.0
    %950 = vmatpush1.msra.mxu0 %v92
    %951 = vmatprep.subr.mxu0 0.0
    %952 = vmatpush1.msra.mxu0 0.0
    %953 = vmatprep.subr.mxu0 0.0
    %954 = vmatpush1.msra.mxu0 0.0
    %955 = vmatprep.subr.mxu0 0.0
    %956 = vmatpush1.msra.mxu0 0.0
    %957 = vmatprep.subr.mxu0 0.0
    %958 = vmatpush1.msra.mxu0 0.0
    %959 = vmatprep.subr.mxu0 0.0
    %960 = vmatpush1.msra.mxu0 0.0
    %961 = vmatprep.subr.mxu0 0.0
    %962 = vmatpush1.msra.mxu0 0.0
    %963 = vmatprep.subr.mxu0 0.0
    %964 = vmatpush1.msra.mxu0 0.0
    %965 = vmatprep.subr.mxu0 0.0
    %966 = vmatpush1.msra.mxu0 0.0
    %967 = vmatprep.subr.mxu0 0.0
    %968 = vmatpush1.msra.mxu0 0.0
    %969 = vmatprep.subr.mxu0 0.0
    %970 = vmatpush1.msra.mxu0 0.0
    %971 = vmatprep.subr.mxu0 0.0
    %972 = vmatpush1.msra.mxu0 0.0
    %973 = vmatprep.subr.mxu0 0.0
    %974 = vmatpush1.msra.mxu0 0.0
    %975 = vmatprep.subr.mxu0 0.0
    %976 = vmatpush1.msra.mxu0 0.0
    %977 = vmatprep.subr.mxu0 0.0
    %978 = vmatpush1.msra.mxu0 0.0
    %979 = vmatprep.subr.mxu0 0.0
    %980 = vmatpush1.msra.mxu0 0.0
    %981 = vmatprep.subr.mxu0 0.0
    %982 = vmatpush1.msra.mxu0 0.0
    %983 = vmatprep.subr.mxu0 0.0
    %984 = vmatpush1.msra.mxu0 0.0
    %985 = vmatprep.subr.mxu0 0.0
    %986 = vmatpush1.msra.mxu0 0.0
    %987 = vmatprep.subr.mxu0 0.0
    %988 = vmatpush1.msra.mxu0 0.0
    %989 = vmatprep.subr.mxu0 0.0
    %990 = vmatpush1.msra.mxu0 0.0
    %991 = vmatprep.subr.mxu0 0.0
    %992 = vmatpush1.msra.mxu0 0.0
    %993 = vmatprep.subr.mxu0 0.0
    %994 = vmatpush1.msra.mxu0 0.0
    %995 = vmatprep.subr.mxu0 0.0
    %996 = vmatpush1.msra.mxu0 0.0
    %997 = vmatprep.subr.mxu0 0.0
    %998 = vmatpush1.msra.mxu0 0.0
    %999 = vmatprep.mubr.f32.mxu0 0.0
    %1000 = vmatmul.mubr.f32.gmra.mrb[0].mxu0 %v744
    %v1001 = vpop.f32.mrb[0].mxu0
    %v1002 = vadd.f32 %v425, %v1001
    %v1003 = vpop.f32.mrb[0].mxu0
    %1004 = vmatprep.mubr.f32.mxu0 0.0
    %1005 = vmatmul.mubr.f32.gmra.mrb[0].mxu0 %v747
    %v1006 = vpop.f32.mrb[0].mxu0
    %v1007 = vadd.f32 %v430, %v1006
    %v1008 = vpop.f32.mrb[0].mxu0
    %1009 = vmatprep.mubr.f32.mxu0 0.0
    %1010 = vmatmul.mubr.f32.gmra.mrb[0].mxu0 %v750
    %v1011 = vpop.f32.mrb[0].mxu0
    %v1012 = vadd.f32 %v435, %v1011
    %v1013 = vpop.f32.mrb[0].mxu0
    %1014 = vmatprep.mubr.f32.mxu0 0.0
    %1015 = vmatmul.mubr.f32.gmra.mrb[0].mxu0 %v753
    %v1016 = vpop.f32.mrb[0].mxu0
    %v1017 = vadd.f32 %v440, %v1016
    %v1018 = vpop.f32.mrb[0].mxu0
    %1019 = vmatprep.mubr.f32.mxu0 0.0
    %1020 = vmatmul.mubr.f32.gmra.mrb[0].mxu0 %v756
    %v1021 = vpop.f32.mrb[0].mxu0
    %v1022 = vadd.f32 %v445, %v1021
    %v1023 = vpop.f32.mrb[0].mxu0
    %1024 = vmatprep.mubr.f32.mxu0 0.0
    %1025 = vmatmul.mubr.f32.gmra.mrb[0].mxu0 %v759
    %v1026 = vpop.f32.mrb[0].mxu0
    %v1027 = vadd.f32 %v450, %v1026
    %v1028 = vpop.f32.mrb[0].mxu0
    %1029 = vmatprep.mubr.f32.mxu0 0.0
    %1030 = vmatmul.mubr.f32.gmra.mrb[0].mxu0 %v762
    %v1031 = vpop.f32.mrb[0].mxu0
    %v1032 = vadd.f32 %v455, %v1031
    %v1033 = vpop.f32.mrb[0].mxu0
    %1034 = vmatprep.mubr.f32.mxu0 0.0
    %1035 = vmatmul.mubr.f32.gmra.mrb[0].mxu0 %v765
    %v1036 = vpop.f32.mrb[0].mxu0
    %v1037 = vadd.f32 %v460, %v1036
    %v1038 = vpop.f32.mrb[0].mxu0
    %1039 = vmatprep.mubr.f32.mxu0 0.0
    %1040 = vmatmul.mubr.f32.gmra.mrb[0].mxu0 %v768
    %v1041 = vpop.f32.mrb[0].mxu0
    %v1042 = vadd.f32 %v465, %v1041
    %v1043 = vpop.f32.mrb[0].mxu0
    %1044 = vmatprep.mubr.f32.mxu0 0.0
    %1045 = vmatmul.mubr.f32.gmra.mrb[0].mxu0 %v771
    %v1046 = vpop.f32.mrb[0].mxu0
    %v1047 = vadd.f32 %v470, %v1046
    %v1048 = vpop.f32.mrb[0].mxu0
    %1049 = vmatprep.mubr.f32.mxu0 0.0
    %1050 = vmatmul.mubr.f32.gmra.mrb[0].mxu0 %v774
    %v1051 = vpop.f32.mrb[0].mxu0
    %v1052 = vadd.f32 %v475, %v1051
    %v1053 = vpop.f32.mrb[0].mxu0
    %1054 = vmatprep.mubr.f32.mxu0 0.0
    %1055 = vmatmul.mubr.f32.gmra.mrb[0].mxu0 %v777
    %v1056 = vpop.f32.mrb[0].mxu0
    %v1057 = vadd.f32 %v480, %v1056
    %v1058 = vpop.f32.mrb[0].mxu0
    %1059 = vmatprep.mubr.f32.mxu0 0.0
    %1060 = vmatmul.mubr.f32.gmra.mrb[0].mxu0 %v780
    %v1061 = vpop.f32.mrb[0].mxu0
    %v1062 = vadd.f32 %v485, %v1061
    %v1063 = vpop.f32.mrb[0].mxu0
    %1064 = vmatprep.mubr.f32.mxu0 0.0
    %1065 = vmatmul.mubr.f32.gmra.mrb[0].mxu0 %v783
    %v1066 = vpop.f32.mrb[0].mxu0
    %v1067 = vadd.f32 %v490, %v1066
    %v1068 = vpop.f32.mrb[0].mxu0
    %1069 = vmatprep.mubr.f32.mxu0 0.0
    %1070 = vmatmul.mubr.f32.gmra.mrb[0].mxu0 %v786
    %v1071 = vpop.f32.mrb[0].mxu0
    %v1072 = vadd.f32 %v495, %v1071
    %v1073 = vpop.f32.mrb[0].mxu0
    %1074 = vmatprep.mubr.f32.mxu0 0.0
    %1075 = vmatmul.mubr.f32.gmra.mrb[0].mxu0 %v789
    %v1076 = vpop.f32.mrb[0].mxu0
    %v1077 = vadd.f32 %v500, %v1076
    %v1078 = vpop.f32.mrb[0].mxu0
    %1079 = vmatprep.mubr.f32.mxu0 0.0
    %1080 = vmatmul.mubr.f32.gmra.mrb[0].mxu0 %v792
    %v1081 = vpop.f32.mrb[0].mxu0
    %v1082 = vadd.f32 %v505, %v1081
    %v1083 = vpop.f32.mrb[0].mxu0
    %1084 = vmatprep.mubr.f32.mxu0 0.0
    %1085 = vmatmul.mubr.f32.gmra.mrb[0].mxu0 %v795
    %v1086 = vpop.f32.mrb[0].mxu0
    %v1087 = vadd.f32 %v510, %v1086
    %v1088 = vpop.f32.mrb[0].mxu0
    %1089 = vmatprep.mubr.f32.mxu0 0.0
    %1090 = vmatmul.mubr.f32.gmra.mrb[0].mxu0 %v798
    %v1091 = vpop.f32.mrb[0].mxu0
    %v1092 = vadd.f32 %v515, %v1091
    %v1093 = vpop.f32.mrb[0].mxu0
    %1094 = vmatprep.mubr.f32.mxu0 0.0
    %1095 = vmatmul.mubr.f32.gmra.mrb[0].mxu0 %v801
    %v1096 = vpop.f32.mrb[0].mxu0
    %v1097 = vadd.f32 %v520, %v1096
    %v1098 = vpop.f32.mrb[0].mxu0
    %1099 = vmatprep.mubr.f32.mxu0 0.0
    %1100 = vmatmul.mubr.f32.gmra.mrb[0].mxu0 %v804
    %v1101 = vpop.f32.mrb[0].mxu0
    %v1102 = vadd.f32 %v525, %v1101
    %v1103 = vpop.f32.mrb[0].mxu0
    %1104 = vmatprep.mubr.f32.mxu0 0.0
    %1105 = vmatmul.mubr.f32.gmra.mrb[0].mxu0 %v807
    %v1106 = vpop.f32.mrb[0].mxu0
    %v1107 = vadd.f32 %v530, %v1106
    %v1108 = vpop.f32.mrb[0].mxu0
    %1109 = vmatprep.mubr.f32.mxu0 0.0
    %1110 = vmatmul.mubr.f32.gmra.mrb[0].mxu0 %v810
    %v1111 = vpop.f32.mrb[0].mxu0
    %v1112 = vadd.f32 %v535, %v1111
    %v1113 = vpop.f32.mrb[0].mxu0
    %1114 = vmatprep.mubr.f32.mxu0 0.0
    %1115 = vmatmul.mubr.f32.gmra.mrb[0].mxu0 %v813
    %v1116 = vpop.f32.mrb[0].mxu0
    %v1117 = vadd.f32 %v540, %v1116
    %v1118 = vpop.f32.mrb[0].mxu0
    %1119 = vmatprep.mubr.f32.mxu0 0.0
    %1120 = vmatmul.mubr.f32.gmra.mrb[0].mxu0 %v816
    %v1121 = vpop.f32.mrb[0].mxu0
    %v1122 = vadd.f32 %v545, %v1121
    %v1123 = vpop.f32.mrb[0].mxu0
    %1124 = vmatprep.mubr.f32.mxu0 0.0
    %1125 = vmatmul.mubr.f32.gmra.mrb[0].mxu0 %v819
    %v1126 = vpop.f32.mrb[0].mxu0
    %v1127 = vadd.f32 %v550, %v1126
    %v1128 = vpop.f32.mrb[0].mxu0
    %1129 = vmatprep.mubr.f32.mxu0 0.0
    %1130 = vmatmul.mubr.f32.gmra.mrb[0].mxu0 %v822
    %v1131 = vpop.f32.mrb[0].mxu0
    %v1132 = vadd.f32 %v555, %v1131
    %v1133 = vpop.f32.mrb[0].mxu0
    %1134 = vmatprep.mubr.f32.mxu0 0.0
    %1135 = vmatmul.mubr.f32.gmra.mrb[0].mxu0 %v825
    %v1136 = vpop.f32.mrb[0].mxu0
    %v1137 = vadd.f32 %v560, %v1136
    %v1138 = vpop.f32.mrb[0].mxu0
    %1139 = vmatprep.mubr.f32.mxu0 0.0
    %1140 = vmatmul.mubr.f32.gmra.mrb[0].mxu0 %v828
    %v1141 = vpop.f32.mrb[0].mxu0
    %v1142 = vadd.f32 %v565, %v1141
    %v1143 = vpop.f32.mrb[0].mxu0
    %1144 = vmatprep.mubr.f32.mxu0 0.0
    %1145 = vmatmul.mubr.f32.gmra.mrb[0].mxu0 %v831
    %v1146 = vpop.f32.mrb[0].mxu0
    %v1147 = vadd.f32 %v570, %v1146
    %v1148 = vpop.f32.mrb[0].mxu0
    %1149 = vmatprep.mubr.f32.mxu0 0.0
    %1150 = vmatmul.mubr.f32.gmra.mrb[0].mxu0 %v834
    %v1151 = vpop.f32.mrb[0].mxu0
    %v1152 = vadd.f32 %v575, %v1151
    %v1153 = vpop.f32.mrb[0].mxu0
    %1154 = vmatprep.mubr.f32.mxu0 0.0
    %1155 = vmatmul.mubr.f32.gmra.mrb[0].mxu0 %v837
    %v1156 = vpop.f32.mrb[0].mxu0
    %v1157 = vadd.f32 %v580, %v1156
    %v1158 = vpop.f32.mrb[0].mxu0
    %1159 = vmatprep.mubr.f32.mxu0 0.0
    %1160 = vmatmul.mubr.f32.gmra.mrb[0].mxu0 %v840
    %v1161 = vpop.f32.mrb[0].mxu0
    %v1162 = vadd.f32 %v585, %v1161
    %v1163 = vpop.f32.mrb[0].mxu0
    %1164 = vmatprep.mubr.f32.mxu0 0.0
    %1165 = vmatmul.mubr.f32.gmra.mrb[0].mxu0 %v843
    %v1166 = vpop.f32.mrb[0].mxu0
    %v1167 = vadd.f32 %v590, %v1166
    %v1168 = vpop.f32.mrb[0].mxu0
    %1169 = vmatprep.mubr.f32.mxu0 0.0
    %1170 = vmatmul.mubr.f32.gmra.mrb[0].mxu0 %v846
    %v1171 = vpop.f32.mrb[0].mxu0
    %v1172 = vadd.f32 %v595, %v1171
    %v1173 = vpop.f32.mrb[0].mxu0
    %1174 = vmatprep.mubr.f32.mxu0 0.0
    %1175 = vmatmul.mubr.f32.gmra.mrb[0].mxu0 %v849
    %v1176 = vpop.f32.mrb[0].mxu0
    %v1177 = vadd.f32 %v600, %v1176
    %v1178 = vpop.f32.mrb[0].mxu0
    %1179 = vmatprep.mubr.f32.mxu0 0.0
    %1180 = vmatmul.mubr.f32.gmra.mrb[0].mxu0 %v852
    %v1181 = vpop.f32.mrb[0].mxu0
    %v1182 = vadd.f32 %v605, %v1181
    %v1183 = vpop.f32.mrb[0].mxu0
    %1184 = vmatprep.mubr.f32.mxu0 0.0
    %1185 = vmatmul.mubr.f32.gmra.mrb[0].mxu0 %v855
    %v1186 = vpop.f32.mrb[0].mxu0
    %v1187 = vadd.f32 %v610, %v1186
    %v1188 = vpop.f32.mrb[0].mxu0
    %1189 = vmatprep.mubr.f32.mxu0 0.0
    %1190 = vmatmul.mubr.f32.gmra.mrb[0].mxu0 %v858
    %v1191 = vpop.f32.mrb[0].mxu0
    %v1192 = vadd.f32 %v615, %v1191
    %v1193 = vpop.f32.mrb[0].mxu0
    %1194 = vmatprep.mubr.f32.mxu0 0.0
    %1195 = vmatmul.mubr.f32.gmra.mrb[0].mxu0 %v861
    %v1196 = vpop.f32.mrb[0].mxu0
    %v1197 = vadd.f32 %v620, %v1196
    %v1198 = vpop.f32.mrb[0].mxu0
    %1199 = vmatprep.mubr.f32.mxu0 0.0
    %1200 = vmatmul.mubr.f32.gmra.mrb[0].mxu0 %v864
    %v1201 = vpop.f32.mrb[0].mxu0
    %v1202 = vadd.f32 %v625, %v1201
    %v1203 = vpop.f32.mrb[0].mxu0
    %1204 = vmatprep.mubr.f32.mxu0 0.0
    %1205 = vmatmul.mubr.f32.gmra.mrb[0].mxu0 %v867
    %v1206 = vpop.f32.mrb[0].mxu0
    %v1207 = vadd.f32 %v630, %v1206
    %v1208 = vpop.f32.mrb[0].mxu0
    %1209 = vmatprep.mubr.f32.mxu0 0.0
    %1210 = vmatmul.mubr.f32.gmra.mrb[0].mxu0 %v870
    %v1211 = vpop.f32.mrb[0].mxu0
    %v1212 = vadd.f32 %v635, %v1211
    %v1213 = vpop.f32.mrb[0].mxu0
    %1214 = vmatprep.mubr.f32.mxu0 0.0
    %1215 = vmatmul.mubr.f32.gmra.mrb[0].mxu0 %v873
    %v1216 = vpop.f32.mrb[0].mxu0
    %v1217 = vadd.f32 %v640, %v1216
    %v1218 = vpop.f32.mrb[0].mxu0
    %1219 = vmatprep.mubr.f32.mxu0 0.0
    %1220 = vmatmul.mubr.f32.gmra.mrb[0].mxu0 %v876
    %v1221 = vpop.f32.mrb[0].mxu0
    %v1222 = vadd.f32 %v645, %v1221
    %v1223 = vpop.f32.mrb[0].mxu0
    %1224 = vmatprep.mubr.f32.mxu0 0.0
    %1225 = vmatmul.mubr.f32.gmra.mrb[0].mxu0 %v879
    %v1226 = vpop.f32.mrb[0].mxu0
    %v1227 = vadd.f32 %v650, %v1226
    %v1228 = vpop.f32.mrb[0].mxu0
    %1229 = vmatprep.mubr.f32.mxu0 0.0
    %1230 = vmatmul.mubr.f32.gmra.mrb[0].mxu0 %v882
    %v1231 = vpop.f32.mrb[0].mxu0
    %v1232 = vadd.f32 %v655, %v1231
    %v1233 = vpop.f32.mrb[0].mxu0
    %1234 = vmatprep.mubr.f32.mxu0 0.0
    %1235 = vmatmul.mubr.f32.gmra.mrb[0].mxu0 %v885
    %v1236 = vpop.f32.mrb[0].mxu0
    %v1237 = vadd.f32 %v660, %v1236
    %v1238 = vpop.f32.mrb[0].mxu0
    %1239 = vmatprep.mubr.f32.mxu0 0.0
    %1240 = vmatmul.mubr.f32.gmra.mrb[0].mxu0 %v888
    %v1241 = vpop.f32.mrb[0].mxu0
    %v1242 = vadd.f32 %v665, %v1241
    %v1243 = vpop.f32.mrb[0].mxu0
    %1244 = vmatprep.mubr.f32.mxu0 0.0
    %1245 = vmatmul.mubr.f32.gmra.mrb[0].mxu0 %v891
    %v1246 = vpop.f32.mrb[0].mxu0
    %v1247 = vadd.f32 %v670, %v1246
    %v1248 = vpop.f32.mrb[0].mxu0
    %1249 = vmatprep.mubr.f32.mxu0 0.0
    %1250 = vmatmul.mubr.f32.gmra.mrb[0].mxu0 %v894
    %v1251 = vpop.f32.mrb[0].mxu0
    %v1252 = vadd.f32 %v675, %v1251
    %v1253 = vpop.f32.mrb[0].mxu0
    %1254 = vmatprep.mubr.f32.mxu0 0.0
    %1255 = vmatmul.mubr.f32.gmra.mrb[0].mxu0 %v897
    %v1256 = vpop.f32.mrb[0].mxu0
    %v1257 = vadd.f32 %v680, %v1256
    %v1258 = vpop.f32.mrb[0].mxu0
    %1259 = vmatprep.mubr.f32.mxu0 0.0
    %1260 = vmatmul.mubr.f32.gmra.mrb[0].mxu0 %v900
    %v1261 = vpop.f32.mrb[0].mxu0
    %v1262 = vadd.f32 %v685, %v1261
    %v1263 = vpop.f32.mrb[0].mxu0
    %1264 = vmatprep.mubr.f32.mxu0 0.0
    %1265 = vmatmul.mubr.f32.gmra.mrb[0].mxu0 %v903
    %v1266 = vpop.f32.mrb[0].mxu0
    %v1267 = vadd.f32 %v690, %v1266
    %v1268 = vpop.f32.mrb[0].mxu0
    %1269 = vmatprep.mubr.f32.mxu0 0.0
    %1270 = vmatmul.mubr.f32.gmra.mrb[0].mxu0 %v906
    %v1271 = vpop.f32.mrb[0].mxu0
    %v1272 = vadd.f32 %v695, %v1271
    %v1273 = vpop.f32.mrb[0].mxu0
    %1274 = vmatprep.mubr.f32.mxu0 0.0
    %1275 = vmatmul.mubr.f32.gmra.mrb[0].mxu0 %v909
    %v1276 = vpop.f32.mrb[0].mxu0
    %v1277 = vadd.f32 %v700, %v1276
    %v1278 = vpop.f32.mrb[0].mxu0
    %1279 = vmatprep.mubr.f32.mxu0 0.0
    %1280 = vmatmul.mubr.f32.gmra.mrb[0].mxu0 %v912
    %v1281 = vpop.f32.mrb[0].mxu0
    %v1282 = vadd.f32 %v705, %v1281
    %v1283 = vpop.f32.mrb[0].mxu0
    %1284 = vmatprep.mubr.f32.mxu0 0.0
    %1285 = vmatmul.mubr.f32.gmra.mrb[0].mxu0 %v915
    %v1286 = vpop.f32.mrb[0].mxu0
    %v1287 = vadd.f32 %v710, %v1286
    %v1288 = vpop.f32.mrb[0].mxu0
    %1289 = vmatprep.mubr.f32.mxu0 0.0
    %1290 = vmatmul.mubr.f32.gmra.mrb[0].mxu0 %v918
    %v1291 = vpop.f32.mrb[0].mxu0
    %v1292 = vadd.f32 %v715, %v1291
    %v1293 = vpop.f32.mrb[0].mxu0
    %1294 = vmatprep.mubr.f32.mxu0 0.0
    %1295 = vmatmul.mubr.f32.gmra.mrb[0].mxu0 %v921
    %v1296 = vpop.f32.mrb[0].mxu0
    %v1297 = vadd.f32 %v720, %v1296
    %v1298 = vpop.f32.mrb[0].mxu0
    %1299 = vmatprep.mubr.f32.mxu0 0.0
    %1300 = vmatmul.mubr.f32.gmra.mrb[0].mxu0 %v924
    %v1301 = vpop.f32.mrb[0].mxu0
    %v1302 = vadd.f32 %v725, %v1301
    %v1303 = vpop.f32.mrb[0].mxu0
    %1304 = vmatprep.mubr.f32.mxu0 0.0
    %1305 = vmatmul.mubr.f32.gmra.mrb[0].mxu0 %v927
    %v1306 = vpop.f32.mrb[0].mxu0
    %v1307 = vadd.f32 %v730, %v1306
    %v1308 = vpop.f32.mrb[0].mxu0
    %1309 = vmatprep.mubr.f32.mxu0 0.0
    %1310 = vmatmul.mubr.f32.gmra.mrb[0].mxu0 %v930
    %v1311 = vpop.f32.mrb[0].mxu0
    %v1312 = vadd.f32 %v735, %v1311
    %v1313 = vpop.f32.mrb[0].mxu0
    %1314 = vmatprep.mubr.f32.mxu0 0.0
    %1315 = vmatmul.mubr.f32.gmra.mrb[0].mxu0 %v933
    %v1316 = vpop.f32.mrb[0].mxu0
    %v1317 = vadd.f32 %v740, %v1316
    %v1318 = vpop.f32.mrb[0].mxu0
    %1319 = vdwg.mxu0
    %v1320 = vld [vmem:[%s0 + $0x2] sm:$0xff]
    %v1321 = vld [vmem:[%s0 + $0x12] sm:$0xff]
    %v1322 = vld [vmem:[%s0 + $0x22] sm:$0xff]
    %v1323 = vld [vmem:[%s0 + $0x32] sm:$0xff]
    %v1324 = vld [vmem:[%s0 + $0x42] sm:$0xff]
    %v1325 = vld [vmem:[%s0 + $0x52] sm:$0xff]
    %v1326 = vld [vmem:[%s0 + $0x62] sm:$0xff]
    %v1327 = vld [vmem:[%s0 + $0x72] sm:$0xff]
    %v1328 = vld [vmem:[%s0 + $0xa2] sm:$0xff]
    %v1329 = vld [vmem:[%s0 + $0xb2] sm:$0xff]
    %v1330 = vld [vmem:[%s0 + $0xc2] sm:$0xff]
    %v1331 = vld [vmem:[%s0 + $0xd2] sm:$0xff]
    %v1332 = vld [vmem:[%s0 + $0xe2] sm:$0xff]
    %v1333 = vld [vmem:[%s0 + $0xf2] sm:$0xff]
    %v1334 = vld [vmem:[%s0 + $0x102] sm:$0xff]
    %v1335 = vld [vmem:[%s0 + $0x112] sm:$0xff]
    %v1336 = vld [vmem:[%s0 + $0x142] sm:$0xff]
    %v1337 = vld [vmem:[%s0 + $0x152] sm:$0xff]
    %v1338 = vld [vmem:[%s0 + $0x162] sm:$0xff]
    %v1339 = vld [vmem:[%s0 + $0x172] sm:$0xff]
    %v1340 = vld [vmem:[%s0 + $0x182] sm:$0xff]
    %v1341 = vld [vmem:[%s0 + $0x192] sm:$0xff]
    %v1342 = vld [vmem:[%s0 + $0x1a2] sm:$0xff]
    %v1343 = vld [vmem:[%s0 + $0x1b2] sm:$0xff]
    %v1344 = vld [vmem:[%s0 + $0x1e2] sm:$0xff]
    %v1345 = vld [vmem:[%s0 + $0x1f2] sm:$0xff]
    %v1346 = vld [vmem:[%s0 + $0x202] sm:$0xff]
    %v1347 = vld [vmem:[%s0 + $0x212] sm:$0xff]
    %v1348 = vld [vmem:[%s0 + $0x222] sm:$0xff]
    %v1349 = vld [vmem:[%s0 + $0x232] sm:$0xff]
    %v1350 = vld [vmem:[%s0 + $0x242] sm:$0xff]
    %v1351 = vld [vmem:[%s0 + $0x252] sm:$0xff]
    %v1352 = vld [vmem:[%s0 + $0x282] sm:$0xff]
    %v1353 = vld [vmem:[%s0 + $0x292] sm:$0xff]
    %v1354 = vld [vmem:[%s0 + $0x2a2] sm:$0xff]
    %v1355 = vld [vmem:[%s0 + $0x2b2] sm:$0xff]
    %v1356 = vld [vmem:[%s0 + $0x2c2] sm:$0xff]
    %v1357 = vld [vmem:[%s0 + $0x2d2] sm:$0xff]
    %v1358 = vld [vmem:[%s0 + $0x2e2] sm:$0xff]
    %v1359 = vld [vmem:[%s0 + $0x2f2] sm:$0xff]
    %v1360 = vld [vmem:[%s0 + $0x322] sm:$0xff]
    %v1361 = vld [vmem:[%s0 + $0x332] sm:$0xff]
    %v1362 = vld [vmem:[%s0 + $0x342] sm:$0xff]
    %v1363 = vld [vmem:[%s0 + $0x352] sm:$0xff]
    %v1364 = vld [vmem:[%s0 + $0x362] sm:$0xff]
    %v1365 = vld [vmem:[%s0 + $0x372] sm:$0xff]
    %v1366 = vld [vmem:[%s0 + $0x382] sm:$0xff]
    %v1367 = vld [vmem:[%s0 + $0x392] sm:$0xff]
    %v1368 = vld [vmem:[%s0 + $0x3c2] sm:$0xff]
    %v1369 = vld [vmem:[%s0 + $0x3d2] sm:$0xff]
    %v1370 = vld [vmem:[%s0 + $0x3e2] sm:$0xff]
    %v1371 = vld [vmem:[%s0 + $0x3f2] sm:$0xff]
    %v1372 = vld [vmem:[%s0 + $0x402] sm:$0xff]
    %v1373 = vld [vmem:[%s0 + $0x412] sm:$0xff]
    %v1374 = vld [vmem:[%s0 + $0x422] sm:$0xff]
    %v1375 = vld [vmem:[%s0 + $0x432] sm:$0xff]
    %v1376 = vld [vmem:[%s0 + $0x462] sm:$0xff]
    %v1377 = vld [vmem:[%s0 + $0x472] sm:$0xff]
    %v1378 = vld [vmem:[%s0 + $0x482] sm:$0xff]
    %v1379 = vld [vmem:[%s0 + $0x492] sm:$0xff]
    %v1380 = vld [vmem:[%s0 + $0x4a2] sm:$0xff]
    %v1381 = vld [vmem:[%s0 + $0x4b2] sm:$0xff]
    %v1382 = vld [vmem:[%s0 + $0x4c2] sm:$0xff]
    %v1383 = vld [vmem:[%s0 + $0x4d2] sm:$0xff]
    %v1384 = vld [vmem:[%s1 + $0x80] sm:$0xff]
    %v1385 = vld [vmem:[%s1 + $0x88] sm:$0xff]
    %v1386 = vld [vmem:[%s1 + $0x90] sm:$0xff]
    %v1387 = vld [vmem:[%s1 + $0x98] sm:$0xff]
    %v1388 = vld [vmem:[%s1 + $0xa0] sm:$0xff]
    %v1389 = vld [vmem:[%s1 + $0xa8] sm:$0xff]
    %v1390 = vld [vmem:[%s1 + $0xb0] sm:$0xff]
    %v1391 = vld [vmem:[%s1 + $0xb8] sm:$0xff]
    %v1393 = vsel %vm165, %v1320, 0
    %v1396 = vsel %vm165, %v1321, 0
    %v1399 = vsel %vm165, %v1322, 0
    %v1402 = vsel %vm165, %v1323, 0
    %v1405 = vsel %vm165, %v1324, 0
    %v1408 = vsel %vm165, %v1325, 0
    %v1411 = vsel %vm165, %v1326, 0
    %v1414 = vsel %vm165, %v1327, 0
    %v1417 = vsel %vm165, %v1328, 0
    %v1420 = vsel %vm165, %v1329, 0
    %v1423 = vsel %vm165, %v1330, 0
    %v1426 = vsel %vm165, %v1331, 0
    %v1429 = vsel %vm165, %v1332, 0
    %v1432 = vsel %vm165, %v1333, 0
    %v1435 = vsel %vm165, %v1334, 0
    %v1438 = vsel %vm165, %v1335, 0
    %v1441 = vsel %vm165, %v1336, 0
    %v1444 = vsel %vm165, %v1337, 0
    %v1447 = vsel %vm165, %v1338, 0
    %v1450 = vsel %vm165, %v1339, 0
    %v1453 = vsel %vm165, %v1340, 0
    %v1456 = vsel %vm165, %v1341, 0
    %v1459 = vsel %vm165, %v1342, 0
    %v1462 = vsel %vm165, %v1343, 0
    %v1465 = vsel %vm165, %v1344, 0
    %v1468 = vsel %vm165, %v1345, 0
    %v1471 = vsel %vm165, %v1346, 0
    %v1474 = vsel %vm165, %v1347, 0
    %v1477 = vsel %vm165, %v1348, 0
    %v1480 = vsel %vm165, %v1349, 0
    %v1483 = vsel %vm165, %v1350, 0
    %v1486 = vsel %vm165, %v1351, 0
    %v1489 = vsel %vm165, %v1352, 0
    %v1492 = vsel %vm165, %v1353, 0
    %v1495 = vsel %vm165, %v1354, 0
    %v1498 = vsel %vm165, %v1355, 0
    %v1501 = vsel %vm165, %v1356, 0
    %v1504 = vsel %vm165, %v1357, 0
    %v1507 = vsel %vm165, %v1358, 0
    %v1510 = vsel %vm165, %v1359, 0
    %v1513 = vsel %vm165, %v1360, 0
    %v1516 = vsel %vm165, %v1361, 0
    %v1519 = vsel %vm165, %v1362, 0
    %v1522 = vsel %vm165, %v1363, 0
    %v1525 = vsel %vm165, %v1364, 0
    %v1528 = vsel %vm165, %v1365, 0
    %v1531 = vsel %vm165, %v1366, 0
    %v1534 = vsel %vm165, %v1367, 0
    %v1537 = vsel %vm165, %v1368, 0
    %v1540 = vsel %vm165, %v1369, 0
    %v1543 = vsel %vm165, %v1370, 0
    %v1546 = vsel %vm165, %v1371, 0
    %v1549 = vsel %vm165, %v1372, 0
    %v1552 = vsel %vm165, %v1373, 0
    %v1555 = vsel %vm165, %v1374, 0
    %v1558 = vsel %vm165, %v1375, 0
    %v1561 = vsel %vm165, %v1376, 0
    %v1564 = vsel %vm165, %v1377, 0
    %v1567 = vsel %vm165, %v1378, 0
    %v1570 = vsel %vm165, %v1379, 0
    %v1573 = vsel %vm165, %v1380, 0
    %v1576 = vsel %vm165, %v1381, 0
    %v1579 = vsel %vm165, %v1382, 0
    %v1582 = vsel %vm165, %v1383, 0
    %1584 = vmatprep.subr.mxu0 0.0
    %1585 = vmatpush1.msra.mxu0 %v1384
    %1586 = vmatprep.subr.mxu0 0.0
    %1587 = vmatpush1.msra.mxu0 %v1385
    %1588 = vmatprep.subr.mxu0 0.0
    %1589 = vmatpush1.msra.mxu0 %v1386
    %1590 = vmatprep.subr.mxu0 0.0
    %1591 = vmatpush1.msra.mxu0 %v1387
    %1592 = vmatprep.subr.mxu0 0.0
    %1593 = vmatpush1.msra.mxu0 %v1388
    %1594 = vmatprep.subr.mxu0 0.0
    %1595 = vmatpush1.msra.mxu0 %v1389
    %1596 = vmatprep.subr.mxu0 0.0
    %1597 = vmatpush1.msra.mxu0 %v1390
    %1598 = vmatprep.subr.mxu0 0.0
    %1599 = vmatpush1.msra.mxu0 %v1391
    %1600 = vmatprep.subr.mxu0 0.0
    %1601 = vmatpush1.msra.mxu0 0.0
    %1602 = vmatprep.subr.mxu0 0.0
    %1603 = vmatpush1.msra.mxu0 0.0
    %1604 = vmatprep.subr.mxu0 0.0
    %1605 = vmatpush1.msra.mxu0 0.0
    %1606 = vmatprep.subr.mxu0 0.0
    %1607 = vmatpush1.msra.mxu0 0.0
    %1608 = vmatprep.subr.mxu0 0.0
    %1609 = vmatpush1.msra.mxu0 0.0
    %1610 = vmatprep.subr.mxu0 0.0
    %1611 = vmatpush1.msra.mxu0 0.0
    %1612 = vmatprep.subr.mxu0 0.0
    %1613 = vmatpush1.msra.mxu0 0.0
    %1614 = vmatprep.subr.mxu0 0.0
    %1615 = vmatpush1.msra.mxu0 0.0
    %1616 = vmatprep.subr.mxu0 0.0
    %1617 = vmatpush1.msra.mxu0 0.0
    %1618 = vmatprep.subr.mxu0 0.0
    %1619 = vmatpush1.msra.mxu0 0.0
    %1620 = vmatprep.subr.mxu0 0.0
    %1621 = vmatpush1.msra.mxu0 0.0
    %1622 = vmatprep.subr.mxu0 0.0
    %1623 = vmatpush1.msra.mxu0 0.0
    %1624 = vmatprep.subr.mxu0 0.0
    %1625 = vmatpush1.msra.mxu0 0.0
    %1626 = vmatprep.subr.mxu0 0.0
    %1627 = vmatpush1.msra.mxu0 0.0
    %1628 = vmatprep.subr.mxu0 0.0
    %1629 = vmatpush1.msra.mxu0 0.0
    %1630 = vmatprep.subr.mxu0 0.0
    %1631 = vmatpush1.msra.mxu0 0.0
    %1632 = vmatprep.subr.mxu0 0.0
    %1633 = vmatpush1.msra.mxu0 0.0
    %1634 = vmatprep.subr.mxu0 0.0
    %1635 = vmatpush1.msra.mxu0 0.0
    %1636 = vmatprep.subr.mxu0 0.0
    %1637 = vmatpush1.msra.mxu0 0.0
    %1638 = vmatprep.subr.mxu0 0.0
    %1639 = vmatpush1.msra.mxu0 0.0
    %1640 = vmatprep.subr.mxu0 0.0
    %1641 = vmatpush1.msra.mxu0 0.0
    %1642 = vmatprep.subr.mxu0 0.0
    %1643 = vmatpush1.msra.mxu0 0.0
    %1644 = vmatprep.subr.mxu0 0.0
    %1645 = vmatpush1.msra.mxu0 0.0
    %1646 = vmatprep.subr.mxu0 0.0
    %1647 = vmatpush1.msra.mxu0 0.0
    %1648 = vmatprep.mubr.f32.mxu0 0.0
    %1649 = vmatmul.mubr.f32.gmra.mrb[0].mxu0 %v1393
    %v1650 = vpop.f32.mrb[0].mxu0
    %v1651 = vadd.f32 0.0, %v1650
    %v1652 = vpop.f32.mrb[0].mxu0
    %1653 = vmatprep.mubr.f32.mxu0 0.0
    %1654 = vmatmul.mubr.f32.gmra.mrb[0].mxu0 %v1396
    %v1655 = vpop.f32.mrb[0].mxu0
    %v1656 = vadd.f32 0.0, %v1655
    %v1657 = vpop.f32.mrb[0].mxu0
    %1658 = vmatprep.mubr.f32.mxu0 0.0
    %1659 = vmatmul.mubr.f32.gmra.mrb[0].mxu0 %v1399
    %v1660 = vpop.f32.mrb[0].mxu0
    %v1661 = vadd.f32 0.0, %v1660
    %v1662 = vpop.f32.mrb[0].mxu0
    %1663 = vmatprep.mubr.f32.mxu0 0.0
    %1664 = vmatmul.mubr.f32.gmra.mrb[0].mxu0 %v1402
    %v1665 = vpop.f32.mrb[0].mxu0
    %v1666 = vadd.f32 0.0, %v1665
    %v1667 = vpop.f32.mrb[0].mxu0
    %1668 = vmatprep.mubr.f32.mxu0 0.0
    %1669 = vmatmul.mubr.f32.gmra.mrb[0].mxu0 %v1405
    %v1670 = vpop.f32.mrb[0].mxu0
    %v1671 = vadd.f32 0.0, %v1670
    %v1672 = vpop.f32.mrb[0].mxu0
    %1673 = vmatprep.mubr.f32.mxu0 0.0
    %1674 = vmatmul.mubr.f32.gmra.mrb[0].mxu0 %v1408
    %v1675 = vpop.f32.mrb[0].mxu0
    %v1676 = vadd.f32 0.0, %v1675
    %v1677 = vpop.f32.mrb[0].mxu0
    %1678 = vmatprep.mubr.f32.mxu0 0.0
    %1679 = vmatmul.mubr.f32.gmra.mrb[0].mxu0 %v1411
    %v1680 = vpop.f32.mrb[0].mxu0
    %v1681 = vadd.f32 0.0, %v1680
    %v1682 = vpop.f32.mrb[0].mxu0
    %1683 = vmatprep.mubr.f32.mxu0 0.0
    %1684 = vmatmul.mubr.f32.gmra.mrb[0].mxu0 %v1414
    %v1685 = vpop.f32.mrb[0].mxu0
    %v1686 = vadd.f32 0.0, %v1685
    %v1687 = vpop.f32.mrb[0].mxu0
    %1688 = vmatprep.mubr.f32.mxu0 0.0
    %1689 = vmatmul.mubr.f32.gmra.mrb[0].mxu0 %v1417
    %v1690 = vpop.f32.mrb[0].mxu0
    %v1691 = vadd.f32 0.0, %v1690
    %v1692 = vpop.f32.mrb[0].mxu0
    %1693 = vmatprep.mubr.f32.mxu0 0.0
    %1694 = vmatmul.mubr.f32.gmra.mrb[0].mxu0 %v1420
    %v1695 = vpop.f32.mrb[0].mxu0
    %v1696 = vadd.f32 0.0, %v1695
    %v1697 = vpop.f32.mrb[0].mxu0
    %1698 = vmatprep.mubr.f32.mxu0 0.0
    %1699 = vmatmul.mubr.f32.gmra.mrb[0].mxu0 %v1423
    %v1700 = vpop.f32.mrb[0].mxu0
    %v1701 = vadd.f32 0.0, %v1700
    %v1702 = vpop.f32.mrb[0].mxu0
    %1703 = vmatprep.mubr.f32.mxu0 0.0
    %1704 = vmatmul.mubr.f32.gmra.mrb[0].mxu0 %v1426
    %v1705 = vpop.f32.mrb[0].mxu0
    %v1706 = vadd.f32 0.0, %v1705
    %v1707 = vpop.f32.mrb[0].mxu0
    %1708 = vmatprep.mubr.f32.mxu0 0.0
    %1709 = vmatmul.mubr.f32.gmra.mrb[0].mxu0 %v1429
    %v1710 = vpop.f32.mrb[0].mxu0
    %v1711 = vadd.f32 0.0, %v1710
    %v1712 = vpop.f32.mrb[0].mxu0
    %1713 = vmatprep.mubr.f32.mxu0 0.0
    %1714 = vmatmul.mubr.f32.gmra.mrb[0].mxu0 %v1432
    %v1715 = vpop.f32.mrb[0].mxu0
    %v1716 = vadd.f32 0.0, %v1715
    %v1717 = vpop.f32.mrb[0].mxu0
    %1718 = vmatprep.mubr.f32.mxu0 0.0
    %1719 = vmatmul.mubr.f32.gmra.mrb[0].mxu0 %v1435
    %v1720 = vpop.f32.mrb[0].mxu0
    %v1721 = vadd.f32 0.0, %v1720
    %v1722 = vpop.f32.mrb[0].mxu0
    %1723 = vmatprep.mubr.f32.mxu0 0.0
    %1724 = vmatmul.mubr.f32.gmra.mrb[0].mxu0 %v1438
    %v1725 = vpop.f32.mrb[0].mxu0
    %v1726 = vadd.f32 0.0, %v1725
    %v1727 = vpop.f32.mrb[0].mxu0
    %1728 = vmatprep.mubr.f32.mxu0 0.0
    %1729 = vmatmul.mubr.f32.gmra.mrb[0].mxu0 %v1441
    %v1730 = vpop.f32.mrb[0].mxu0
    %v1731 = vadd.f32 0.0, %v1730
    %v1732 = vpop.f32.mrb[0].mxu0
    %1733 = vmatprep.mubr.f32.mxu0 0.0
    %1734 = vmatmul.mubr.f32.gmra.mrb[0].mxu0 %v1444
    %v1735 = vpop.f32.mrb[0].mxu0
    %v1736 = vadd.f32 0.0, %v1735
    %v1737 = vpop.f32.mrb[0].mxu0
    %1738 = vmatprep.mubr.f32.mxu0 0.0
    %1739 = vmatmul.mubr.f32.gmra.mrb[0].mxu0 %v1447
    %v1740 = vpop.f32.mrb[0].mxu0
    %v1741 = vadd.f32 0.0, %v1740
    %v1742 = vpop.f32.mrb[0].mxu0
    %1743 = vmatprep.mubr.f32.mxu0 0.0
    %1744 = vmatmul.mubr.f32.gmra.mrb[0].mxu0 %v1450
    %v1745 = vpop.f32.mrb[0].mxu0
    %v1746 = vadd.f32 0.0, %v1745
    %v1747 = vpop.f32.mrb[0].mxu0
    %1748 = vmatprep.mubr.f32.mxu0 0.0
    %1749 = vmatmul.mubr.f32.gmra.mrb[0].mxu0 %v1453
    %v1750 = vpop.f32.mrb[0].mxu0
    %v1751 = vadd.f32 0.0, %v1750
    %v1752 = vpop.f32.mrb[0].mxu0
    %1753 = vmatprep.mubr.f32.mxu0 0.0
    %1754 = vmatmul.mubr.f32.gmra.mrb[0].mxu0 %v1456
    %v1755 = vpop.f32.mrb[0].mxu0
    %v1756 = vadd.f32 0.0, %v1755
    %v1757 = vpop.f32.mrb[0].mxu0
    %1758 = vmatprep.mubr.f32.mxu0 0.0
    %1759 = vmatmul.mubr.f32.gmra.mrb[0].mxu0 %v1459
    %v1760 = vpop.f32.mrb[0].mxu0
    %v1761 = vadd.f32 0.0, %v1760
    %v1762 = vpop.f32.mrb[0].mxu0
    %1763 = vmatprep.mubr.f32.mxu0 0.0
    %1764 = vmatmul.mubr.f32.gmra.mrb[0].mxu0 %v1462
    %v1765 = vpop.f32.mrb[0].mxu0
    %v1766 = vadd.f32 0.0, %v1765
    %v1767 = vpop.f32.mrb[0].mxu0
    %1768 = vmatprep.mubr.f32.mxu0 0.0
    %1769 = vmatmul.mubr.f32.gmra.mrb[0].mxu0 %v1465
    %v1770 = vpop.f32.mrb[0].mxu0
    %v1771 = vadd.f32 0.0, %v1770
    %v1772 = vpop.f32.mrb[0].mxu0
    %1773 = vmatprep.mubr.f32.mxu0 0.0
    %1774 = vmatmul.mubr.f32.gmra.mrb[0].mxu0 %v1468
    %v1775 = vpop.f32.mrb[0].mxu0
    %v1776 = vadd.f32 0.0, %v1775
    %v1777 = vpop.f32.mrb[0].mxu0
    %1778 = vmatprep.mubr.f32.mxu0 0.0
    %1779 = vmatmul.mubr.f32.gmra.mrb[0].mxu0 %v1471
    %v1780 = vpop.f32.mrb[0].mxu0
    %v1781 = vadd.f32 0.0, %v1780
    %v1782 = vpop.f32.mrb[0].mxu0
    %1783 = vmatprep.mubr.f32.mxu0 0.0
    %1784 = vmatmul.mubr.f32.gmra.mrb[0].mxu0 %v1474
    %v1785 = vpop.f32.mrb[0].mxu0
    %v1786 = vadd.f32 0.0, %v1785
    %v1787 = vpop.f32.mrb[0].mxu0
    %1788 = vmatprep.mubr.f32.mxu0 0.0
    %1789 = vmatmul.mubr.f32.gmra.mrb[0].mxu0 %v1477
    %v1790 = vpop.f32.mrb[0].mxu0
    %v1791 = vadd.f32 0.0, %v1790
    %v1792 = vpop.f32.mrb[0].mxu0
    %1793 = vmatprep.mubr.f32.mxu0 0.0
    %1794 = vmatmul.mubr.f32.gmra.mrb[0].mxu0 %v1480
    %v1795 = vpop.f32.mrb[0].mxu0
    %v1796 = vadd.f32 0.0, %v1795
    %v1797 = vpop.f32.mrb[0].mxu0
    %1798 = vmatprep.mubr.f32.mxu0 0.0
    %1799 = vmatmul.mubr.f32.gmra.mrb[0].mxu0 %v1483
    %v1800 = vpop.f32.mrb[0].mxu0
    %v1801 = vadd.f32 0.0, %v1800
    %v1802 = vpop.f32.mrb[0].mxu0
    %1803 = vmatprep.mubr.f32.mxu0 0.0
    %1804 = vmatmul.mubr.f32.gmra.mrb[0].mxu0 %v1486
    %v1805 = vpop.f32.mrb[0].mxu0
    %v1806 = vadd.f32 0.0, %v1805
    %v1807 = vpop.f32.mrb[0].mxu0
    %1808 = vmatprep.mubr.f32.mxu0 0.0
    %1809 = vmatmul.mubr.f32.gmra.mrb[0].mxu0 %v1489
    %v1810 = vpop.f32.mrb[0].mxu0
    %v1811 = vadd.f32 0.0, %v1810
    %v1812 = vpop.f32.mrb[0].mxu0
    %1813 = vmatprep.mubr.f32.mxu0 0.0
    %1814 = vmatmul.mubr.f32.gmra.mrb[0].mxu0 %v1492
    %v1815 = vpop.f32.mrb[0].mxu0
    %v1816 = vadd.f32 0.0, %v1815
    %v1817 = vpop.f32.mrb[0].mxu0
    %1818 = vmatprep.mubr.f32.mxu0 0.0
    %1819 = vmatmul.mubr.f32.gmra.mrb[0].mxu0 %v1495
    %v1820 = vpop.f32.mrb[0].mxu0
    %v1821 = vadd.f32 0.0, %v1820
    %v1822 = vpop.f32.mrb[0].mxu0
    %1823 = vmatprep.mubr.f32.mxu0 0.0
    %1824 = vmatmul.mubr.f32.gmra.mrb[0].mxu0 %v1498
    %v1825 = vpop.f32.mrb[0].mxu0
    %v1826 = vadd.f32 0.0, %v1825
    %v1827 = vpop.f32.mrb[0].mxu0
    %1828 = vmatprep.mubr.f32.mxu0 0.0
    %1829 = vmatmul.mubr.f32.gmra.mrb[0].mxu0 %v1501
    %v1830 = vpop.f32.mrb[0].mxu0
    %v1831 = vadd.f32 0.0, %v1830
    %v1832 = vpop.f32.mrb[0].mxu0
    %1833 = vmatprep.mubr.f32.mxu0 0.0
    %1834 = vmatmul.mubr.f32.gmra.mrb[0].mxu0 %v1504
    %v1835 = vpop.f32.mrb[0].mxu0
    %v1836 = vadd.f32 0.0, %v1835
    %v1837 = vpop.f32.mrb[0].mxu0
    %1838 = vmatprep.mubr.f32.mxu0 0.0
    %1839 = vmatmul.mubr.f32.gmra.mrb[0].mxu0 %v1507
    %v1840 = vpop.f32.mrb[0].mxu0
    %v1841 = vadd.f32 0.0, %v1840
    %v1842 = vpop.f32.mrb[0].mxu0
    %1843 = vmatprep.mubr.f32.mxu0 0.0
    %1844 = vmatmul.mubr.f32.gmra.mrb[0].mxu0 %v1510
    %v1845 = vpop.f32.mrb[0].mxu0
    %v1846 = vadd.f32 0.0, %v1845
    %v1847 = vpop.f32.mrb[0].mxu0
    %1848 = vmatprep.mubr.f32.mxu0 0.0
    %1849 = vmatmul.mubr.f32.gmra.mrb[0].mxu0 %v1513
    %v1850 = vpop.f32.mrb[0].mxu0
    %v1851 = vadd.f32 0.0, %v1850
    %v1852 = vpop.f32.mrb[0].mxu0
    %1853 = vmatprep.mubr.f32.mxu0 0.0
    %1854 = vmatmul.mubr.f32.gmra.mrb[0].mxu0 %v1516
    %v1855 = vpop.f32.mrb[0].mxu0
    %v1856 = vadd.f32 0.0, %v1855
    %v1857 = vpop.f32.mrb[0].mxu0
    %1858 = vmatprep.mubr.f32.mxu0 0.0
    %1859 = vmatmul.mubr.f32.gmra.mrb[0].mxu0 %v1519
    %v1860 = vpop.f32.mrb[0].mxu0
    %v1861 = vadd.f32 0.0, %v1860
    %v1862 = vpop.f32.mrb[0].mxu0
    %1863 = vmatprep.mubr.f32.mxu0 0.0
    %1864 = vmatmul.mubr.f32.gmra.mrb[0].mxu0 %v1522
    %v1865 = vpop.f32.mrb[0].mxu0
    %v1866 = vadd.f32 0.0, %v1865
    %v1867 = vpop.f32.mrb[0].mxu0
    %1868 = vmatprep.mubr.f32.mxu0 0.0
    %1869 = vmatmul.mubr.f32.gmra.mrb[0].mxu0 %v1525
    %v1870 = vpop.f32.mrb[0].mxu0
    %v1871 = vadd.f32 0.0, %v1870
    %v1872 = vpop.f32.mrb[0].mxu0
    %1873 = vmatprep.mubr.f32.mxu0 0.0
    %1874 = vmatmul.mubr.f32.gmra.mrb[0].mxu0 %v1528
    %v1875 = vpop.f32.mrb[0].mxu0
    %v1876 = vadd.f32 0.0, %v1875
    %v1877 = vpop.f32.mrb[0].mxu0
    %1878 = vmatprep.mubr.f32.mxu0 0.0
    %1879 = vmatmul.mubr.f32.gmra.mrb[0].mxu0 %v1531
    %v1880 = vpop.f32.mrb[0].mxu0
    %v1881 = vadd.f32 0.0, %v1880
    %v1882 = vpop.f32.mrb[0].mxu0
    %1883 = vmatprep.mubr.f32.mxu0 0.0
    %1884 = vmatmul.mubr.f32.gmra.mrb[0].mxu0 %v1534
    %v1885 = vpop.f32.mrb[0].mxu0
    %v1886 = vadd.f32 0.0, %v1885
    %v1887 = vpop.f32.mrb[0].mxu0
    %1888 = vmatprep.mubr.f32.mxu0 0.0
    %1889 = vmatmul.mubr.f32.gmra.mrb[0].mxu0 %v1537
    %v1890 = vpop.f32.mrb[0].mxu0
    %v1891 = vadd.f32 0.0, %v1890
    %v1892 = vpop.f32.mrb[0].mxu0
    %1893 = vmatprep.mubr.f32.mxu0 0.0
    %1894 = vmatmul.mubr.f32.gmra.mrb[0].mxu0 %v1540
    %v1895 = vpop.f32.mrb[0].mxu0
    %v1896 = vadd.f32 0.0, %v1895
    %v1897 = vpop.f32.mrb[0].mxu0
    %1898 = vmatprep.mubr.f32.mxu0 0.0
    %1899 = vmatmul.mubr.f32.gmra.mrb[0].mxu0 %v1543
    %v1900 = vpop.f32.mrb[0].mxu0
    %v1901 = vadd.f32 0.0, %v1900
    %v1902 = vpop.f32.mrb[0].mxu0
    %1903 = vmatprep.mubr.f32.mxu0 0.0
    %1904 = vmatmul.mubr.f32.gmra.mrb[0].mxu0 %v1546
    %v1905 = vpop.f32.mrb[0].mxu0
    %v1906 = vadd.f32 0.0, %v1905
    %v1907 = vpop.f32.mrb[0].mxu0
    %1908 = vmatprep.mubr.f32.mxu0 0.0
    %1909 = vmatmul.mubr.f32.gmra.mrb[0].mxu0 %v1549
    %v1910 = vpop.f32.mrb[0].mxu0
    %v1911 = vadd.f32 0.0, %v1910
    %v1912 = vpop.f32.mrb[0].mxu0
    %1913 = vmatprep.mubr.f32.mxu0 0.0
    %1914 = vmatmul.mubr.f32.gmra.mrb[0].mxu0 %v1552
    %v1915 = vpop.f32.mrb[0].mxu0
    %v1916 = vadd.f32 0.0, %v1915
    %v1917 = vpop.f32.mrb[0].mxu0
    %1918 = vmatprep.mubr.f32.mxu0 0.0
    %1919 = vmatmul.mubr.f32.gmra.mrb[0].mxu0 %v1555
    %v1920 = vpop.f32.mrb[0].mxu0
    %v1921 = vadd.f32 0.0, %v1920
    %v1922 = vpop.f32.mrb[0].mxu0
    %1923 = vmatprep.mubr.f32.mxu0 0.0
    %1924 = vmatmul.mubr.f32.gmra.mrb[0].mxu0 %v1558
    %v1925 = vpop.f32.mrb[0].mxu0
    %v1926 = vadd.f32 0.0, %v1925
    %v1927 = vpop.f32.mrb[0].mxu0
    %1928 = vmatprep.mubr.f32.mxu0 0.0
    %1929 = vmatmul.mubr.f32.gmra.mrb[0].mxu0 %v1561
    %v1930 = vpop.f32.mrb[0].mxu0
    %v1931 = vadd.f32 0.0, %v1930
    %v1932 = vpop.f32.mrb[0].mxu0
    %1933 = vmatprep.mubr.f32.mxu0 0.0
    %1934 = vmatmul.mubr.f32.gmra.mrb[0].mxu0 %v1564
    %v1935 = vpop.f32.mrb[0].mxu0
    %v1936 = vadd.f32 0.0, %v1935
    %v1937 = vpop.f32.mrb[0].mxu0
    %1938 = vmatprep.mubr.f32.mxu0 0.0
    %1939 = vmatmul.mubr.f32.gmra.mrb[0].mxu0 %v1567
    %v1940 = vpop.f32.mrb[0].mxu0
    %v1941 = vadd.f32 0.0, %v1940
    %v1942 = vpop.f32.mrb[0].mxu0
    %1943 = vmatprep.mubr.f32.mxu0 0.0
    %1944 = vmatmul.mubr.f32.gmra.mrb[0].mxu0 %v1570
    %v1945 = vpop.f32.mrb[0].mxu0
    %v1946 = vadd.f32 0.0, %v1945
    %v1947 = vpop.f32.mrb[0].mxu0
    %1948 = vmatprep.mubr.f32.mxu0 0.0
    %1949 = vmatmul.mubr.f32.gmra.mrb[0].mxu0 %v1573
    %v1950 = vpop.f32.mrb[0].mxu0
    %v1951 = vadd.f32 0.0, %v1950
    %v1952 = vpop.f32.mrb[0].mxu0
    %1953 = vmatprep.mubr.f32.mxu0 0.0
    %1954 = vmatmul.mubr.f32.gmra.mrb[0].mxu0 %v1576
    %v1955 = vpop.f32.mrb[0].mxu0
    %v1956 = vadd.f32 0.0, %v1955
    %v1957 = vpop.f32.mrb[0].mxu0
    %1958 = vmatprep.mubr.f32.mxu0 0.0
    %1959 = vmatmul.mubr.f32.gmra.mrb[0].mxu0 %v1579
    %v1960 = vpop.f32.mrb[0].mxu0
    %v1961 = vadd.f32 0.0, %v1960
    %v1962 = vpop.f32.mrb[0].mxu0
    %1963 = vmatprep.mubr.f32.mxu0 0.0
    %1964 = vmatmul.mubr.f32.gmra.mrb[0].mxu0 %v1582
    %v1965 = vpop.f32.mrb[0].mxu0
    %v1966 = vadd.f32 0.0, %v1965
    %v1967 = vpop.f32.mrb[0].mxu0
    %1968 = vdwg.mxu0
    %v1969 = vadd.f32 %v1002, %v1651
    %v1970 = vadd.f32 %v1007, %v1656
    %v1971 = vadd.f32 %v1012, %v1661
    %v1972 = vadd.f32 %v1017, %v1666
    %v1973 = vadd.f32 %v1022, %v1671
    %v1974 = vadd.f32 %v1027, %v1676
    %v1975 = vadd.f32 %v1032, %v1681
    %v1976 = vadd.f32 %v1037, %v1686
    %v1977 = vadd.f32 %v1042, %v1691
    %v1978 = vadd.f32 %v1047, %v1696
    %v1979 = vadd.f32 %v1052, %v1701
    %v1980 = vadd.f32 %v1057, %v1706
    %v1981 = vadd.f32 %v1062, %v1711
    %v1982 = vadd.f32 %v1067, %v1716
    %v1983 = vadd.f32 %v1072, %v1721
    %v1984 = vadd.f32 %v1077, %v1726
    %v1985 = vadd.f32 %v1082, %v1731
    %v1986 = vadd.f32 %v1087, %v1736
    %v1987 = vadd.f32 %v1092, %v1741
    %v1988 = vadd.f32 %v1097, %v1746
    %v1989 = vadd.f32 %v1102, %v1751
    %v1990 = vadd.f32 %v1107, %v1756
    %v1991 = vadd.f32 %v1112, %v1761
    %v1992 = vadd.f32 %v1117, %v1766
    %v1993 = vadd.f32 %v1122, %v1771
    %v1994 = vadd.f32 %v1127, %v1776
    %v1995 = vadd.f32 %v1132, %v1781
    %v1996 = vadd.f32 %v1137, %v1786
    %v1997 = vadd.f32 %v1142, %v1791
    %v1998 = vadd.f32 %v1147, %v1796
    %v1999 = vadd.f32 %v1152, %v1801
    %v2000 = vadd.f32 %v1157, %v1806
    %v2001 = vadd.f32 %v1162, %v1811
    %v2002 = vadd.f32 %v1167, %v1816
    %v2003 = vadd.f32 %v1172, %v1821
    %v2004 = vadd.f32 %v1177, %v1826
    %v2005 = vadd.f32 %v1182, %v1831
    %v2006 = vadd.f32 %v1187, %v1836
    %v2007 = vadd.f32 %v1192, %v1841
    %v2008 = vadd.f32 %v1197, %v1846
    %v2009 = vadd.f32 %v1202, %v1851
    %v2010 = vadd.f32 %v1207, %v1856
    %v2011 = vadd.f32 %v1212, %v1861
    %v2012 = vadd.f32 %v1217, %v1866
    %v2013 = vadd.f32 %v1222, %v1871
    %v2014 = vadd.f32 %v1227, %v1876
    %v2015 = vadd.f32 %v1232, %v1881
    %v2016 = vadd.f32 %v1237, %v1886
    %v2017 = vadd.f32 %v1242, %v1891
    %v2018 = vadd.f32 %v1247, %v1896
    %v2019 = vadd.f32 %v1252, %v1901
    %v2020 = vadd.f32 %v1257, %v1906
    %v2021 = vadd.f32 %v1262, %v1911
    %v2022 = vadd.f32 %v1267, %v1916
    %v2023 = vadd.f32 %v1272, %v1921
    %v2024 = vadd.f32 %v1277, %v1926
    %v2025 = vadd.f32 %v1282, %v1931
    %v2026 = vadd.f32 %v1287, %v1936
    %v2027 = vadd.f32 %v1292, %v1941
    %v2028 = vadd.f32 %v1297, %v1946
    %v2029 = vadd.f32 %v1302, %v1951
    %v2030 = vadd.f32 %v1307, %v1956
    %v2031 = vadd.f32 %v1312, %v1961
    %v2032 = vadd.f32 %v1317, %v1966
    %s2033 = scalar_lea.vmem %s0, 16
    %v2034 = vld [vmem:[%s2033] sm:$0xff]
    %v2035 = vld [vmem:[%s2033 + $0x10] sm:$0xff]
    %v2036 = vld [vmem:[%s2033 + $0x20] sm:$0xff]
    %v2037 = vld [vmem:[%s2033 + $0x30] sm:$0xff]
    %v2038 = vld [vmem:[%s2033 + $0x40] sm:$0xff]
    %v2039 = vld [vmem:[%s2033 + $0x50] sm:$0xff]
    %v2040 = vld [vmem:[%s2033 + $0x60] sm:$0xff]
    %v2041 = vld [vmem:[%s2033 + $0x70] sm:$0xff]
    %v2042 = vld [vmem:[%s2033 + $0xa0] sm:$0xff]
    %v2043 = vld [vmem:[%s2033 + $0xb0] sm:$0xff]
    %v2044 = vld [vmem:[%s2033 + $0xc0] sm:$0xff]
    %v2045 = vld [vmem:[%s2033 + $0xd0] sm:$0xff]
    %v2046 = vld [vmem:[%s2033 + $0xe0] sm:$0xff]
    %v2047 = vld [vmem:[%s2033 + $0xf0] sm:$0xff]
    %v2048 = vld [vmem:[%s2033 + $0x100] sm:$0xff]
    %v2049 = vld [vmem:[%s2033 + $0x110] sm:$0xff]
    %v2050 = vld [vmem:[%s2033 + $0x140] sm:$0xff]
    %v2051 = vld [vmem:[%s2033 + $0x150] sm:$0xff]
    %v2052 = vld [vmem:[%s2033 + $0x160] sm:$0xff]
    %v2053 = vld [vmem:[%s2033 + $0x170] sm:$0xff]
    %v2054 = vld [vmem:[%s2033 + $0x180] sm:$0xff]
    %v2055 = vld [vmem:[%s2033 + $0x190] sm:$0xff]
    %v2056 = vld [vmem:[%s2033 + $0x1a0] sm:$0xff]
    %v2057 = vld [vmem:[%s2033 + $0x1b0] sm:$0xff]
    %v2058 = vld [vmem:[%s2033 + $0x1e0] sm:$0xff]
    %v2059 = vld [vmem:[%s2033 + $0x1f0] sm:$0xff]
    %v2060 = vld [vmem:[%s2033 + $0x200] sm:$0xff]
    %v2061 = vld [vmem:[%s2033 + $0x210] sm:$0xff]
    %v2062 = vld [vmem:[%s2033 + $0x220] sm:$0xff]
    %v2063 = vld [vmem:[%s2033 + $0x230] sm:$0xff]
    %v2064 = vld [vmem:[%s2033 + $0x240] sm:$0xff]
    %v2065 = vld [vmem:[%s2033 + $0x250] sm:$0xff]
    %v2066 = vld [vmem:[%s2033 + $0x280] sm:$0xff]
    %v2067 = vld [vmem:[%s2033 + $0x290] sm:$0xff]
    %v2068 = vld [vmem:[%s2033 + $0x2a0] sm:$0xff]
    %v2069 = vld [vmem:[%s2033 + $0x2b0] sm:$0xff]
    %v2070 = vld [vmem:[%s2033 + $0x2c0] sm:$0xff]
    %v2071 = vld [vmem:[%s2033 + $0x2d0] sm:$0xff]
    %v2072 = vld [vmem:[%s2033 + $0x2e0] sm:$0xff]
    %v2073 = vld [vmem:[%s2033 + $0x2f0] sm:$0xff]
    %v2074 = vld [vmem:[%s2033 + $0x320] sm:$0xff]
    %v2075 = vld [vmem:[%s2033 + $0x330] sm:$0xff]
    %v2076 = vld [vmem:[%s2033 + $0x340] sm:$0xff]
    %v2077 = vld [vmem:[%s2033 + $0x350] sm:$0xff]
    %v2078 = vld [vmem:[%s2033 + $0x360] sm:$0xff]
    %v2079 = vld [vmem:[%s2033 + $0x370] sm:$0xff]
    %v2080 = vld [vmem:[%s2033 + $0x380] sm:$0xff]
    %v2081 = vld [vmem:[%s2033 + $0x390] sm:$0xff]
    %v2082 = vld [vmem:[%s2033 + $0x3c0] sm:$0xff]
    %v2083 = vld [vmem:[%s2033 + $0x3d0] sm:$0xff]
    %v2084 = vld [vmem:[%s2033 + $0x3e0] sm:$0xff]
    %v2085 = vld [vmem:[%s2033 + $0x3f0] sm:$0xff]
    %v2086 = vld [vmem:[%s2033 + $0x400] sm:$0xff]
    %v2087 = vld [vmem:[%s2033 + $0x410] sm:$0xff]
    %v2088 = vld [vmem:[%s2033 + $0x420] sm:$0xff]
    %v2089 = vld [vmem:[%s2033 + $0x430] sm:$0xff]
    %v2090 = vld [vmem:[%s2033 + $0x460] sm:$0xff]
    %v2091 = vld [vmem:[%s2033 + $0x470] sm:$0xff]
    %v2092 = vld [vmem:[%s2033 + $0x480] sm:$0xff]
    %v2093 = vld [vmem:[%s2033 + $0x490] sm:$0xff]
    %v2094 = vld [vmem:[%s2033 + $0x4a0] sm:$0xff]
    %v2095 = vld [vmem:[%s2033 + $0x4b0] sm:$0xff]
    %v2096 = vld [vmem:[%s2033 + $0x4c0] sm:$0xff]
    %v2097 = vld [vmem:[%s2033 + $0x4d0] sm:$0xff]
    %v2098 = vld [vmem:[%s1 + $0xc0] sm:$0xff]
    %v2099 = vld [vmem:[%s1 + $0xc8] sm:$0xff]
    %v2100 = vld [vmem:[%s1 + $0xd0] sm:$0xff]
    %v2101 = vld [vmem:[%s1 + $0xd8] sm:$0xff]
    %v2102 = vld [vmem:[%s1 + $0xe0] sm:$0xff]
    %v2103 = vld [vmem:[%s1 + $0xe8] sm:$0xff]
    %v2104 = vld [vmem:[%s1 + $0xf0] sm:$0xff]
    %v2105 = vld [vmem:[%s1 + $0xf8] sm:$0xff]
    %v2107 = vsel %vm165, %v2034, 0
    %v2110 = vsel %vm165, %v2035, 0
    %v2113 = vsel %vm165, %v2036, 0
    %v2116 = vsel %vm165, %v2037, 0
    %v2119 = vsel %vm165, %v2038, 0
    %v2122 = vsel %vm165, %v2039, 0
    %v2125 = vsel %vm165, %v2040, 0
    %v2128 = vsel %vm165, %v2041, 0
    %v2131 = vsel %vm165, %v2042, 0
    %v2134 = vsel %vm165, %v2043, 0
    %v2137 = vsel %vm165, %v2044, 0
    %v2140 = vsel %vm165, %v2045, 0
    %v2143 = vsel %vm165, %v2046, 0
    %v2146 = vsel %vm165, %v2047, 0
    %v2149 = vsel %vm165, %v2048, 0
    %v2152 = vsel %vm165, %v2049, 0
    %v2155 = vsel %vm165, %v2050, 0
    %v2158 = vsel %vm165, %v2051, 0
    %v2161 = vsel %vm165, %v2052, 0
    %v2164 = vsel %vm165, %v2053, 0
    %v2167 = vsel %vm165, %v2054, 0
    %v2170 = vsel %vm165, %v2055, 0
    %v2173 = vsel %vm165, %v2056, 0
    %v2176 = vsel %vm165, %v2057, 0
    %v2179 = vsel %vm165, %v2058, 0
    %v2182 = vsel %vm165, %v2059, 0
    %v2185 = vsel %vm165, %v2060, 0
    %v2188 = vsel %vm165, %v2061, 0
    %v2191 = vsel %vm165, %v2062, 0
    %v2194 = vsel %vm165, %v2063, 0
    %v2197 = vsel %vm165, %v2064, 0
    %v2200 = vsel %vm165, %v2065, 0
    %v2203 = vsel %vm165, %v2066, 0
    %v2206 = vsel %vm165, %v2067, 0
    %v2209 = vsel %vm165, %v2068, 0
    %v2212 = vsel %vm165, %v2069, 0
    %v2215 = vsel %vm165, %v2070, 0
    %v2218 = vsel %vm165, %v2071, 0
    %v2221 = vsel %vm165, %v2072, 0
    %v2224 = vsel %vm165, %v2073, 0
    %v2227 = vsel %vm165, %v2074, 0
    %v2230 = vsel %vm165, %v2075, 0
    %v2233 = vsel %vm165, %v2076, 0
    %v2236 = vsel %vm165, %v2077, 0
    %v2239 = vsel %vm165, %v2078, 0
    %v2242 = vsel %vm165, %v2079, 0
    %v2245 = vsel %vm165, %v2080, 0
    %v2248 = vsel %vm165, %v2081, 0
    %v2251 = vsel %vm165, %v2082, 0
    %v2254 = vsel %vm165, %v2083, 0
    %v2257 = vsel %vm165, %v2084, 0
    %v2260 = vsel %vm165, %v2085, 0
    %v2263 = vsel %vm165, %v2086, 0
    %v2266 = vsel %vm165, %v2087, 0
    %v2269 = vsel %vm165, %v2088, 0
    %v2272 = vsel %vm165, %v2089, 0
    %v2275 = vsel %vm165, %v2090, 0
    %v2278 = vsel %vm165, %v2091, 0
    %v2281 = vsel %vm165, %v2092, 0
    %v2284 = vsel %vm165, %v2093, 0
    %v2287 = vsel %vm165, %v2094, 0
    %v2290 = vsel %vm165, %v2095, 0
    %v2293 = vsel %vm165, %v2096, 0
    %v2296 = vsel %vm165, %v2097, 0
    %2298 = vmatprep.subr.mxu0 0.0
    %2299 = vmatpush1.msra.mxu0 %v2098
    %2300 = vmatprep.subr.mxu0 0.0
    %2301 = vmatpush1.msra.mxu0 %v2099
    %2302 = vmatprep.subr.mxu0 0.0
    %2303 = vmatpush1.msra.mxu0 %v2100
    %2304 = vmatprep.subr.mxu0 0.0
    %2305 = vmatpush1.msra.mxu0 %v2101
    %2306 = vmatprep.subr.mxu0 0.0
    %2307 = vmatpush1.msra.mxu0 %v2102
    %2308 = vmatprep.subr.mxu0 0.0
    %2309 = vmatpush1.msra.mxu0 %v2103
    %2310 = vmatprep.subr.mxu0 0.0
    %2311 = vmatpush1.msra.mxu0 %v2104
    %2312 = vmatprep.subr.mxu0 0.0
    %2313 = vmatpush1.msra.mxu0 %v2105
    %2314 = vmatprep.subr.mxu0 0.0
    %2315 = vmatpush1.msra.mxu0 0.0
    %2316 = vmatprep.subr.mxu0 0.0
    %2317 = vmatpush1.msra.mxu0 0.0
    %2318 = vmatprep.subr.mxu0 0.0
    %2319 = vmatpush1.msra.mxu0 0.0
    %2320 = vmatprep.subr.mxu0 0.0
    %2321 = vmatpush1.msra.mxu0 0.0
    %2322 = vmatprep.subr.mxu0 0.0
    %2323 = vmatpush1.msra.mxu0 0.0
    %2324 = vmatprep.subr.mxu0 0.0
    %2325 = vmatpush1.msra.mxu0 0.0
    %2326 = vmatprep.subr.mxu0 0.0
    %2327 = vmatpush1.msra.mxu0 0.0
    %2328 = vmatprep.subr.mxu0 0.0
    %2329 = vmatpush1.msra.mxu0 0.0
    %2330 = vmatprep.subr.mxu0 0.0
    %2331 = vmatpush1.msra.mxu0 0.0
    %2332 = vmatprep.subr.mxu0 0.0
    %2333 = vmatpush1.msra.mxu0 0.0
    %2334 = vmatprep.subr.mxu0 0.0
    %2335 = vmatpush1.msra.mxu0 0.0
    %2336 = vmatprep.subr.mxu0 0.0
    %2337 = vmatpush1.msra.mxu0 0.0
    %2338 = vmatprep.subr.mxu0 0.0
    %2339 = vmatpush1.msra.mxu0 0.0
    %2340 = vmatprep.subr.mxu0 0.0
    %2341 = vmatpush1.msra.mxu0 0.0
    %2342 = vmatprep.subr.mxu0 0.0
    %2343 = vmatpush1.msra.mxu0 0.0
    %2344 = vmatprep.subr.mxu0 0.0
    %2345 = vmatpush1.msra.mxu0 0.0
    %2346 = vmatprep.subr.mxu0 0.0
    %2347 = vmatpush1.msra.mxu0 0.0
    %2348 = vmatprep.subr.mxu0 0.0
    %2349 = vmatpush1.msra.mxu0 0.0
    %2350 = vmatprep.subr.mxu0 0.0
    %2351 = vmatpush1.msra.mxu0 0.0
    %2352 = vmatprep.subr.mxu0 0.0
    %2353 = vmatpush1.msra.mxu0 0.0
    %2354 = vmatprep.subr.mxu0 0.0
    %2355 = vmatpush1.msra.mxu0 0.0
    %2356 = vmatprep.subr.mxu0 0.0
    %2357 = vmatpush1.msra.mxu0 0.0
    %2358 = vmatprep.subr.mxu0 0.0
    %2359 = vmatpush1.msra.mxu0 0.0
    %2360 = vmatprep.subr.mxu0 0.0
    %2361 = vmatpush1.msra.mxu0 0.0
    %2362 = vmatprep.mubr.f32.mxu0 0.0
    %2363 = vmatmul.mubr.f32.gmra.mrb[0].mxu0 %v2107
    %v2364 = vpop.f32.mrb[0].mxu0
    %v2365 = vadd.f32 0.0, %v2364
    %v2366 = vpop.f32.mrb[0].mxu0
    %2367 = vmatprep.mubr.f32.mxu0 0.0
    %2368 = vmatmul.mubr.f32.gmra.mrb[0].mxu0 %v2110
    %v2369 = vpop.f32.mrb[0].mxu0
    %v2370 = vadd.f32 0.0, %v2369
    %v2371 = vpop.f32.mrb[0].mxu0
    %2372 = vmatprep.mubr.f32.mxu0 0.0
    %2373 = vmatmul.mubr.f32.gmra.mrb[0].mxu0 %v2113
    %v2374 = vpop.f32.mrb[0].mxu0
    %v2375 = vadd.f32 0.0, %v2374
    %v2376 = vpop.f32.mrb[0].mxu0
    %2377 = vmatprep.mubr.f32.mxu0 0.0
    %2378 = vmatmul.mubr.f32.gmra.mrb[0].mxu0 %v2116
    %v2379 = vpop.f32.mrb[0].mxu0
    %v2380 = vadd.f32 0.0, %v2379
    %v2381 = vpop.f32.mrb[0].mxu0
    %2382 = vmatprep.mubr.f32.mxu0 0.0
    %2383 = vmatmul.mubr.f32.gmra.mrb[0].mxu0 %v2119
    %v2384 = vpop.f32.mrb[0].mxu0
    %v2385 = vadd.f32 0.0, %v2384
    %v2386 = vpop.f32.mrb[0].mxu0
    %2387 = vmatprep.mubr.f32.mxu0 0.0
    %2388 = vmatmul.mubr.f32.gmra.mrb[0].mxu0 %v2122
    %v2389 = vpop.f32.mrb[0].mxu0
    %v2390 = vadd.f32 0.0, %v2389
    %v2391 = vpop.f32.mrb[0].mxu0
    %2392 = vmatprep.mubr.f32.mxu0 0.0
    %2393 = vmatmul.mubr.f32.gmra.mrb[0].mxu0 %v2125
    %v2394 = vpop.f32.mrb[0].mxu0
    %v2395 = vadd.f32 0.0, %v2394
    %v2396 = vpop.f32.mrb[0].mxu0
    %2397 = vmatprep.mubr.f32.mxu0 0.0
    %2398 = vmatmul.mubr.f32.gmra.mrb[0].mxu0 %v2128
    %v2399 = vpop.f32.mrb[0].mxu0
    %v2400 = vadd.f32 0.0, %v2399
    %v2401 = vpop.f32.mrb[0].mxu0
    %2402 = vmatprep.mubr.f32.mxu0 0.0
    %2403 = vmatmul.mubr.f32.gmra.mrb[0].mxu0 %v2131
    %v2404 = vpop.f32.mrb[0].mxu0
    %v2405 = vadd.f32 0.0, %v2404
    %v2406 = vpop.f32.mrb[0].mxu0
    %2407 = vmatprep.mubr.f32.mxu0 0.0
    %2408 = vmatmul.mubr.f32.gmra.mrb[0].mxu0 %v2134
    %v2409 = vpop.f32.mrb[0].mxu0
    %v2410 = vadd.f32 0.0, %v2409
    %v2411 = vpop.f32.mrb[0].mxu0
    %2412 = vmatprep.mubr.f32.mxu0 0.0
    %2413 = vmatmul.mubr.f32.gmra.mrb[0].mxu0 %v2137
    %v2414 = vpop.f32.mrb[0].mxu0
    %v2415 = vadd.f32 0.0, %v2414
    %v2416 = vpop.f32.mrb[0].mxu0
    %2417 = vmatprep.mubr.f32.mxu0 0.0
    %2418 = vmatmul.mubr.f32.gmra.mrb[0].mxu0 %v2140
    %v2419 = vpop.f32.mrb[0].mxu0
    %v2420 = vadd.f32 0.0, %v2419
    %v2421 = vpop.f32.mrb[0].mxu0
    %2422 = vmatprep.mubr.f32.mxu0 0.0
    %2423 = vmatmul.mubr.f32.gmra.mrb[0].mxu0 %v2143
    %v2424 = vpop.f32.mrb[0].mxu0
    %v2425 = vadd.f32 0.0, %v2424
    %v2426 = vpop.f32.mrb[0].mxu0
    %2427 = vmatprep.mubr.f32.mxu0 0.0
    %2428 = vmatmul.mubr.f32.gmra.mrb[0].mxu0 %v2146
    %v2429 = vpop.f32.mrb[0].mxu0
    %v2430 = vadd.f32 0.0, %v2429
    %v2431 = vpop.f32.mrb[0].mxu0
    %2432 = vmatprep.mubr.f32.mxu0 0.0
    %2433 = vmatmul.mubr.f32.gmra.mrb[0].mxu0 %v2149
    %v2434 = vpop.f32.mrb[0].mxu0
    %v2435 = vadd.f32 0.0, %v2434
    %v2436 = vpop.f32.mrb[0].mxu0
    %2437 = vmatprep.mubr.f32.mxu0 0.0
    %2438 = vmatmul.mubr.f32.gmra.mrb[0].mxu0 %v2152
    %v2439 = vpop.f32.mrb[0].mxu0
    %v2440 = vadd.f32 0.0, %v2439
    %v2441 = vpop.f32.mrb[0].mxu0
    %2442 = vmatprep.mubr.f32.mxu0 0.0
    %2443 = vmatmul.mubr.f32.gmra.mrb[0].mxu0 %v2155
    %v2444 = vpop.f32.mrb[0].mxu0
    %v2445 = vadd.f32 0.0, %v2444
    %v2446 = vpop.f32.mrb[0].mxu0
    %2447 = vmatprep.mubr.f32.mxu0 0.0
    %2448 = vmatmul.mubr.f32.gmra.mrb[0].mxu0 %v2158
    %v2449 = vpop.f32.mrb[0].mxu0
    %v2450 = vadd.f32 0.0, %v2449
    %v2451 = vpop.f32.mrb[0].mxu0
    %2452 = vmatprep.mubr.f32.mxu0 0.0
    %2453 = vmatmul.mubr.f32.gmra.mrb[0].mxu0 %v2161
    %v2454 = vpop.f32.mrb[0].mxu0
    %v2455 = vadd.f32 0.0, %v2454
    %v2456 = vpop.f32.mrb[0].mxu0
    %2457 = vmatprep.mubr.f32.mxu0 0.0
    %2458 = vmatmul.mubr.f32.gmra.mrb[0].mxu0 %v2164
    %v2459 = vpop.f32.mrb[0].mxu0
    %v2460 = vadd.f32 0.0, %v2459
    %v2461 = vpop.f32.mrb[0].mxu0
    %2462 = vmatprep.mubr.f32.mxu0 0.0
    %2463 = vmatmul.mubr.f32.gmra.mrb[0].mxu0 %v2167
    %v2464 = vpop.f32.mrb[0].mxu0
    %v2465 = vadd.f32 0.0, %v2464
    %v2466 = vpop.f32.mrb[0].mxu0
    %2467 = vmatprep.mubr.f32.mxu0 0.0
    %2468 = vmatmul.mubr.f32.gmra.mrb[0].mxu0 %v2170
    %v2469 = vpop.f32.mrb[0].mxu0
    %v2470 = vadd.f32 0.0, %v2469
    %v2471 = vpop.f32.mrb[0].mxu0
    %2472 = vmatprep.mubr.f32.mxu0 0.0
    %2473 = vmatmul.mubr.f32.gmra.mrb[0].mxu0 %v2173
    %v2474 = vpop.f32.mrb[0].mxu0
    %v2475 = vadd.f32 0.0, %v2474
    %v2476 = vpop.f32.mrb[0].mxu0
    %2477 = vmatprep.mubr.f32.mxu0 0.0
    %2478 = vmatmul.mubr.f32.gmra.mrb[0].mxu0 %v2176
    %v2479 = vpop.f32.mrb[0].mxu0
    %v2480 = vadd.f32 0.0, %v2479
    %v2481 = vpop.f32.mrb[0].mxu0
    %2482 = vmatprep.mubr.f32.mxu0 0.0
    %2483 = vmatmul.mubr.f32.gmra.mrb[0].mxu0 %v2179
    %v2484 = vpop.f32.mrb[0].mxu0
    %v2485 = vadd.f32 0.0, %v2484
    %v2486 = vpop.f32.mrb[0].mxu0
    %2487 = vmatprep.mubr.f32.mxu0 0.0
    %2488 = vmatmul.mubr.f32.gmra.mrb[0].mxu0 %v2182
    %v2489 = vpop.f32.mrb[0].mxu0
    %v2490 = vadd.f32 0.0, %v2489
    %v2491 = vpop.f32.mrb[0].mxu0
    %2492 = vmatprep.mubr.f32.mxu0 0.0
    %2493 = vmatmul.mubr.f32.gmra.mrb[0].mxu0 %v2185
    %v2494 = vpop.f32.mrb[0].mxu0
    %v2495 = vadd.f32 0.0, %v2494
    %v2496 = vpop.f32.mrb[0].mxu0
    %2497 = vmatprep.mubr.f32.mxu0 0.0
    %2498 = vmatmul.mubr.f32.gmra.mrb[0].mxu0 %v2188
    %v2499 = vpop.f32.mrb[0].mxu0
    %v2500 = vadd.f32 0.0, %v2499
    %v2501 = vpop.f32.mrb[0].mxu0
    %2502 = vmatprep.mubr.f32.mxu0 0.0
    %2503 = vmatmul.mubr.f32.gmra.mrb[0].mxu0 %v2191
    %v2504 = vpop.f32.mrb[0].mxu0
    %v2505 = vadd.f32 0.0, %v2504
    %v2506 = vpop.f32.mrb[0].mxu0
    %2507 = vmatprep.mubr.f32.mxu0 0.0
    %2508 = vmatmul.mubr.f32.gmra.mrb[0].mxu0 %v2194
    %v2509 = vpop.f32.mrb[0].mxu0
    %v2510 = vadd.f32 0.0, %v2509
    %v2511 = vpop.f32.mrb[0].mxu0
    %2512 = vmatprep.mubr.f32.mxu0 0.0
    %2513 = vmatmul.mubr.f32.gmra.mrb[0].mxu0 %v2197
    %v2514 = vpop.f32.mrb[0].mxu0
    %v2515 = vadd.f32 0.0, %v2514
    %v2516 = vpop.f32.mrb[0].mxu0
    %2517 = vmatprep.mubr.f32.mxu0 0.0
    %2518 = vmatmul.mubr.f32.gmra.mrb[0].mxu0 %v2200
    %v2519 = vpop.f32.mrb[0].mxu0
    %v2520 = vadd.f32 0.0, %v2519
    %v2521 = vpop.f32.mrb[0].mxu0
    %2522 = vmatprep.mubr.f32.mxu0 0.0
    %2523 = vmatmul.mubr.f32.gmra.mrb[0].mxu0 %v2203
    %v2524 = vpop.f32.mrb[0].mxu0
    %v2525 = vadd.f32 0.0, %v2524
    %v2526 = vpop.f32.mrb[0].mxu0
    %2527 = vmatprep.mubr.f32.mxu0 0.0
    %2528 = vmatmul.mubr.f32.gmra.mrb[0].mxu0 %v2206
    %v2529 = vpop.f32.mrb[0].mxu0
    %v2530 = vadd.f32 0.0, %v2529
    %v2531 = vpop.f32.mrb[0].mxu0
    %2532 = vmatprep.mubr.f32.mxu0 0.0
    %2533 = vmatmul.mubr.f32.gmra.mrb[0].mxu0 %v2209
    %v2534 = vpop.f32.mrb[0].mxu0
    %v2535 = vadd.f32 0.0, %v2534
    %v2536 = vpop.f32.mrb[0].mxu0
    %2537 = vmatprep.mubr.f32.mxu0 0.0
    %2538 = vmatmul.mubr.f32.gmra.mrb[0].mxu0 %v2212
    %v2539 = vpop.f32.mrb[0].mxu0
    %v2540 = vadd.f32 0.0, %v2539
    %v2541 = vpop.f32.mrb[0].mxu0
    %2542 = vmatprep.mubr.f32.mxu0 0.0
    %2543 = vmatmul.mubr.f32.gmra.mrb[0].mxu0 %v2215
    %v2544 = vpop.f32.mrb[0].mxu0
    %v2545 = vadd.f32 0.0, %v2544
    %v2546 = vpop.f32.mrb[0].mxu0
    %2547 = vmatprep.mubr.f32.mxu0 0.0
    %2548 = vmatmul.mubr.f32.gmra.mrb[0].mxu0 %v2218
    %v2549 = vpop.f32.mrb[0].mxu0
    %v2550 = vadd.f32 0.0, %v2549
    %v2551 = vpop.f32.mrb[0].mxu0
    %2552 = vmatprep.mubr.f32.mxu0 0.0
    %2553 = vmatmul.mubr.f32.gmra.mrb[0].mxu0 %v2221
    %v2554 = vpop.f32.mrb[0].mxu0
    %v2555 = vadd.f32 0.0, %v2554
    %v2556 = vpop.f32.mrb[0].mxu0
    %2557 = vmatprep.mubr.f32.mxu0 0.0
    %2558 = vmatmul.mubr.f32.gmra.mrb[0].mxu0 %v2224
    %v2559 = vpop.f32.mrb[0].mxu0
    %v2560 = vadd.f32 0.0, %v2559
    %v2561 = vpop.f32.mrb[0].mxu0
    %2562 = vmatprep.mubr.f32.mxu0 0.0
    %2563 = vmatmul.mubr.f32.gmra.mrb[0].mxu0 %v2227
    %v2564 = vpop.f32.mrb[0].mxu0
    %v2565 = vadd.f32 0.0, %v2564
    %v2566 = vpop.f32.mrb[0].mxu0
    %2567 = vmatprep.mubr.f32.mxu0 0.0
    %2568 = vmatmul.mubr.f32.gmra.mrb[0].mxu0 %v2230
    %v2569 = vpop.f32.mrb[0].mxu0
    %v2570 = vadd.f32 0.0, %v2569
    %v2571 = vpop.f32.mrb[0].mxu0
    %2572 = vmatprep.mubr.f32.mxu0 0.0
    %2573 = vmatmul.mubr.f32.gmra.mrb[0].mxu0 %v2233
    %v2574 = vpop.f32.mrb[0].mxu0
    %v2575 = vadd.f32 0.0, %v2574
    %v2576 = vpop.f32.mrb[0].mxu0
    %2577 = vmatprep.mubr.f32.mxu0 0.0
    %2578 = vmatmul.mubr.f32.gmra.mrb[0].mxu0 %v2236
    %v2579 = vpop.f32.mrb[0].mxu0
    %v2580 = vadd.f32 0.0, %v2579
    %v2581 = vpop.f32.mrb[0].mxu0
    %2582 = vmatprep.mubr.f32.mxu0 0.0
    %2583 = vmatmul.mubr.f32.gmra.mrb[0].mxu0 %v2239
    %v2584 = vpop.f32.mrb[0].mxu0
    %v2585 = vadd.f32 0.0, %v2584
    %v2586 = vpop.f32.mrb[0].mxu0
    %2587 = vmatprep.mubr.f32.mxu0 0.0
    %2588 = vmatmul.mubr.f32.gmra.mrb[0].mxu0 %v2242
    %v2589 = vpop.f32.mrb[0].mxu0
    %v2590 = vadd.f32 0.0, %v2589
    %v2591 = vpop.f32.mrb[0].mxu0
    %2592 = vmatprep.mubr.f32.mxu0 0.0
    %2593 = vmatmul.mubr.f32.gmra.mrb[0].mxu0 %v2245
    %v2594 = vpop.f32.mrb[0].mxu0
    %v2595 = vadd.f32 0.0, %v2594
    %v2596 = vpop.f32.mrb[0].mxu0
    %2597 = vmatprep.mubr.f32.mxu0 0.0
    %2598 = vmatmul.mubr.f32.gmra.mrb[0].mxu0 %v2248
    %v2599 = vpop.f32.mrb[0].mxu0
    %v2600 = vadd.f32 0.0, %v2599
    %v2601 = vpop.f32.mrb[0].mxu0
    %2602 = vmatprep.mubr.f32.mxu0 0.0
    %2603 = vmatmul.mubr.f32.gmra.mrb[0].mxu0 %v2251
    %v2604 = vpop.f32.mrb[0].mxu0
    %v2605 = vadd.f32 0.0, %v2604
    %v2606 = vpop.f32.mrb[0].mxu0
    %2607 = vmatprep.mubr.f32.mxu0 0.0
    %2608 = vmatmul.mubr.f32.gmra.mrb[0].mxu0 %v2254
    %v2609 = vpop.f32.mrb[0].mxu0
    %v2610 = vadd.f32 0.0, %v2609
    %v2611 = vpop.f32.mrb[0].mxu0
    %2612 = vmatprep.mubr.f32.mxu0 0.0
    %2613 = vmatmul.mubr.f32.gmra.mrb[0].mxu0 %v2257
    %v2614 = vpop.f32.mrb[0].mxu0
    %v2615 = vadd.f32 0.0, %v2614
    %v2616 = vpop.f32.mrb[0].mxu0
    %2617 = vmatprep.mubr.f32.mxu0 0.0
    %2618 = vmatmul.mubr.f32.gmra.mrb[0].mxu0 %v2260
    %v2619 = vpop.f32.mrb[0].mxu0
    %v2620 = vadd.f32 0.0, %v2619
    %v2621 = vpop.f32.mrb[0].mxu0
    %2622 = vmatprep.mubr.f32.mxu0 0.0
    %2623 = vmatmul.mubr.f32.gmra.mrb[0].mxu0 %v2263
    %v2624 = vpop.f32.mrb[0].mxu0
    %v2625 = vadd.f32 0.0, %v2624
    %v2626 = vpop.f32.mrb[0].mxu0
    %2627 = vmatprep.mubr.f32.mxu0 0.0
    %2628 = vmatmul.mubr.f32.gmra.mrb[0].mxu0 %v2266
    %v2629 = vpop.f32.mrb[0].mxu0
    %v2630 = vadd.f32 0.0, %v2629
    %v2631 = vpop.f32.mrb[0].mxu0
    %2632 = vmatprep.mubr.f32.mxu0 0.0
    %2633 = vmatmul.mubr.f32.gmra.mrb[0].mxu0 %v2269
    %v2634 = vpop.f32.mrb[0].mxu0
    %v2635 = vadd.f32 0.0, %v2634
    %v2636 = vpop.f32.mrb[0].mxu0
    %2637 = vmatprep.mubr.f32.mxu0 0.0
    %2638 = vmatmul.mubr.f32.gmra.mrb[0].mxu0 %v2272
    %v2639 = vpop.f32.mrb[0].mxu0
    %v2640 = vadd.f32 0.0, %v2639
    %v2641 = vpop.f32.mrb[0].mxu0
    %2642 = vmatprep.mubr.f32.mxu0 0.0
    %2643 = vmatmul.mubr.f32.gmra.mrb[0].mxu0 %v2275
    %v2644 = vpop.f32.mrb[0].mxu0
    %v2645 = vadd.f32 0.0, %v2644
    %v2646 = vpop.f32.mrb[0].mxu0
    %2647 = vmatprep.mubr.f32.mxu0 0.0
    %2648 = vmatmul.mubr.f32.gmra.mrb[0].mxu0 %v2278
    %v2649 = vpop.f32.mrb[0].mxu0
    %v2650 = vadd.f32 0.0, %v2649
    %v2651 = vpop.f32.mrb[0].mxu0
    %2652 = vmatprep.mubr.f32.mxu0 0.0
    %2653 = vmatmul.mubr.f32.gmra.mrb[0].mxu0 %v2281
    %v2654 = vpop.f32.mrb[0].mxu0
    %v2655 = vadd.f32 0.0, %v2654
    %v2656 = vpop.f32.mrb[0].mxu0
    %2657 = vmatprep.mubr.f32.mxu0 0.0
    %2658 = vmatmul.mubr.f32.gmra.mrb[0].mxu0 %v2284
    %v2659 = vpop.f32.mrb[0].mxu0
    %v2660 = vadd.f32 0.0, %v2659
    %v2661 = vpop.f32.mrb[0].mxu0
    %2662 = vmatprep.mubr.f32.mxu0 0.0
    %2663 = vmatmul.mubr.f32.gmra.mrb[0].mxu0 %v2287
    %v2664 = vpop.f32.mrb[0].mxu0
    %v2665 = vadd.f32 0.0, %v2664
    %v2666 = vpop.f32.mrb[0].mxu0
    %2667 = vmatprep.mubr.f32.mxu0 0.0
    %2668 = vmatmul.mubr.f32.gmra.mrb[0].mxu0 %v2290
    %v2669 = vpop.f32.mrb[0].mxu0
    %v2670 = vadd.f32 0.0, %v2669
    %v2671 = vpop.f32.mrb[0].mxu0
    %2672 = vmatprep.mubr.f32.mxu0 0.0
    %2673 = vmatmul.mubr.f32.gmra.mrb[0].mxu0 %v2293
    %v2674 = vpop.f32.mrb[0].mxu0
    %v2675 = vadd.f32 0.0, %v2674
    %v2676 = vpop.f32.mrb[0].mxu0
    %2677 = vmatprep.mubr.f32.mxu0 0.0
    %2678 = vmatmul.mubr.f32.gmra.mrb[0].mxu0 %v2296
    %v2679 = vpop.f32.mrb[0].mxu0
    %v2680 = vadd.f32 0.0, %v2679
    %v2681 = vpop.f32.mrb[0].mxu0
    %2682 = vdwg.mxu0
    %v2683 = vadd.f32 %v1969, %v2365
    %v2684 = vadd.f32 %v1970, %v2370
    %v2685 = vadd.f32 %v1971, %v2375
    %v2686 = vadd.f32 %v1972, %v2380
    %v2687 = vadd.f32 %v1973, %v2385
    %v2688 = vadd.f32 %v1974, %v2390
    %v2689 = vadd.f32 %v1975, %v2395
    %v2690 = vadd.f32 %v1976, %v2400
    %v2691 = vadd.f32 %v1977, %v2405
    %v2692 = vadd.f32 %v1978, %v2410
    %v2693 = vadd.f32 %v1979, %v2415
    %v2694 = vadd.f32 %v1980, %v2420
    %v2695 = vadd.f32 %v1981, %v2425
    %v2696 = vadd.f32 %v1982, %v2430
    %v2697 = vadd.f32 %v1983, %v2435
    %v2698 = vadd.f32 %v1984, %v2440
    %v2699 = vadd.f32 %v1985, %v2445
    %v2700 = vadd.f32 %v1986, %v2450
    %v2701 = vadd.f32 %v1987, %v2455
    %v2702 = vadd.f32 %v1988, %v2460
    %v2703 = vadd.f32 %v1989, %v2465
    %v2704 = vadd.f32 %v1990, %v2470
    %v2705 = vadd.f32 %v1991, %v2475
    %v2706 = vadd.f32 %v1992, %v2480
    %v2707 = vadd.f32 %v1993, %v2485
    %v2708 = vadd.f32 %v1994, %v2490
    %v2709 = vadd.f32 %v1995, %v2495
    %v2710 = vadd.f32 %v1996, %v2500
    %v2711 = vadd.f32 %v1997, %v2505
    %v2712 = vadd.f32 %v1998, %v2510
    %v2713 = vadd.f32 %v1999, %v2515
    %v2714 = vadd.f32 %v2000, %v2520
    %v2715 = vadd.f32 %v2001, %v2525
    %v2716 = vadd.f32 %v2002, %v2530
    %v2717 = vadd.f32 %v2003, %v2535
    %v2718 = vadd.f32 %v2004, %v2540
    %v2719 = vadd.f32 %v2005, %v2545
    %v2720 = vadd.f32 %v2006, %v2550
    %v2721 = vadd.f32 %v2007, %v2555
    %v2722 = vadd.f32 %v2008, %v2560
    %v2723 = vadd.f32 %v2009, %v2565
    %v2724 = vadd.f32 %v2010, %v2570
    %v2725 = vadd.f32 %v2011, %v2575
    %v2726 = vadd.f32 %v2012, %v2580
    %v2727 = vadd.f32 %v2013, %v2585
    %v2728 = vadd.f32 %v2014, %v2590
    %v2729 = vadd.f32 %v2015, %v2595
    %v2730 = vadd.f32 %v2016, %v2600
    %v2731 = vadd.f32 %v2017, %v2605
    %v2732 = vadd.f32 %v2018, %v2610
    %v2733 = vadd.f32 %v2019, %v2615
    %v2734 = vadd.f32 %v2020, %v2620
    %v2735 = vadd.f32 %v2021, %v2625
    %v2736 = vadd.f32 %v2022, %v2630
    %v2737 = vadd.f32 %v2023, %v2635
    %v2738 = vadd.f32 %v2024, %v2640
    %v2739 = vadd.f32 %v2025, %v2645
    %v2740 = vadd.f32 %v2026, %v2650
    %v2741 = vadd.f32 %v2027, %v2655
    %v2742 = vadd.f32 %v2028, %v2660
    %v2743 = vadd.f32 %v2029, %v2665
    %v2744 = vadd.f32 %v2030, %v2670
    %v2745 = vadd.f32 %v2031, %v2675
    %v2746 = vadd.f32 %v2032, %v2680
    %v2747 = vld [vmem:[%s2033 + $0x1] sm:$0xff]
    %v2748 = vld [vmem:[%s2033 + $0x11] sm:$0xff]
    %v2749 = vld [vmem:[%s2033 + $0x21] sm:$0xff]
    %v2750 = vld [vmem:[%s2033 + $0x31] sm:$0xff]
    %v2751 = vld [vmem:[%s2033 + $0x41] sm:$0xff]
    %v2752 = vld [vmem:[%s2033 + $0x51] sm:$0xff]
    %v2753 = vld [vmem:[%s2033 + $0x61] sm:$0xff]
    %v2754 = vld [vmem:[%s2033 + $0x71] sm:$0xff]
    %v2755 = vld [vmem:[%s2033 + $0xa1] sm:$0xff]
    %v2756 = vld [vmem:[%s2033 + $0xb1] sm:$0xff]
    %v2757 = vld [vmem:[%s2033 + $0xc1] sm:$0xff]
    %v2758 = vld [vmem:[%s2033 + $0xd1] sm:$0xff]
    %v2759 = vld [vmem:[%s2033 + $0xe1] sm:$0xff]
    %v2760 = vld [vmem:[%s2033 + $0xf1] sm:$0xff]
    %v2761 = vld [vmem:[%s2033 + $0x101] sm:$0xff]
    %v2762 = vld [vmem:[%s2033 + $0x111] sm:$0xff]
    %v2763 = vld [vmem:[%s2033 + $0x141] sm:$0xff]
    %v2764 = vld [vmem:[%s2033 + $0x151] sm:$0xff]
    %v2765 = vld [vmem:[%s2033 + $0x161] sm:$0xff]
    %v2766 = vld [vmem:[%s2033 + $0x171] sm:$0xff]
    %v2767 = vld [vmem:[%s2033 + $0x181] sm:$0xff]
    %v2768 = vld [vmem:[%s2033 + $0x191] sm:$0xff]
    %v2769 = vld [vmem:[%s2033 + $0x1a1] sm:$0xff]
    %v2770 = vld [vmem:[%s2033 + $0x1b1] sm:$0xff]
    %v2771 = vld [vmem:[%s2033 + $0x1e1] sm:$0xff]
    %v2772 = vld [vmem:[%s2033 + $0x1f1] sm:$0xff]
    %v2773 = vld [vmem:[%s2033 + $0x201] sm:$0xff]
    %v2774 = vld [vmem:[%s2033 + $0x211] sm:$0xff]
    %v2775 = vld [vmem:[%s2033 + $0x221] sm:$0xff]
    %v2776 = vld [vmem:[%s2033 + $0x231] sm:$0xff]
    %v2777 = vld [vmem:[%s2033 + $0x241] sm:$0xff]
    %v2778 = vld [vmem:[%s2033 + $0x251] sm:$0xff]
    %v2779 = vld [vmem:[%s2033 + $0x281] sm:$0xff]
    %v2780 = vld [vmem:[%s2033 + $0x291] sm:$0xff]
    %v2781 = vld [vmem:[%s2033 + $0x2a1] sm:$0xff]
    %v2782 = vld [vmem:[%s2033 + $0x2b1] sm:$0xff]
    %v2783 = vld [vmem:[%s2033 + $0x2c1] sm:$0xff]
    %v2784 = vld [vmem:[%s2033 + $0x2d1] sm:$0xff]
    %v2785 = vld [vmem:[%s2033 + $0x2e1] sm:$0xff]
    %v2786 = vld [vmem:[%s2033 + $0x2f1] sm:$0xff]
    %v2787 = vld [vmem:[%s2033 + $0x321] sm:$0xff]
    %v2788 = vld [vmem:[%s2033 + $0x331] sm:$0xff]
    %v2789 = vld [vmem:[%s2033 + $0x341] sm:$0xff]
    %v2790 = vld [vmem:[%s2033 + $0x351] sm:$0xff]
    %v2791 = vld [vmem:[%s2033 + $0x361] sm:$0xff]
    %v2792 = vld [vmem:[%s2033 + $0x371] sm:$0xff]
    %v2793 = vld [vmem:[%s2033 + $0x381] sm:$0xff]
    %v2794 = vld [vmem:[%s2033 + $0x391] sm:$0xff]
    %v2795 = vld [vmem:[%s2033 + $0x3c1] sm:$0xff]
    %v2796 = vld [vmem:[%s2033 + $0x3d1] sm:$0xff]
    %v2797 = vld [vmem:[%s2033 + $0x3e1] sm:$0xff]
    %v2798 = vld [vmem:[%s2033 + $0x3f1] sm:$0xff]
    %v2799 = vld [vmem:[%s2033 + $0x401] sm:$0xff]
    %v2800 = vld [vmem:[%s2033 + $0x411] sm:$0xff]
    %v2801 = vld [vmem:[%s2033 + $0x421] sm:$0xff]
    %v2802 = vld [vmem:[%s2033 + $0x431] sm:$0xff]
    %v2803 = vld [vmem:[%s2033 + $0x461] sm:$0xff]
    %v2804 = vld [vmem:[%s2033 + $0x471] sm:$0xff]
    %v2805 = vld [vmem:[%s2033 + $0x481] sm:$0xff]
    %v2806 = vld [vmem:[%s2033 + $0x491] sm:$0xff]
    %v2807 = vld [vmem:[%s2033 + $0x4a1] sm:$0xff]
    %v2808 = vld [vmem:[%s2033 + $0x4b1] sm:$0xff]
    %v2809 = vld [vmem:[%s2033 + $0x4c1] sm:$0xff]
    %v2810 = vld [vmem:[%s2033 + $0x4d1] sm:$0xff]
    %v2811 = vld [vmem:[%s1 + $0x100] sm:$0xff]
    %v2812 = vld [vmem:[%s1 + $0x108] sm:$0xff]
    %v2813 = vld [vmem:[%s1 + $0x110] sm:$0xff]
    %v2814 = vld [vmem:[%s1 + $0x118] sm:$0xff]
    %v2815 = vld [vmem:[%s1 + $0x120] sm:$0xff]
    %v2816 = vld [vmem:[%s1 + $0x128] sm:$0xff]
    %v2817 = vld [vmem:[%s1 + $0x130] sm:$0xff]
    %v2818 = vld [vmem:[%s1 + $0x138] sm:$0xff]
    %v2820 = vsel %vm165, %v2747, 0
    %v2823 = vsel %vm165, %v2748, 0
    %v2826 = vsel %vm165, %v2749, 0
    %v2829 = vsel %vm165, %v2750, 0
    %v2832 = vsel %vm165, %v2751, 0
    %v2835 = vsel %vm165, %v2752, 0
    %v2838 = vsel %vm165, %v2753, 0
    %v2841 = vsel %vm165, %v2754, 0
    %v2844 = vsel %vm165, %v2755, 0
    %v2847 = vsel %vm165, %v2756, 0
    %v2850 = vsel %vm165, %v2757, 0
    %v2853 = vsel %vm165, %v2758, 0
    %v2856 = vsel %vm165, %v2759, 0
    %v2859 = vsel %vm165, %v2760, 0
    %v2862 = vsel %vm165, %v2761, 0
    %v2865 = vsel %vm165, %v2762, 0
    %v2868 = vsel %vm165, %v2763, 0
    %v2871 = vsel %vm165, %v2764, 0
    %v2874 = vsel %vm165, %v2765, 0
    %v2877 = vsel %vm165, %v2766, 0
    %v2880 = vsel %vm165, %v2767, 0
    %v2883 = vsel %vm165, %v2768, 0
    %v2886 = vsel %vm165, %v2769, 0
    %v2889 = vsel %vm165, %v2770, 0
    %v2892 = vsel %vm165, %v2771, 0
    %v2895 = vsel %vm165, %v2772, 0
    %v2898 = vsel %vm165, %v2773, 0
    %v2901 = vsel %vm165, %v2774, 0
    %v2904 = vsel %vm165, %v2775, 0
    %v2907 = vsel %vm165, %v2776, 0
    %v2910 = vsel %vm165, %v2777, 0
    %v2913 = vsel %vm165, %v2778, 0
    %v2916 = vsel %vm165, %v2779, 0
    %v2919 = vsel %vm165, %v2780, 0
    %v2922 = vsel %vm165, %v2781, 0
    %v2925 = vsel %vm165, %v2782, 0
    %v2928 = vsel %vm165, %v2783, 0
    %v2931 = vsel %vm165, %v2784, 0
    %v2934 = vsel %vm165, %v2785, 0
    %v2937 = vsel %vm165, %v2786, 0
    %v2940 = vsel %vm165, %v2787, 0
    %v2943 = vsel %vm165, %v2788, 0
    %v2946 = vsel %vm165, %v2789, 0
    %v2949 = vsel %vm165, %v2790, 0
    %v2952 = vsel %vm165, %v2791, 0
    %v2955 = vsel %vm165, %v2792, 0
    %v2958 = vsel %vm165, %v2793, 0
    %v2961 = vsel %vm165, %v2794, 0
    %v2964 = vsel %vm165, %v2795, 0
    %v2967 = vsel %vm165, %v2796, 0
    %v2970 = vsel %vm165, %v2797, 0
    %v2973 = vsel %vm165, %v2798, 0
    %v2976 = vsel %vm165, %v2799, 0
    %v2979 = vsel %vm165, %v2800, 0
    %v2982 = vsel %vm165, %v2801, 0
    %v2985 = vsel %vm165, %v2802, 0
    %v2988 = vsel %vm165, %v2803, 0
    %v2991 = vsel %vm165, %v2804, 0
    %v2994 = vsel %vm165, %v2805, 0
    %v2997 = vsel %vm165, %v2806, 0
    %v3000 = vsel %vm165, %v2807, 0
    %v3003 = vsel %vm165, %v2808, 0
    %v3006 = vsel %vm165, %v2809, 0
    %v3009 = vsel %vm165, %v2810, 0
    %3011 = vmatprep.subr.mxu0 0.0
    %3012 = vmatpush1.msra.mxu0 %v2811
    %3013 = vmatprep.subr.mxu0 0.0
    %3014 = vmatpush1.msra.mxu0 %v2812
    %3015 = vmatprep.subr.mxu0 0.0
    %3016 = vmatpush1.msra.mxu0 %v2813
    %3017 = vmatprep.subr.mxu0 0.0
    %3018 = vmatpush1.msra.mxu0 %v2814
    %3019 = vmatprep.subr.mxu0 0.0
    %3020 = vmatpush1.msra.mxu0 %v2815
    %3021 = vmatprep.subr.mxu0 0.0
    %3022 = vmatpush1.msra.mxu0 %v2816
    %3023 = vmatprep.subr.mxu0 0.0
    %3024 = vmatpush1.msra.mxu0 %v2817
    %3025 = vmatprep.subr.mxu0 0.0
    %3026 = vmatpush1.msra.mxu0 %v2818
    %3027 = vmatprep.subr.mxu0 0.0
    %3028 = vmatpush1.msra.mxu0 0.0
    %3029 = vmatprep.subr.mxu0 0.0
    %3030 = vmatpush1.msra.mxu0 0.0
    %3031 = vmatprep.subr.mxu0 0.0
    %3032 = vmatpush1.msra.mxu0 0.0
    %3033 = vmatprep.subr.mxu0 0.0
    %3034 = vmatpush1.msra.mxu0 0.0
    %3035 = vmatprep.subr.mxu0 0.0
    %3036 = vmatpush1.msra.mxu0 0.0
    %3037 = vmatprep.subr.mxu0 0.0
    %3038 = vmatpush1.msra.mxu0 0.0
    %3039 = vmatprep.subr.mxu0 0.0
    %3040 = vmatpush1.msra.mxu0 0.0
    %3041 = vmatprep.subr.mxu0 0.0
    %3042 = vmatpush1.msra.mxu0 0.0
    %3043 = vmatprep.subr.mxu0 0.0
    %3044 = vmatpush1.msra.mxu0 0.0
    %3045 = vmatprep.subr.mxu0 0.0
    %3046 = vmatpush1.msra.mxu0 0.0
    %3047 = vmatprep.subr.mxu0 0.0
    %3048 = vmatpush1.msra.mxu0 0.0
    %3049 = vmatprep.subr.mxu0 0.0
    %3050 = vmatpush1.msra.mxu0 0.0
    %3051 = vmatprep.subr.mxu0 0.0
    %3052 = vmatpush1.msra.mxu0 0.0
    %3053 = vmatprep.subr.mxu0 0.0
    %3054 = vmatpush1.msra.mxu0 0.0
    %3055 = vmatprep.subr.mxu0 0.0
    %3056 = vmatpush1.msra.mxu0 0.0
    %3057 = vmatprep.subr.mxu0 0.0
    %3058 = vmatpush1.msra.mxu0 0.0
    %3059 = vmatprep.subr.mxu0 0.0
    %3060 = vmatpush1.msra.mxu0 0.0
    %3061 = vmatprep.subr.mxu0 0.0
    %3062 = vmatpush1.msra.mxu0 0.0
    %3063 = vmatprep.subr.mxu0 0.0
    %3064 = vmatpush1.msra.mxu0 0.0
    %3065 = vmatprep.subr.mxu0 0.0
    %3066 = vmatpush1.msra.mxu0 0.0
    %3067 = vmatprep.subr.mxu0 0.0
    %3068 = vmatpush1.msra.mxu0 0.0
    %3069 = vmatprep.subr.mxu0 0.0
    %3070 = vmatpush1.msra.mxu0 0.0
    %3071 = vmatprep.subr.mxu0 0.0
    %3072 = vmatpush1.msra.mxu0 0.0
    %3073 = vmatprep.subr.mxu0 0.0
    %3074 = vmatpush1.msra.mxu0 0.0
    %3075 = vmatprep.mubr.f32.mxu0 0.0
    %3076 = vmatmul.mubr.f32.gmra.mrb[0].mxu0 %v2820
    %v3077 = vpop.f32.mrb[0].mxu0
    %v3078 = vadd.f32 0.0, %v3077
    %v3079 = vpop.f32.mrb[0].mxu0
    %3080 = vmatprep.mubr.f32.mxu0 0.0
    %3081 = vmatmul.mubr.f32.gmra.mrb[0].mxu0 %v2823
    %v3082 = vpop.f32.mrb[0].mxu0
    %v3083 = vadd.f32 0.0, %v3082
    %v3084 = vpop.f32.mrb[0].mxu0
    %3085 = vmatprep.mubr.f32.mxu0 0.0
    %3086 = vmatmul.mubr.f32.gmra.mrb[0].mxu0 %v2826
    %v3087 = vpop.f32.mrb[0].mxu0
    %v3088 = vadd.f32 0.0, %v3087
    %v3089 = vpop.f32.mrb[0].mxu0
    %3090 = vmatprep.mubr.f32.mxu0 0.0
    %3091 = vmatmul.mubr.f32.gmra.mrb[0].mxu0 %v2829
    %v3092 = vpop.f32.mrb[0].mxu0
    %v3093 = vadd.f32 0.0, %v3092
    %v3094 = vpop.f32.mrb[0].mxu0
    %3095 = vmatprep.mubr.f32.mxu0 0.0
    %3096 = vmatmul.mubr.f32.gmra.mrb[0].mxu0 %v2832
    %v3097 = vpop.f32.mrb[0].mxu0
    %v3098 = vadd.f32 0.0, %v3097
    %v3099 = vpop.f32.mrb[0].mxu0
    %3100 = vmatprep.mubr.f32.mxu0 0.0
    %3101 = vmatmul.mubr.f32.gmra.mrb[0].mxu0 %v2835
    %v3102 = vpop.f32.mrb[0].mxu0
    %v3103 = vadd.f32 0.0, %v3102
    %v3104 = vpop.f32.mrb[0].mxu0
    %3105 = vmatprep.mubr.f32.mxu0 0.0
    %3106 = vmatmul.mubr.f32.gmra.mrb[0].mxu0 %v2838
    %v3107 = vpop.f32.mrb[0].mxu0
    %v3108 = vadd.f32 0.0, %v3107
    %v3109 = vpop.f32.mrb[0].mxu0
    %3110 = vmatprep.mubr.f32.mxu0 0.0
    %3111 = vmatmul.mubr.f32.gmra.mrb[0].mxu0 %v2841
    %v3112 = vpop.f32.mrb[0].mxu0
    %v3113 = vadd.f32 0.0, %v3112
    %v3114 = vpop.f32.mrb[0].mxu0
    %3115 = vmatprep.mubr.f32.mxu0 0.0
    %3116 = vmatmul.mubr.f32.gmra.mrb[0].mxu0 %v2844
    %v3117 = vpop.f32.mrb[0].mxu0
    %v3118 = vadd.f32 0.0, %v3117
    %v3119 = vpop.f32.mrb[0].mxu0
    %3120 = vmatprep.mubr.f32.mxu0 0.0
    %3121 = vmatmul.mubr.f32.gmra.mrb[0].mxu0 %v2847
    %v3122 = vpop.f32.mrb[0].mxu0
    %v3123 = vadd.f32 0.0, %v3122
    %v3124 = vpop.f32.mrb[0].mxu0
    %3125 = vmatprep.mubr.f32.mxu0 0.0
    %3126 = vmatmul.mubr.f32.gmra.mrb[0].mxu0 %v2850
    %v3127 = vpop.f32.mrb[0].mxu0
    %v3128 = vadd.f32 0.0, %v3127
    %v3129 = vpop.f32.mrb[0].mxu0
    %3130 = vmatprep.mubr.f32.mxu0 0.0
    %3131 = vmatmul.mubr.f32.gmra.mrb[0].mxu0 %v2853
    %v3132 = vpop.f32.mrb[0].mxu0
    %v3133 = vadd.f32 0.0, %v3132
    %v3134 = vpop.f32.mrb[0].mxu0
    %3135 = vmatprep.mubr.f32.mxu0 0.0
    %3136 = vmatmul.mubr.f32.gmra.mrb[0].mxu0 %v2856
    %v3137 = vpop.f32.mrb[0].mxu0
    %v3138 = vadd.f32 0.0, %v3137
    %v3139 = vpop.f32.mrb[0].mxu0
    %3140 = vmatprep.mubr.f32.mxu0 0.0
    %3141 = vmatmul.mubr.f32.gmra.mrb[0].mxu0 %v2859
    %v3142 = vpop.f32.mrb[0].mxu0
    %v3143 = vadd.f32 0.0, %v3142
    %v3144 = vpop.f32.mrb[0].mxu0
    %3145 = vmatprep.mubr.f32.mxu0 0.0
    %3146 = vmatmul.mubr.f32.gmra.mrb[0].mxu0 %v2862
    %v3147 = vpop.f32.mrb[0].mxu0
    %v3148 = vadd.f32 0.0, %v3147
    %v3149 = vpop.f32.mrb[0].mxu0
    %3150 = vmatprep.mubr.f32.mxu0 0.0
    %3151 = vmatmul.mubr.f32.gmra.mrb[0].mxu0 %v2865
    %v3152 = vpop.f32.mrb[0].mxu0
    %v3153 = vadd.f32 0.0, %v3152
    %v3154 = vpop.f32.mrb[0].mxu0
    %3155 = vmatprep.mubr.f32.mxu0 0.0
    %3156 = vmatmul.mubr.f32.gmra.mrb[0].mxu0 %v2868
    %v3157 = vpop.f32.mrb[0].mxu0
    %v3158 = vadd.f32 0.0, %v3157
    %v3159 = vpop.f32.mrb[0].mxu0
    %3160 = vmatprep.mubr.f32.mxu0 0.0
    %3161 = vmatmul.mubr.f32.gmra.mrb[0].mxu0 %v2871
    %v3162 = vpop.f32.mrb[0].mxu0
    %v3163 = vadd.f32 0.0, %v3162
    %v3164 = vpop.f32.mrb[0].mxu0
    %3165 = vmatprep.mubr.f32.mxu0 0.0
    %3166 = vmatmul.mubr.f32.gmra.mrb[0].mxu0 %v2874
    %v3167 = vpop.f32.mrb[0].mxu0
    %v3168 = vadd.f32 0.0, %v3167
    %v3169 = vpop.f32.mrb[0].mxu0
    %3170 = vmatprep.mubr.f32.mxu0 0.0
    %3171 = vmatmul.mubr.f32.gmra.mrb[0].mxu0 %v2877
    %v3172 = vpop.f32.mrb[0].mxu0
    %v3173 = vadd.f32 0.0, %v3172
    %v3174 = vpop.f32.mrb[0].mxu0
    %3175 = vmatprep.mubr.f32.mxu0 0.0
    %3176 = vmatmul.mubr.f32.gmra.mrb[0].mxu0 %v2880
    %v3177 = vpop.f32.mrb[0].mxu0
    %v3178 = vadd.f32 0.0, %v3177
    %v3179 = vpop.f32.mrb[0].mxu0
    %3180 = vmatprep.mubr.f32.mxu0 0.0
    %3181 = vmatmul.mubr.f32.gmra.mrb[0].mxu0 %v2883
    %v3182 = vpop.f32.mrb[0].mxu0
    %v3183 = vadd.f32 0.0, %v3182
    %v3184 = vpop.f32.mrb[0].mxu0
    %3185 = vmatprep.mubr.f32.mxu0 0.0
    %3186 = vmatmul.mubr.f32.gmra.mrb[0].mxu0 %v2886
    %v3187 = vpop.f32.mrb[0].mxu0
    %v3188 = vadd.f32 0.0, %v3187
    %v3189 = vpop.f32.mrb[0].mxu0
    %3190 = vmatprep.mubr.f32.mxu0 0.0
    %3191 = vmatmul.mubr.f32.gmra.mrb[0].mxu0 %v2889
    %v3192 = vpop.f32.mrb[0].mxu0
    %v3193 = vadd.f32 0.0, %v3192
    %v3194 = vpop.f32.mrb[0].mxu0
    %3195 = vmatprep.mubr.f32.mxu0 0.0
    %3196 = vmatmul.mubr.f32.gmra.mrb[0].mxu0 %v2892
    %v3197 = vpop.f32.mrb[0].mxu0
    %v3198 = vadd.f32 0.0, %v3197
    %v3199 = vpop.f32.mrb[0].mxu0
    %3200 = vmatprep.mubr.f32.mxu0 0.0
    %3201 = vmatmul.mubr.f32.gmra.mrb[0].mxu0 %v2895
    %v3202 = vpop.f32.mrb[0].mxu0
    %v3203 = vadd.f32 0.0, %v3202
    %v3204 = vpop.f32.mrb[0].mxu0
    %3205 = vmatprep.mubr.f32.mxu0 0.0
    %3206 = vmatmul.mubr.f32.gmra.mrb[0].mxu0 %v2898
    %v3207 = vpop.f32.mrb[0].mxu0
    %v3208 = vadd.f32 0.0, %v3207
    %v3209 = vpop.f32.mrb[0].mxu0
    %3210 = vmatprep.mubr.f32.mxu0 0.0
    %3211 = vmatmul.mubr.f32.gmra.mrb[0].mxu0 %v2901
    %v3212 = vpop.f32.mrb[0].mxu0
    %v3213 = vadd.f32 0.0, %v3212
    %v3214 = vpop.f32.mrb[0].mxu0
    %3215 = vmatprep.mubr.f32.mxu0 0.0
    %3216 = vmatmul.mubr.f32.gmra.mrb[0].mxu0 %v2904
    %v3217 = vpop.f32.mrb[0].mxu0
    %v3218 = vadd.f32 0.0, %v3217
    %v3219 = vpop.f32.mrb[0].mxu0
    %3220 = vmatprep.mubr.f32.mxu0 0.0
    %3221 = vmatmul.mubr.f32.gmra.mrb[0].mxu0 %v2907
    %v3222 = vpop.f32.mrb[0].mxu0
    %v3223 = vadd.f32 0.0, %v3222
    %v3224 = vpop.f32.mrb[0].mxu0
    %3225 = vmatprep.mubr.f32.mxu0 0.0
    %3226 = vmatmul.mubr.f32.gmra.mrb[0].mxu0 %v2910
    %v3227 = vpop.f32.mrb[0].mxu0
    %v3228 = vadd.f32 0.0, %v3227
    %v3229 = vpop.f32.mrb[0].mxu0
    %3230 = vmatprep.mubr.f32.mxu0 0.0
    %3231 = vmatmul.mubr.f32.gmra.mrb[0].mxu0 %v2913
    %v3232 = vpop.f32.mrb[0].mxu0
    %v3233 = vadd.f32 0.0, %v3232
    %v3234 = vpop.f32.mrb[0].mxu0
    %3235 = vmatprep.mubr.f32.mxu0 0.0
    %3236 = vmatmul.mubr.f32.gmra.mrb[0].mxu0 %v2916
    %v3237 = vpop.f32.mrb[0].mxu0
    %v3238 = vadd.f32 0.0, %v3237
    %v3239 = vpop.f32.mrb[0].mxu0
    %3240 = vmatprep.mubr.f32.mxu0 0.0
    %3241 = vmatmul.mubr.f32.gmra.mrb[0].mxu0 %v2919
    %v3242 = vpop.f32.mrb[0].mxu0
    %v3243 = vadd.f32 0.0, %v3242
    %v3244 = vpop.f32.mrb[0].mxu0
    %3245 = vmatprep.mubr.f32.mxu0 0.0
    %3246 = vmatmul.mubr.f32.gmra.mrb[0].mxu0 %v2922
    %v3247 = vpop.f32.mrb[0].mxu0
    %v3248 = vadd.f32 0.0, %v3247
    %v3249 = vpop.f32.mrb[0].mxu0
    %3250 = vmatprep.mubr.f32.mxu0 0.0
    %3251 = vmatmul.mubr.f32.gmra.mrb[0].mxu0 %v2925
    %v3252 = vpop.f32.mrb[0].mxu0
    %v3253 = vadd.f32 0.0, %v3252
    %v3254 = vpop.f32.mrb[0].mxu0
    %3255 = vmatprep.mubr.f32.mxu0 0.0
    %3256 = vmatmul.mubr.f32.gmra.mrb[0].mxu0 %v2928
    %v3257 = vpop.f32.mrb[0].mxu0
    %v3258 = vadd.f32 0.0, %v3257
    %v3259 = vpop.f32.mrb[0].mxu0
    %3260 = vmatprep.mubr.f32.mxu0 0.0
    %3261 = vmatmul.mubr.f32.gmra.mrb[0].mxu0 %v2931
    %v3262 = vpop.f32.mrb[0].mxu0
    %v3263 = vadd.f32 0.0, %v3262
    %v3264 = vpop.f32.mrb[0].mxu0
    %3265 = vmatprep.mubr.f32.mxu0 0.0
    %3266 = vmatmul.mubr.f32.gmra.mrb[0].mxu0 %v2934
    %v3267 = vpop.f32.mrb[0].mxu0
    %v3268 = vadd.f32 0.0, %v3267
    %v3269 = vpop.f32.mrb[0].mxu0
    %3270 = vmatprep.mubr.f32.mxu0 0.0
    %3271 = vmatmul.mubr.f32.gmra.mrb[0].mxu0 %v2937
    %v3272 = vpop.f32.mrb[0].mxu0
    %v3273 = vadd.f32 0.0, %v3272
    %v3274 = vpop.f32.mrb[0].mxu0
    %3275 = vmatprep.mubr.f32.mxu0 0.0
    %3276 = vmatmul.mubr.f32.gmra.mrb[0].mxu0 %v2940
    %v3277 = vpop.f32.mrb[0].mxu0
    %v3278 = vadd.f32 0.0, %v3277
    %v3279 = vpop.f32.mrb[0].mxu0
    %3280 = vmatprep.mubr.f32.mxu0 0.0
    %3281 = vmatmul.mubr.f32.gmra.mrb[0].mxu0 %v2943
    %v3282 = vpop.f32.mrb[0].mxu0
    %v3283 = vadd.f32 0.0, %v3282
    %v3284 = vpop.f32.mrb[0].mxu0
    %3285 = vmatprep.mubr.f32.mxu0 0.0
    %3286 = vmatmul.mubr.f32.gmra.mrb[0].mxu0 %v2946
    %v3287 = vpop.f32.mrb[0].mxu0
    %v3288 = vadd.f32 0.0, %v3287
    %v3289 = vpop.f32.mrb[0].mxu0
    %3290 = vmatprep.mubr.f32.mxu0 0.0
    %3291 = vmatmul.mubr.f32.gmra.mrb[0].mxu0 %v2949
    %v3292 = vpop.f32.mrb[0].mxu0
    %v3293 = vadd.f32 0.0, %v3292
    %v3294 = vpop.f32.mrb[0].mxu0
    %3295 = vmatprep.mubr.f32.mxu0 0.0
    %3296 = vmatmul.mubr.f32.gmra.mrb[0].mxu0 %v2952
    %v3297 = vpop.f32.mrb[0].mxu0
    %v3298 = vadd.f32 0.0, %v3297
    %v3299 = vpop.f32.mrb[0].mxu0
    %3300 = vmatprep.mubr.f32.mxu0 0.0
    %3301 = vmatmul.mubr.f32.gmra.mrb[0].mxu0 %v2955
    %v3302 = vpop.f32.mrb[0].mxu0
    %v3303 = vadd.f32 0.0, %v3302
    %v3304 = vpop.f32.mrb[0].mxu0
    %3305 = vmatprep.mubr.f32.mxu0 0.0
    %3306 = vmatmul.mubr.f32.gmra.mrb[0].mxu0 %v2958
    %v3307 = vpop.f32.mrb[0].mxu0
    %v3308 = vadd.f32 0.0, %v3307
    %v3309 = vpop.f32.mrb[0].mxu0
    %3310 = vmatprep.mubr.f32.mxu0 0.0
    %3311 = vmatmul.mubr.f32.gmra.mrb[0].mxu0 %v2961
    %v3312 = vpop.f32.mrb[0].mxu0
    %v3313 = vadd.f32 0.0, %v3312
    %v3314 = vpop.f32.mrb[0].mxu0
    %3315 = vmatprep.mubr.f32.mxu0 0.0
    %3316 = vmatmul.mubr.f32.gmra.mrb[0].mxu0 %v2964
    %v3317 = vpop.f32.mrb[0].mxu0
    %v3318 = vadd.f32 0.0, %v3317
    %v3319 = vpop.f32.mrb[0].mxu0
    %3320 = vmatprep.mubr.f32.mxu0 0.0
    %3321 = vmatmul.mubr.f32.gmra.mrb[0].mxu0 %v2967
    %v3322 = vpop.f32.mrb[0].mxu0
    %v3323 = vadd.f32 0.0, %v3322
    %v3324 = vpop.f32.mrb[0].mxu0
    %3325 = vmatprep.mubr.f32.mxu0 0.0
    %3326 = vmatmul.mubr.f32.gmra.mrb[0].mxu0 %v2970
    %v3327 = vpop.f32.mrb[0].mxu0
    %v3328 = vadd.f32 0.0, %v3327
    %v3329 = vpop.f32.mrb[0].mxu0
    %3330 = vmatprep.mubr.f32.mxu0 0.0
    %3331 = vmatmul.mubr.f32.gmra.mrb[0].mxu0 %v2973
    %v3332 = vpop.f32.mrb[0].mxu0
    %v3333 = vadd.f32 0.0, %v3332
    %v3334 = vpop.f32.mrb[0].mxu0
    %3335 = vmatprep.mubr.f32.mxu0 0.0
    %3336 = vmatmul.mubr.f32.gmra.mrb[0].mxu0 %v2976
    %v3337 = vpop.f32.mrb[0].mxu0
    %v3338 = vadd.f32 0.0, %v3337
    %v3339 = vpop.f32.mrb[0].mxu0
    %3340 = vmatprep.mubr.f32.mxu0 0.0
    %3341 = vmatmul.mubr.f32.gmra.mrb[0].mxu0 %v2979
    %v3342 = vpop.f32.mrb[0].mxu0
    %v3343 = vadd.f32 0.0, %v3342
    %v3344 = vpop.f32.mrb[0].mxu0
    %3345 = vmatprep.mubr.f32.mxu0 0.0
    %3346 = vmatmul.mubr.f32.gmra.mrb[0].mxu0 %v2982
    %v3347 = vpop.f32.mrb[0].mxu0
    %v3348 = vadd.f32 0.0, %v3347
    %v3349 = vpop.f32.mrb[0].mxu0
    %3350 = vmatprep.mubr.f32.mxu0 0.0
    %3351 = vmatmul.mubr.f32.gmra.mrb[0].mxu0 %v2985
    %v3352 = vpop.f32.mrb[0].mxu0
    %v3353 = vadd.f32 0.0, %v3352
    %v3354 = vpop.f32.mrb[0].mxu0
    %3355 = vmatprep.mubr.f32.mxu0 0.0
    %3356 = vmatmul.mubr.f32.gmra.mrb[0].mxu0 %v2988
    %v3357 = vpop.f32.mrb[0].mxu0
    %v3358 = vadd.f32 0.0, %v3357
    %v3359 = vpop.f32.mrb[0].mxu0
    %3360 = vmatprep.mubr.f32.mxu0 0.0
    %3361 = vmatmul.mubr.f32.gmra.mrb[0].mxu0 %v2991
    %v3362 = vpop.f32.mrb[0].mxu0
    %v3363 = vadd.f32 0.0, %v3362
    %v3364 = vpop.f32.mrb[0].mxu0
    %3365 = vmatprep.mubr.f32.mxu0 0.0
    %3366 = vmatmul.mubr.f32.gmra.mrb[0].mxu0 %v2994
    %v3367 = vpop.f32.mrb[0].mxu0
    %v3368 = vadd.f32 0.0, %v3367
    %v3369 = vpop.f32.mrb[0].mxu0
    %3370 = vmatprep.mubr.f32.mxu0 0.0
    %3371 = vmatmul.mubr.f32.gmra.mrb[0].mxu0 %v2997
    %v3372 = vpop.f32.mrb[0].mxu0
    %v3373 = vadd.f32 0.0, %v3372
    %v3374 = vpop.f32.mrb[0].mxu0
    %3375 = vmatprep.mubr.f32.mxu0 0.0
    %3376 = vmatmul.mubr.f32.gmra.mrb[0].mxu0 %v3000
    %v3377 = vpop.f32.mrb[0].mxu0
    %v3378 = vadd.f32 0.0, %v3377
    %v3379 = vpop.f32.mrb[0].mxu0
    %3380 = vmatprep.mubr.f32.mxu0 0.0
    %3381 = vmatmul.mubr.f32.gmra.mrb[0].mxu0 %v3003
    %v3382 = vpop.f32.mrb[0].mxu0
    %v3383 = vadd.f32 0.0, %v3382
    %v3384 = vpop.f32.mrb[0].mxu0
    %3385 = vmatprep.mubr.f32.mxu0 0.0
    %3386 = vmatmul.mubr.f32.gmra.mrb[0].mxu0 %v3006
    %v3387 = vpop.f32.mrb[0].mxu0
    %v3388 = vadd.f32 0.0, %v3387
    %v3389 = vpop.f32.mrb[0].mxu0
    %3390 = vmatprep.mubr.f32.mxu0 0.0
    %3391 = vmatmul.mubr.f32.gmra.mrb[0].mxu0 %v3009
    %v3392 = vpop.f32.mrb[0].mxu0
    %v3393 = vadd.f32 0.0, %v3392
    %v3394 = vpop.f32.mrb[0].mxu0
    %3395 = vdwg.mxu0
    %v3396 = vadd.f32 %v2683, %v3078
    %v3397 = vadd.f32 %v2684, %v3083
    %v3398 = vadd.f32 %v2685, %v3088
    %v3399 = vadd.f32 %v2686, %v3093
    %v3400 = vadd.f32 %v2687, %v3098
    %v3401 = vadd.f32 %v2688, %v3103
    %v3402 = vadd.f32 %v2689, %v3108
    %v3403 = vadd.f32 %v2690, %v3113
    %v3404 = vadd.f32 %v2691, %v3118
    %v3405 = vadd.f32 %v2692, %v3123
    %v3406 = vadd.f32 %v2693, %v3128
    %v3407 = vadd.f32 %v2694, %v3133
    %v3408 = vadd.f32 %v2695, %v3138
    %v3409 = vadd.f32 %v2696, %v3143
    %v3410 = vadd.f32 %v2697, %v3148
    %v3411 = vadd.f32 %v2698, %v3153
    %v3412 = vadd.f32 %v2699, %v3158
    %v3413 = vadd.f32 %v2700, %v3163
    %v3414 = vadd.f32 %v2701, %v3168
    %v3415 = vadd.f32 %v2702, %v3173
    %v3416 = vadd.f32 %v2703, %v3178
    %v3417 = vadd.f32 %v2704, %v3183
    %v3418 = vadd.f32 %v2705, %v3188
    %v3419 = vadd.f32 %v2706, %v3193
    %v3420 = vadd.f32 %v2707, %v3198
    %v3421 = vadd.f32 %v2708, %v3203
    %v3422 = vadd.f32 %v2709, %v3208
    %v3423 = vadd.f32 %v2710, %v3213
    %v3424 = vadd.f32 %v2711, %v3218
    %v3425 = vadd.f32 %v2712, %v3223
    %v3426 = vadd.f32 %v2713, %v3228
    %v3427 = vadd.f32 %v2714, %v3233
    %v3428 = vadd.f32 %v2715, %v3238
    %v3429 = vadd.f32 %v2716, %v3243
    %v3430 = vadd.f32 %v2717, %v3248
    %v3431 = vadd.f32 %v2718, %v3253
    %v3432 = vadd.f32 %v2719, %v3258
    %v3433 = vadd.f32 %v2720, %v3263
    %v3434 = vadd.f32 %v2721, %v3268
    %v3435 = vadd.f32 %v2722, %v3273
    %v3436 = vadd.f32 %v2723, %v3278
    %v3437 = vadd.f32 %v2724, %v3283
    %v3438 = vadd.f32 %v2725, %v3288
    %v3439 = vadd.f32 %v2726, %v3293
    %v3440 = vadd.f32 %v2727, %v3298
    %v3441 = vadd.f32 %v2728, %v3303
    %v3442 = vadd.f32 %v2729, %v3308
    %v3443 = vadd.f32 %v2730, %v3313
    %v3444 = vadd.f32 %v2731, %v3318
    %v3445 = vadd.f32 %v2732, %v3323
    %v3446 = vadd.f32 %v2733, %v3328
    %v3447 = vadd.f32 %v2734, %v3333
    %v3448 = vadd.f32 %v2735, %v3338
    %v3449 = vadd.f32 %v2736, %v3343
    %v3450 = vadd.f32 %v2737, %v3348
    %v3451 = vadd.f32 %v2738, %v3353
    %v3452 = vadd.f32 %v2739, %v3358
    %v3453 = vadd.f32 %v2740, %v3363
    %v3454 = vadd.f32 %v2741, %v3368
    %v3455 = vadd.f32 %v2742, %v3373
    %v3456 = vadd.f32 %v2743, %v3378
    %v3457 = vadd.f32 %v2744, %v3383
    %v3458 = vadd.f32 %v2745, %v3388
    %v3459 = vadd.f32 %v2746, %v3393
    %v3460 = vld [vmem:[%s2033 + $0x2] sm:$0xff]
    %v3461 = vld [vmem:[%s2033 + $0x12] sm:$0xff]
    %v3462 = vld [vmem:[%s2033 + $0x22] sm:$0xff]
    %v3463 = vld [vmem:[%s2033 + $0x32] sm:$0xff]
    %v3464 = vld [vmem:[%s2033 + $0x42] sm:$0xff]
    %v3465 = vld [vmem:[%s2033 + $0x52] sm:$0xff]
    %v3466 = vld [vmem:[%s2033 + $0x62] sm:$0xff]
    %v3467 = vld [vmem:[%s2033 + $0x72] sm:$0xff]
    %v3468 = vld [vmem:[%s2033 + $0xa2] sm:$0xff]
    %v3469 = vld [vmem:[%s2033 + $0xb2] sm:$0xff]
    %v3470 = vld [vmem:[%s2033 + $0xc2] sm:$0xff]
    %v3471 = vld [vmem:[%s2033 + $0xd2] sm:$0xff]
    %v3472 = vld [vmem:[%s2033 + $0xe2] sm:$0xff]
    %v3473 = vld [vmem:[%s2033 + $0xf2] sm:$0xff]
    %v3474 = vld [vmem:[%s2033 + $0x102] sm:$0xff]
    %v3475 = vld [vmem:[%s2033 + $0x112] sm:$0xff]
    %v3476 = vld [vmem:[%s2033 + $0x142] sm:$0xff]
    %v3477 = vld [vmem:[%s2033 + $0x152] sm:$0xff]
    %v3478 = vld [vmem:[%s2033 + $0x162] sm:$0xff]
    %v3479 = vld [vmem:[%s2033 + $0x172] sm:$0xff]
    %v3480 = vld [vmem:[%s2033 + $0x182] sm:$0xff]
    %v3481 = vld [vmem:[%s2033 + $0x192] sm:$0xff]
    %v3482 = vld [vmem:[%s2033 + $0x1a2] sm:$0xff]
    %v3483 = vld [vmem:[%s2033 + $0x1b2] sm:$0xff]
    %v3484 = vld [vmem:[%s2033 + $0x1e2] sm:$0xff]
    %v3485 = vld [vmem:[%s2033 + $0x1f2] sm:$0xff]
    %v3486 = vld [vmem:[%s2033 + $0x202] sm:$0xff]
    %v3487 = vld [vmem:[%s2033 + $0x212] sm:$0xff]
    %v3488 = vld [vmem:[%s2033 + $0x222] sm:$0xff]
    %v3489 = vld [vmem:[%s2033 + $0x232] sm:$0xff]
    %v3490 = vld [vmem:[%s2033 + $0x242] sm:$0xff]
    %v3491 = vld [vmem:[%s2033 + $0x252] sm:$0xff]
    %v3492 = vld [vmem:[%s2033 + $0x282] sm:$0xff]
    %v3493 = vld [vmem:[%s2033 + $0x292] sm:$0xff]
    %v3494 = vld [vmem:[%s2033 + $0x2a2] sm:$0xff]
    %v3495 = vld [vmem:[%s2033 + $0x2b2] sm:$0xff]
    %v3496 = vld [vmem:[%s2033 + $0x2c2] sm:$0xff]
    %v3497 = vld [vmem:[%s2033 + $0x2d2] sm:$0xff]
    %v3498 = vld [vmem:[%s2033 + $0x2e2] sm:$0xff]
    %v3499 = vld [vmem:[%s2033 + $0x2f2] sm:$0xff]
    %v3500 = vld [vmem:[%s2033 + $0x322] sm:$0xff]
    %v3501 = vld [vmem:[%s2033 + $0x332] sm:$0xff]
    %v3502 = vld [vmem:[%s2033 + $0x342] sm:$0xff]
    %v3503 = vld [vmem:[%s2033 + $0x352] sm:$0xff]
    %v3504 = vld [vmem:[%s2033 + $0x362] sm:$0xff]
    %v3505 = vld [vmem:[%s2033 + $0x372] sm:$0xff]
    %v3506 = vld [vmem:[%s2033 + $0x382] sm:$0xff]
    %v3507 = vld [vmem:[%s2033 + $0x392] sm:$0xff]
    %v3508 = vld [vmem:[%s2033 + $0x3c2] sm:$0xff]
    %v3509 = vld [vmem:[%s2033 + $0x3d2] sm:$0xff]
    %v3510 = vld [vmem:[%s2033 + $0x3e2] sm:$0xff]
    %v3511 = vld [vmem:[%s2033 + $0x3f2] sm:$0xff]
    %v3512 = vld [vmem:[%s2033 + $0x402] sm:$0xff]
    %v3513 = vld [vmem:[%s2033 + $0x412] sm:$0xff]
    %v3514 = vld [vmem:[%s2033 + $0x422] sm:$0xff]
    %v3515 = vld [vmem:[%s2033 + $0x432] sm:$0xff]
    %v3516 = vld [vmem:[%s2033 + $0x462] sm:$0xff]
    %v3517 = vld [vmem:[%s2033 + $0x472] sm:$0xff]
    %v3518 = vld [vmem:[%s2033 + $0x482] sm:$0xff]
    %v3519 = vld [vmem:[%s2033 + $0x492] sm:$0xff]
    %v3520 = vld [vmem:[%s2033 + $0x4a2] sm:$0xff]
    %v3521 = vld [vmem:[%s2033 + $0x4b2] sm:$0xff]
    %v3522 = vld [vmem:[%s2033 + $0x4c2] sm:$0xff]
    %v3523 = vld [vmem:[%s2033 + $0x4d2] sm:$0xff]
    %v3524 = vld [vmem:[%s1 + $0x140] sm:$0xff]
    %v3525 = vld [vmem:[%s1 + $0x148] sm:$0xff]
    %v3526 = vld [vmem:[%s1 + $0x150] sm:$0xff]
    %v3527 = vld [vmem:[%s1 + $0x158] sm:$0xff]
    %v3528 = vld [vmem:[%s1 + $0x160] sm:$0xff]
    %v3529 = vld [vmem:[%s1 + $0x168] sm:$0xff]
    %v3530 = vld [vmem:[%s1 + $0x170] sm:$0xff]
    %v3531 = vld [vmem:[%s1 + $0x178] sm:$0xff]
    %v3533 = vsel %vm165, %v3460, 0
    %v3536 = vsel %vm165, %v3461, 0
    %v3539 = vsel %vm165, %v3462, 0
    %v3542 = vsel %vm165, %v3463, 0
    %v3545 = vsel %vm165, %v3464, 0
    %v3548 = vsel %vm165, %v3465, 0
    %v3551 = vsel %vm165, %v3466, 0
    %v3554 = vsel %vm165, %v3467, 0
    %v3557 = vsel %vm165, %v3468, 0
    %v3560 = vsel %vm165, %v3469, 0
    %v3563 = vsel %vm165, %v3470, 0
    %v3566 = vsel %vm165, %v3471, 0
    %v3569 = vsel %vm165, %v3472, 0
    %v3572 = vsel %vm165, %v3473, 0
    %v3575 = vsel %vm165, %v3474, 0
    %v3578 = vsel %vm165, %v3475, 0
    %v3581 = vsel %vm165, %v3476, 0
    %v3584 = vsel %vm165, %v3477, 0
    %v3587 = vsel %vm165, %v3478, 0
    %v3590 = vsel %vm165, %v3479, 0
    %v3593 = vsel %vm165, %v3480, 0
    %v3596 = vsel %vm165, %v3481, 0
    %v3599 = vsel %vm165, %v3482, 0
    %v3602 = vsel %vm165, %v3483, 0
    %v3605 = vsel %vm165, %v3484, 0
    %v3608 = vsel %vm165, %v3485, 0
    %v3611 = vsel %vm165, %v3486, 0
    %v3614 = vsel %vm165, %v3487, 0
    %v3617 = vsel %vm165, %v3488, 0
    %v3620 = vsel %vm165, %v3489, 0
    %v3623 = vsel %vm165, %v3490, 0
    %v3626 = vsel %vm165, %v3491, 0
    %v3629 = vsel %vm165, %v3492, 0
    %v3632 = vsel %vm165, %v3493, 0
    %v3635 = vsel %vm165, %v3494, 0
    %v3638 = vsel %vm165, %v3495, 0
    %v3641 = vsel %vm165, %v3496, 0
    %v3644 = vsel %vm165, %v3497, 0
    %v3647 = vsel %vm165, %v3498, 0
    %v3650 = vsel %vm165, %v3499, 0
    %v3653 = vsel %vm165, %v3500, 0
    %v3656 = vsel %vm165, %v3501, 0
    %v3659 = vsel %vm165, %v3502, 0
    %v3662 = vsel %vm165, %v3503, 0
    %v3665 = vsel %vm165, %v3504, 0
    %v3668 = vsel %vm165, %v3505, 0
    %v3671 = vsel %vm165, %v3506, 0
    %v3674 = vsel %vm165, %v3507, 0
    %v3677 = vsel %vm165, %v3508, 0
    %v3680 = vsel %vm165, %v3509, 0
    %v3683 = vsel %vm165, %v3510, 0
    %v3686 = vsel %vm165, %v3511, 0
    %v3689 = vsel %vm165, %v3512, 0
    %v3692 = vsel %vm165, %v3513, 0
    %v3695 = vsel %vm165, %v3514, 0
    %v3698 = vsel %vm165, %v3515, 0
    %v3701 = vsel %vm165, %v3516, 0
    %v3704 = vsel %vm165, %v3517, 0
    %v3707 = vsel %vm165, %v3518, 0
    %v3710 = vsel %vm165, %v3519, 0
    %v3713 = vsel %vm165, %v3520, 0
    %v3716 = vsel %vm165, %v3521, 0
    %v3719 = vsel %vm165, %v3522, 0
    %v3722 = vsel %vm165, %v3523, 0
    %3724 = vmatprep.subr.mxu0 0.0
    %3725 = vmatpush1.msra.mxu0 %v3524
    %3726 = vmatprep.subr.mxu0 0.0
    %3727 = vmatpush1.msra.mxu0 %v3525
    %3728 = vmatprep.subr.mxu0 0.0
    %3729 = vmatpush1.msra.mxu0 %v3526
    %3730 = vmatprep.subr.mxu0 0.0
    %3731 = vmatpush1.msra.mxu0 %v3527
    %3732 = vmatprep.subr.mxu0 0.0
    %3733 = vmatpush1.msra.mxu0 %v3528
    %3734 = vmatprep.subr.mxu0 0.0
    %3735 = vmatpush1.msra.mxu0 %v3529
    %3736 = vmatprep.subr.mxu0 0.0
    %3737 = vmatpush1.msra.mxu0 %v3530
    %3738 = vmatprep.subr.mxu0 0.0
    %3739 = vmatpush1.msra.mxu0 %v3531
    %3740 = vmatprep.subr.mxu0 0.0
    %3741 = vmatpush1.msra.mxu0 0.0
    %3742 = vmatprep.subr.mxu0 0.0
    %3743 = vmatpush1.msra.mxu0 0.0
    %3744 = vmatprep.subr.mxu0 0.0
    %3745 = vmatpush1.msra.mxu0 0.0
    %3746 = vmatprep.subr.mxu0 0.0
    %3747 = vmatpush1.msra.mxu0 0.0
    %3748 = vmatprep.subr.mxu0 0.0
    %3749 = vmatpush1.msra.mxu0 0.0
    %3750 = vmatprep.subr.mxu0 0.0
    %3751 = vmatpush1.msra.mxu0 0.0
    %3752 = vmatprep.subr.mxu0 0.0
    %3753 = vmatpush1.msra.mxu0 0.0
    %3754 = vmatprep.subr.mxu0 0.0
    %3755 = vmatpush1.msra.mxu0 0.0
    %3756 = vmatprep.subr.mxu0 0.0
    %3757 = vmatpush1.msra.mxu0 0.0
    %3758 = vmatprep.subr.mxu0 0.0
    %3759 = vmatpush1.msra.mxu0 0.0
    %3760 = vmatprep.subr.mxu0 0.0
    %3761 = vmatpush1.msra.mxu0 0.0
    %3762 = vmatprep.subr.mxu0 0.0
    %3763 = vmatpush1.msra.mxu0 0.0
    %3764 = vmatprep.subr.mxu0 0.0
    %3765 = vmatpush1.msra.mxu0 0.0
    %3766 = vmatprep.subr.mxu0 0.0
    %3767 = vmatpush1.msra.mxu0 0.0
    %3768 = vmatprep.subr.mxu0 0.0
    %3769 = vmatpush1.msra.mxu0 0.0
    %3770 = vmatprep.subr.mxu0 0.0
    %3771 = vmatpush1.msra.mxu0 0.0
    %3772 = vmatprep.subr.mxu0 0.0
    %3773 = vmatpush1.msra.mxu0 0.0
    %3774 = vmatprep.subr.mxu0 0.0
    %3775 = vmatpush1.msra.mxu0 0.0
    %3776 = vmatprep.subr.mxu0 0.0
    %3777 = vmatpush1.msra.mxu0 0.0
    %3778 = vmatprep.subr.mxu0 0.0
    %3779 = vmatpush1.msra.mxu0 0.0
    %3780 = vmatprep.subr.mxu0 0.0
    %3781 = vmatpush1.msra.mxu0 0.0
    %3782 = vmatprep.subr.mxu0 0.0
    %3783 = vmatpush1.msra.mxu0 0.0
    %3784 = vmatprep.subr.mxu0 0.0
    %3785 = vmatpush1.msra.mxu0 0.0
    %3786 = vmatprep.subr.mxu0 0.0
    %3787 = vmatpush1.msra.mxu0 0.0
    %3788 = vmatprep.mubr.f32.mxu0 0.0
    %3789 = vmatmul.mubr.f32.gmra.mrb[0].mxu0 %v3533
    %v3790 = vpop.f32.mrb[0].mxu0
    %v3791 = vadd.f32 0.0, %v3790
    %v3792 = vpop.f32.mrb[0].mxu0
    %3793 = vmatprep.mubr.f32.mxu0 0.0
    %3794 = vmatmul.mubr.f32.gmra.mrb[0].mxu0 %v3536
    %v3795 = vpop.f32.mrb[0].mxu0
    %v3796 = vadd.f32 0.0, %v3795
    %v3797 = vpop.f32.mrb[0].mxu0
    %3798 = vmatprep.mubr.f32.mxu0 0.0
    %3799 = vmatmul.mubr.f32.gmra.mrb[0].mxu0 %v3539
    %v3800 = vpop.f32.mrb[0].mxu0
    %v3801 = vadd.f32 0.0, %v3800
    %v3802 = vpop.f32.mrb[0].mxu0
    %3803 = vmatprep.mubr.f32.mxu0 0.0
    %3804 = vmatmul.mubr.f32.gmra.mrb[0].mxu0 %v3542
    %v3805 = vpop.f32.mrb[0].mxu0
    %v3806 = vadd.f32 0.0, %v3805
    %v3807 = vpop.f32.mrb[0].mxu0
    %3808 = vmatprep.mubr.f32.mxu0 0.0
    %3809 = vmatmul.mubr.f32.gmra.mrb[0].mxu0 %v3545
    %v3810 = vpop.f32.mrb[0].mxu0
    %v3811 = vadd.f32 0.0, %v3810
    %v3812 = vpop.f32.mrb[0].mxu0
    %3813 = vmatprep.mubr.f32.mxu0 0.0
    %3814 = vmatmul.mubr.f32.gmra.mrb[0].mxu0 %v3548
    %v3815 = vpop.f32.mrb[0].mxu0
    %v3816 = vadd.f32 0.0, %v3815
    %v3817 = vpop.f32.mrb[0].mxu0
    %3818 = vmatprep.mubr.f32.mxu0 0.0
    %3819 = vmatmul.mubr.f32.gmra.mrb[0].mxu0 %v3551
    %v3820 = vpop.f32.mrb[0].mxu0
    %v3821 = vadd.f32 0.0, %v3820
    %v3822 = vpop.f32.mrb[0].mxu0
    %3823 = vmatprep.mubr.f32.mxu0 0.0
    %3824 = vmatmul.mubr.f32.gmra.mrb[0].mxu0 %v3554
    %v3825 = vpop.f32.mrb[0].mxu0
    %v3826 = vadd.f32 0.0, %v3825
    %v3827 = vpop.f32.mrb[0].mxu0
    %3828 = vmatprep.mubr.f32.mxu0 0.0
    %3829 = vmatmul.mubr.f32.gmra.mrb[0].mxu0 %v3557
    %v3830 = vpop.f32.mrb[0].mxu0
    %v3831 = vadd.f32 0.0, %v3830
    %v3832 = vpop.f32.mrb[0].mxu0
    %3833 = vmatprep.mubr.f32.mxu0 0.0
    %3834 = vmatmul.mubr.f32.gmra.mrb[0].mxu0 %v3560
    %v3835 = vpop.f32.mrb[0].mxu0
    %v3836 = vadd.f32 0.0, %v3835
    %v3837 = vpop.f32.mrb[0].mxu0
    %3838 = vmatprep.mubr.f32.mxu0 0.0
    %3839 = vmatmul.mubr.f32.gmra.mrb[0].mxu0 %v3563
    %v3840 = vpop.f32.mrb[0].mxu0
    %v3841 = vadd.f32 0.0, %v3840
    %v3842 = vpop.f32.mrb[0].mxu0
    %3843 = vmatprep.mubr.f32.mxu0 0.0
    %3844 = vmatmul.mubr.f32.gmra.mrb[0].mxu0 %v3566
    %v3845 = vpop.f32.mrb[0].mxu0
    %v3846 = vadd.f32 0.0, %v3845
    %v3847 = vpop.f32.mrb[0].mxu0
    %3848 = vmatprep.mubr.f32.mxu0 0.0
    %3849 = vmatmul.mubr.f32.gmra.mrb[0].mxu0 %v3569
    %v3850 = vpop.f32.mrb[0].mxu0
    %v3851 = vadd.f32 0.0, %v3850
    %v3852 = vpop.f32.mrb[0].mxu0
    %3853 = vmatprep.mubr.f32.mxu0 0.0
    %3854 = vmatmul.mubr.f32.gmra.mrb[0].mxu0 %v3572
    %v3855 = vpop.f32.mrb[0].mxu0
    %v3856 = vadd.f32 0.0, %v3855
    %v3857 = vpop.f32.mrb[0].mxu0
    %3858 = vmatprep.mubr.f32.mxu0 0.0
    %3859 = vmatmul.mubr.f32.gmra.mrb[0].mxu0 %v3575
    %v3860 = vpop.f32.mrb[0].mxu0
    %v3861 = vadd.f32 0.0, %v3860
    %v3862 = vpop.f32.mrb[0].mxu0
    %3863 = vmatprep.mubr.f32.mxu0 0.0
    %3864 = vmatmul.mubr.f32.gmra.mrb[0].mxu0 %v3578
    %v3865 = vpop.f32.mrb[0].mxu0
    %v3866 = vadd.f32 0.0, %v3865
    %v3867 = vpop.f32.mrb[0].mxu0
    %3868 = vmatprep.mubr.f32.mxu0 0.0
    %3869 = vmatmul.mubr.f32.gmra.mrb[0].mxu0 %v3581
    %v3870 = vpop.f32.mrb[0].mxu0
    %v3871 = vadd.f32 0.0, %v3870
    %v3872 = vpop.f32.mrb[0].mxu0
    %3873 = vmatprep.mubr.f32.mxu0 0.0
    %3874 = vmatmul.mubr.f32.gmra.mrb[0].mxu0 %v3584
    %v3875 = vpop.f32.mrb[0].mxu0
    %v3876 = vadd.f32 0.0, %v3875
    %v3877 = vpop.f32.mrb[0].mxu0
    %3878 = vmatprep.mubr.f32.mxu0 0.0
    %3879 = vmatmul.mubr.f32.gmra.mrb[0].mxu0 %v3587
    %v3880 = vpop.f32.mrb[0].mxu0
    %v3881 = vadd.f32 0.0, %v3880
    %v3882 = vpop.f32.mrb[0].mxu0
    %3883 = vmatprep.mubr.f32.mxu0 0.0
    %3884 = vmatmul.mubr.f32.gmra.mrb[0].mxu0 %v3590
    %v3885 = vpop.f32.mrb[0].mxu0
    %v3886 = vadd.f32 0.0, %v3885
    %v3887 = vpop.f32.mrb[0].mxu0
    %3888 = vmatprep.mubr.f32.mxu0 0.0
    %3889 = vmatmul.mubr.f32.gmra.mrb[0].mxu0 %v3593
    %v3890 = vpop.f32.mrb[0].mxu0
    %v3891 = vadd.f32 0.0, %v3890
    %v3892 = vpop.f32.mrb[0].mxu0
    %3893 = vmatprep.mubr.f32.mxu0 0.0
    %3894 = vmatmul.mubr.f32.gmra.mrb[0].mxu0 %v3596
    %v3895 = vpop.f32.mrb[0].mxu0
    %v3896 = vadd.f32 0.0, %v3895
    %v3897 = vpop.f32.mrb[0].mxu0
    %3898 = vmatprep.mubr.f32.mxu0 0.0
    %3899 = vmatmul.mubr.f32.gmra.mrb[0].mxu0 %v3599
    %v3900 = vpop.f32.mrb[0].mxu0
    %v3901 = vadd.f32 0.0, %v3900
    %v3902 = vpop.f32.mrb[0].mxu0
    %3903 = vmatprep.mubr.f32.mxu0 0.0
    %3904 = vmatmul.mubr.f32.gmra.mrb[0].mxu0 %v3602
    %v3905 = vpop.f32.mrb[0].mxu0
    %v3906 = vadd.f32 0.0, %v3905
    %v3907 = vpop.f32.mrb[0].mxu0
    %3908 = vmatprep.mubr.f32.mxu0 0.0
    %3909 = vmatmul.mubr.f32.gmra.mrb[0].mxu0 %v3605
    %v3910 = vpop.f32.mrb[0].mxu0
    %v3911 = vadd.f32 0.0, %v3910
    %v3912 = vpop.f32.mrb[0].mxu0
    %3913 = vmatprep.mubr.f32.mxu0 0.0
    %3914 = vmatmul.mubr.f32.gmra.mrb[0].mxu0 %v3608
    %v3915 = vpop.f32.mrb[0].mxu0
    %v3916 = vadd.f32 0.0, %v3915
    %v3917 = vpop.f32.mrb[0].mxu0
    %3918 = vmatprep.mubr.f32.mxu0 0.0
    %3919 = vmatmul.mubr.f32.gmra.mrb[0].mxu0 %v3611
    %v3920 = vpop.f32.mrb[0].mxu0
    %v3921 = vadd.f32 0.0, %v3920
    %v3922 = vpop.f32.mrb[0].mxu0
    %3923 = vmatprep.mubr.f32.mxu0 0.0
    %3924 = vmatmul.mubr.f32.gmra.mrb[0].mxu0 %v3614
    %v3925 = vpop.f32.mrb[0].mxu0
    %v3926 = vadd.f32 0.0, %v3925
    %v3927 = vpop.f32.mrb[0].mxu0
    %3928 = vmatprep.mubr.f32.mxu0 0.0
    %3929 = vmatmul.mubr.f32.gmra.mrb[0].mxu0 %v3617
    %v3930 = vpop.f32.mrb[0].mxu0
    %v3931 = vadd.f32 0.0, %v3930
    %v3932 = vpop.f32.mrb[0].mxu0
    %3933 = vmatprep.mubr.f32.mxu0 0.0
    %3934 = vmatmul.mubr.f32.gmra.mrb[0].mxu0 %v3620
    %v3935 = vpop.f32.mrb[0].mxu0
    %v3936 = vadd.f32 0.0, %v3935
    %v3937 = vpop.f32.mrb[0].mxu0
    %3938 = vmatprep.mubr.f32.mxu0 0.0
    %3939 = vmatmul.mubr.f32.gmra.mrb[0].mxu0 %v3623
    %v3940 = vpop.f32.mrb[0].mxu0
    %v3941 = vadd.f32 0.0, %v3940
    %v3942 = vpop.f32.mrb[0].mxu0
    %3943 = vmatprep.mubr.f32.mxu0 0.0
    %3944 = vmatmul.mubr.f32.gmra.mrb[0].mxu0 %v3626
    %v3945 = vpop.f32.mrb[0].mxu0
    %v3946 = vadd.f32 0.0, %v3945
    %v3947 = vpop.f32.mrb[0].mxu0
    %3948 = vmatprep.mubr.f32.mxu0 0.0
    %3949 = vmatmul.mubr.f32.gmra.mrb[0].mxu0 %v3629
    %v3950 = vpop.f32.mrb[0].mxu0
    %v3951 = vadd.f32 0.0, %v3950
    %v3952 = vpop.f32.mrb[0].mxu0
    %3953 = vmatprep.mubr.f32.mxu0 0.0
    %3954 = vmatmul.mubr.f32.gmra.mrb[0].mxu0 %v3632
    %v3955 = vpop.f32.mrb[0].mxu0
    %v3956 = vadd.f32 0.0, %v3955
    %v3957 = vpop.f32.mrb[0].mxu0
    %3958 = vmatprep.mubr.f32.mxu0 0.0
    %3959 = vmatmul.mubr.f32.gmra.mrb[0].mxu0 %v3635
    %v3960 = vpop.f32.mrb[0].mxu0
    %v3961 = vadd.f32 0.0, %v3960
    %v3962 = vpop.f32.mrb[0].mxu0
    %3963 = vmatprep.mubr.f32.mxu0 0.0
    %3964 = vmatmul.mubr.f32.gmra.mrb[0].mxu0 %v3638
    %v3965 = vpop.f32.mrb[0].mxu0
    %v3966 = vadd.f32 0.0, %v3965
    %v3967 = vpop.f32.mrb[0].mxu0
    %3968 = vmatprep.mubr.f32.mxu0 0.0
    %3969 = vmatmul.mubr.f32.gmra.mrb[0].mxu0 %v3641
    %v3970 = vpop.f32.mrb[0].mxu0
    %v3971 = vadd.f32 0.0, %v3970
    %v3972 = vpop.f32.mrb[0].mxu0
    %3973 = vmatprep.mubr.f32.mxu0 0.0
    %3974 = vmatmul.mubr.f32.gmra.mrb[0].mxu0 %v3644
    %v3975 = vpop.f32.mrb[0].mxu0
    %v3976 = vadd.f32 0.0, %v3975
    %v3977 = vpop.f32.mrb[0].mxu0
    %3978 = vmatprep.mubr.f32.mxu0 0.0
    %3979 = vmatmul.mubr.f32.gmra.mrb[0].mxu0 %v3647
    %v3980 = vpop.f32.mrb[0].mxu0
    %v3981 = vadd.f32 0.0, %v3980
    %v3982 = vpop.f32.mrb[0].mxu0
    %3983 = vmatprep.mubr.f32.mxu0 0.0
    %3984 = vmatmul.mubr.f32.gmra.mrb[0].mxu0 %v3650
    %v3985 = vpop.f32.mrb[0].mxu0
    %v3986 = vadd.f32 0.0, %v3985
    %v3987 = vpop.f32.mrb[0].mxu0
    %3988 = vmatprep.mubr.f32.mxu0 0.0
    %3989 = vmatmul.mubr.f32.gmra.mrb[0].mxu0 %v3653
    %v3990 = vpop.f32.mrb[0].mxu0
    %v3991 = vadd.f32 0.0, %v3990
    %v3992 = vpop.f32.mrb[0].mxu0
    %3993 = vmatprep.mubr.f32.mxu0 0.0
    %3994 = vmatmul.mubr.f32.gmra.mrb[0].mxu0 %v3656
    %v3995 = vpop.f32.mrb[0].mxu0
    %v3996 = vadd.f32 0.0, %v3995
    %v3997 = vpop.f32.mrb[0].mxu0
    %3998 = vmatprep.mubr.f32.mxu0 0.0
    %3999 = vmatmul.mubr.f32.gmra.mrb[0].mxu0 %v3659
    %v4000 = vpop.f32.mrb[0].mxu0
    %v4001 = vadd.f32 0.0, %v4000
    %v4002 = vpop.f32.mrb[0].mxu0
    %4003 = vmatprep.mubr.f32.mxu0 0.0
    %4004 = vmatmul.mubr.f32.gmra.mrb[0].mxu0 %v3662
    %v4005 = vpop.f32.mrb[0].mxu0
    %v4006 = vadd.f32 0.0, %v4005
    %v4007 = vpop.f32.mrb[0].mxu0
    %4008 = vmatprep.mubr.f32.mxu0 0.0
    %4009 = vmatmul.mubr.f32.gmra.mrb[0].mxu0 %v3665
    %v4010 = vpop.f32.mrb[0].mxu0
    %v4011 = vadd.f32 0.0, %v4010
    %v4012 = vpop.f32.mrb[0].mxu0
    %4013 = vmatprep.mubr.f32.mxu0 0.0
    %4014 = vmatmul.mubr.f32.gmra.mrb[0].mxu0 %v3668
    %v4015 = vpop.f32.mrb[0].mxu0
    %v4016 = vadd.f32 0.0, %v4015
    %v4017 = vpop.f32.mrb[0].mxu0
    %4018 = vmatprep.mubr.f32.mxu0 0.0
    %4019 = vmatmul.mubr.f32.gmra.mrb[0].mxu0 %v3671
    %v4020 = vpop.f32.mrb[0].mxu0
    %v4021 = vadd.f32 0.0, %v4020
    %v4022 = vpop.f32.mrb[0].mxu0
    %4023 = vmatprep.mubr.f32.mxu0 0.0
    %4024 = vmatmul.mubr.f32.gmra.mrb[0].mxu0 %v3674
    %v4025 = vpop.f32.mrb[0].mxu0
    %v4026 = vadd.f32 0.0, %v4025
    %v4027 = vpop.f32.mrb[0].mxu0
    %4028 = vmatprep.mubr.f32.mxu0 0.0
    %4029 = vmatmul.mubr.f32.gmra.mrb[0].mxu0 %v3677
    %v4030 = vpop.f32.mrb[0].mxu0
    %v4031 = vadd.f32 0.0, %v4030
    %v4032 = vpop.f32.mrb[0].mxu0
    %4033 = vmatprep.mubr.f32.mxu0 0.0
    %4034 = vmatmul.mubr.f32.gmra.mrb[0].mxu0 %v3680
    %v4035 = vpop.f32.mrb[0].mxu0
    %v4036 = vadd.f32 0.0, %v4035
    %v4037 = vpop.f32.mrb[0].mxu0
    %4038 = vmatprep.mubr.f32.mxu0 0.0
    %4039 = vmatmul.mubr.f32.gmra.mrb[0].mxu0 %v3683
    %v4040 = vpop.f32.mrb[0].mxu0
    %v4041 = vadd.f32 0.0, %v4040
    %v4042 = vpop.f32.mrb[0].mxu0
    %4043 = vmatprep.mubr.f32.mxu0 0.0
    %4044 = vmatmul.mubr.f32.gmra.mrb[0].mxu0 %v3686
    %v4045 = vpop.f32.mrb[0].mxu0
    %v4046 = vadd.f32 0.0, %v4045
    %v4047 = vpop.f32.mrb[0].mxu0
    %4048 = vmatprep.mubr.f32.mxu0 0.0
    %4049 = vmatmul.mubr.f32.gmra.mrb[0].mxu0 %v3689
    %v4050 = vpop.f32.mrb[0].mxu0
    %v4051 = vadd.f32 0.0, %v4050
    %v4052 = vpop.f32.mrb[0].mxu0
    %4053 = vmatprep.mubr.f32.mxu0 0.0
    %4054 = vmatmul.mubr.f32.gmra.mrb[0].mxu0 %v3692
    %v4055 = vpop.f32.mrb[0].mxu0
    %v4056 = vadd.f32 0.0, %v4055
    %v4057 = vpop.f32.mrb[0].mxu0
    %4058 = vmatprep.mubr.f32.mxu0 0.0
    %4059 = vmatmul.mubr.f32.gmra.mrb[0].mxu0 %v3695
    %v4060 = vpop.f32.mrb[0].mxu0
    %v4061 = vadd.f32 0.0, %v4060
    %v4062 = vpop.f32.mrb[0].mxu0
    %4063 = vmatprep.mubr.f32.mxu0 0.0
    %4064 = vmatmul.mubr.f32.gmra.mrb[0].mxu0 %v3698
    %v4065 = vpop.f32.mrb[0].mxu0
    %v4066 = vadd.f32 0.0, %v4065
    %v4067 = vpop.f32.mrb[0].mxu0
    %4068 = vmatprep.mubr.f32.mxu0 0.0
    %4069 = vmatmul.mubr.f32.gmra.mrb[0].mxu0 %v3701
    %v4070 = vpop.f32.mrb[0].mxu0
    %v4071 = vadd.f32 0.0, %v4070
    %v4072 = vpop.f32.mrb[0].mxu0
    %4073 = vmatprep.mubr.f32.mxu0 0.0
    %4074 = vmatmul.mubr.f32.gmra.mrb[0].mxu0 %v3704
    %v4075 = vpop.f32.mrb[0].mxu0
    %v4076 = vadd.f32 0.0, %v4075
    %v4077 = vpop.f32.mrb[0].mxu0
    %4078 = vmatprep.mubr.f32.mxu0 0.0
    %4079 = vmatmul.mubr.f32.gmra.mrb[0].mxu0 %v3707
    %v4080 = vpop.f32.mrb[0].mxu0
    %v4081 = vadd.f32 0.0, %v4080
    %v4082 = vpop.f32.mrb[0].mxu0
    %4083 = vmatprep.mubr.f32.mxu0 0.0
    %4084 = vmatmul.mubr.f32.gmra.mrb[0].mxu0 %v3710
    %v4085 = vpop.f32.mrb[0].mxu0
    %v4086 = vadd.f32 0.0, %v4085
    %v4087 = vpop.f32.mrb[0].mxu0
    %4088 = vmatprep.mubr.f32.mxu0 0.0
    %4089 = vmatmul.mubr.f32.gmra.mrb[0].mxu0 %v3713
    %v4090 = vpop.f32.mrb[0].mxu0
    %v4091 = vadd.f32 0.0, %v4090
    %v4092 = vpop.f32.mrb[0].mxu0
    %4093 = vmatprep.mubr.f32.mxu0 0.0
    %4094 = vmatmul.mubr.f32.gmra.mrb[0].mxu0 %v3716
    %v4095 = vpop.f32.mrb[0].mxu0
    %v4096 = vadd.f32 0.0, %v4095
    %v4097 = vpop.f32.mrb[0].mxu0
    %4098 = vmatprep.mubr.f32.mxu0 0.0
    %4099 = vmatmul.mubr.f32.gmra.mrb[0].mxu0 %v3719
    %v4100 = vpop.f32.mrb[0].mxu0
    %v4101 = vadd.f32 0.0, %v4100
    %v4102 = vpop.f32.mrb[0].mxu0
    %4103 = vmatprep.mubr.f32.mxu0 0.0
    %4104 = vmatmul.mubr.f32.gmra.mrb[0].mxu0 %v3722
    %v4105 = vpop.f32.mrb[0].mxu0
    %v4106 = vadd.f32 0.0, %v4105
    %v4107 = vpop.f32.mrb[0].mxu0
    %4108 = vdwg.mxu0
    %v4109 = vadd.f32 %v3396, %v3791
    %v4110 = vadd.f32 %v3397, %v3796
    %v4111 = vadd.f32 %v3398, %v3801
    %v4112 = vadd.f32 %v3399, %v3806
    %v4113 = vadd.f32 %v3400, %v3811
    %v4114 = vadd.f32 %v3401, %v3816
    %v4115 = vadd.f32 %v3402, %v3821
    %v4116 = vadd.f32 %v3403, %v3826
    %v4117 = vadd.f32 %v3404, %v3831
    %v4118 = vadd.f32 %v3405, %v3836
    %v4119 = vadd.f32 %v3406, %v3841
    %v4120 = vadd.f32 %v3407, %v3846
    %v4121 = vadd.f32 %v3408, %v3851
    %v4122 = vadd.f32 %v3409, %v3856
    %v4123 = vadd.f32 %v3410, %v3861
    %v4124 = vadd.f32 %v3411, %v3866
    %v4125 = vadd.f32 %v3412, %v3871
    %v4126 = vadd.f32 %v3413, %v3876
    %v4127 = vadd.f32 %v3414, %v3881
    %v4128 = vadd.f32 %v3415, %v3886
    %v4129 = vadd.f32 %v3416, %v3891
    %v4130 = vadd.f32 %v3417, %v3896
    %v4131 = vadd.f32 %v3418, %v3901
    %v4132 = vadd.f32 %v3419, %v3906
    %v4133 = vadd.f32 %v3420, %v3911
    %v4134 = vadd.f32 %v3421, %v3916
    %v4135 = vadd.f32 %v3422, %v3921
    %v4136 = vadd.f32 %v3423, %v3926
    %v4137 = vadd.f32 %v3424, %v3931
    %v4138 = vadd.f32 %v3425, %v3936
    %v4139 = vadd.f32 %v3426, %v3941
    %v4140 = vadd.f32 %v3427, %v3946
    %v4141 = vadd.f32 %v3428, %v3951
    %v4142 = vadd.f32 %v3429, %v3956
    %v4143 = vadd.f32 %v3430, %v3961
    %v4144 = vadd.f32 %v3431, %v3966
    %v4145 = vadd.f32 %v3432, %v3971
    %v4146 = vadd.f32 %v3433, %v3976
    %v4147 = vadd.f32 %v3434, %v3981
    %v4148 = vadd.f32 %v3435, %v3986
    %v4149 = vadd.f32 %v3436, %v3991
    %v4150 = vadd.f32 %v3437, %v3996
    %v4151 = vadd.f32 %v3438, %v4001
    %v4152 = vadd.f32 %v3439, %v4006
    %v4153 = vadd.f32 %v3440, %v4011
    %v4154 = vadd.f32 %v3441, %v4016
    %v4155 = vadd.f32 %v3442, %v4021
    %v4156 = vadd.f32 %v3443, %v4026
    %v4157 = vadd.f32 %v3444, %v4031
    %v4158 = vadd.f32 %v3445, %v4036
    %v4159 = vadd.f32 %v3446, %v4041
    %v4160 = vadd.f32 %v3447, %v4046
    %v4161 = vadd.f32 %v3448, %v4051
    %v4162 = vadd.f32 %v3449, %v4056
    %v4163 = vadd.f32 %v3450, %v4061
    %v4164 = vadd.f32 %v3451, %v4066
    %v4165 = vadd.f32 %v3452, %v4071
    %v4166 = vadd.f32 %v3453, %v4076
    %v4167 = vadd.f32 %v3454, %v4081
    %v4168 = vadd.f32 %v3455, %v4086
    %v4169 = vadd.f32 %v3456, %v4091
    %v4170 = vadd.f32 %v3457, %v4096
    %v4171 = vadd.f32 %v3458, %v4101
    %v4172 = vadd.f32 %v3459, %v4106
    %s4173 = scalar_lea.vmem %s0, 32
    %v4174 = vld [vmem:[%s4173] sm:$0xff]
    %v4175 = vld [vmem:[%s4173 + $0x10] sm:$0xff]
    %v4176 = vld [vmem:[%s4173 + $0x20] sm:$0xff]
    %v4177 = vld [vmem:[%s4173 + $0x30] sm:$0xff]
    %v4178 = vld [vmem:[%s4173 + $0x40] sm:$0xff]
    %v4179 = vld [vmem:[%s4173 + $0x50] sm:$0xff]
    %v4180 = vld [vmem:[%s4173 + $0x60] sm:$0xff]
    %v4181 = vld [vmem:[%s4173 + $0x70] sm:$0xff]
    %v4182 = vld [vmem:[%s4173 + $0xa0] sm:$0xff]
    %v4183 = vld [vmem:[%s4173 + $0xb0] sm:$0xff]
    %v4184 = vld [vmem:[%s4173 + $0xc0] sm:$0xff]
    %v4185 = vld [vmem:[%s4173 + $0xd0] sm:$0xff]
    %v4186 = vld [vmem:[%s4173 + $0xe0] sm:$0xff]
    %v4187 = vld [vmem:[%s4173 + $0xf0] sm:$0xff]
    %v4188 = vld [vmem:[%s4173 + $0x100] sm:$0xff]
    %v4189 = vld [vmem:[%s4173 + $0x110] sm:$0xff]
    %v4190 = vld [vmem:[%s4173 + $0x140] sm:$0xff]
    %v4191 = vld [vmem:[%s4173 + $0x150] sm:$0xff]
    %v4192 = vld [vmem:[%s4173 + $0x160] sm:$0xff]
    %v4193 = vld [vmem:[%s4173 + $0x170] sm:$0xff]
    %v4194 = vld [vmem:[%s4173 + $0x180] sm:$0xff]
    %v4195 = vld [vmem:[%s4173 + $0x190] sm:$0xff]
    %v4196 = vld [vmem:[%s4173 + $0x1a0] sm:$0xff]
    %v4197 = vld [vmem:[%s4173 + $0x1b0] sm:$0xff]
    %v4198 = vld [vmem:[%s4173 + $0x1e0] sm:$0xff]
    %v4199 = vld [vmem:[%s4173 + $0x1f0] sm:$0xff]
    %v4200 = vld [vmem:[%s4173 + $0x200] sm:$0xff]
    %v4201 = vld [vmem:[%s4173 + $0x210] sm:$0xff]
    %v4202 = vld [vmem:[%s4173 + $0x220] sm:$0xff]
    %v4203 = vld [vmem:[%s4173 + $0x230] sm:$0xff]
    %v4204 = vld [vmem:[%s4173 + $0x240] sm:$0xff]
    %v4205 = vld [vmem:[%s4173 + $0x250] sm:$0xff]
    %v4206 = vld [vmem:[%s4173 + $0x280] sm:$0xff]
    %v4207 = vld [vmem:[%s4173 + $0x290] sm:$0xff]
    %v4208 = vld [vmem:[%s4173 + $0x2a0] sm:$0xff]
    %v4209 = vld [vmem:[%s4173 + $0x2b0] sm:$0xff]
    %v4210 = vld [vmem:[%s4173 + $0x2c0] sm:$0xff]
    %v4211 = vld [vmem:[%s4173 + $0x2d0] sm:$0xff]
    %v4212 = vld [vmem:[%s4173 + $0x2e0] sm:$0xff]
    %v4213 = vld [vmem:[%s4173 + $0x2f0] sm:$0xff]
    %v4214 = vld [vmem:[%s4173 + $0x320] sm:$0xff]
    %v4215 = vld [vmem:[%s4173 + $0x330] sm:$0xff]
    %v4216 = vld [vmem:[%s4173 + $0x340] sm:$0xff]
    %v4217 = vld [vmem:[%s4173 + $0x350] sm:$0xff]
    %v4218 = vld [vmem:[%s4173 + $0x360] sm:$0xff]
    %v4219 = vld [vmem:[%s4173 + $0x370] sm:$0xff]
    %v4220 = vld [vmem:[%s4173 + $0x380] sm:$0xff]
    %v4221 = vld [vmem:[%s4173 + $0x390] sm:$0xff]
    %v4222 = vld [vmem:[%s4173 + $0x3c0] sm:$0xff]
    %v4223 = vld [vmem:[%s4173 + $0x3d0] sm:$0xff]
    %v4224 = vld [vmem:[%s4173 + $0x3e0] sm:$0xff]
    %v4225 = vld [vmem:[%s4173 + $0x3f0] sm:$0xff]
    %v4226 = vld [vmem:[%s4173 + $0x400] sm:$0xff]
    %v4227 = vld [vmem:[%s4173 + $0x410] sm:$0xff]
    %v4228 = vld [vmem:[%s4173 + $0x420] sm:$0xff]
    %v4229 = vld [vmem:[%s4173 + $0x430] sm:$0xff]
    %v4230 = vld [vmem:[%s4173 + $0x460] sm:$0xff]
    %v4231 = vld [vmem:[%s4173 + $0x470] sm:$0xff]
    %v4232 = vld [vmem:[%s4173 + $0x480] sm:$0xff]
    %v4233 = vld [vmem:[%s4173 + $0x490] sm:$0xff]
    %v4234 = vld [vmem:[%s4173 + $0x4a0] sm:$0xff]
    %v4235 = vld [vmem:[%s4173 + $0x4b0] sm:$0xff]
    %v4236 = vld [vmem:[%s4173 + $0x4c0] sm:$0xff]
    %v4237 = vld [vmem:[%s4173 + $0x4d0] sm:$0xff]
    %v4238 = vld [vmem:[%s1 + $0x180] sm:$0xff]
    %v4239 = vld [vmem:[%s1 + $0x188] sm:$0xff]
    %v4240 = vld [vmem:[%s1 + $0x190] sm:$0xff]
    %v4241 = vld [vmem:[%s1 + $0x198] sm:$0xff]
    %v4242 = vld [vmem:[%s1 + $0x1a0] sm:$0xff]
    %v4243 = vld [vmem:[%s1 + $0x1a8] sm:$0xff]
    %v4244 = vld [vmem:[%s1 + $0x1b0] sm:$0xff]
    %v4245 = vld [vmem:[%s1 + $0x1b8] sm:$0xff]
    %v4247 = vsel %vm165, %v4174, 0
    %v4250 = vsel %vm165, %v4175, 0
    %v4253 = vsel %vm165, %v4176, 0
    %v4256 = vsel %vm165, %v4177, 0
    %v4259 = vsel %vm165, %v4178, 0
    %v4262 = vsel %vm165, %v4179, 0
    %v4265 = vsel %vm165, %v4180, 0
    %v4268 = vsel %vm165, %v4181, 0
    %v4271 = vsel %vm165, %v4182, 0
    %v4274 = vsel %vm165, %v4183, 0
    %v4277 = vsel %vm165, %v4184, 0
    %v4280 = vsel %vm165, %v4185, 0
    %v4283 = vsel %vm165, %v4186, 0
    %v4286 = vsel %vm165, %v4187, 0
    %v4289 = vsel %vm165, %v4188, 0
    %v4292 = vsel %vm165, %v4189, 0
    %v4295 = vsel %vm165, %v4190, 0
    %v4298 = vsel %vm165, %v4191, 0
    %v4301 = vsel %vm165, %v4192, 0
    %v4304 = vsel %vm165, %v4193, 0
    %v4307 = vsel %vm165, %v4194, 0
    %v4310 = vsel %vm165, %v4195, 0
    %v4313 = vsel %vm165, %v4196, 0
    %v4316 = vsel %vm165, %v4197, 0
    %v4319 = vsel %vm165, %v4198, 0
    %v4322 = vsel %vm165, %v4199, 0
    %v4325 = vsel %vm165, %v4200, 0
    %v4328 = vsel %vm165, %v4201, 0
    %v4331 = vsel %vm165, %v4202, 0
    %v4334 = vsel %vm165, %v4203, 0
    %v4337 = vsel %vm165, %v4204, 0
    %v4340 = vsel %vm165, %v4205, 0
    %v4343 = vsel %vm165, %v4206, 0
    %v4346 = vsel %vm165, %v4207, 0
    %v4349 = vsel %vm165, %v4208, 0
    %v4352 = vsel %vm165, %v4209, 0
    %v4355 = vsel %vm165, %v4210, 0
    %v4358 = vsel %vm165, %v4211, 0
    %v4361 = vsel %vm165, %v4212, 0
    %v4364 = vsel %vm165, %v4213, 0
    %v4367 = vsel %vm165, %v4214, 0
    %v4370 = vsel %vm165, %v4215, 0
    %v4373 = vsel %vm165, %v4216, 0
    %v4376 = vsel %vm165, %v4217, 0
    %v4379 = vsel %vm165, %v4218, 0
    %v4382 = vsel %vm165, %v4219, 0
    %v4385 = vsel %vm165, %v4220, 0
    %v4388 = vsel %vm165, %v4221, 0
    %v4391 = vsel %vm165, %v4222, 0
    %v4394 = vsel %vm165, %v4223, 0
    %v4397 = vsel %vm165, %v4224, 0
    %v4400 = vsel %vm165, %v4225, 0
    %v4403 = vsel %vm165, %v4226, 0
    %v4406 = vsel %vm165, %v4227, 0
    %v4409 = vsel %vm165, %v4228, 0
    %v4412 = vsel %vm165, %v4229, 0
    %v4415 = vsel %vm165, %v4230, 0
    %v4418 = vsel %vm165, %v4231, 0
    %v4421 = vsel %vm165, %v4232, 0
    %v4424 = vsel %vm165, %v4233, 0
    %v4427 = vsel %vm165, %v4234, 0
    %v4430 = vsel %vm165, %v4235, 0
    %v4433 = vsel %vm165, %v4236, 0
    %v4436 = vsel %vm165, %v4237, 0
    %4438 = vmatprep.subr.mxu0 0.0
    %4439 = vmatpush1.msra.mxu0 %v4238
    %4440 = vmatprep.subr.mxu0 0.0
    %4441 = vmatpush1.msra.mxu0 %v4239
    %4442 = vmatprep.subr.mxu0 0.0
    %4443 = vmatpush1.msra.mxu0 %v4240
    %4444 = vmatprep.subr.mxu0 0.0
    %4445 = vmatpush1.msra.mxu0 %v4241
    %4446 = vmatprep.subr.mxu0 0.0
    %4447 = vmatpush1.msra.mxu0 %v4242
    %4448 = vmatprep.subr.mxu0 0.0
    %4449 = vmatpush1.msra.mxu0 %v4243
    %4450 = vmatprep.subr.mxu0 0.0
    %4451 = vmatpush1.msra.mxu0 %v4244
    %4452 = vmatprep.subr.mxu0 0.0
    %4453 = vmatpush1.msra.mxu0 %v4245
    %4454 = vmatprep.subr.mxu0 0.0
    %4455 = vmatpush1.msra.mxu0 0.0
    %4456 = vmatprep.subr.mxu0 0.0
    %4457 = vmatpush1.msra.mxu0 0.0
    %4458 = vmatprep.subr.mxu0 0.0
    %4459 = vmatpush1.msra.mxu0 0.0
    %4460 = vmatprep.subr.mxu0 0.0
    %4461 = vmatpush1.msra.mxu0 0.0
    %4462 = vmatprep.subr.mxu0 0.0
    %4463 = vmatpush1.msra.mxu0 0.0
    %4464 = vmatprep.subr.mxu0 0.0
    %4465 = vmatpush1.msra.mxu0 0.0
    %4466 = vmatprep.subr.mxu0 0.0
    %4467 = vmatpush1.msra.mxu0 0.0
    %4468 = vmatprep.subr.mxu0 0.0
    %4469 = vmatpush1.msra.mxu0 0.0
    %4470 = vmatprep.subr.mxu0 0.0
    %4471 = vmatpush1.msra.mxu0 0.0
    %4472 = vmatprep.subr.mxu0 0.0
    %4473 = vmatpush1.msra.mxu0 0.0
    %4474 = vmatprep.subr.mxu0 0.0
    %4475 = vmatpush1.msra.mxu0 0.0
    %4476 = vmatprep.subr.mxu0 0.0
    %4477 = vmatpush1.msra.mxu0 0.0
    %4478 = vmatprep.subr.mxu0 0.0
    %4479 = vmatpush1.msra.mxu0 0.0
    %4480 = vmatprep.subr.mxu0 0.0
    %4481 = vmatpush1.msra.mxu0 0.0
    %4482 = vmatprep.subr.mxu0 0.0
    %4483 = vmatpush1.msra.mxu0 0.0
    %4484 = vmatprep.subr.mxu0 0.0
    %4485 = vmatpush1.msra.mxu0 0.0
    %4486 = vmatprep.subr.mxu0 0.0
    %4487 = vmatpush1.msra.mxu0 0.0
    %4488 = vmatprep.subr.mxu0 0.0
    %4489 = vmatpush1.msra.mxu0 0.0
    %4490 = vmatprep.subr.mxu0 0.0
    %4491 = vmatpush1.msra.mxu0 0.0
    %4492 = vmatprep.subr.mxu0 0.0
    %4493 = vmatpush1.msra.mxu0 0.0
    %4494 = vmatprep.subr.mxu0 0.0
    %4495 = vmatpush1.msra.mxu0 0.0
    %4496 = vmatprep.subr.mxu0 0.0
    %4497 = vmatpush1.msra.mxu0 0.0
    %4498 = vmatprep.subr.mxu0 0.0
    %4499 = vmatpush1.msra.mxu0 0.0
    %4500 = vmatprep.subr.mxu0 0.0
    %4501 = vmatpush1.msra.mxu0 0.0
    %4502 = vmatprep.mubr.f32.mxu0 0.0
    %4503 = vmatmul.mubr.f32.gmra.mrb[0].mxu0 %v4247
    %v4504 = vpop.f32.mrb[0].mxu0
    %v4505 = vadd.f32 0.0, %v4504
    %v4506 = vpop.f32.mrb[0].mxu0
    %4507 = vmatprep.mubr.f32.mxu0 0.0
    %4508 = vmatmul.mubr.f32.gmra.mrb[0].mxu0 %v4250
    %v4509 = vpop.f32.mrb[0].mxu0
    %v4510 = vadd.f32 0.0, %v4509
    %v4511 = vpop.f32.mrb[0].mxu0
    %4512 = vmatprep.mubr.f32.mxu0 0.0
    %4513 = vmatmul.mubr.f32.gmra.mrb[0].mxu0 %v4253
    %v4514 = vpop.f32.mrb[0].mxu0
    %v4515 = vadd.f32 0.0, %v4514
    %v4516 = vpop.f32.mrb[0].mxu0
    %4517 = vmatprep.mubr.f32.mxu0 0.0
    %4518 = vmatmul.mubr.f32.gmra.mrb[0].mxu0 %v4256
    %v4519 = vpop.f32.mrb[0].mxu0
    %v4520 = vadd.f32 0.0, %v4519
    %v4521 = vpop.f32.mrb[0].mxu0
    %4522 = vmatprep.mubr.f32.mxu0 0.0
    %4523 = vmatmul.mubr.f32.gmra.mrb[0].mxu0 %v4259
    %v4524 = vpop.f32.mrb[0].mxu0
    %v4525 = vadd.f32 0.0, %v4524
    %v4526 = vpop.f32.mrb[0].mxu0
    %4527 = vmatprep.mubr.f32.mxu0 0.0
    %4528 = vmatmul.mubr.f32.gmra.mrb[0].mxu0 %v4262
    %v4529 = vpop.f32.mrb[0].mxu0
    %v4530 = vadd.f32 0.0, %v4529
    %v4531 = vpop.f32.mrb[0].mxu0
    %4532 = vmatprep.mubr.f32.mxu0 0.0
    %4533 = vmatmul.mubr.f32.gmra.mrb[0].mxu0 %v4265
    %v4534 = vpop.f32.mrb[0].mxu0
    %v4535 = vadd.f32 0.0, %v4534
    %v4536 = vpop.f32.mrb[0].mxu0
    %4537 = vmatprep.mubr.f32.mxu0 0.0
    %4538 = vmatmul.mubr.f32.gmra.mrb[0].mxu0 %v4268
    %v4539 = vpop.f32.mrb[0].mxu0
    %v4540 = vadd.f32 0.0, %v4539
    %v4541 = vpop.f32.mrb[0].mxu0
    %4542 = vmatprep.mubr.f32.mxu0 0.0
    %4543 = vmatmul.mubr.f32.gmra.mrb[0].mxu0 %v4271
    %v4544 = vpop.f32.mrb[0].mxu0
    %v4545 = vadd.f32 0.0, %v4544
    %v4546 = vpop.f32.mrb[0].mxu0
    %4547 = vmatprep.mubr.f32.mxu0 0.0
    %4548 = vmatmul.mubr.f32.gmra.mrb[0].mxu0 %v4274
    %v4549 = vpop.f32.mrb[0].mxu0
    %v4550 = vadd.f32 0.0, %v4549
    %v4551 = vpop.f32.mrb[0].mxu0
    %4552 = vmatprep.mubr.f32.mxu0 0.0
    %4553 = vmatmul.mubr.f32.gmra.mrb[0].mxu0 %v4277
    %v4554 = vpop.f32.mrb[0].mxu0
    %v4555 = vadd.f32 0.0, %v4554
    %v4556 = vpop.f32.mrb[0].mxu0
    %4557 = vmatprep.mubr.f32.mxu0 0.0
    %4558 = vmatmul.mubr.f32.gmra.mrb[0].mxu0 %v4280
    %v4559 = vpop.f32.mrb[0].mxu0
    %v4560 = vadd.f32 0.0, %v4559
    %v4561 = vpop.f32.mrb[0].mxu0
    %4562 = vmatprep.mubr.f32.mxu0 0.0
    %4563 = vmatmul.mubr.f32.gmra.mrb[0].mxu0 %v4283
    %v4564 = vpop.f32.mrb[0].mxu0
    %v4565 = vadd.f32 0.0, %v4564
    %v4566 = vpop.f32.mrb[0].mxu0
    %4567 = vmatprep.mubr.f32.mxu0 0.0
    %4568 = vmatmul.mubr.f32.gmra.mrb[0].mxu0 %v4286
    %v4569 = vpop.f32.mrb[0].mxu0
    %v4570 = vadd.f32 0.0, %v4569
    %v4571 = vpop.f32.mrb[0].mxu0
    %4572 = vmatprep.mubr.f32.mxu0 0.0
    %4573 = vmatmul.mubr.f32.gmra.mrb[0].mxu0 %v4289
    %v4574 = vpop.f32.mrb[0].mxu0
    %v4575 = vadd.f32 0.0, %v4574
    %v4576 = vpop.f32.mrb[0].mxu0
    %4577 = vmatprep.mubr.f32.mxu0 0.0
    %4578 = vmatmul.mubr.f32.gmra.mrb[0].mxu0 %v4292
    %v4579 = vpop.f32.mrb[0].mxu0
    %v4580 = vadd.f32 0.0, %v4579
    %v4581 = vpop.f32.mrb[0].mxu0
    %4582 = vmatprep.mubr.f32.mxu0 0.0
    %4583 = vmatmul.mubr.f32.gmra.mrb[0].mxu0 %v4295
    %v4584 = vpop.f32.mrb[0].mxu0
    %v4585 = vadd.f32 0.0, %v4584
    %v4586 = vpop.f32.mrb[0].mxu0
    %4587 = vmatprep.mubr.f32.mxu0 0.0
    %4588 = vmatmul.mubr.f32.gmra.mrb[0].mxu0 %v4298
    %v4589 = vpop.f32.mrb[0].mxu0
    %v4590 = vadd.f32 0.0, %v4589
    %v4591 = vpop.f32.mrb[0].mxu0
    %4592 = vmatprep.mubr.f32.mxu0 0.0
    %4593 = vmatmul.mubr.f32.gmra.mrb[0].mxu0 %v4301
    %v4594 = vpop.f32.mrb[0].mxu0
    %v4595 = vadd.f32 0.0, %v4594
    %v4596 = vpop.f32.mrb[0].mxu0
    %4597 = vmatprep.mubr.f32.mxu0 0.0
    %4598 = vmatmul.mubr.f32.gmra.mrb[0].mxu0 %v4304
    %v4599 = vpop.f32.mrb[0].mxu0
    %v4600 = vadd.f32 0.0, %v4599
    %v4601 = vpop.f32.mrb[0].mxu0
    %4602 = vmatprep.mubr.f32.mxu0 0.0
    %4603 = vmatmul.mubr.f32.gmra.mrb[0].mxu0 %v4307
    %v4604 = vpop.f32.mrb[0].mxu0
    %v4605 = vadd.f32 0.0, %v4604
    %v4606 = vpop.f32.mrb[0].mxu0
    %4607 = vmatprep.mubr.f32.mxu0 0.0
    %4608 = vmatmul.mubr.f32.gmra.mrb[0].mxu0 %v4310
    %v4609 = vpop.f32.mrb[0].mxu0
    %v4610 = vadd.f32 0.0, %v4609
    %v4611 = vpop.f32.mrb[0].mxu0
    %4612 = vmatprep.mubr.f32.mxu0 0.0
    %4613 = vmatmul.mubr.f32.gmra.mrb[0].mxu0 %v4313
    %v4614 = vpop.f32.mrb[0].mxu0
    %v4615 = vadd.f32 0.0, %v4614
    %v4616 = vpop.f32.mrb[0].mxu0
    %4617 = vmatprep.mubr.f32.mxu0 0.0
    %4618 = vmatmul.mubr.f32.gmra.mrb[0].mxu0 %v4316
    %v4619 = vpop.f32.mrb[0].mxu0
    %v4620 = vadd.f32 0.0, %v4619
    %v4621 = vpop.f32.mrb[0].mxu0
    %4622 = vmatprep.mubr.f32.mxu0 0.0
    %4623 = vmatmul.mubr.f32.gmra.mrb[0].mxu0 %v4319
    %v4624 = vpop.f32.mrb[0].mxu0
    %v4625 = vadd.f32 0.0, %v4624
    %v4626 = vpop.f32.mrb[0].mxu0
    %4627 = vmatprep.mubr.f32.mxu0 0.0
    %4628 = vmatmul.mubr.f32.gmra.mrb[0].mxu0 %v4322
    %v4629 = vpop.f32.mrb[0].mxu0
    %v4630 = vadd.f32 0.0, %v4629
    %v4631 = vpop.f32.mrb[0].mxu0
    %4632 = vmatprep.mubr.f32.mxu0 0.0
    %4633 = vmatmul.mubr.f32.gmra.mrb[0].mxu0 %v4325
    %v4634 = vpop.f32.mrb[0].mxu0
    %v4635 = vadd.f32 0.0, %v4634
    %v4636 = vpop.f32.mrb[0].mxu0
    %4637 = vmatprep.mubr.f32.mxu0 0.0
    %4638 = vmatmul.mubr.f32.gmra.mrb[0].mxu0 %v4328
    %v4639 = vpop.f32.mrb[0].mxu0
    %v4640 = vadd.f32 0.0, %v4639
    %v4641 = vpop.f32.mrb[0].mxu0
    %4642 = vmatprep.mubr.f32.mxu0 0.0
    %4643 = vmatmul.mubr.f32.gmra.mrb[0].mxu0 %v4331
    %v4644 = vpop.f32.mrb[0].mxu0
    %v4645 = vadd.f32 0.0, %v4644
    %v4646 = vpop.f32.mrb[0].mxu0
    %4647 = vmatprep.mubr.f32.mxu0 0.0
    %4648 = vmatmul.mubr.f32.gmra.mrb[0].mxu0 %v4334
    %v4649 = vpop.f32.mrb[0].mxu0
    %v4650 = vadd.f32 0.0, %v4649
    %v4651 = vpop.f32.mrb[0].mxu0
    %4652 = vmatprep.mubr.f32.mxu0 0.0
    %4653 = vmatmul.mubr.f32.gmra.mrb[0].mxu0 %v4337
    %v4654 = vpop.f32.mrb[0].mxu0
    %v4655 = vadd.f32 0.0, %v4654
    %v4656 = vpop.f32.mrb[0].mxu0
    %4657 = vmatprep.mubr.f32.mxu0 0.0
    %4658 = vmatmul.mubr.f32.gmra.mrb[0].mxu0 %v4340
    %v4659 = vpop.f32.mrb[0].mxu0
    %v4660 = vadd.f32 0.0, %v4659
    %v4661 = vpop.f32.mrb[0].mxu0
    %4662 = vmatprep.mubr.f32.mxu0 0.0
    %4663 = vmatmul.mubr.f32.gmra.mrb[0].mxu0 %v4343
    %v4664 = vpop.f32.mrb[0].mxu0
    %v4665 = vadd.f32 0.0, %v4664
    %v4666 = vpop.f32.mrb[0].mxu0
    %4667 = vmatprep.mubr.f32.mxu0 0.0
    %4668 = vmatmul.mubr.f32.gmra.mrb[0].mxu0 %v4346
    %v4669 = vpop.f32.mrb[0].mxu0
    %v4670 = vadd.f32 0.0, %v4669
    %v4671 = vpop.f32.mrb[0].mxu0
    %4672 = vmatprep.mubr.f32.mxu0 0.0
    %4673 = vmatmul.mubr.f32.gmra.mrb[0].mxu0 %v4349
    %v4674 = vpop.f32.mrb[0].mxu0
    %v4675 = vadd.f32 0.0, %v4674
    %v4676 = vpop.f32.mrb[0].mxu0
    %4677 = vmatprep.mubr.f32.mxu0 0.0
    %4678 = vmatmul.mubr.f32.gmra.mrb[0].mxu0 %v4352
    %v4679 = vpop.f32.mrb[0].mxu0
    %v4680 = vadd.f32 0.0, %v4679
    %v4681 = vpop.f32.mrb[0].mxu0
    %4682 = vmatprep.mubr.f32.mxu0 0.0
    %4683 = vmatmul.mubr.f32.gmra.mrb[0].mxu0 %v4355
    %v4684 = vpop.f32.mrb[0].mxu0
    %v4685 = vadd.f32 0.0, %v4684
    %v4686 = vpop.f32.mrb[0].mxu0
    %4687 = vmatprep.mubr.f32.mxu0 0.0
    %4688 = vmatmul.mubr.f32.gmra.mrb[0].mxu0 %v4358
    %v4689 = vpop.f32.mrb[0].mxu0
    %v4690 = vadd.f32 0.0, %v4689
    %v4691 = vpop.f32.mrb[0].mxu0
    %4692 = vmatprep.mubr.f32.mxu0 0.0
    %4693 = vmatmul.mubr.f32.gmra.mrb[0].mxu0 %v4361
    %v4694 = vpop.f32.mrb[0].mxu0
    %v4695 = vadd.f32 0.0, %v4694
    %v4696 = vpop.f32.mrb[0].mxu0
    %4697 = vmatprep.mubr.f32.mxu0 0.0
    %4698 = vmatmul.mubr.f32.gmra.mrb[0].mxu0 %v4364
    %v4699 = vpop.f32.mrb[0].mxu0
    %v4700 = vadd.f32 0.0, %v4699
    %v4701 = vpop.f32.mrb[0].mxu0
    %4702 = vmatprep.mubr.f32.mxu0 0.0
    %4703 = vmatmul.mubr.f32.gmra.mrb[0].mxu0 %v4367
    %v4704 = vpop.f32.mrb[0].mxu0
    %v4705 = vadd.f32 0.0, %v4704
    %v4706 = vpop.f32.mrb[0].mxu0
    %4707 = vmatprep.mubr.f32.mxu0 0.0
    %4708 = vmatmul.mubr.f32.gmra.mrb[0].mxu0 %v4370
    %v4709 = vpop.f32.mrb[0].mxu0
    %v4710 = vadd.f32 0.0, %v4709
    %v4711 = vpop.f32.mrb[0].mxu0
    %4712 = vmatprep.mubr.f32.mxu0 0.0
    %4713 = vmatmul.mubr.f32.gmra.mrb[0].mxu0 %v4373
    %v4714 = vpop.f32.mrb[0].mxu0
    %v4715 = vadd.f32 0.0, %v4714
    %v4716 = vpop.f32.mrb[0].mxu0
    %4717 = vmatprep.mubr.f32.mxu0 0.0
    %4718 = vmatmul.mubr.f32.gmra.mrb[0].mxu0 %v4376
    %v4719 = vpop.f32.mrb[0].mxu0
    %v4720 = vadd.f32 0.0, %v4719
    %v4721 = vpop.f32.mrb[0].mxu0
    %4722 = vmatprep.mubr.f32.mxu0 0.0
    %4723 = vmatmul.mubr.f32.gmra.mrb[0].mxu0 %v4379
    %v4724 = vpop.f32.mrb[0].mxu0
    %v4725 = vadd.f32 0.0, %v4724
    %v4726 = vpop.f32.mrb[0].mxu0
    %4727 = vmatprep.mubr.f32.mxu0 0.0
    %4728 = vmatmul.mubr.f32.gmra.mrb[0].mxu0 %v4382
    %v4729 = vpop.f32.mrb[0].mxu0
    %v4730 = vadd.f32 0.0, %v4729
    %v4731 = vpop.f32.mrb[0].mxu0
    %4732 = vmatprep.mubr.f32.mxu0 0.0
    %4733 = vmatmul.mubr.f32.gmra.mrb[0].mxu0 %v4385
    %v4734 = vpop.f32.mrb[0].mxu0
    %v4735 = vadd.f32 0.0, %v4734
    %v4736 = vpop.f32.mrb[0].mxu0
    %4737 = vmatprep.mubr.f32.mxu0 0.0
    %4738 = vmatmul.mubr.f32.gmra.mrb[0].mxu0 %v4388
    %v4739 = vpop.f32.mrb[0].mxu0
    %v4740 = vadd.f32 0.0, %v4739
    %v4741 = vpop.f32.mrb[0].mxu0
    %4742 = vmatprep.mubr.f32.mxu0 0.0
    %4743 = vmatmul.mubr.f32.gmra.mrb[0].mxu0 %v4391
    %v4744 = vpop.f32.mrb[0].mxu0
    %v4745 = vadd.f32 0.0, %v4744
    %v4746 = vpop.f32.mrb[0].mxu0
    %4747 = vmatprep.mubr.f32.mxu0 0.0
    %4748 = vmatmul.mubr.f32.gmra.mrb[0].mxu0 %v4394
    %v4749 = vpop.f32.mrb[0].mxu0
    %v4750 = vadd.f32 0.0, %v4749
    %v4751 = vpop.f32.mrb[0].mxu0
    %4752 = vmatprep.mubr.f32.mxu0 0.0
    %4753 = vmatmul.mubr.f32.gmra.mrb[0].mxu0 %v4397
    %v4754 = vpop.f32.mrb[0].mxu0
    %v4755 = vadd.f32 0.0, %v4754
    %v4756 = vpop.f32.mrb[0].mxu0
    %4757 = vmatprep.mubr.f32.mxu0 0.0
    %4758 = vmatmul.mubr.f32.gmra.mrb[0].mxu0 %v4400
    %v4759 = vpop.f32.mrb[0].mxu0
    %v4760 = vadd.f32 0.0, %v4759
    %v4761 = vpop.f32.mrb[0].mxu0
    %4762 = vmatprep.mubr.f32.mxu0 0.0
    %4763 = vmatmul.mubr.f32.gmra.mrb[0].mxu0 %v4403
    %v4764 = vpop.f32.mrb[0].mxu0
    %v4765 = vadd.f32 0.0, %v4764
    %v4766 = vpop.f32.mrb[0].mxu0
    %4767 = vmatprep.mubr.f32.mxu0 0.0
    %4768 = vmatmul.mubr.f32.gmra.mrb[0].mxu0 %v4406
    %v4769 = vpop.f32.mrb[0].mxu0
    %v4770 = vadd.f32 0.0, %v4769
    %v4771 = vpop.f32.mrb[0].mxu0
    %4772 = vmatprep.mubr.f32.mxu0 0.0
    %4773 = vmatmul.mubr.f32.gmra.mrb[0].mxu0 %v4409
    %v4774 = vpop.f32.mrb[0].mxu0
    %v4775 = vadd.f32 0.0, %v4774
    %v4776 = vpop.f32.mrb[0].mxu0
    %4777 = vmatprep.mubr.f32.mxu0 0.0
    %4778 = vmatmul.mubr.f32.gmra.mrb[0].mxu0 %v4412
    %v4779 = vpop.f32.mrb[0].mxu0
    %v4780 = vadd.f32 0.0, %v4779
    %v4781 = vpop.f32.mrb[0].mxu0
    %4782 = vmatprep.mubr.f32.mxu0 0.0
    %4783 = vmatmul.mubr.f32.gmra.mrb[0].mxu0 %v4415
    %v4784 = vpop.f32.mrb[0].mxu0
    %v4785 = vadd.f32 0.0, %v4784
    %v4786 = vpop.f32.mrb[0].mxu0
    %4787 = vmatprep.mubr.f32.mxu0 0.0
    %4788 = vmatmul.mubr.f32.gmra.mrb[0].mxu0 %v4418
    %v4789 = vpop.f32.mrb[0].mxu0
    %v4790 = vadd.f32 0.0, %v4789
    %v4791 = vpop.f32.mrb[0].mxu0
    %4792 = vmatprep.mubr.f32.mxu0 0.0
    %4793 = vmatmul.mubr.f32.gmra.mrb[0].mxu0 %v4421
    %v4794 = vpop.f32.mrb[0].mxu0
    %v4795 = vadd.f32 0.0, %v4794
    %v4796 = vpop.f32.mrb[0].mxu0
    %4797 = vmatprep.mubr.f32.mxu0 0.0
    %4798 = vmatmul.mubr.f32.gmra.mrb[0].mxu0 %v4424
    %v4799 = vpop.f32.mrb[0].mxu0
    %v4800 = vadd.f32 0.0, %v4799
    %v4801 = vpop.f32.mrb[0].mxu0
    %4802 = vmatprep.mubr.f32.mxu0 0.0
    %4803 = vmatmul.mubr.f32.gmra.mrb[0].mxu0 %v4427
    %v4804 = vpop.f32.mrb[0].mxu0
    %v4805 = vadd.f32 0.0, %v4804
    %v4806 = vpop.f32.mrb[0].mxu0
    %4807 = vmatprep.mubr.f32.mxu0 0.0
    %4808 = vmatmul.mubr.f32.gmra.mrb[0].mxu0 %v4430
    %v4809 = vpop.f32.mrb[0].mxu0
    %v4810 = vadd.f32 0.0, %v4809
    %v4811 = vpop.f32.mrb[0].mxu0
    %4812 = vmatprep.mubr.f32.mxu0 0.0
    %4813 = vmatmul.mubr.f32.gmra.mrb[0].mxu0 %v4433
    %v4814 = vpop.f32.mrb[0].mxu0
    %v4815 = vadd.f32 0.0, %v4814
    %v4816 = vpop.f32.mrb[0].mxu0
    %4817 = vmatprep.mubr.f32.mxu0 0.0
    %4818 = vmatmul.mubr.f32.gmra.mrb[0].mxu0 %v4436
    %v4819 = vpop.f32.mrb[0].mxu0
    %v4820 = vadd.f32 0.0, %v4819
    %v4821 = vpop.f32.mrb[0].mxu0
    %4822 = vdwg.mxu0
    %v4823 = vadd.f32 %v4109, %v4505
    %v4824 = vadd.f32 %v4110, %v4510
    %v4825 = vadd.f32 %v4111, %v4515
    %v4826 = vadd.f32 %v4112, %v4520
    %v4827 = vadd.f32 %v4113, %v4525
    %v4828 = vadd.f32 %v4114, %v4530
    %v4829 = vadd.f32 %v4115, %v4535
    %v4830 = vadd.f32 %v4116, %v4540
    %v4831 = vadd.f32 %v4117, %v4545
    %v4832 = vadd.f32 %v4118, %v4550
    %v4833 = vadd.f32 %v4119, %v4555
    %v4834 = vadd.f32 %v4120, %v4560
    %v4835 = vadd.f32 %v4121, %v4565
    %v4836 = vadd.f32 %v4122, %v4570
    %v4837 = vadd.f32 %v4123, %v4575
    %v4838 = vadd.f32 %v4124, %v4580
    %v4839 = vadd.f32 %v4125, %v4585
    %v4840 = vadd.f32 %v4126, %v4590
    %v4841 = vadd.f32 %v4127, %v4595
    %v4842 = vadd.f32 %v4128, %v4600
    %v4843 = vadd.f32 %v4129, %v4605
    %v4844 = vadd.f32 %v4130, %v4610
    %v4845 = vadd.f32 %v4131, %v4615
    %v4846 = vadd.f32 %v4132, %v4620
    %v4847 = vadd.f32 %v4133, %v4625
    %v4848 = vadd.f32 %v4134, %v4630
    %v4849 = vadd.f32 %v4135, %v4635
    %v4850 = vadd.f32 %v4136, %v4640
    %v4851 = vadd.f32 %v4137, %v4645
    %v4852 = vadd.f32 %v4138, %v4650
    %v4853 = vadd.f32 %v4139, %v4655
    %v4854 = vadd.f32 %v4140, %v4660
    %v4855 = vadd.f32 %v4141, %v4665
    %v4856 = vadd.f32 %v4142, %v4670
    %v4857 = vadd.f32 %v4143, %v4675
    %v4858 = vadd.f32 %v4144, %v4680
    %v4859 = vadd.f32 %v4145, %v4685
    %v4860 = vadd.f32 %v4146, %v4690
    %v4861 = vadd.f32 %v4147, %v4695
    %v4862 = vadd.f32 %v4148, %v4700
    %v4863 = vadd.f32 %v4149, %v4705
    %v4864 = vadd.f32 %v4150, %v4710
    %v4865 = vadd.f32 %v4151, %v4715
    %v4866 = vadd.f32 %v4152, %v4720
    %v4867 = vadd.f32 %v4153, %v4725
    %v4868 = vadd.f32 %v4154, %v4730
    %v4869 = vadd.f32 %v4155, %v4735
    %v4870 = vadd.f32 %v4156, %v4740
    %v4871 = vadd.f32 %v4157, %v4745
    %v4872 = vadd.f32 %v4158, %v4750
    %v4873 = vadd.f32 %v4159, %v4755
    %v4874 = vadd.f32 %v4160, %v4760
    %v4875 = vadd.f32 %v4161, %v4765
    %v4876 = vadd.f32 %v4162, %v4770
    %v4877 = vadd.f32 %v4163, %v4775
    %v4878 = vadd.f32 %v4164, %v4780
    %v4879 = vadd.f32 %v4165, %v4785
    %v4880 = vadd.f32 %v4166, %v4790
    %v4881 = vadd.f32 %v4167, %v4795
    %v4882 = vadd.f32 %v4168, %v4800
    %v4883 = vadd.f32 %v4169, %v4805
    %v4884 = vadd.f32 %v4170, %v4810
    %v4885 = vadd.f32 %v4171, %v4815
    %v4886 = vadd.f32 %v4172, %v4820
    %v4887 = vld [vmem:[%s4173 + $0x1] sm:$0xff]
    %v4888 = vld [vmem:[%s4173 + $0x11] sm:$0xff]
    %v4889 = vld [vmem:[%s4173 + $0x21] sm:$0xff]
    %v4890 = vld [vmem:[%s4173 + $0x31] sm:$0xff]
    %v4891 = vld [vmem:[%s4173 + $0x41] sm:$0xff]
    %v4892 = vld [vmem:[%s4173 + $0x51] sm:$0xff]
    %v4893 = vld [vmem:[%s4173 + $0x61] sm:$0xff]
    %v4894 = vld [vmem:[%s4173 + $0x71] sm:$0xff]
    %v4895 = vld [vmem:[%s4173 + $0xa1] sm:$0xff]
    %v4896 = vld [vmem:[%s4173 + $0xb1] sm:$0xff]
    %v4897 = vld [vmem:[%s4173 + $0xc1] sm:$0xff]
    %v4898 = vld [vmem:[%s4173 + $0xd1] sm:$0xff]
    %v4899 = vld [vmem:[%s4173 + $0xe1] sm:$0xff]
    %v4900 = vld [vmem:[%s4173 + $0xf1] sm:$0xff]
    %v4901 = vld [vmem:[%s4173 + $0x101] sm:$0xff]
    %v4902 = vld [vmem:[%s4173 + $0x111] sm:$0xff]
    %v4903 = vld [vmem:[%s4173 + $0x141] sm:$0xff]
    %v4904 = vld [vmem:[%s4173 + $0x151] sm:$0xff]
    %v4905 = vld [vmem:[%s4173 + $0x161] sm:$0xff]
    %v4906 = vld [vmem:[%s4173 + $0x171] sm:$0xff]
    %v4907 = vld [vmem:[%s4173 + $0x181] sm:$0xff]
    %v4908 = vld [vmem:[%s4173 + $0x191] sm:$0xff]
    %v4909 = vld [vmem:[%s4173 + $0x1a1] sm:$0xff]
    %v4910 = vld [vmem:[%s4173 + $0x1b1] sm:$0xff]
    %v4911 = vld [vmem:[%s4173 + $0x1e1] sm:$0xff]
    %v4912 = vld [vmem:[%s4173 + $0x1f1] sm:$0xff]
    %v4913 = vld [vmem:[%s4173 + $0x201] sm:$0xff]
    %v4914 = vld [vmem:[%s4173 + $0x211] sm:$0xff]
    %v4915 = vld [vmem:[%s4173 + $0x221] sm:$0xff]
    %v4916 = vld [vmem:[%s4173 + $0x231] sm:$0xff]
    %v4917 = vld [vmem:[%s4173 + $0x241] sm:$0xff]
    %v4918 = vld [vmem:[%s4173 + $0x251] sm:$0xff]
    %v4919 = vld [vmem:[%s4173 + $0x281] sm:$0xff]
    %v4920 = vld [vmem:[%s4173 + $0x291] sm:$0xff]
    %v4921 = vld [vmem:[%s4173 + $0x2a1] sm:$0xff]
    %v4922 = vld [vmem:[%s4173 + $0x2b1] sm:$0xff]
    %v4923 = vld [vmem:[%s4173 + $0x2c1] sm:$0xff]
    %v4924 = vld [vmem:[%s4173 + $0x2d1] sm:$0xff]
    %v4925 = vld [vmem:[%s4173 + $0x2e1] sm:$0xff]
    %v4926 = vld [vmem:[%s4173 + $0x2f1] sm:$0xff]
    %v4927 = vld [vmem:[%s4173 + $0x321] sm:$0xff]
    %v4928 = vld [vmem:[%s4173 + $0x331] sm:$0xff]
    %v4929 = vld [vmem:[%s4173 + $0x341] sm:$0xff]
    %v4930 = vld [vmem:[%s4173 + $0x351] sm:$0xff]
    %v4931 = vld [vmem:[%s4173 + $0x361] sm:$0xff]
    %v4932 = vld [vmem:[%s4173 + $0x371] sm:$0xff]
    %v4933 = vld [vmem:[%s4173 + $0x381] sm:$0xff]
    %v4934 = vld [vmem:[%s4173 + $0x391] sm:$0xff]
    %v4935 = vld [vmem:[%s4173 + $0x3c1] sm:$0xff]
    %v4936 = vld [vmem:[%s4173 + $0x3d1] sm:$0xff]
    %v4937 = vld [vmem:[%s4173 + $0x3e1] sm:$0xff]
    %v4938 = vld [vmem:[%s4173 + $0x3f1] sm:$0xff]
    %v4939 = vld [vmem:[%s4173 + $0x401] sm:$0xff]
    %v4940 = vld [vmem:[%s4173 + $0x411] sm:$0xff]
    %v4941 = vld [vmem:[%s4173 + $0x421] sm:$0xff]
    %v4942 = vld [vmem:[%s4173 + $0x431] sm:$0xff]
    %v4943 = vld [vmem:[%s4173 + $0x461] sm:$0xff]
    %v4944 = vld [vmem:[%s4173 + $0x471] sm:$0xff]
    %v4945 = vld [vmem:[%s4173 + $0x481] sm:$0xff]
    %v4946 = vld [vmem:[%s4173 + $0x491] sm:$0xff]
    %v4947 = vld [vmem:[%s4173 + $0x4a1] sm:$0xff]
    %v4948 = vld [vmem:[%s4173 + $0x4b1] sm:$0xff]
    %v4949 = vld [vmem:[%s4173 + $0x4c1] sm:$0xff]
    %v4950 = vld [vmem:[%s4173 + $0x4d1] sm:$0xff]
    %v4951 = vld [vmem:[%s1 + $0x1c0] sm:$0xff]
    %v4952 = vld [vmem:[%s1 + $0x1c8] sm:$0xff]
    %v4953 = vld [vmem:[%s1 + $0x1d0] sm:$0xff]
    %v4954 = vld [vmem:[%s1 + $0x1d8] sm:$0xff]
    %v4955 = vld [vmem:[%s1 + $0x1e0] sm:$0xff]
    %v4956 = vld [vmem:[%s1 + $0x1e8] sm:$0xff]
    %v4957 = vld [vmem:[%s1 + $0x1f0] sm:$0xff]
    %v4958 = vld [vmem:[%s1 + $0x1f8] sm:$0xff]
    %v4960 = vsel %vm165, %v4887, 0
    %v4963 = vsel %vm165, %v4888, 0
    %v4966 = vsel %vm165, %v4889, 0
    %v4969 = vsel %vm165, %v4890, 0
    %v4972 = vsel %vm165, %v4891, 0
    %v4975 = vsel %vm165, %v4892, 0
    %v4978 = vsel %vm165, %v4893, 0
    %v4981 = vsel %vm165, %v4894, 0
    %v4984 = vsel %vm165, %v4895, 0
    %v4987 = vsel %vm165, %v4896, 0
    %v4990 = vsel %vm165, %v4897, 0
    %v4993 = vsel %vm165, %v4898, 0
    %v4996 = vsel %vm165, %v4899, 0
    %v4999 = vsel %vm165, %v4900, 0
    %v5002 = vsel %vm165, %v4901, 0
    %v5005 = vsel %vm165, %v4902, 0
    %v5008 = vsel %vm165, %v4903, 0
    %v5011 = vsel %vm165, %v4904, 0
    %v5014 = vsel %vm165, %v4905, 0
    %v5017 = vsel %vm165, %v4906, 0
    %v5020 = vsel %vm165, %v4907, 0
    %v5023 = vsel %vm165, %v4908, 0
    %v5026 = vsel %vm165, %v4909, 0
    %v5029 = vsel %vm165, %v4910, 0
    %v5032 = vsel %vm165, %v4911, 0
    %v5035 = vsel %vm165, %v4912, 0
    %v5038 = vsel %vm165, %v4913, 0
    %v5041 = vsel %vm165, %v4914, 0
    %v5044 = vsel %vm165, %v4915, 0
    %v5047 = vsel %vm165, %v4916, 0
    %v5050 = vsel %vm165, %v4917, 0
    %v5053 = vsel %vm165, %v4918, 0
    %v5056 = vsel %vm165, %v4919, 0
    %v5059 = vsel %vm165, %v4920, 0
    %v5062 = vsel %vm165, %v4921, 0
    %v5065 = vsel %vm165, %v4922, 0
    %v5068 = vsel %vm165, %v4923, 0
    %v5071 = vsel %vm165, %v4924, 0
    %v5074 = vsel %vm165, %v4925, 0
    %v5077 = vsel %vm165, %v4926, 0
    %v5080 = vsel %vm165, %v4927, 0
    %v5083 = vsel %vm165, %v4928, 0
    %v5086 = vsel %vm165, %v4929, 0
    %v5089 = vsel %vm165, %v4930, 0
    %v5092 = vsel %vm165, %v4931, 0
    %v5095 = vsel %vm165, %v4932, 0
    %v5098 = vsel %vm165, %v4933, 0
    %v5101 = vsel %vm165, %v4934, 0
    %v5104 = vsel %vm165, %v4935, 0
    %v5107 = vsel %vm165, %v4936, 0
    %v5110 = vsel %vm165, %v4937, 0
    %v5113 = vsel %vm165, %v4938, 0
    %v5116 = vsel %vm165, %v4939, 0
    %v5119 = vsel %vm165, %v4940, 0
    %v5122 = vsel %vm165, %v4941, 0
    %v5125 = vsel %vm165, %v4942, 0
    %v5128 = vsel %vm165, %v4943, 0
    %v5131 = vsel %vm165, %v4944, 0
    %v5134 = vsel %vm165, %v4945, 0
    %v5137 = vsel %vm165, %v4946, 0
    %v5140 = vsel %vm165, %v4947, 0
    %v5143 = vsel %vm165, %v4948, 0
    %v5146 = vsel %vm165, %v4949, 0
    %v5149 = vsel %vm165, %v4950, 0
    %5151 = vmatprep.subr.mxu0 0.0
    %5152 = vmatpush1.msra.mxu0 %v4951
    %5153 = vmatprep.subr.mxu0 0.0
    %5154 = vmatpush1.msra.mxu0 %v4952
    %5155 = vmatprep.subr.mxu0 0.0
    %5156 = vmatpush1.msra.mxu0 %v4953
    %5157 = vmatprep.subr.mxu0 0.0
    %5158 = vmatpush1.msra.mxu0 %v4954
    %5159 = vmatprep.subr.mxu0 0.0
    %5160 = vmatpush1.msra.mxu0 %v4955
    %5161 = vmatprep.subr.mxu0 0.0
    %5162 = vmatpush1.msra.mxu0 %v4956
    %5163 = vmatprep.subr.mxu0 0.0
    %5164 = vmatpush1.msra.mxu0 %v4957
    %5165 = vmatprep.subr.mxu0 0.0
    %5166 = vmatpush1.msra.mxu0 %v4958
    %5167 = vmatprep.subr.mxu0 0.0
    %5168 = vmatpush1.msra.mxu0 0.0
    %5169 = vmatprep.subr.mxu0 0.0
    %5170 = vmatpush1.msra.mxu0 0.0
    %5171 = vmatprep.subr.mxu0 0.0
    %5172 = vmatpush1.msra.mxu0 0.0
    %5173 = vmatprep.subr.mxu0 0.0
    %5174 = vmatpush1.msra.mxu0 0.0
    %5175 = vmatprep.subr.mxu0 0.0
    %5176 = vmatpush1.msra.mxu0 0.0
    %5177 = vmatprep.subr.mxu0 0.0
    %5178 = vmatpush1.msra.mxu0 0.0
    %5179 = vmatprep.subr.mxu0 0.0
    %5180 = vmatpush1.msra.mxu0 0.0
    %5181 = vmatprep.subr.mxu0 0.0
    %5182 = vmatpush1.msra.mxu0 0.0
    %5183 = vmatprep.subr.mxu0 0.0
    %5184 = vmatpush1.msra.mxu0 0.0
    %5185 = vmatprep.subr.mxu0 0.0
    %5186 = vmatpush1.msra.mxu0 0.0
    %5187 = vmatprep.subr.mxu0 0.0
    %5188 = vmatpush1.msra.mxu0 0.0
    %5189 = vmatprep.subr.mxu0 0.0
    %5190 = vmatpush1.msra.mxu0 0.0
    %5191 = vmatprep.subr.mxu0 0.0
    %5192 = vmatpush1.msra.mxu0 0.0
    %5193 = vmatprep.subr.mxu0 0.0
    %5194 = vmatpush1.msra.mxu0 0.0
    %5195 = vmatprep.subr.mxu0 0.0
    %5196 = vmatpush1.msra.mxu0 0.0
    %5197 = vmatprep.subr.mxu0 0.0
    %5198 = vmatpush1.msra.mxu0 0.0
    %5199 = vmatprep.subr.mxu0 0.0
    %5200 = vmatpush1.msra.mxu0 0.0
    %5201 = vmatprep.subr.mxu0 0.0
    %5202 = vmatpush1.msra.mxu0 0.0
    %5203 = vmatprep.subr.mxu0 0.0
    %5204 = vmatpush1.msra.mxu0 0.0
    %5205 = vmatprep.subr.mxu0 0.0
    %5206 = vmatpush1.msra.mxu0 0.0
    %5207 = vmatprep.subr.mxu0 0.0
    %5208 = vmatpush1.msra.mxu0 0.0
    %5209 = vmatprep.subr.mxu0 0.0
    %5210 = vmatpush1.msra.mxu0 0.0
    %5211 = vmatprep.subr.mxu0 0.0
    %5212 = vmatpush1.msra.mxu0 0.0
    %5213 = vmatprep.subr.mxu0 0.0
    %5214 = vmatpush1.msra.mxu0 0.0
    %5215 = vmatprep.mubr.f32.mxu0 0.0
    %5216 = vmatmul.mubr.f32.gmra.mrb[0].mxu0 %v4960
    %v5217 = vpop.f32.mrb[0].mxu0
    %v5218 = vadd.f32 0.0, %v5217
    %v5219 = vpop.f32.mrb[0].mxu0
    %5220 = vmatprep.mubr.f32.mxu0 0.0
    %5221 = vmatmul.mubr.f32.gmra.mrb[0].mxu0 %v4963
    %v5222 = vpop.f32.mrb[0].mxu0
    %v5223 = vadd.f32 0.0, %v5222
    %v5224 = vpop.f32.mrb[0].mxu0
    %5225 = vmatprep.mubr.f32.mxu0 0.0
    %5226 = vmatmul.mubr.f32.gmra.mrb[0].mxu0 %v4966
    %v5227 = vpop.f32.mrb[0].mxu0
    %v5228 = vadd.f32 0.0, %v5227
    %v5229 = vpop.f32.mrb[0].mxu0
    %5230 = vmatprep.mubr.f32.mxu0 0.0
    %5231 = vmatmul.mubr.f32.gmra.mrb[0].mxu0 %v4969
    %v5232 = vpop.f32.mrb[0].mxu0
    %v5233 = vadd.f32 0.0, %v5232
    %v5234 = vpop.f32.mrb[0].mxu0
    %5235 = vmatprep.mubr.f32.mxu0 0.0
    %5236 = vmatmul.mubr.f32.gmra.mrb[0].mxu0 %v4972
    %v5237 = vpop.f32.mrb[0].mxu0
    %v5238 = vadd.f32 0.0, %v5237
    %v5239 = vpop.f32.mrb[0].mxu0
    %5240 = vmatprep.mubr.f32.mxu0 0.0
    %5241 = vmatmul.mubr.f32.gmra.mrb[0].mxu0 %v4975
    %v5242 = vpop.f32.mrb[0].mxu0
    %v5243 = vadd.f32 0.0, %v5242
    %v5244 = vpop.f32.mrb[0].mxu0
    %5245 = vmatprep.mubr.f32.mxu0 0.0
    %5246 = vmatmul.mubr.f32.gmra.mrb[0].mxu0 %v4978
    %v5247 = vpop.f32.mrb[0].mxu0
    %v5248 = vadd.f32 0.0, %v5247
    %v5249 = vpop.f32.mrb[0].mxu0
    %5250 = vmatprep.mubr.f32.mxu0 0.0
    %5251 = vmatmul.mubr.f32.gmra.mrb[0].mxu0 %v4981
    %v5252 = vpop.f32.mrb[0].mxu0
    %v5253 = vadd.f32 0.0, %v5252
    %v5254 = vpop.f32.mrb[0].mxu0
    %5255 = vmatprep.mubr.f32.mxu0 0.0
    %5256 = vmatmul.mubr.f32.gmra.mrb[0].mxu0 %v4984
    %v5257 = vpop.f32.mrb[0].mxu0
    %v5258 = vadd.f32 0.0, %v5257
    %v5259 = vpop.f32.mrb[0].mxu0
    %5260 = vmatprep.mubr.f32.mxu0 0.0
    %5261 = vmatmul.mubr.f32.gmra.mrb[0].mxu0 %v4987
    %v5262 = vpop.f32.mrb[0].mxu0
    %v5263 = vadd.f32 0.0, %v5262
    %v5264 = vpop.f32.mrb[0].mxu0
    %5265 = vmatprep.mubr.f32.mxu0 0.0
    %5266 = vmatmul.mubr.f32.gmra.mrb[0].mxu0 %v4990
    %v5267 = vpop.f32.mrb[0].mxu0
    %v5268 = vadd.f32 0.0, %v5267
    %v5269 = vpop.f32.mrb[0].mxu0
    %5270 = vmatprep.mubr.f32.mxu0 0.0
    %5271 = vmatmul.mubr.f32.gmra.mrb[0].mxu0 %v4993
    %v5272 = vpop.f32.mrb[0].mxu0
    %v5273 = vadd.f32 0.0, %v5272
    %v5274 = vpop.f32.mrb[0].mxu0
    %5275 = vmatprep.mubr.f32.mxu0 0.0
    %5276 = vmatmul.mubr.f32.gmra.mrb[0].mxu0 %v4996
    %v5277 = vpop.f32.mrb[0].mxu0
    %v5278 = vadd.f32 0.0, %v5277
    %v5279 = vpop.f32.mrb[0].mxu0
    %5280 = vmatprep.mubr.f32.mxu0 0.0
    %5281 = vmatmul.mubr.f32.gmra.mrb[0].mxu0 %v4999
    %v5282 = vpop.f32.mrb[0].mxu0
    %v5283 = vadd.f32 0.0, %v5282
    %v5284 = vpop.f32.mrb[0].mxu0
    %5285 = vmatprep.mubr.f32.mxu0 0.0
    %5286 = vmatmul.mubr.f32.gmra.mrb[0].mxu0 %v5002
    %v5287 = vpop.f32.mrb[0].mxu0
    %v5288 = vadd.f32 0.0, %v5287
    %v5289 = vpop.f32.mrb[0].mxu0
    %5290 = vmatprep.mubr.f32.mxu0 0.0
    %5291 = vmatmul.mubr.f32.gmra.mrb[0].mxu0 %v5005
    %v5292 = vpop.f32.mrb[0].mxu0
    %v5293 = vadd.f32 0.0, %v5292
    %v5294 = vpop.f32.mrb[0].mxu0
    %5295 = vmatprep.mubr.f32.mxu0 0.0
    %5296 = vmatmul.mubr.f32.gmra.mrb[0].mxu0 %v5008
    %v5297 = vpop.f32.mrb[0].mxu0
    %v5298 = vadd.f32 0.0, %v5297
    %v5299 = vpop.f32.mrb[0].mxu0
    %5300 = vmatprep.mubr.f32.mxu0 0.0
    %5301 = vmatmul.mubr.f32.gmra.mrb[0].mxu0 %v5011
    %v5302 = vpop.f32.mrb[0].mxu0
    %v5303 = vadd.f32 0.0, %v5302
    %v5304 = vpop.f32.mrb[0].mxu0
    %5305 = vmatprep.mubr.f32.mxu0 0.0
    %5306 = vmatmul.mubr.f32.gmra.mrb[0].mxu0 %v5014
    %v5307 = vpop.f32.mrb[0].mxu0
    %v5308 = vadd.f32 0.0, %v5307
    %v5309 = vpop.f32.mrb[0].mxu0
    %5310 = vmatprep.mubr.f32.mxu0 0.0
    %5311 = vmatmul.mubr.f32.gmra.mrb[0].mxu0 %v5017
    %v5312 = vpop.f32.mrb[0].mxu0
    %v5313 = vadd.f32 0.0, %v5312
    %v5314 = vpop.f32.mrb[0].mxu0
    %5315 = vmatprep.mubr.f32.mxu0 0.0
    %5316 = vmatmul.mubr.f32.gmra.mrb[0].mxu0 %v5020
    %v5317 = vpop.f32.mrb[0].mxu0
    %v5318 = vadd.f32 0.0, %v5317
    %v5319 = vpop.f32.mrb[0].mxu0
    %5320 = vmatprep.mubr.f32.mxu0 0.0
    %5321 = vmatmul.mubr.f32.gmra.mrb[0].mxu0 %v5023
    %v5322 = vpop.f32.mrb[0].mxu0
    %v5323 = vadd.f32 0.0, %v5322
    %v5324 = vpop.f32.mrb[0].mxu0
    %5325 = vmatprep.mubr.f32.mxu0 0.0
    %5326 = vmatmul.mubr.f32.gmra.mrb[0].mxu0 %v5026
    %v5327 = vpop.f32.mrb[0].mxu0
    %v5328 = vadd.f32 0.0, %v5327
    %v5329 = vpop.f32.mrb[0].mxu0
    %5330 = vmatprep.mubr.f32.mxu0 0.0
    %5331 = vmatmul.mubr.f32.gmra.mrb[0].mxu0 %v5029
    %v5332 = vpop.f32.mrb[0].mxu0
    %v5333 = vadd.f32 0.0, %v5332
    %v5334 = vpop.f32.mrb[0].mxu0
    %5335 = vmatprep.mubr.f32.mxu0 0.0
    %5336 = vmatmul.mubr.f32.gmra.mrb[0].mxu0 %v5032
    %v5337 = vpop.f32.mrb[0].mxu0
    %v5338 = vadd.f32 0.0, %v5337
    %v5339 = vpop.f32.mrb[0].mxu0
    %5340 = vmatprep.mubr.f32.mxu0 0.0
    %5341 = vmatmul.mubr.f32.gmra.mrb[0].mxu0 %v5035
    %v5342 = vpop.f32.mrb[0].mxu0
    %v5343 = vadd.f32 0.0, %v5342
    %v5344 = vpop.f32.mrb[0].mxu0
    %5345 = vmatprep.mubr.f32.mxu0 0.0
    %5346 = vmatmul.mubr.f32.gmra.mrb[0].mxu0 %v5038
    %v5347 = vpop.f32.mrb[0].mxu0
    %v5348 = vadd.f32 0.0, %v5347
    %v5349 = vpop.f32.mrb[0].mxu0
    %5350 = vmatprep.mubr.f32.mxu0 0.0
    %5351 = vmatmul.mubr.f32.gmra.mrb[0].mxu0 %v5041
    %v5352 = vpop.f32.mrb[0].mxu0
    %v5353 = vadd.f32 0.0, %v5352
    %v5354 = vpop.f32.mrb[0].mxu0
    %5355 = vmatprep.mubr.f32.mxu0 0.0
    %5356 = vmatmul.mubr.f32.gmra.mrb[0].mxu0 %v5044
    %v5357 = vpop.f32.mrb[0].mxu0
    %v5358 = vadd.f32 0.0, %v5357
    %v5359 = vpop.f32.mrb[0].mxu0
    %5360 = vmatprep.mubr.f32.mxu0 0.0
    %5361 = vmatmul.mubr.f32.gmra.mrb[0].mxu0 %v5047
    %v5362 = vpop.f32.mrb[0].mxu0
    %v5363 = vadd.f32 0.0, %v5362
    %v5364 = vpop.f32.mrb[0].mxu0
    %5365 = vmatprep.mubr.f32.mxu0 0.0
    %5366 = vmatmul.mubr.f32.gmra.mrb[0].mxu0 %v5050
    %v5367 = vpop.f32.mrb[0].mxu0
    %v5368 = vadd.f32 0.0, %v5367
    %v5369 = vpop.f32.mrb[0].mxu0
    %5370 = vmatprep.mubr.f32.mxu0 0.0
    %5371 = vmatmul.mubr.f32.gmra.mrb[0].mxu0 %v5053
    %v5372 = vpop.f32.mrb[0].mxu0
    %v5373 = vadd.f32 0.0, %v5372
    %v5374 = vpop.f32.mrb[0].mxu0
    %5375 = vmatprep.mubr.f32.mxu0 0.0
    %5376 = vmatmul.mubr.f32.gmra.mrb[0].mxu0 %v5056
    %v5377 = vpop.f32.mrb[0].mxu0
    %v5378 = vadd.f32 0.0, %v5377
    %v5379 = vpop.f32.mrb[0].mxu0
    %5380 = vmatprep.mubr.f32.mxu0 0.0
    %5381 = vmatmul.mubr.f32.gmra.mrb[0].mxu0 %v5059
    %v5382 = vpop.f32.mrb[0].mxu0
    %v5383 = vadd.f32 0.0, %v5382
    %v5384 = vpop.f32.mrb[0].mxu0
    %5385 = vmatprep.mubr.f32.mxu0 0.0
    %5386 = vmatmul.mubr.f32.gmra.mrb[0].mxu0 %v5062
    %v5387 = vpop.f32.mrb[0].mxu0
    %v5388 = vadd.f32 0.0, %v5387
    %v5389 = vpop.f32.mrb[0].mxu0
    %5390 = vmatprep.mubr.f32.mxu0 0.0
    %5391 = vmatmul.mubr.f32.gmra.mrb[0].mxu0 %v5065
    %v5392 = vpop.f32.mrb[0].mxu0
    %v5393 = vadd.f32 0.0, %v5392
    %v5394 = vpop.f32.mrb[0].mxu0
    %5395 = vmatprep.mubr.f32.mxu0 0.0
    %5396 = vmatmul.mubr.f32.gmra.mrb[0].mxu0 %v5068
    %v5397 = vpop.f32.mrb[0].mxu0
    %v5398 = vadd.f32 0.0, %v5397
    %v5399 = vpop.f32.mrb[0].mxu0
    %5400 = vmatprep.mubr.f32.mxu0 0.0
    %5401 = vmatmul.mubr.f32.gmra.mrb[0].mxu0 %v5071
    %v5402 = vpop.f32.mrb[0].mxu0
    %v5403 = vadd.f32 0.0, %v5402
    %v5404 = vpop.f32.mrb[0].mxu0
    %5405 = vmatprep.mubr.f32.mxu0 0.0
    %5406 = vmatmul.mubr.f32.gmra.mrb[0].mxu0 %v5074
    %v5407 = vpop.f32.mrb[0].mxu0
    %v5408 = vadd.f32 0.0, %v5407
    %v5409 = vpop.f32.mrb[0].mxu0
    %5410 = vmatprep.mubr.f32.mxu0 0.0
    %5411 = vmatmul.mubr.f32.gmra.mrb[0].mxu0 %v5077
    %v5412 = vpop.f32.mrb[0].mxu0
    %v5413 = vadd.f32 0.0, %v5412
    %v5414 = vpop.f32.mrb[0].mxu0
    %5415 = vmatprep.mubr.f32.mxu0 0.0
    %5416 = vmatmul.mubr.f32.gmra.mrb[0].mxu0 %v5080
    %v5417 = vpop.f32.mrb[0].mxu0
    %v5418 = vadd.f32 0.0, %v5417
    %v5419 = vpop.f32.mrb[0].mxu0
    %5420 = vmatprep.mubr.f32.mxu0 0.0
    %5421 = vmatmul.mubr.f32.gmra.mrb[0].mxu0 %v5083
    %v5422 = vpop.f32.mrb[0].mxu0
    %v5423 = vadd.f32 0.0, %v5422
    %v5424 = vpop.f32.mrb[0].mxu0
    %5425 = vmatprep.mubr.f32.mxu0 0.0
    %5426 = vmatmul.mubr.f32.gmra.mrb[0].mxu0 %v5086
    %v5427 = vpop.f32.mrb[0].mxu0
    %v5428 = vadd.f32 0.0, %v5427
    %v5429 = vpop.f32.mrb[0].mxu0
    %5430 = vmatprep.mubr.f32.mxu0 0.0
    %5431 = vmatmul.mubr.f32.gmra.mrb[0].mxu0 %v5089
    %v5432 = vpop.f32.mrb[0].mxu0
    %v5433 = vadd.f32 0.0, %v5432
    %v5434 = vpop.f32.mrb[0].mxu0
    %5435 = vmatprep.mubr.f32.mxu0 0.0
    %5436 = vmatmul.mubr.f32.gmra.mrb[0].mxu0 %v5092
    %v5437 = vpop.f32.mrb[0].mxu0
    %v5438 = vadd.f32 0.0, %v5437
    %v5439 = vpop.f32.mrb[0].mxu0
    %5440 = vmatprep.mubr.f32.mxu0 0.0
    %5441 = vmatmul.mubr.f32.gmra.mrb[0].mxu0 %v5095
    %v5442 = vpop.f32.mrb[0].mxu0
    %v5443 = vadd.f32 0.0, %v5442
    %v5444 = vpop.f32.mrb[0].mxu0
    %5445 = vmatprep.mubr.f32.mxu0 0.0
    %5446 = vmatmul.mubr.f32.gmra.mrb[0].mxu0 %v5098
    %v5447 = vpop.f32.mrb[0].mxu0
    %v5448 = vadd.f32 0.0, %v5447
    %v5449 = vpop.f32.mrb[0].mxu0
    %5450 = vmatprep.mubr.f32.mxu0 0.0
    %5451 = vmatmul.mubr.f32.gmra.mrb[0].mxu0 %v5101
    %v5452 = vpop.f32.mrb[0].mxu0
    %v5453 = vadd.f32 0.0, %v5452
    %v5454 = vpop.f32.mrb[0].mxu0
    %5455 = vmatprep.mubr.f32.mxu0 0.0
    %5456 = vmatmul.mubr.f32.gmra.mrb[0].mxu0 %v5104
    %v5457 = vpop.f32.mrb[0].mxu0
    %v5458 = vadd.f32 0.0, %v5457
    %v5459 = vpop.f32.mrb[0].mxu0
    %5460 = vmatprep.mubr.f32.mxu0 0.0
    %5461 = vmatmul.mubr.f32.gmra.mrb[0].mxu0 %v5107
    %v5462 = vpop.f32.mrb[0].mxu0
    %v5463 = vadd.f32 0.0, %v5462
    %v5464 = vpop.f32.mrb[0].mxu0
    %5465 = vmatprep.mubr.f32.mxu0 0.0
    %5466 = vmatmul.mubr.f32.gmra.mrb[0].mxu0 %v5110
    %v5467 = vpop.f32.mrb[0].mxu0
    %v5468 = vadd.f32 0.0, %v5467
    %v5469 = vpop.f32.mrb[0].mxu0
    %5470 = vmatprep.mubr.f32.mxu0 0.0
    %5471 = vmatmul.mubr.f32.gmra.mrb[0].mxu0 %v5113
    %v5472 = vpop.f32.mrb[0].mxu0
    %v5473 = vadd.f32 0.0, %v5472
    %v5474 = vpop.f32.mrb[0].mxu0
    %5475 = vmatprep.mubr.f32.mxu0 0.0
    %5476 = vmatmul.mubr.f32.gmra.mrb[0].mxu0 %v5116
    %v5477 = vpop.f32.mrb[0].mxu0
    %v5478 = vadd.f32 0.0, %v5477
    %v5479 = vpop.f32.mrb[0].mxu0
    %5480 = vmatprep.mubr.f32.mxu0 0.0
    %5481 = vmatmul.mubr.f32.gmra.mrb[0].mxu0 %v5119
    %v5482 = vpop.f32.mrb[0].mxu0
    %v5483 = vadd.f32 0.0, %v5482
    %v5484 = vpop.f32.mrb[0].mxu0
    %5485 = vmatprep.mubr.f32.mxu0 0.0
    %5486 = vmatmul.mubr.f32.gmra.mrb[0].mxu0 %v5122
    %v5487 = vpop.f32.mrb[0].mxu0
    %v5488 = vadd.f32 0.0, %v5487
    %v5489 = vpop.f32.mrb[0].mxu0
    %5490 = vmatprep.mubr.f32.mxu0 0.0
    %5491 = vmatmul.mubr.f32.gmra.mrb[0].mxu0 %v5125
    %v5492 = vpop.f32.mrb[0].mxu0
    %v5493 = vadd.f32 0.0, %v5492
    %v5494 = vpop.f32.mrb[0].mxu0
    %5495 = vmatprep.mubr.f32.mxu0 0.0
    %5496 = vmatmul.mubr.f32.gmra.mrb[0].mxu0 %v5128
    %v5497 = vpop.f32.mrb[0].mxu0
    %v5498 = vadd.f32 0.0, %v5497
    %v5499 = vpop.f32.mrb[0].mxu0
    %5500 = vmatprep.mubr.f32.mxu0 0.0
    %5501 = vmatmul.mubr.f32.gmra.mrb[0].mxu0 %v5131
    %v5502 = vpop.f32.mrb[0].mxu0
    %v5503 = vadd.f32 0.0, %v5502
    %v5504 = vpop.f32.mrb[0].mxu0
    %5505 = vmatprep.mubr.f32.mxu0 0.0
    %5506 = vmatmul.mubr.f32.gmra.mrb[0].mxu0 %v5134
    %v5507 = vpop.f32.mrb[0].mxu0
    %v5508 = vadd.f32 0.0, %v5507
    %v5509 = vpop.f32.mrb[0].mxu0
    %5510 = vmatprep.mubr.f32.mxu0 0.0
    %5511 = vmatmul.mubr.f32.gmra.mrb[0].mxu0 %v5137
    %v5512 = vpop.f32.mrb[0].mxu0
    %v5513 = vadd.f32 0.0, %v5512
    %v5514 = vpop.f32.mrb[0].mxu0
    %5515 = vmatprep.mubr.f32.mxu0 0.0
    %5516 = vmatmul.mubr.f32.gmra.mrb[0].mxu0 %v5140
    %v5517 = vpop.f32.mrb[0].mxu0
    %v5518 = vadd.f32 0.0, %v5517
    %v5519 = vpop.f32.mrb[0].mxu0
    %5520 = vmatprep.mubr.f32.mxu0 0.0
    %5521 = vmatmul.mubr.f32.gmra.mrb[0].mxu0 %v5143
    %v5522 = vpop.f32.mrb[0].mxu0
    %v5523 = vadd.f32 0.0, %v5522
    %v5524 = vpop.f32.mrb[0].mxu0
    %5525 = vmatprep.mubr.f32.mxu0 0.0
    %5526 = vmatmul.mubr.f32.gmra.mrb[0].mxu0 %v5146
    %v5527 = vpop.f32.mrb[0].mxu0
    %v5528 = vadd.f32 0.0, %v5527
    %v5529 = vpop.f32.mrb[0].mxu0
    %5530 = vmatprep.mubr.f32.mxu0 0.0
    %5531 = vmatmul.mubr.f32.gmra.mrb[0].mxu0 %v5149
    %v5532 = vpop.f32.mrb[0].mxu0
    %v5533 = vadd.f32 0.0, %v5532
    %v5534 = vpop.f32.mrb[0].mxu0
    %5535 = vdwg.mxu0
    %v5536 = vadd.f32 %v4823, %v5218
    %v5537 = vadd.f32 %v4824, %v5223
    %v5538 = vadd.f32 %v4825, %v5228
    %v5539 = vadd.f32 %v4826, %v5233
    %v5540 = vadd.f32 %v4827, %v5238
    %v5541 = vadd.f32 %v4828, %v5243
    %v5542 = vadd.f32 %v4829, %v5248
    %v5543 = vadd.f32 %v4830, %v5253
    %v5544 = vadd.f32 %v4831, %v5258
    %v5545 = vadd.f32 %v4832, %v5263
    %v5546 = vadd.f32 %v4833, %v5268
    %v5547 = vadd.f32 %v4834, %v5273
    %v5548 = vadd.f32 %v4835, %v5278
    %v5549 = vadd.f32 %v4836, %v5283
    %v5550 = vadd.f32 %v4837, %v5288
    %v5551 = vadd.f32 %v4838, %v5293
    %v5552 = vadd.f32 %v4839, %v5298
    %v5553 = vadd.f32 %v4840, %v5303
    %v5554 = vadd.f32 %v4841, %v5308
    %v5555 = vadd.f32 %v4842, %v5313
    %v5556 = vadd.f32 %v4843, %v5318
    %v5557 = vadd.f32 %v4844, %v5323
    %v5558 = vadd.f32 %v4845, %v5328
    %v5559 = vadd.f32 %v4846, %v5333
    %v5560 = vadd.f32 %v4847, %v5338
    %v5561 = vadd.f32 %v4848, %v5343
    %v5562 = vadd.f32 %v4849, %v5348
    %v5563 = vadd.f32 %v4850, %v5353
    %v5564 = vadd.f32 %v4851, %v5358
    %v5565 = vadd.f32 %v4852, %v5363
    %v5566 = vadd.f32 %v4853, %v5368
    %v5567 = vadd.f32 %v4854, %v5373
    %v5568 = vadd.f32 %v4855, %v5378
    %v5569 = vadd.f32 %v4856, %v5383
    %v5570 = vadd.f32 %v4857, %v5388
    %v5571 = vadd.f32 %v4858, %v5393
    %v5572 = vadd.f32 %v4859, %v5398
    %v5573 = vadd.f32 %v4860, %v5403
    %v5574 = vadd.f32 %v4861, %v5408
    %v5575 = vadd.f32 %v4862, %v5413
    %v5576 = vadd.f32 %v4863, %v5418
    %v5577 = vadd.f32 %v4864, %v5423
    %v5578 = vadd.f32 %v4865, %v5428
    %v5579 = vadd.f32 %v4866, %v5433
    %v5580 = vadd.f32 %v4867, %v5438
    %v5581 = vadd.f32 %v4868, %v5443
    %v5582 = vadd.f32 %v4869, %v5448
    %v5583 = vadd.f32 %v4870, %v5453
    %v5584 = vadd.f32 %v4871, %v5458
    %v5585 = vadd.f32 %v4872, %v5463
    %v5586 = vadd.f32 %v4873, %v5468
    %v5587 = vadd.f32 %v4874, %v5473
    %v5588 = vadd.f32 %v4875, %v5478
    %v5589 = vadd.f32 %v4876, %v5483
    %v5590 = vadd.f32 %v4877, %v5488
    %v5591 = vadd.f32 %v4878, %v5493
    %v5592 = vadd.f32 %v4879, %v5498
    %v5593 = vadd.f32 %v4880, %v5503
    %v5594 = vadd.f32 %v4881, %v5508
    %v5595 = vadd.f32 %v4882, %v5513
    %v5596 = vadd.f32 %v4883, %v5518
    %v5597 = vadd.f32 %v4884, %v5523
    %v5598 = vadd.f32 %v4885, %v5528
    %v5599 = vadd.f32 %v4886, %v5533
    %v5600 = vld [vmem:[%s4173 + $0x2] sm:$0xff]
    %v5601 = vld [vmem:[%s4173 + $0x12] sm:$0xff]
    %v5602 = vld [vmem:[%s4173 + $0x22] sm:$0xff]
    %v5603 = vld [vmem:[%s4173 + $0x32] sm:$0xff]
    %v5604 = vld [vmem:[%s4173 + $0x42] sm:$0xff]
    %v5605 = vld [vmem:[%s4173 + $0x52] sm:$0xff]
    %v5606 = vld [vmem:[%s4173 + $0x62] sm:$0xff]
    %v5607 = vld [vmem:[%s4173 + $0x72] sm:$0xff]
    %v5608 = vld [vmem:[%s4173 + $0xa2] sm:$0xff]
    %v5609 = vld [vmem:[%s4173 + $0xb2] sm:$0xff]
    %v5610 = vld [vmem:[%s4173 + $0xc2] sm:$0xff]
    %v5611 = vld [vmem:[%s4173 + $0xd2] sm:$0xff]
    %v5612 = vld [vmem:[%s4173 + $0xe2] sm:$0xff]
    %v5613 = vld [vmem:[%s4173 + $0xf2] sm:$0xff]
    %v5614 = vld [vmem:[%s4173 + $0x102] sm:$0xff]
    %v5615 = vld [vmem:[%s4173 + $0x112] sm:$0xff]
    %v5616 = vld [vmem:[%s4173 + $0x142] sm:$0xff]
    %v5617 = vld [vmem:[%s4173 + $0x152] sm:$0xff]
    %v5618 = vld [vmem:[%s4173 + $0x162] sm:$0xff]
    %v5619 = vld [vmem:[%s4173 + $0x172] sm:$0xff]
    %v5620 = vld [vmem:[%s4173 + $0x182] sm:$0xff]
    %v5621 = vld [vmem:[%s4173 + $0x192] sm:$0xff]
    %v5622 = vld [vmem:[%s4173 + $0x1a2] sm:$0xff]
    %v5623 = vld [vmem:[%s4173 + $0x1b2] sm:$0xff]
    %v5624 = vld [vmem:[%s4173 + $0x1e2] sm:$0xff]
    %v5625 = vld [vmem:[%s4173 + $0x1f2] sm:$0xff]
    %v5626 = vld [vmem:[%s4173 + $0x202] sm:$0xff]
    %v5627 = vld [vmem:[%s4173 + $0x212] sm:$0xff]
    %v5628 = vld [vmem:[%s4173 + $0x222] sm:$0xff]
    %v5629 = vld [vmem:[%s4173 + $0x232] sm:$0xff]
    %v5630 = vld [vmem:[%s4173 + $0x242] sm:$0xff]
    %v5631 = vld [vmem:[%s4173 + $0x252] sm:$0xff]
    %v5632 = vld [vmem:[%s4173 + $0x282] sm:$0xff]
    %v5633 = vld [vmem:[%s4173 + $0x292] sm:$0xff]
    %v5634 = vld [vmem:[%s4173 + $0x2a2] sm:$0xff]
    %v5635 = vld [vmem:[%s4173 + $0x2b2] sm:$0xff]
    %v5636 = vld [vmem:[%s4173 + $0x2c2] sm:$0xff]
    %v5637 = vld [vmem:[%s4173 + $0x2d2] sm:$0xff]
    %v5638 = vld [vmem:[%s4173 + $0x2e2] sm:$0xff]
    %v5639 = vld [vmem:[%s4173 + $0x2f2] sm:$0xff]
    %v5640 = vld [vmem:[%s4173 + $0x322] sm:$0xff]
    %v5641 = vld [vmem:[%s4173 + $0x332] sm:$0xff]
    %v5642 = vld [vmem:[%s4173 + $0x342] sm:$0xff]
    %v5643 = vld [vmem:[%s4173 + $0x352] sm:$0xff]
    %v5644 = vld [vmem:[%s4173 + $0x362] sm:$0xff]
    %v5645 = vld [vmem:[%s4173 + $0x372] sm:$0xff]
    %v5646 = vld [vmem:[%s4173 + $0x382] sm:$0xff]
    %v5647 = vld [vmem:[%s4173 + $0x392] sm:$0xff]
    %v5648 = vld [vmem:[%s4173 + $0x3c2] sm:$0xff]
    %v5649 = vld [vmem:[%s4173 + $0x3d2] sm:$0xff]
    %v5650 = vld [vmem:[%s4173 + $0x3e2] sm:$0xff]
    %v5651 = vld [vmem:[%s4173 + $0x3f2] sm:$0xff]
    %v5652 = vld [vmem:[%s4173 + $0x402] sm:$0xff]
    %v5653 = vld [vmem:[%s4173 + $0x412] sm:$0xff]
    %v5654 = vld [vmem:[%s4173 + $0x422] sm:$0xff]
    %v5655 = vld [vmem:[%s4173 + $0x432] sm:$0xff]
    %v5656 = vld [vmem:[%s4173 + $0x462] sm:$0xff]
    %v5657 = vld [vmem:[%s4173 + $0x472] sm:$0xff]
    %v5658 = vld [vmem:[%s4173 + $0x482] sm:$0xff]
    %v5659 = vld [vmem:[%s4173 + $0x492] sm:$0xff]
    %v5660 = vld [vmem:[%s4173 + $0x4a2] sm:$0xff]
    %v5661 = vld [vmem:[%s4173 + $0x4b2] sm:$0xff]
    %v5662 = vld [vmem:[%s4173 + $0x4c2] sm:$0xff]
    %v5663 = vld [vmem:[%s4173 + $0x4d2] sm:$0xff]
    %v5664 = vld [vmem:[%s1 + $0x200] sm:$0xff]
    %v5665 = vld [vmem:[%s1 + $0x208] sm:$0xff]
    %v5666 = vld [vmem:[%s1 + $0x210] sm:$0xff]
    %v5667 = vld [vmem:[%s1 + $0x218] sm:$0xff]
    %v5668 = vld [vmem:[%s1 + $0x220] sm:$0xff]
    %v5669 = vld [vmem:[%s1 + $0x228] sm:$0xff]
    %v5670 = vld [vmem:[%s1 + $0x230] sm:$0xff]
    %v5671 = vld [vmem:[%s1 + $0x238] sm:$0xff]
    %v5673 = vsel %vm165, %v5600, 0
    %v5676 = vsel %vm165, %v5601, 0
    %v5679 = vsel %vm165, %v5602, 0
    %v5682 = vsel %vm165, %v5603, 0
    %v5685 = vsel %vm165, %v5604, 0
    %v5688 = vsel %vm165, %v5605, 0
    %v5691 = vsel %vm165, %v5606, 0
    %v5694 = vsel %vm165, %v5607, 0
    %v5697 = vsel %vm165, %v5608, 0
    %v5700 = vsel %vm165, %v5609, 0
    %v5703 = vsel %vm165, %v5610, 0
    %v5706 = vsel %vm165, %v5611, 0
    %v5709 = vsel %vm165, %v5612, 0
    %v5712 = vsel %vm165, %v5613, 0
    %v5715 = vsel %vm165, %v5614, 0
    %v5718 = vsel %vm165, %v5615, 0
    %v5721 = vsel %vm165, %v5616, 0
    %v5724 = vsel %vm165, %v5617, 0
    %v5727 = vsel %vm165, %v5618, 0
    %v5730 = vsel %vm165, %v5619, 0
    %v5733 = vsel %vm165, %v5620, 0
    %v5736 = vsel %vm165, %v5621, 0
    %v5739 = vsel %vm165, %v5622, 0
    %v5742 = vsel %vm165, %v5623, 0
    %v5745 = vsel %vm165, %v5624, 0
    %v5748 = vsel %vm165, %v5625, 0
    %v5751 = vsel %vm165, %v5626, 0
    %v5754 = vsel %vm165, %v5627, 0
    %v5757 = vsel %vm165, %v5628, 0
    %v5760 = vsel %vm165, %v5629, 0
    %v5763 = vsel %vm165, %v5630, 0
    %v5766 = vsel %vm165, %v5631, 0
    %v5769 = vsel %vm165, %v5632, 0
    %v5772 = vsel %vm165, %v5633, 0
    %v5775 = vsel %vm165, %v5634, 0
    %v5778 = vsel %vm165, %v5635, 0
    %v5781 = vsel %vm165, %v5636, 0
    %v5784 = vsel %vm165, %v5637, 0
    %v5787 = vsel %vm165, %v5638, 0
    %v5790 = vsel %vm165, %v5639, 0
    %v5793 = vsel %vm165, %v5640, 0
    %v5796 = vsel %vm165, %v5641, 0
    %v5799 = vsel %vm165, %v5642, 0
    %v5802 = vsel %vm165, %v5643, 0
    %v5805 = vsel %vm165, %v5644, 0
    %v5808 = vsel %vm165, %v5645, 0
    %v5811 = vsel %vm165, %v5646, 0
    %v5814 = vsel %vm165, %v5647, 0
    %v5817 = vsel %vm165, %v5648, 0
    %v5820 = vsel %vm165, %v5649, 0
    %v5823 = vsel %vm165, %v5650, 0
    %v5826 = vsel %vm165, %v5651, 0
    %v5829 = vsel %vm165, %v5652, 0
    %v5832 = vsel %vm165, %v5653, 0
    %v5835 = vsel %vm165, %v5654, 0
    %v5838 = vsel %vm165, %v5655, 0
    %v5841 = vsel %vm165, %v5656, 0
    %v5844 = vsel %vm165, %v5657, 0
    %v5847 = vsel %vm165, %v5658, 0
    %v5850 = vsel %vm165, %v5659, 0
    %v5853 = vsel %vm165, %v5660, 0
    %v5856 = vsel %vm165, %v5661, 0
    %v5859 = vsel %vm165, %v5662, 0
    %v5862 = vsel %vm165, %v5663, 0
    %5864 = vmatprep.subr.mxu0 0.0
    %5865 = vmatpush1.msra.mxu0 %v5664
    %5866 = vmatprep.subr.mxu0 0.0
    %5867 = vmatpush1.msra.mxu0 %v5665
    %5868 = vmatprep.subr.mxu0 0.0
    %5869 = vmatpush1.msra.mxu0 %v5666
    %5870 = vmatprep.subr.mxu0 0.0
    %5871 = vmatpush1.msra.mxu0 %v5667
    %5872 = vmatprep.subr.mxu0 0.0
    %5873 = vmatpush1.msra.mxu0 %v5668
    %5874 = vmatprep.subr.mxu0 0.0
    %5875 = vmatpush1.msra.mxu0 %v5669
    %5876 = vmatprep.subr.mxu0 0.0
    %5877 = vmatpush1.msra.mxu0 %v5670
    %5878 = vmatprep.subr.mxu0 0.0
    %5879 = vmatpush1.msra.mxu0 %v5671
    %5880 = vmatprep.subr.mxu0 0.0
    %5881 = vmatpush1.msra.mxu0 0.0
    %5882 = vmatprep.subr.mxu0 0.0
    %5883 = vmatpush1.msra.mxu0 0.0
    %5884 = vmatprep.subr.mxu0 0.0
    %5885 = vmatpush1.msra.mxu0 0.0
    %5886 = vmatprep.subr.mxu0 0.0
    %5887 = vmatpush1.msra.mxu0 0.0
    %5888 = vmatprep.subr.mxu0 0.0
    %5889 = vmatpush1.msra.mxu0 0.0
    %5890 = vmatprep.subr.mxu0 0.0
    %5891 = vmatpush1.msra.mxu0 0.0
    %5892 = vmatprep.subr.mxu0 0.0
    %5893 = vmatpush1.msra.mxu0 0.0
    %5894 = vmatprep.subr.mxu0 0.0
    %5895 = vmatpush1.msra.mxu0 0.0
    %5896 = vmatprep.subr.mxu0 0.0
    %5897 = vmatpush1.msra.mxu0 0.0
    %5898 = vmatprep.subr.mxu0 0.0
    %5899 = vmatpush1.msra.mxu0 0.0
    %5900 = vmatprep.subr.mxu0 0.0
    %5901 = vmatpush1.msra.mxu0 0.0
    %5902 = vmatprep.subr.mxu0 0.0
    %5903 = vmatpush1.msra.mxu0 0.0
    %5904 = vmatprep.subr.mxu0 0.0
    %5905 = vmatpush1.msra.mxu0 0.0
    %5906 = vmatprep.subr.mxu0 0.0
    %5907 = vmatpush1.msra.mxu0 0.0
    %5908 = vmatprep.subr.mxu0 0.0
    %5909 = vmatpush1.msra.mxu0 0.0
    %5910 = vmatprep.subr.mxu0 0.0
    %5911 = vmatpush1.msra.mxu0 0.0
    %5912 = vmatprep.subr.mxu0 0.0
    %5913 = vmatpush1.msra.mxu0 0.0
    %5914 = vmatprep.subr.mxu0 0.0
    %5915 = vmatpush1.msra.mxu0 0.0
    %5916 = vmatprep.subr.mxu0 0.0
    %5917 = vmatpush1.msra.mxu0 0.0
    %5918 = vmatprep.subr.mxu0 0.0
    %5919 = vmatpush1.msra.mxu0 0.0
    %5920 = vmatprep.subr.mxu0 0.0
    %5921 = vmatpush1.msra.mxu0 0.0
    %5922 = vmatprep.subr.mxu0 0.0
    %5923 = vmatpush1.msra.mxu0 0.0
    %5924 = vmatprep.subr.mxu0 0.0
    %5925 = vmatpush1.msra.mxu0 0.0
    %5926 = vmatprep.subr.mxu0 0.0
    %5927 = vmatpush1.msra.mxu0 0.0
    %5928 = vmatprep.mubr.f32.mxu0 0.0
    %5929 = vmatmul.mubr.f32.gmra.mrb[0].mxu0 %v5673
    %v5930 = vpop.f32.mrb[0].mxu0
    %v5931 = vadd.f32 0.0, %v5930
    %v5932 = vpop.f32.mrb[0].mxu0
    %5933 = vmatprep.mubr.f32.mxu0 0.0
    %5934 = vmatmul.mubr.f32.gmra.mrb[0].mxu0 %v5676
    %v5935 = vpop.f32.mrb[0].mxu0
    %v5936 = vadd.f32 0.0, %v5935
    %v5937 = vpop.f32.mrb[0].mxu0
    %5938 = vmatprep.mubr.f32.mxu0 0.0
    %5939 = vmatmul.mubr.f32.gmra.mrb[0].mxu0 %v5679
    %v5940 = vpop.f32.mrb[0].mxu0
    %v5941 = vadd.f32 0.0, %v5940
    %v5942 = vpop.f32.mrb[0].mxu0
    %5943 = vmatprep.mubr.f32.mxu0 0.0
    %5944 = vmatmul.mubr.f32.gmra.mrb[0].mxu0 %v5682
    %v5945 = vpop.f32.mrb[0].mxu0
    %v5946 = vadd.f32 0.0, %v5945
    %v5947 = vpop.f32.mrb[0].mxu0
    %5948 = vmatprep.mubr.f32.mxu0 0.0
    %5949 = vmatmul.mubr.f32.gmra.mrb[0].mxu0 %v5685
    %v5950 = vpop.f32.mrb[0].mxu0
    %v5951 = vadd.f32 0.0, %v5950
    %v5952 = vpop.f32.mrb[0].mxu0
    %5953 = vmatprep.mubr.f32.mxu0 0.0
    %5954 = vmatmul.mubr.f32.gmra.mrb[0].mxu0 %v5688
    %v5955 = vpop.f32.mrb[0].mxu0
    %v5956 = vadd.f32 0.0, %v5955
    %v5957 = vpop.f32.mrb[0].mxu0
    %5958 = vmatprep.mubr.f32.mxu0 0.0
    %5959 = vmatmul.mubr.f32.gmra.mrb[0].mxu0 %v5691
    %v5960 = vpop.f32.mrb[0].mxu0
    %v5961 = vadd.f32 0.0, %v5960
    %v5962 = vpop.f32.mrb[0].mxu0
    %5963 = vmatprep.mubr.f32.mxu0 0.0
    %5964 = vmatmul.mubr.f32.gmra.mrb[0].mxu0 %v5694
    %v5965 = vpop.f32.mrb[0].mxu0
    %v5966 = vadd.f32 0.0, %v5965
    %v5967 = vpop.f32.mrb[0].mxu0
    %5968 = vmatprep.mubr.f32.mxu0 0.0
    %5969 = vmatmul.mubr.f32.gmra.mrb[0].mxu0 %v5697
    %v5970 = vpop.f32.mrb[0].mxu0
    %v5971 = vadd.f32 0.0, %v5970
    %v5972 = vpop.f32.mrb[0].mxu0
    %5973 = vmatprep.mubr.f32.mxu0 0.0
    %5974 = vmatmul.mubr.f32.gmra.mrb[0].mxu0 %v5700
    %v5975 = vpop.f32.mrb[0].mxu0
    %v5976 = vadd.f32 0.0, %v5975
    %v5977 = vpop.f32.mrb[0].mxu0
    %5978 = vmatprep.mubr.f32.mxu0 0.0
    %5979 = vmatmul.mubr.f32.gmra.mrb[0].mxu0 %v5703
    %v5980 = vpop.f32.mrb[0].mxu0
    %v5981 = vadd.f32 0.0, %v5980
    %v5982 = vpop.f32.mrb[0].mxu0
    %5983 = vmatprep.mubr.f32.mxu0 0.0
    %5984 = vmatmul.mubr.f32.gmra.mrb[0].mxu0 %v5706
    %v5985 = vpop.f32.mrb[0].mxu0
    %v5986 = vadd.f32 0.0, %v5985
    %v5987 = vpop.f32.mrb[0].mxu0
    %5988 = vmatprep.mubr.f32.mxu0 0.0
    %5989 = vmatmul.mubr.f32.gmra.mrb[0].mxu0 %v5709
    %v5990 = vpop.f32.mrb[0].mxu0
    %v5991 = vadd.f32 0.0, %v5990
    %v5992 = vpop.f32.mrb[0].mxu0
    %5993 = vmatprep.mubr.f32.mxu0 0.0
    %5994 = vmatmul.mubr.f32.gmra.mrb[0].mxu0 %v5712
    %v5995 = vpop.f32.mrb[0].mxu0
    %v5996 = vadd.f32 0.0, %v5995
    %v5997 = vpop.f32.mrb[0].mxu0
    %5998 = vmatprep.mubr.f32.mxu0 0.0
    %5999 = vmatmul.mubr.f32.gmra.mrb[0].mxu0 %v5715
    %v6000 = vpop.f32.mrb[0].mxu0
    %v6001 = vadd.f32 0.0, %v6000
    %v6002 = vpop.f32.mrb[0].mxu0
    %6003 = vmatprep.mubr.f32.mxu0 0.0
    %6004 = vmatmul.mubr.f32.gmra.mrb[0].mxu0 %v5718
    %v6005 = vpop.f32.mrb[0].mxu0
    %v6006 = vadd.f32 0.0, %v6005
    %v6007 = vpop.f32.mrb[0].mxu0
    %6008 = vmatprep.mubr.f32.mxu0 0.0
    %6009 = vmatmul.mubr.f32.gmra.mrb[0].mxu0 %v5721
    %v6010 = vpop.f32.mrb[0].mxu0
    %v6011 = vadd.f32 0.0, %v6010
    %v6012 = vpop.f32.mrb[0].mxu0
    %6013 = vmatprep.mubr.f32.mxu0 0.0
    %6014 = vmatmul.mubr.f32.gmra.mrb[0].mxu0 %v5724
    %v6015 = vpop.f32.mrb[0].mxu0
    %v6016 = vadd.f32 0.0, %v6015
    %v6017 = vpop.f32.mrb[0].mxu0
    %6018 = vmatprep.mubr.f32.mxu0 0.0
    %6019 = vmatmul.mubr.f32.gmra.mrb[0].mxu0 %v5727
    %v6020 = vpop.f32.mrb[0].mxu0
    %v6021 = vadd.f32 0.0, %v6020
    %v6022 = vpop.f32.mrb[0].mxu0
    %6023 = vmatprep.mubr.f32.mxu0 0.0
    %6024 = vmatmul.mubr.f32.gmra.mrb[0].mxu0 %v5730
    %v6025 = vpop.f32.mrb[0].mxu0
    %v6026 = vadd.f32 0.0, %v6025
    %v6027 = vpop.f32.mrb[0].mxu0
    %6028 = vmatprep.mubr.f32.mxu0 0.0
    %6029 = vmatmul.mubr.f32.gmra.mrb[0].mxu0 %v5733
    %v6030 = vpop.f32.mrb[0].mxu0
    %v6031 = vadd.f32 0.0, %v6030
    %v6032 = vpop.f32.mrb[0].mxu0
    %6033 = vmatprep.mubr.f32.mxu0 0.0
    %6034 = vmatmul.mubr.f32.gmra.mrb[0].mxu0 %v5736
    %v6035 = vpop.f32.mrb[0].mxu0
    %v6036 = vadd.f32 0.0, %v6035
    %v6037 = vpop.f32.mrb[0].mxu0
    %6038 = vmatprep.mubr.f32.mxu0 0.0
    %6039 = vmatmul.mubr.f32.gmra.mrb[0].mxu0 %v5739
    %v6040 = vpop.f32.mrb[0].mxu0
    %v6041 = vadd.f32 0.0, %v6040
    %v6042 = vpop.f32.mrb[0].mxu0
    %6043 = vmatprep.mubr.f32.mxu0 0.0
    %6044 = vmatmul.mubr.f32.gmra.mrb[0].mxu0 %v5742
    %v6045 = vpop.f32.mrb[0].mxu0
    %v6046 = vadd.f32 0.0, %v6045
    %v6047 = vpop.f32.mrb[0].mxu0
    %6048 = vmatprep.mubr.f32.mxu0 0.0
    %6049 = vmatmul.mubr.f32.gmra.mrb[0].mxu0 %v5745
    %v6050 = vpop.f32.mrb[0].mxu0
    %v6051 = vadd.f32 0.0, %v6050
    %v6052 = vpop.f32.mrb[0].mxu0
    %6053 = vmatprep.mubr.f32.mxu0 0.0
    %6054 = vmatmul.mubr.f32.gmra.mrb[0].mxu0 %v5748
    %v6055 = vpop.f32.mrb[0].mxu0
    %v6056 = vadd.f32 0.0, %v6055
    %v6057 = vpop.f32.mrb[0].mxu0
    %6058 = vmatprep.mubr.f32.mxu0 0.0
    %6059 = vmatmul.mubr.f32.gmra.mrb[0].mxu0 %v5751
    %v6060 = vpop.f32.mrb[0].mxu0
    %v6061 = vadd.f32 0.0, %v6060
    %v6062 = vpop.f32.mrb[0].mxu0
    %6063 = vmatprep.mubr.f32.mxu0 0.0
    %6064 = vmatmul.mubr.f32.gmra.mrb[0].mxu0 %v5754
    %v6065 = vpop.f32.mrb[0].mxu0
    %v6066 = vadd.f32 0.0, %v6065
    %v6067 = vpop.f32.mrb[0].mxu0
    %6068 = vmatprep.mubr.f32.mxu0 0.0
    %6069 = vmatmul.mubr.f32.gmra.mrb[0].mxu0 %v5757
    %v6070 = vpop.f32.mrb[0].mxu0
    %v6071 = vadd.f32 0.0, %v6070
    %v6072 = vpop.f32.mrb[0].mxu0
    %6073 = vmatprep.mubr.f32.mxu0 0.0
    %6074 = vmatmul.mubr.f32.gmra.mrb[0].mxu0 %v5760
    %v6075 = vpop.f32.mrb[0].mxu0
    %v6076 = vadd.f32 0.0, %v6075
    %v6077 = vpop.f32.mrb[0].mxu0
    %6078 = vmatprep.mubr.f32.mxu0 0.0
    %6079 = vmatmul.mubr.f32.gmra.mrb[0].mxu0 %v5763
    %v6080 = vpop.f32.mrb[0].mxu0
    %v6081 = vadd.f32 0.0, %v6080
    %v6082 = vpop.f32.mrb[0].mxu0
    %6083 = vmatprep.mubr.f32.mxu0 0.0
    %6084 = vmatmul.mubr.f32.gmra.mrb[0].mxu0 %v5766
    %v6085 = vpop.f32.mrb[0].mxu0
    %v6086 = vadd.f32 0.0, %v6085
    %v6087 = vpop.f32.mrb[0].mxu0
    %6088 = vmatprep.mubr.f32.mxu0 0.0
    %6089 = vmatmul.mubr.f32.gmra.mrb[0].mxu0 %v5769
    %v6090 = vpop.f32.mrb[0].mxu0
    %v6091 = vadd.f32 0.0, %v6090
    %v6092 = vpop.f32.mrb[0].mxu0
    %6093 = vmatprep.mubr.f32.mxu0 0.0
    %6094 = vmatmul.mubr.f32.gmra.mrb[0].mxu0 %v5772
    %v6095 = vpop.f32.mrb[0].mxu0
    %v6096 = vadd.f32 0.0, %v6095
    %v6097 = vpop.f32.mrb[0].mxu0
    %6098 = vmatprep.mubr.f32.mxu0 0.0
    %6099 = vmatmul.mubr.f32.gmra.mrb[0].mxu0 %v5775
    %v6100 = vpop.f32.mrb[0].mxu0
    %v6101 = vadd.f32 0.0, %v6100
    %v6102 = vpop.f32.mrb[0].mxu0
    %6103 = vmatprep.mubr.f32.mxu0 0.0
    %6104 = vmatmul.mubr.f32.gmra.mrb[0].mxu0 %v5778
    %v6105 = vpop.f32.mrb[0].mxu0
    %v6106 = vadd.f32 0.0, %v6105
    %v6107 = vpop.f32.mrb[0].mxu0
    %6108 = vmatprep.mubr.f32.mxu0 0.0
    %6109 = vmatmul.mubr.f32.gmra.mrb[0].mxu0 %v5781
    %v6110 = vpop.f32.mrb[0].mxu0
    %v6111 = vadd.f32 0.0, %v6110
    %v6112 = vpop.f32.mrb[0].mxu0
    %6113 = vmatprep.mubr.f32.mxu0 0.0
    %6114 = vmatmul.mubr.f32.gmra.mrb[0].mxu0 %v5784
    %v6115 = vpop.f32.mrb[0].mxu0
    %v6116 = vadd.f32 0.0, %v6115
    %v6117 = vpop.f32.mrb[0].mxu0
    %6118 = vmatprep.mubr.f32.mxu0 0.0
    %6119 = vmatmul.mubr.f32.gmra.mrb[0].mxu0 %v5787
    %v6120 = vpop.f32.mrb[0].mxu0
    %v6121 = vadd.f32 0.0, %v6120
    %v6122 = vpop.f32.mrb[0].mxu0
    %6123 = vmatprep.mubr.f32.mxu0 0.0
    %6124 = vmatmul.mubr.f32.gmra.mrb[0].mxu0 %v5790
    %v6125 = vpop.f32.mrb[0].mxu0
    %v6126 = vadd.f32 0.0, %v6125
    %v6127 = vpop.f32.mrb[0].mxu0
    %6128 = vmatprep.mubr.f32.mxu0 0.0
    %6129 = vmatmul.mubr.f32.gmra.mrb[0].mxu0 %v5793
    %v6130 = vpop.f32.mrb[0].mxu0
    %v6131 = vadd.f32 0.0, %v6130
    %v6132 = vpop.f32.mrb[0].mxu0
    %6133 = vmatprep.mubr.f32.mxu0 0.0
    %6134 = vmatmul.mubr.f32.gmra.mrb[0].mxu0 %v5796
    %v6135 = vpop.f32.mrb[0].mxu0
    %v6136 = vadd.f32 0.0, %v6135
    %v6137 = vpop.f32.mrb[0].mxu0
    %6138 = vmatprep.mubr.f32.mxu0 0.0
    %6139 = vmatmul.mubr.f32.gmra.mrb[0].mxu0 %v5799
    %v6140 = vpop.f32.mrb[0].mxu0
    %v6141 = vadd.f32 0.0, %v6140
    %v6142 = vpop.f32.mrb[0].mxu0
    %6143 = vmatprep.mubr.f32.mxu0 0.0
    %6144 = vmatmul.mubr.f32.gmra.mrb[0].mxu0 %v5802
    %v6145 = vpop.f32.mrb[0].mxu0
    %v6146 = vadd.f32 0.0, %v6145
    %v6147 = vpop.f32.mrb[0].mxu0
    %6148 = vmatprep.mubr.f32.mxu0 0.0
    %6149 = vmatmul.mubr.f32.gmra.mrb[0].mxu0 %v5805
    %v6150 = vpop.f32.mrb[0].mxu0
    %v6151 = vadd.f32 0.0, %v6150
    %v6152 = vpop.f32.mrb[0].mxu0
    %6153 = vmatprep.mubr.f32.mxu0 0.0
    %6154 = vmatmul.mubr.f32.gmra.mrb[0].mxu0 %v5808
    %v6155 = vpop.f32.mrb[0].mxu0
    %v6156 = vadd.f32 0.0, %v6155
    %v6157 = vpop.f32.mrb[0].mxu0
    %6158 = vmatprep.mubr.f32.mxu0 0.0
    %6159 = vmatmul.mubr.f32.gmra.mrb[0].mxu0 %v5811
    %v6160 = vpop.f32.mrb[0].mxu0
    %v6161 = vadd.f32 0.0, %v6160
    %v6162 = vpop.f32.mrb[0].mxu0
    %6163 = vmatprep.mubr.f32.mxu0 0.0
    %6164 = vmatmul.mubr.f32.gmra.mrb[0].mxu0 %v5814
    %v6165 = vpop.f32.mrb[0].mxu0
    %v6166 = vadd.f32 0.0, %v6165
    %v6167 = vpop.f32.mrb[0].mxu0
    %6168 = vmatprep.mubr.f32.mxu0 0.0
    %6169 = vmatmul.mubr.f32.gmra.mrb[0].mxu0 %v5817
    %v6170 = vpop.f32.mrb[0].mxu0
    %v6171 = vadd.f32 0.0, %v6170
    %v6172 = vpop.f32.mrb[0].mxu0
    %6173 = vmatprep.mubr.f32.mxu0 0.0
    %6174 = vmatmul.mubr.f32.gmra.mrb[0].mxu0 %v5820
    %v6175 = vpop.f32.mrb[0].mxu0
    %v6176 = vadd.f32 0.0, %v6175
    %v6177 = vpop.f32.mrb[0].mxu0
    %6178 = vmatprep.mubr.f32.mxu0 0.0
    %6179 = vmatmul.mubr.f32.gmra.mrb[0].mxu0 %v5823
    %v6180 = vpop.f32.mrb[0].mxu0
    %v6181 = vadd.f32 0.0, %v6180
    %v6182 = vpop.f32.mrb[0].mxu0
    %6183 = vmatprep.mubr.f32.mxu0 0.0
    %6184 = vmatmul.mubr.f32.gmra.mrb[0].mxu0 %v5826
    %v6185 = vpop.f32.mrb[0].mxu0
    %v6186 = vadd.f32 0.0, %v6185
    %v6187 = vpop.f32.mrb[0].mxu0
    %6188 = vmatprep.mubr.f32.mxu0 0.0
    %6189 = vmatmul.mubr.f32.gmra.mrb[0].mxu0 %v5829
    %v6190 = vpop.f32.mrb[0].mxu0
    %v6191 = vadd.f32 0.0, %v6190
    %v6192 = vpop.f32.mrb[0].mxu0
    %6193 = vmatprep.mubr.f32.mxu0 0.0
    %6194 = vmatmul.mubr.f32.gmra.mrb[0].mxu0 %v5832
    %v6195 = vpop.f32.mrb[0].mxu0
    %v6196 = vadd.f32 0.0, %v6195
    %v6197 = vpop.f32.mrb[0].mxu0
    %6198 = vmatprep.mubr.f32.mxu0 0.0
    %6199 = vmatmul.mubr.f32.gmra.mrb[0].mxu0 %v5835
    %v6200 = vpop.f32.mrb[0].mxu0
    %v6201 = vadd.f32 0.0, %v6200
    %v6202 = vpop.f32.mrb[0].mxu0
    %6203 = vmatprep.mubr.f32.mxu0 0.0
    %6204 = vmatmul.mubr.f32.gmra.mrb[0].mxu0 %v5838
    %v6205 = vpop.f32.mrb[0].mxu0
    %v6206 = vadd.f32 0.0, %v6205
    %v6207 = vpop.f32.mrb[0].mxu0
    %6208 = vmatprep.mubr.f32.mxu0 0.0
    %6209 = vmatmul.mubr.f32.gmra.mrb[0].mxu0 %v5841
    %v6210 = vpop.f32.mrb[0].mxu0
    %v6211 = vadd.f32 0.0, %v6210
    %v6212 = vpop.f32.mrb[0].mxu0
    %6213 = vmatprep.mubr.f32.mxu0 0.0
    %6214 = vmatmul.mubr.f32.gmra.mrb[0].mxu0 %v5844
    %v6215 = vpop.f32.mrb[0].mxu0
    %v6216 = vadd.f32 0.0, %v6215
    %v6217 = vpop.f32.mrb[0].mxu0
    %6218 = vmatprep.mubr.f32.mxu0 0.0
    %6219 = vmatmul.mubr.f32.gmra.mrb[0].mxu0 %v5847
    %v6220 = vpop.f32.mrb[0].mxu0
    %v6221 = vadd.f32 0.0, %v6220
    %v6222 = vpop.f32.mrb[0].mxu0
    %6223 = vmatprep.mubr.f32.mxu0 0.0
    %6224 = vmatmul.mubr.f32.gmra.mrb[0].mxu0 %v5850
    %v6225 = vpop.f32.mrb[0].mxu0
    %v6226 = vadd.f32 0.0, %v6225
    %v6227 = vpop.f32.mrb[0].mxu0
    %6228 = vmatprep.mubr.f32.mxu0 0.0
    %6229 = vmatmul.mubr.f32.gmra.mrb[0].mxu0 %v5853
    %v6230 = vpop.f32.mrb[0].mxu0
    %v6231 = vadd.f32 0.0, %v6230
    %v6232 = vpop.f32.mrb[0].mxu0
    %6233 = vmatprep.mubr.f32.mxu0 0.0
    %6234 = vmatmul.mubr.f32.gmra.mrb[0].mxu0 %v5856
    %v6235 = vpop.f32.mrb[0].mxu0
    %v6236 = vadd.f32 0.0, %v6235
    %v6237 = vpop.f32.mrb[0].mxu0
    %6238 = vmatprep.mubr.f32.mxu0 0.0
    %6239 = vmatmul.mubr.f32.gmra.mrb[0].mxu0 %v5859
    %v6240 = vpop.f32.mrb[0].mxu0
    %v6241 = vadd.f32 0.0, %v6240
    %v6242 = vpop.f32.mrb[0].mxu0
    %6243 = vmatprep.mubr.f32.mxu0 0.0
    %6244 = vmatmul.mubr.f32.gmra.mrb[0].mxu0 %v5862
    %v6245 = vpop.f32.mrb[0].mxu0
    %v6246 = vadd.f32 0.0, %v6245
    %v6247 = vpop.f32.mrb[0].mxu0
    %6248 = vdwg.mxu0
    %v6249 = vadd.f32 %v5536, %v5931
    %v6250 = vadd.f32 %v5537, %v5936
    %v6251 = vadd.f32 %v5538, %v5941
    %v6252 = vadd.f32 %v5539, %v5946
    %v6253 = vadd.f32 %v5540, %v5951
    %v6254 = vadd.f32 %v5541, %v5956
    %v6255 = vadd.f32 %v5542, %v5961
    %v6256 = vadd.f32 %v5543, %v5966
    %v6257 = vadd.f32 %v5544, %v5971
    %v6258 = vadd.f32 %v5545, %v5976
    %v6259 = vadd.f32 %v5546, %v5981
    %v6260 = vadd.f32 %v5547, %v5986
    %v6261 = vadd.f32 %v5548, %v5991
    %v6262 = vadd.f32 %v5549, %v5996
    %v6263 = vadd.f32 %v5550, %v6001
    %v6264 = vadd.f32 %v5551, %v6006
    %v6265 = vadd.f32 %v5552, %v6011
    %v6266 = vadd.f32 %v5553, %v6016
    %v6267 = vadd.f32 %v5554, %v6021
    %v6268 = vadd.f32 %v5555, %v6026
    %v6269 = vadd.f32 %v5556, %v6031
    %v6270 = vadd.f32 %v5557, %v6036
    %v6271 = vadd.f32 %v5558, %v6041
    %v6272 = vadd.f32 %v5559, %v6046
    %v6273 = vadd.f32 %v5560, %v6051
    %v6274 = vadd.f32 %v5561, %v6056
    %v6275 = vadd.f32 %v5562, %v6061
    %v6276 = vadd.f32 %v5563, %v6066
    %v6277 = vadd.f32 %v5564, %v6071
    %v6278 = vadd.f32 %v5565, %v6076
    %v6279 = vadd.f32 %v5566, %v6081
    %v6280 = vadd.f32 %v5567, %v6086
    %v6281 = vadd.f32 %v5568, %v6091
    %v6282 = vadd.f32 %v5569, %v6096
    %v6283 = vadd.f32 %v5570, %v6101
    %v6284 = vadd.f32 %v5571, %v6106
    %v6285 = vadd.f32 %v5572, %v6111
    %v6286 = vadd.f32 %v5573, %v6116
    %v6287 = vadd.f32 %v5574, %v6121
    %v6288 = vadd.f32 %v5575, %v6126
    %v6289 = vadd.f32 %v5576, %v6131
    %v6290 = vadd.f32 %v5577, %v6136
    %v6291 = vadd.f32 %v5578, %v6141
    %v6292 = vadd.f32 %v5579, %v6146
    %v6293 = vadd.f32 %v5580, %v6151
    %v6294 = vadd.f32 %v5581, %v6156
    %v6295 = vadd.f32 %v5582, %v6161
    %v6296 = vadd.f32 %v5583, %v6166
    %v6297 = vadd.f32 %v5584, %v6171
    %v6298 = vadd.f32 %v5585, %v6176
    %v6299 = vadd.f32 %v5586, %v6181
    %v6300 = vadd.f32 %v5587, %v6186
    %v6301 = vadd.f32 %v5588, %v6191
    %v6302 = vadd.f32 %v5589, %v6196
    %v6303 = vadd.f32 %v5590, %v6201
    %v6304 = vadd.f32 %v5591, %v6206
    %v6305 = vadd.f32 %v5592, %v6211
    %v6306 = vadd.f32 %v5593, %v6216
    %v6307 = vadd.f32 %v5594, %v6221
    %v6308 = vadd.f32 %v5595, %v6226
    %v6309 = vadd.f32 %v5596, %v6231
    %v6310 = vadd.f32 %v5597, %v6236
    %v6311 = vadd.f32 %v5598, %v6241
    %v6312 = vadd.f32 %v5599, %v6246
    %v6313 = vld [vmem:[%s2] sm:$0x1]
    %v6315 = vlaneseq
    %v6316 = vshrl.u32 %v6315, 7
    %v6317 = vsub.s32 0, %v6316
    %v6318 = vrot.slane %v6313, %v6317
    %v6320 = vadd.f32 %v6249, %v6318
    %v6321 = vadd.f32 %v6250, %v6318
    %v6322 = vadd.f32 %v6251, %v6318
    %v6323 = vadd.f32 %v6252, %v6318
    %v6324 = vadd.f32 %v6253, %v6318
    %v6325 = vadd.f32 %v6254, %v6318
    %v6326 = vadd.f32 %v6255, %v6318
    %v6327 = vadd.f32 %v6256, %v6318
    %v6328 = vadd.f32 %v6257, %v6318
    %v6329 = vadd.f32 %v6258, %v6318
    %v6330 = vadd.f32 %v6259, %v6318
    %v6331 = vadd.f32 %v6260, %v6318
    %v6332 = vadd.f32 %v6261, %v6318
    %v6333 = vadd.f32 %v6262, %v6318
    %v6334 = vadd.f32 %v6263, %v6318
    %v6335 = vadd.f32 %v6264, %v6318
    %v6336 = vadd.f32 %v6265, %v6318
    %v6337 = vadd.f32 %v6266, %v6318
    %v6338 = vadd.f32 %v6267, %v6318
    %v6339 = vadd.f32 %v6268, %v6318
    %v6340 = vadd.f32 %v6269, %v6318
    %v6341 = vadd.f32 %v6270, %v6318
    %v6342 = vadd.f32 %v6271, %v6318
    %v6343 = vadd.f32 %v6272, %v6318
    %v6344 = vadd.f32 %v6273, %v6318
    %v6345 = vadd.f32 %v6274, %v6318
    %v6346 = vadd.f32 %v6275, %v6318
    %v6347 = vadd.f32 %v6276, %v6318
    %v6348 = vadd.f32 %v6277, %v6318
    %v6349 = vadd.f32 %v6278, %v6318
    %v6350 = vadd.f32 %v6279, %v6318
    %v6351 = vadd.f32 %v6280, %v6318
    %v6352 = vadd.f32 %v6281, %v6318
    %v6353 = vadd.f32 %v6282, %v6318
    %v6354 = vadd.f32 %v6283, %v6318
    %v6355 = vadd.f32 %v6284, %v6318
    %v6356 = vadd.f32 %v6285, %v6318
    %v6357 = vadd.f32 %v6286, %v6318
    %v6358 = vadd.f32 %v6287, %v6318
    %v6359 = vadd.f32 %v6288, %v6318
    %v6360 = vadd.f32 %v6289, %v6318
    %v6361 = vadd.f32 %v6290, %v6318
    %v6362 = vadd.f32 %v6291, %v6318
    %v6363 = vadd.f32 %v6292, %v6318
    %v6364 = vadd.f32 %v6293, %v6318
    %v6365 = vadd.f32 %v6294, %v6318
    %v6366 = vadd.f32 %v6295, %v6318
    %v6367 = vadd.f32 %v6296, %v6318
    %v6368 = vadd.f32 %v6297, %v6318
    %v6369 = vadd.f32 %v6298, %v6318
    %v6370 = vadd.f32 %v6299, %v6318
    %v6371 = vadd.f32 %v6300, %v6318
    %v6372 = vadd.f32 %v6301, %v6318
    %v6373 = vadd.f32 %v6302, %v6318
    %v6374 = vadd.f32 %v6303, %v6318
    %v6375 = vadd.f32 %v6304, %v6318
    %v6376 = vadd.f32 %v6305, %v6318
    %v6377 = vadd.f32 %v6306, %v6318
    %v6378 = vadd.f32 %v6307, %v6318
    %v6379 = vadd.f32 %v6308, %v6318
    %v6380 = vadd.f32 %v6309, %v6318
    %v6381 = vadd.f32 %v6310, %v6318
    %v6382 = vadd.f32 %v6311, %v6318
    %v6383 = vadd.f32 %v6312, %v6318
    %v6384 = vmax.f32 %v6320, 0.0
    %v6385 = vmax.f32 %v6321, 0.0
    %v6386 = vmax.f32 %v6322, 0.0
    %v6387 = vmax.f32 %v6323, 0.0
    %v6388 = vmax.f32 %v6324, 0.0
    %v6389 = vmax.f32 %v6325, 0.0
    %v6390 = vmax.f32 %v6326, 0.0
    %v6391 = vmax.f32 %v6327, 0.0
    %v6392 = vmax.f32 %v6328, 0.0
    %v6393 = vmax.f32 %v6329, 0.0
    %v6394 = vmax.f32 %v6330, 0.0
    %v6395 = vmax.f32 %v6331, 0.0
    %v6396 = vmax.f32 %v6332, 0.0
    %v6397 = vmax.f32 %v6333, 0.0
    %v6398 = vmax.f32 %v6334, 0.0
    %v6399 = vmax.f32 %v6335, 0.0
    %v6400 = vmax.f32 %v6336, 0.0
    %v6401 = vmax.f32 %v6337, 0.0
    %v6402 = vmax.f32 %v6338, 0.0
    %v6403 = vmax.f32 %v6339, 0.0
    %v6404 = vmax.f32 %v6340, 0.0
    %v6405 = vmax.f32 %v6341, 0.0
    %v6406 = vmax.f32 %v6342, 0.0
    %v6407 = vmax.f32 %v6343, 0.0
    %v6408 = vmax.f32 %v6344, 0.0
    %v6409 = vmax.f32 %v6345, 0.0
    %v6410 = vmax.f32 %v6346, 0.0
    %v6411 = vmax.f32 %v6347, 0.0
    %v6412 = vmax.f32 %v6348, 0.0
    %v6413 = vmax.f32 %v6349, 0.0
    %v6414 = vmax.f32 %v6350, 0.0
    %v6415 = vmax.f32 %v6351, 0.0
    %v6416 = vmax.f32 %v6352, 0.0
    %v6417 = vmax.f32 %v6353, 0.0
    %v6418 = vmax.f32 %v6354, 0.0
    %v6419 = vmax.f32 %v6355, 0.0
    %v6420 = vmax.f32 %v6356, 0.0
    %v6421 = vmax.f32 %v6357, 0.0
    %v6422 = vmax.f32 %v6358, 0.0
    %v6423 = vmax.f32 %v6359, 0.0
    %v6424 = vmax.f32 %v6360, 0.0
    %v6425 = vmax.f32 %v6361, 0.0
    %v6426 = vmax.f32 %v6362, 0.0
    %v6427 = vmax.f32 %v6363, 0.0
    %v6428 = vmax.f32 %v6364, 0.0
    %v6429 = vmax.f32 %v6365, 0.0
    %v6430 = vmax.f32 %v6366, 0.0
    %v6431 = vmax.f32 %v6367, 0.0
    %v6432 = vmax.f32 %v6368, 0.0
    %v6433 = vmax.f32 %v6369, 0.0
    %v6434 = vmax.f32 %v6370, 0.0
    %v6435 = vmax.f32 %v6371, 0.0
    %v6436 = vmax.f32 %v6372, 0.0
    %v6437 = vmax.f32 %v6373, 0.0
    %v6438 = vmax.f32 %v6374, 0.0
    %v6439 = vmax.f32 %v6375, 0.0
    %v6440 = vmax.f32 %v6376, 0.0
    %v6441 = vmax.f32 %v6377, 0.0
    %v6442 = vmax.f32 %v6378, 0.0
    %v6443 = vmax.f32 %v6379, 0.0
    %v6444 = vmax.f32 %v6380, 0.0
    %v6445 = vmax.f32 %v6381, 0.0
    %v6446 = vmax.f32 %v6382, 0.0
    %v6447 = vmax.f32 %v6383, 0.0
    %6448 = vst.msk [vmem:[#allocation2] sm:$0xff] %vm165, 0.0
    %6449 = vst.msk [vmem:[#allocation2 + $0x8] sm:$0xff] %vm165, 0.0
    %6450 = vst.msk [vmem:[#allocation2 + $0x10] sm:$0xff] %vm165, 0.0
    %6451 = vst.msk [vmem:[#allocation2 + $0x18] sm:$0xff] %vm165, 0.0
    %6452 = vst.msk [vmem:[#allocation2 + $0x20] sm:$0xff] %vm165, 0.0
    %6453 = vst.msk [vmem:[#allocation2 + $0x28] sm:$0xff] %vm165, 0.0
    %6454 = vst.msk [vmem:[#allocation2 + $0x30] sm:$0xff] %vm165, 0.0
    %6455 = vst.msk [vmem:[#allocation2 + $0x38] sm:$0xff] %vm165, 0.0
    %6456 = vst.msk [vmem:[#allocation2 + $0x40] sm:$0xff] %vm165, 0.0
    %6457 = vst.msk [vmem:[#allocation2 + $0x48] sm:$0xff] %vm165, 0.0
    %6458 = vst.msk [vmem:[#allocation2 + $0x50] sm:$0xff] %vm165, 0.0
    %6459 = vst.msk [vmem:[#allocation2 + $0x58] sm:$0xff] %vm165, 0.0
    %6460 = vst.msk [vmem:[#allocation2 + $0x60] sm:$0xff] %vm165, 0.0
    %6461 = vst.msk [vmem:[#allocation2 + $0x68] sm:$0xff] %vm165, 0.0
    %6462 = vst.msk [vmem:[#allocation2 + $0x70] sm:$0xff] %vm165, 0.0
    %6463 = vst.msk [vmem:[#allocation2 + $0x78] sm:$0xff] %vm165, 0.0
    %6464 = vst.msk [vmem:[#allocation2 + $0x80] sm:$0xff] %vm165, 0.0
    %6465 = vst.msk [vmem:[#allocation2 + $0x88] sm:$0xff] %vm165, 0.0
    %6466 = vst.msk [vmem:[#allocation2 + $0x90] sm:$0xff] %vm165, 0.0
    %6467 = vst.msk [vmem:[#allocation2 + $0x98] sm:$0xff] %vm165, 0.0
    %6468 = vst.msk [vmem:[#allocation2 + $0xa0] sm:$0xff] %vm165, 0.0
    %6469 = vst.msk [vmem:[#allocation2 + $0xa8] sm:$0xff] %vm165, 0.0
    %6470 = vst.msk [vmem:[#allocation2 + $0xb0] sm:$0xff] %vm165, 0.0
    %6471 = vst.msk [vmem:[#allocation2 + $0xb8] sm:$0xff] %vm165, 0.0
    %6472 = vst.msk [vmem:[#allocation2 + $0xc0] sm:$0xff] %vm165, 0.0
    %6473 = vst.msk [vmem:[#allocation2 + $0xc8] sm:$0xff] %vm165, 0.0
    %6474 = vst.msk [vmem:[#allocation2 + $0xd0] sm:$0xff] %vm165, 0.0
    %6475 = vst.msk [vmem:[#allocation2 + $0xd8] sm:$0xff] %vm165, 0.0
    %6476 = vst.msk [vmem:[#allocation2 + $0xe0] sm:$0xff] %vm165, 0.0
    %6477 = vst.msk [vmem:[#allocation2 + $0xe8] sm:$0xff] %vm165, 0.0
    %6478 = vst.msk [vmem:[#allocation2 + $0xf0] sm:$0xff] %vm165, 0.0
    %6479 = vst.msk [vmem:[#allocation2 + $0xf8] sm:$0xff] %vm165, 0.0
    %6480 = vst.msk [vmem:[#allocation2 + $0x400] sm:$0xff] %vm165, 0.0
    %6481 = vst.msk [vmem:[#allocation2 + $0x408] sm:$0xff] %vm165, 0.0
    %6482 = vst.msk [vmem:[#allocation2 + $0x410] sm:$0xff] %vm165, 0.0
    %6483 = vst.msk [vmem:[#allocation2 + $0x418] sm:$0xff] %vm165, 0.0
    %6484 = vst.msk [vmem:[#allocation2 + $0x420] sm:$0xff] %vm165, 0.0
    %6485 = vst.msk [vmem:[#allocation2 + $0x428] sm:$0xff] %vm165, 0.0
    %6486 = vst.msk [vmem:[#allocation2 + $0x430] sm:$0xff] %vm165, 0.0
    %6487 = vst.msk [vmem:[#allocation2 + $0x438] sm:$0xff] %vm165, 0.0
    %6488 = vst.msk [vmem:[#allocation2 + $0x440] sm:$0xff] %vm165, 0.0
    %6489 = vst.msk [vmem:[#allocation2 + $0x448] sm:$0xff] %vm165, 0.0
    %6490 = vst.msk [vmem:[#allocation2 + $0x450] sm:$0xff] %vm165, 0.0
    %6491 = vst.msk [vmem:[#allocation2 + $0x458] sm:$0xff] %vm165, 0.0
    %6492 = vst.msk [vmem:[#allocation2 + $0x460] sm:$0xff] %vm165, 0.0
    %6493 = vst.msk [vmem:[#allocation2 + $0x468] sm:$0xff] %vm165, 0.0
    %6494 = vst.msk [vmem:[#allocation2 + $0x470] sm:$0xff] %vm165, 0.0
    %6495 = vst.msk [vmem:[#allocation2 + $0x478] sm:$0xff] %vm165, 0.0
    %6496 = vst.msk [vmem:[#allocation2 + $0x480] sm:$0xff] %vm165, 0.0
    %6497 = vst.msk [vmem:[#allocation2 + $0x488] sm:$0xff] %vm165, 0.0
    %6498 = vst.msk [vmem:[#allocation2 + $0x490] sm:$0xff] %vm165, 0.0
    %6499 = vst.msk [vmem:[#allocation2 + $0x498] sm:$0xff] %vm165, 0.0
    %6500 = vst.msk [vmem:[#allocation2 + $0x4a0] sm:$0xff] %vm165, 0.0
    %6501 = vst.msk [vmem:[#allocation2 + $0x4a8] sm:$0xff] %vm165, 0.0
    %6502 = vst.msk [vmem:[#allocation2 + $0x4b0] sm:$0xff] %vm165, 0.0
    %6503 = vst.msk [vmem:[#allocation2 + $0x4b8] sm:$0xff] %vm165, 0.0
    %6504 = vst.msk [vmem:[#allocation2 + $0x4c0] sm:$0xff] %vm165, 0.0
    %6505 = vst.msk [vmem:[#allocation2 + $0x4c8] sm:$0xff] %vm165, 0.0
    %6506 = vst.msk [vmem:[#allocation2 + $0x4d0] sm:$0xff] %vm165, 0.0
    %6507 = vst.msk [vmem:[#allocation2 + $0x4d8] sm:$0xff] %vm165, 0.0
    %6508 = vst.msk [vmem:[#allocation2 + $0x4e0] sm:$0xff] %vm165, 0.0
    %6509 = vst.msk [vmem:[#allocation2 + $0x4e8] sm:$0xff] %vm165, 0.0
    %6510 = vst.msk [vmem:[#allocation2 + $0x4f0] sm:$0xff] %vm165, 0.0
    %6511 = vst.msk [vmem:[#allocation2 + $0x4f8] sm:$0xff] %vm165, 0.0
    %s6512 = scalar_lea.vmem [#allocation2], 768
    %6513 = vst.msk [vmem:[%s6512] sm:$0xff] %vm165, 0.0
    %6514 = vst.msk [vmem:[%s6512 + $0x8] sm:$0xff] %vm165, 0.0
    %6515 = vst.msk [vmem:[%s6512 + $0x10] sm:$0xff] %vm165, 0.0
    %6516 = vst.msk [vmem:[%s6512 + $0x18] sm:$0xff] %vm165, 0.0
    %6517 = vst.msk [vmem:[%s6512 + $0x20] sm:$0xff] %vm165, 0.0
    %6518 = vst.msk [vmem:[%s6512 + $0x28] sm:$0xff] %vm165, 0.0
    %6519 = vst.msk [vmem:[%s6512 + $0x30] sm:$0xff] %vm165, 0.0
    %6520 = vst.msk [vmem:[%s6512 + $0x38] sm:$0xff] %vm165, 0.0
    %6521 = vst.msk [vmem:[%s6512 + $0x40] sm:$0xff] %vm165, 0.0
    %6522 = vst.msk [vmem:[%s6512 + $0x48] sm:$0xff] %vm165, 0.0
    %6523 = vst.msk [vmem:[%s6512 + $0x50] sm:$0xff] %vm165, 0.0
    %6524 = vst.msk [vmem:[%s6512 + $0x58] sm:$0xff] %vm165, 0.0
    %6525 = vst.msk [vmem:[%s6512 + $0x60] sm:$0xff] %vm165, 0.0
    %6526 = vst.msk [vmem:[%s6512 + $0x68] sm:$0xff] %vm165, 0.0
    %6527 = vst.msk [vmem:[%s6512 + $0x70] sm:$0xff] %vm165, 0.0
    %6528 = vst.msk [vmem:[%s6512 + $0x78] sm:$0xff] %vm165, 0.0
    %6529 = vst.msk [vmem:[%s6512 + $0x80] sm:$0xff] %vm165, 0.0
    %6530 = vst.msk [vmem:[%s6512 + $0x88] sm:$0xff] %vm165, 0.0
    %6531 = vst.msk [vmem:[%s6512 + $0x90] sm:$0xff] %vm165, 0.0
    %6532 = vst.msk [vmem:[%s6512 + $0x98] sm:$0xff] %vm165, 0.0
    %6533 = vst.msk [vmem:[%s6512 + $0xa0] sm:$0xff] %vm165, 0.0
    %6534 = vst.msk [vmem:[%s6512 + $0xa8] sm:$0xff] %vm165, 0.0
    %6535 = vst.msk [vmem:[%s6512 + $0xb0] sm:$0xff] %vm165, 0.0
    %6536 = vst.msk [vmem:[%s6512 + $0xb8] sm:$0xff] %vm165, 0.0
    %6537 = vst.msk [vmem:[%s6512 + $0xc0] sm:$0xff] %vm165, 0.0
    %6538 = vst.msk [vmem:[%s6512 + $0xc8] sm:$0xff] %vm165, 0.0
    %6539 = vst.msk [vmem:[%s6512 + $0xd0] sm:$0xff] %vm165, 0.0
    %6540 = vst.msk [vmem:[%s6512 + $0xd8] sm:$0xff] %vm165, 0.0
    %6541 = vst.msk [vmem:[%s6512 + $0xe0] sm:$0xff] %vm165, 0.0
    %6542 = vst.msk [vmem:[%s6512 + $0xe8] sm:$0xff] %vm165, 0.0
    %6543 = vst.msk [vmem:[%s6512 + $0xf0] sm:$0xff] %vm165, 0.0
    %6544 = vst.msk [vmem:[%s6512 + $0xf8] sm:$0xff] %vm165, 0.0
    %6545 = vst.msk [vmem:[%s6512 + $0x400] sm:$0xff] %vm165, 0.0
    %6546 = vst.msk [vmem:[%s6512 + $0x408] sm:$0xff] %vm165, 0.0
    %6547 = vst.msk [vmem:[%s6512 + $0x410] sm:$0xff] %vm165, 0.0
    %6548 = vst.msk [vmem:[%s6512 + $0x418] sm:$0xff] %vm165, 0.0
    %6549 = vst.msk [vmem:[%s6512 + $0x420] sm:$0xff] %vm165, 0.0
    %6550 = vst.msk [vmem:[%s6512 + $0x428] sm:$0xff] %vm165, 0.0
    %6551 = vst.msk [vmem:[%s6512 + $0x430] sm:$0xff] %vm165, 0.0
    %6552 = vst.msk [vmem:[%s6512 + $0x438] sm:$0xff] %vm165, 0.0
    %6553 = vst.msk [vmem:[%s6512 + $0x440] sm:$0xff] %vm165, 0.0
    %6554 = vst.msk [vmem:[%s6512 + $0x448] sm:$0xff] %vm165, 0.0
    %6555 = vst.msk [vmem:[%s6512 + $0x450] sm:$0xff] %vm165, 0.0
    %6556 = vst.msk [vmem:[%s6512 + $0x458] sm:$0xff] %vm165, 0.0
    %6557 = vst.msk [vmem:[%s6512 + $0x460] sm:$0xff] %vm165, 0.0
    %6558 = vst.msk [vmem:[%s6512 + $0x468] sm:$0xff] %vm165, 0.0
    %6559 = vst.msk [vmem:[%s6512 + $0x470] sm:$0xff] %vm165, 0.0
    %6560 = vst.msk [vmem:[%s6512 + $0x478] sm:$0xff] %vm165, 0.0
    %6561 = vst.msk [vmem:[%s6512 + $0x480] sm:$0xff] %vm165, 0.0
    %6562 = vst.msk [vmem:[%s6512 + $0x488] sm:$0xff] %vm165, 0.0
    %6563 = vst.msk [vmem:[%s6512 + $0x490] sm:$0xff] %vm165, 0.0
    %6564 = vst.msk [vmem:[%s6512 + $0x498] sm:$0xff] %vm165, 0.0
    %6565 = vst.msk [vmem:[%s6512 + $0x4a0] sm:$0xff] %vm165, 0.0
    %6566 = vst.msk [vmem:[%s6512 + $0x4a8] sm:$0xff] %vm165, 0.0
    %6567 = vst.msk [vmem:[%s6512 + $0x4b0] sm:$0xff] %vm165, 0.0
    %6568 = vst.msk [vmem:[%s6512 + $0x4b8] sm:$0xff] %vm165, 0.0
    %6569 = vst.msk [vmem:[%s6512 + $0x4c0] sm:$0xff] %vm165, 0.0
    %6570 = vst.msk [vmem:[%s6512 + $0x4c8] sm:$0xff] %vm165, 0.0
    %6571 = vst.msk [vmem:[%s6512 + $0x4d0] sm:$0xff] %vm165, 0.0
    %6572 = vst.msk [vmem:[%s6512 + $0x4d8] sm:$0xff] %vm165, 0.0
    %6573 = vst.msk [vmem:[%s6512 + $0x4e0] sm:$0xff] %vm165, 0.0
    %6574 = vst.msk [vmem:[%s6512 + $0x4e8] sm:$0xff] %vm165, 0.0
    %6575 = vst.msk [vmem:[%s6512 + $0x4f0] sm:$0xff] %vm165, 0.0
    %6576 = vst.msk [vmem:[%s6512 + $0x4f8] sm:$0xff] %vm165, 0.0
    %s6577 = scalar_lea.vmem [#allocation2], 256
    %6578 = vst.msk [vmem:[%s6577] sm:$0xff] %vm165, 0.0
    %6579 = vst.msk [vmem:[%s6577 + $0x8] sm:$0xff] %vm165, 0.0
    %6580 = vst.msk [vmem:[%s6577 + $0x10] sm:$0xff] %vm165, 0.0
    %6581 = vst.msk [vmem:[%s6577 + $0x18] sm:$0xff] %vm165, 0.0
    %6582 = vst.msk [vmem:[%s6577 + $0x20] sm:$0xff] %vm165, 0.0
    %6583 = vst.msk [vmem:[%s6577 + $0x28] sm:$0xff] %vm165, 0.0
    %6584 = vst.msk [vmem:[%s6577 + $0x30] sm:$0xff] %vm165, 0.0
    %6585 = vst.msk [vmem:[%s6577 + $0x38] sm:$0xff] %vm165, 0.0
    %6586 = vst.msk [vmem:[%s6577 + $0x100] sm:$0xff] %vm165, 0.0
    %6587 = vst.msk [vmem:[%s6577 + $0x108] sm:$0xff] %vm165, 0.0
    %6588 = vst.msk [vmem:[%s6577 + $0x110] sm:$0xff] %vm165, 0.0
    %6589 = vst.msk [vmem:[%s6577 + $0x118] sm:$0xff] %vm165, 0.0
    %6590 = vst.msk [vmem:[%s6577 + $0x120] sm:$0xff] %vm165, 0.0
    %6591 = vst.msk [vmem:[%s6577 + $0x128] sm:$0xff] %vm165, 0.0
    %6592 = vst.msk [vmem:[%s6577 + $0x130] sm:$0xff] %vm165, 0.0
    %6593 = vst.msk [vmem:[%s6577 + $0x138] sm:$0xff] %vm165, 0.0
    %6594 = vst.msk [vmem:[%s6577 + $0x400] sm:$0xff] %vm165, 0.0
    %6595 = vst.msk [vmem:[%s6577 + $0x408] sm:$0xff] %vm165, 0.0
    %6596 = vst.msk [vmem:[%s6577 + $0x410] sm:$0xff] %vm165, 0.0
    %6597 = vst.msk [vmem:[%s6577 + $0x418] sm:$0xff] %vm165, 0.0
    %6598 = vst.msk [vmem:[%s6577 + $0x420] sm:$0xff] %vm165, 0.0
    %6599 = vst.msk [vmem:[%s6577 + $0x428] sm:$0xff] %vm165, 0.0
    %6600 = vst.msk [vmem:[%s6577 + $0x430] sm:$0xff] %vm165, 0.0
    %6601 = vst.msk [vmem:[%s6577 + $0x438] sm:$0xff] %vm165, 0.0
    %6602 = vst.msk [vmem:[%s6577 + $0x500] sm:$0xff] %vm165, 0.0
    %6603 = vst.msk [vmem:[%s6577 + $0x508] sm:$0xff] %vm165, 0.0
    %6604 = vst.msk [vmem:[%s6577 + $0x510] sm:$0xff] %vm165, 0.0
    %6605 = vst.msk [vmem:[%s6577 + $0x518] sm:$0xff] %vm165, 0.0
    %6606 = vst.msk [vmem:[%s6577 + $0x520] sm:$0xff] %vm165, 0.0
    %6607 = vst.msk [vmem:[%s6577 + $0x528] sm:$0xff] %vm165, 0.0
    %6608 = vst.msk [vmem:[%s6577 + $0x530] sm:$0xff] %vm165, 0.0
    %6609 = vst.msk [vmem:[%s6577 + $0x538] sm:$0xff] %vm165, 0.0
    %s6610 = scalar_lea.vmem [#allocation2], 448
    %6611 = vst.msk [vmem:[%s6610] sm:$0xff] %vm165, 0.0
    %6612 = vst.msk [vmem:[%s6610 + $0x8] sm:$0xff] %vm165, 0.0
    %6613 = vst.msk [vmem:[%s6610 + $0x10] sm:$0xff] %vm165, 0.0
    %6614 = vst.msk [vmem:[%s6610 + $0x18] sm:$0xff] %vm165, 0.0
    %6615 = vst.msk [vmem:[%s6610 + $0x20] sm:$0xff] %vm165, 0.0
    %6616 = vst.msk [vmem:[%s6610 + $0x28] sm:$0xff] %vm165, 0.0
    %6617 = vst.msk [vmem:[%s6610 + $0x30] sm:$0xff] %vm165, 0.0
    %6618 = vst.msk [vmem:[%s6610 + $0x38] sm:$0xff] %vm165, 0.0
    %6619 = vst.msk [vmem:[%s6610 + $0x100] sm:$0xff] %vm165, 0.0
    %6620 = vst.msk [vmem:[%s6610 + $0x108] sm:$0xff] %vm165, 0.0
    %6621 = vst.msk [vmem:[%s6610 + $0x110] sm:$0xff] %vm165, 0.0
    %6622 = vst.msk [vmem:[%s6610 + $0x118] sm:$0xff] %vm165, 0.0
    %6623 = vst.msk [vmem:[%s6610 + $0x120] sm:$0xff] %vm165, 0.0
    %6624 = vst.msk [vmem:[%s6610 + $0x128] sm:$0xff] %vm165, 0.0
    %6625 = vst.msk [vmem:[%s6610 + $0x130] sm:$0xff] %vm165, 0.0
    %6626 = vst.msk [vmem:[%s6610 + $0x138] sm:$0xff] %vm165, 0.0
    %6627 = vst.msk [vmem:[%s6610 + $0x400] sm:$0xff] %vm165, 0.0
    %6628 = vst.msk [vmem:[%s6610 + $0x408] sm:$0xff] %vm165, 0.0
    %6629 = vst.msk [vmem:[%s6610 + $0x410] sm:$0xff] %vm165, 0.0
    %6630 = vst.msk [vmem:[%s6610 + $0x418] sm:$0xff] %vm165, 0.0
    %6631 = vst.msk [vmem:[%s6610 + $0x420] sm:$0xff] %vm165, 0.0
    %6632 = vst.msk [vmem:[%s6610 + $0x428] sm:$0xff] %vm165, 0.0
    %6633 = vst.msk [vmem:[%s6610 + $0x430] sm:$0xff] %vm165, 0.0
    %6634 = vst.msk [vmem:[%s6610 + $0x438] sm:$0xff] %vm165, 0.0
    %6635 = vst.msk [vmem:[%s6610 + $0x500] sm:$0xff] %vm165, 0.0
    %6636 = vst.msk [vmem:[%s6610 + $0x508] sm:$0xff] %vm165, 0.0
    %6637 = vst.msk [vmem:[%s6610 + $0x510] sm:$0xff] %vm165, 0.0
    %6638 = vst.msk [vmem:[%s6610 + $0x518] sm:$0xff] %vm165, 0.0
    %6639 = vst.msk [vmem:[%s6610 + $0x520] sm:$0xff] %vm165, 0.0
    %6640 = vst.msk [vmem:[%s6610 + $0x528] sm:$0xff] %vm165, 0.0
    %6641 = vst.msk [vmem:[%s6610 + $0x530] sm:$0xff] %vm165, 0.0
    %6642 = vst.msk [vmem:[%s6610 + $0x538] sm:$0xff] %vm165, 0.0
    %s6643 = scalar_lea.vmem [#allocation2], 320
    %6644 = vst.msk [vmem:[%s6643] sm:$0xff] %vm165, %v6384
    %6645 = vst.msk [vmem:[%s6643 + $0x8] sm:$0xff] %vm165, %v6385
    %6646 = vst.msk [vmem:[%s6643 + $0x10] sm:$0xff] %vm165, %v6386
    %6647 = vst.msk [vmem:[%s6643 + $0x18] sm:$0xff] %vm165, %v6387
    %6648 = vst.msk [vmem:[%s6643 + $0x20] sm:$0xff] %vm165, %v6388
    %6649 = vst.msk [vmem:[%s6643 + $0x28] sm:$0xff] %vm165, %v6389
    %6650 = vst.msk [vmem:[%s6643 + $0x30] sm:$0xff] %vm165, %v6390
    %6651 = vst.msk [vmem:[%s6643 + $0x38] sm:$0xff] %vm165, %v6391
    %6652 = vst.msk [vmem:[%s6643 + $0x40] sm:$0xff] %vm165, %v6392
    %6653 = vst.msk [vmem:[%s6643 + $0x48] sm:$0xff] %vm165, %v6393
    %6654 = vst.msk [vmem:[%s6643 + $0x50] sm:$0xff] %vm165, %v6394
    %6655 = vst.msk [vmem:[%s6643 + $0x58] sm:$0xff] %vm165, %v6395
    %6656 = vst.msk [vmem:[%s6643 + $0x60] sm:$0xff] %vm165, %v6396
    %6657 = vst.msk [vmem:[%s6643 + $0x68] sm:$0xff] %vm165, %v6397
    %6658 = vst.msk [vmem:[%s6643 + $0x70] sm:$0xff] %vm165, %v6398
    %6659 = vst.msk [vmem:[%s6643 + $0x78] sm:$0xff] %vm165, %v6399
    %6660 = vst.msk [vmem:[%s6643 + $0x100] sm:$0xff] %vm165, %v6400
    %6661 = vst.msk [vmem:[%s6643 + $0x108] sm:$0xff] %vm165, %v6401
    %6662 = vst.msk [vmem:[%s6643 + $0x110] sm:$0xff] %vm165, %v6402
    %6663 = vst.msk [vmem:[%s6643 + $0x118] sm:$0xff] %vm165, %v6403
    %6664 = vst.msk [vmem:[%s6643 + $0x120] sm:$0xff] %vm165, %v6404
    %6665 = vst.msk [vmem:[%s6643 + $0x128] sm:$0xff] %vm165, %v6405
    %6666 = vst.msk [vmem:[%s6643 + $0x130] sm:$0xff] %vm165, %v6406
    %6667 = vst.msk [vmem:[%s6643 + $0x138] sm:$0xff] %vm165, %v6407
    %6668 = vst.msk [vmem:[%s6643 + $0x140] sm:$0xff] %vm165, %v6408
    %6669 = vst.msk [vmem:[%s6643 + $0x148] sm:$0xff] %vm165, %v6409
    %6670 = vst.msk [vmem:[%s6643 + $0x150] sm:$0xff] %vm165, %v6410
    %6671 = vst.msk [vmem:[%s6643 + $0x158] sm:$0xff] %vm165, %v6411
    %6672 = vst.msk [vmem:[%s6643 + $0x160] sm:$0xff] %vm165, %v6412
    %6673 = vst.msk [vmem:[%s6643 + $0x168] sm:$0xff] %vm165, %v6413
    %6674 = vst.msk [vmem:[%s6643 + $0x170] sm:$0xff] %vm165, %v6414
    %6675 = vst.msk [vmem:[%s6643 + $0x178] sm:$0xff] %vm165, %v6415
    %6676 = vst.msk [vmem:[%s6643 + $0x400] sm:$0xff] %vm165, %v6416
    %6677 = vst.msk [vmem:[%s6643 + $0x408] sm:$0xff] %vm165, %v6417
    %6678 = vst.msk [vmem:[%s6643 + $0x410] sm:$0xff] %vm165, %v6418
    %6679 = vst.msk [vmem:[%s6643 + $0x418] sm:$0xff] %vm165, %v6419
    %6680 = vst.msk [vmem:[%s6643 + $0x420] sm:$0xff] %vm165, %v6420
    %6681 = vst.msk [vmem:[%s6643 + $0x428] sm:$0xff] %vm165, %v6421
    %6682 = vst.msk [vmem:[%s6643 + $0x430] sm:$0xff] %vm165, %v6422
    %6683 = vst.msk [vmem:[%s6643 + $0x438] sm:$0xff] %vm165, %v6423
    %6684 = vst.msk [vmem:[%s6643 + $0x440] sm:$0xff] %vm165, %v6424
    %6685 = vst.msk [vmem:[%s6643 + $0x448] sm:$0xff] %vm165, %v6425
    %6686 = vst.msk [vmem:[%s6643 + $0x450] sm:$0xff] %vm165, %v6426
    %6687 = vst.msk [vmem:[%s6643 + $0x458] sm:$0xff] %vm165, %v6427
    %6688 = vst.msk [vmem:[%s6643 + $0x460] sm:$0xff] %vm165, %v6428
    %6689 = vst.msk [vmem:[%s6643 + $0x468] sm:$0xff] %vm165, %v6429
    %6690 = vst.msk [vmem:[%s6643 + $0x470] sm:$0xff] %vm165, %v6430
    %6691 = vst.msk [vmem:[%s6643 + $0x478] sm:$0xff] %vm165, %v6431
    %6692 = vst.msk [vmem:[%s6643 + $0x500] sm:$0xff] %vm165, %v6432
    %6693 = vst.msk [vmem:[%s6643 + $0x508] sm:$0xff] %vm165, %v6433
    %6694 = vst.msk [vmem:[%s6643 + $0x510] sm:$0xff] %vm165, %v6434
    %6695 = vst.msk [vmem:[%s6643 + $0x518] sm:$0xff] %vm165, %v6435
    %6696 = vst.msk [vmem:[%s6643 + $0x520] sm:$0xff] %vm165, %v6436
    %6697 = vst.msk [vmem:[%s6643 + $0x528] sm:$0xff] %vm165, %v6437
    %6698 = vst.msk [vmem:[%s6643 + $0x530] sm:$0xff] %vm165, %v6438
    %6699 = vst.msk [vmem:[%s6643 + $0x538] sm:$0xff] %vm165, %v6439
    %6700 = vst.msk [vmem:[%s6643 + $0x540] sm:$0xff] %vm165, %v6440
    %6701 = vst.msk [vmem:[%s6643 + $0x548] sm:$0xff] %vm165, %v6441
    %6702 = vst.msk [vmem:[%s6643 + $0x550] sm:$0xff] %vm165, %v6442
    %6703 = vst.msk [vmem:[%s6643 + $0x558] sm:$0xff] %vm165, %v6443
    %6704 = vst.msk [vmem:[%s6643 + $0x560] sm:$0xff] %vm165, %v6444
    %6705 = vst.msk [vmem:[%s6643 + $0x568] sm:$0xff] %vm165, %v6445
    %6706 = vst.msk [vmem:[%s6643 + $0x570] sm:$0xff] %vm165, %v6446
    %6707 = vst.msk [vmem:[%s6643 + $0x578] sm:$0xff] %vm165, %v6447
    %v6708 = vld [vmem:[#allocation2] sm:$0xff]
    %v6709 = vld [vmem:[#allocation2 + $0x8] sm:$0xff]
    %v6710 = vld [vmem:[#allocation2 + $0x10] sm:$0xff]
    %v6711 = vld [vmem:[#allocation2 + $0x18] sm:$0xff]
    %v6712 = vld [vmem:[#allocation2 + $0x20] sm:$0xff]
    %v6713 = vld [vmem:[#allocation2 + $0x28] sm:$0xff]
    %v6714 = vld [vmem:[#allocation2 + $0x30] sm:$0xff]
    %v6715 = vld [vmem:[#allocation2 + $0x38] sm:$0xff]
    %v6716 = vld [vmem:[#allocation2 + $0x40] sm:$0xff]
    %v6717 = vld [vmem:[#allocation2 + $0x48] sm:$0xff]
    %v6718 = vld [vmem:[#allocation2 + $0x50] sm:$0xff]
    %v6719 = vld [vmem:[#allocation2 + $0x58] sm:$0xff]
    %v6720 = vld [vmem:[#allocation2 + $0x60] sm:$0xff]
    %v6721 = vld [vmem:[#allocation2 + $0x68] sm:$0xff]
    %v6722 = vld [vmem:[#allocation2 + $0x70] sm:$0xff]
    %v6723 = vld [vmem:[#allocation2 + $0x78] sm:$0xff]
    %v6724 = vld [vmem:[#allocation2 + $0x100] sm:$0xff]
    %v6725 = vld [vmem:[#allocation2 + $0x108] sm:$0xff]
    %v6726 = vld [vmem:[#allocation2 + $0x110] sm:$0xff]
    %v6727 = vld [vmem:[#allocation2 + $0x118] sm:$0xff]
    %v6728 = vld [vmem:[#allocation2 + $0x120] sm:$0xff]
    %v6729 = vld [vmem:[#allocation2 + $0x128] sm:$0xff]
    %v6730 = vld [vmem:[#allocation2 + $0x130] sm:$0xff]
    %v6731 = vld [vmem:[#allocation2 + $0x138] sm:$0xff]
    %v6732 = vld [vmem:[#allocation2 + $0x140] sm:$0xff]
    %v6733 = vld [vmem:[#allocation2 + $0x148] sm:$0xff]
    %v6734 = vld [vmem:[#allocation2 + $0x150] sm:$0xff]
    %v6735 = vld [vmem:[#allocation2 + $0x158] sm:$0xff]
    %v6736 = vld [vmem:[#allocation2 + $0x160] sm:$0xff]
    %v6737 = vld [vmem:[#allocation2 + $0x168] sm:$0xff]
    %v6738 = vld [vmem:[#allocation2 + $0x170] sm:$0xff]
    %v6739 = vld [vmem:[#allocation2 + $0x178] sm:$0xff]
    %v6740 = vld [vmem:[#allocation2 + $0x400] sm:$0xff]
    %v6741 = vld [vmem:[#allocation2 + $0x408] sm:$0xff]
    %v6742 = vld [vmem:[#allocation2 + $0x410] sm:$0xff]
    %v6743 = vld [vmem:[#allocation2 + $0x418] sm:$0xff]
    %v6744 = vld [vmem:[#allocation2 + $0x420] sm:$0xff]
    %v6745 = vld [vmem:[#allocation2 + $0x428] sm:$0xff]
    %v6746 = vld [vmem:[#allocation2 + $0x430] sm:$0xff]
    %v6747 = vld [vmem:[#allocation2 + $0x438] sm:$0xff]
    %v6748 = vld [vmem:[#allocation2 + $0x440] sm:$0xff]
    %v6749 = vld [vmem:[#allocation2 + $0x448] sm:$0xff]
    %v6750 = vld [vmem:[#allocation2 + $0x450] sm:$0xff]
    %v6751 = vld [vmem:[#allocation2 + $0x458] sm:$0xff]
    %v6752 = vld [vmem:[#allocation2 + $0x460] sm:$0xff]
    %v6753 = vld [vmem:[#allocation2 + $0x468] sm:$0xff]
    %v6754 = vld [vmem:[#allocation2 + $0x470] sm:$0xff]
    %v6755 = vld [vmem:[#allocation2 + $0x478] sm:$0xff]
    %v6756 = vld [vmem:[#allocation2 + $0x500] sm:$0xff]
    %v6757 = vld [vmem:[#allocation2 + $0x508] sm:$0xff]
    %v6758 = vld [vmem:[#allocation2 + $0x510] sm:$0xff]
    %v6759 = vld [vmem:[#allocation2 + $0x518] sm:$0xff]
    %v6760 = vld [vmem:[#allocation2 + $0x520] sm:$0xff]
    %v6761 = vld [vmem:[#allocation2 + $0x528] sm:$0xff]
    %v6762 = vld [vmem:[#allocation2 + $0x530] sm:$0xff]
    %v6763 = vld [vmem:[#allocation2 + $0x538] sm:$0xff]
    %v6764 = vld [vmem:[#allocation2 + $0x540] sm:$0xff]
    %v6765 = vld [vmem:[#allocation2 + $0x548] sm:$0xff]
    %v6766 = vld [vmem:[#allocation2 + $0x550] sm:$0xff]
    %v6767 = vld [vmem:[#allocation2 + $0x558] sm:$0xff]
    %v6768 = vld [vmem:[#allocation2 + $0x560] sm:$0xff]
    %v6769 = vld [vmem:[#allocation2 + $0x568] sm:$0xff]
    %v6770 = vld [vmem:[#allocation2 + $0x570] sm:$0xff]
    %v6771 = vld [vmem:[#allocation2 + $0x578] sm:$0xff]
    %v6772 = vld [vmem:[%s3] sm:$0xff]
    %v6773 = vld [vmem:[%s3 + $0x8] sm:$0xff]
    %v6774 = vld [vmem:[%s3 + $0x10] sm:$0xff]
    %v6775 = vld [vmem:[%s3 + $0x18] sm:$0xff]
    %v6776 = vld [vmem:[%s3 + $0x20] sm:$0xff]
    %v6777 = vld [vmem:[%s3 + $0x28] sm:$0xff]
    %v6778 = vld [vmem:[%s3 + $0x30] sm:$0xff]
    %v6779 = vld [vmem:[%s3 + $0x38] sm:$0xff]
    %s6780 = scalar_lea.vmem [#allocation2], 64
    %v6781 = vld [vmem:[%s6780] sm:$0xff]
    %v6782 = vld [vmem:[%s6780 + $0x8] sm:$0xff]
    %v6783 = vld [vmem:[%s6780 + $0x10] sm:$0xff]
    %v6784 = vld [vmem:[%s6780 + $0x18] sm:$0xff]
    %v6785 = vld [vmem:[%s6780 + $0x20] sm:$0xff]
    %v6786 = vld [vmem:[%s6780 + $0x28] sm:$0xff]
    %v6787 = vld [vmem:[%s6780 + $0x30] sm:$0xff]
    %v6788 = vld [vmem:[%s6780 + $0x38] sm:$0xff]
    %v6789 = vld [vmem:[%s6780 + $0x40] sm:$0xff]
    %v6790 = vld [vmem:[%s6780 + $0x48] sm:$0xff]
    %v6791 = vld [vmem:[%s6780 + $0x50] sm:$0xff]
    %v6792 = vld [vmem:[%s6780 + $0x58] sm:$0xff]
    %v6793 = vld [vmem:[%s6780 + $0x60] sm:$0xff]
    %v6794 = vld [vmem:[%s6780 + $0x68] sm:$0xff]
    %v6795 = vld [vmem:[%s6780 + $0x70] sm:$0xff]
    %v6796 = vld [vmem:[%s6780 + $0x78] sm:$0xff]
    %v6797 = vld [vmem:[%s6780 + $0x100] sm:$0xff]
    %v6798 = vld [vmem:[%s6780 + $0x108] sm:$0xff]
    %v6799 = vld [vmem:[%s6780 + $0x110] sm:$0xff]
    %v6800 = vld [vmem:[%s6780 + $0x118] sm:$0xff]
    %v6801 = vld [vmem:[%s6780 + $0x120] sm:$0xff]
    %v6802 = vld [vmem:[%s6780 + $0x128] sm:$0xff]
    %v6803 = vld [vmem:[%s6780 + $0x130] sm:$0xff]
    %v6804 = vld [vmem:[%s6780 + $0x138] sm:$0xff]
    %v6805 = vld [vmem:[%s6780 + $0x140] sm:$0xff]
    %v6806 = vld [vmem:[%s6780 + $0x148] sm:$0xff]
    %v6807 = vld [vmem:[%s6780 + $0x150] sm:$0xff]
    %v6808 = vld [vmem:[%s6780 + $0x158] sm:$0xff]
    %v6809 = vld [vmem:[%s6780 + $0x160] sm:$0xff]
    %v6810 = vld [vmem:[%s6780 + $0x168] sm:$0xff]
    %v6811 = vld [vmem:[%s6780 + $0x170] sm:$0xff]
    %v6812 = vld [vmem:[%s6780 + $0x178] sm:$0xff]
    %v6813 = vld [vmem:[%s6780 + $0x400] sm:$0xff]
    %v6814 = vld [vmem:[%s6780 + $0x408] sm:$0xff]
    %v6815 = vld [vmem:[%s6780 + $0x410] sm:$0xff]
    %v6816 = vld [vmem:[%s6780 + $0x418] sm:$0xff]
    %v6817 = vld [vmem:[%s6780 + $0x420] sm:$0xff]
    %v6818 = vld [vmem:[%s6780 + $0x428] sm:$0xff]
    %v6819 = vld [vmem:[%s6780 + $0x430] sm:$0xff]
    %v6820 = vld [vmem:[%s6780 + $0x438] sm:$0xff]
    %v6821 = vld [vmem:[%s6780 + $0x440] sm:$0xff]
    %v6822 = vld [vmem:[%s6780 + $0x448] sm:$0xff]
    %v6823 = vld [vmem:[%s6780 + $0x450] sm:$0xff]
    %v6824 = vld [vmem:[%s6780 + $0x458] sm:$0xff]
    %v6825 = vld [vmem:[%s6780 + $0x460] sm:$0xff]
    %v6826 = vld [vmem:[%s6780 + $0x468] sm:$0xff]
    %v6827 = vld [vmem:[%s6780 + $0x470] sm:$0xff]
    %v6828 = vld [vmem:[%s6780 + $0x478] sm:$0xff]
    %v6829 = vld [vmem:[%s6780 + $0x500] sm:$0xff]
    %v6830 = vld [vmem:[%s6780 + $0x508] sm:$0xff]
    %v6831 = vld [vmem:[%s6780 + $0x510] sm:$0xff]
    %v6832 = vld [vmem:[%s6780 + $0x518] sm:$0xff]
    %v6833 = vld [vmem:[%s6780 + $0x520] sm:$0xff]
    %v6834 = vld [vmem:[%s6780 + $0x528] sm:$0xff]
    %v6835 = vld [vmem:[%s6780 + $0x530] sm:$0xff]
    %v6836 = vld [vmem:[%s6780 + $0x538] sm:$0xff]
    %v6837 = vld [vmem:[%s6780 + $0x540] sm:$0xff]
    %v6838 = vld [vmem:[%s6780 + $0x548] sm:$0xff]
    %v6839 = vld [vmem:[%s6780 + $0x550] sm:$0xff]
    %v6840 = vld [vmem:[%s6780 + $0x558] sm:$0xff]
    %v6841 = vld [vmem:[%s6780 + $0x560] sm:$0xff]
    %v6842 = vld [vmem:[%s6780 + $0x568] sm:$0xff]
    %v6843 = vld [vmem:[%s6780 + $0x570] sm:$0xff]
    %v6844 = vld [vmem:[%s6780 + $0x578] sm:$0xff]
    %v6845 = vld [vmem:[%s3 + $0x40] sm:$0xff]
    %v6846 = vld [vmem:[%s3 + $0x48] sm:$0xff]
    %v6847 = vld [vmem:[%s3 + $0x50] sm:$0xff]
    %v6848 = vld [vmem:[%s3 + $0x58] sm:$0xff]
    %v6849 = vld [vmem:[%s3 + $0x60] sm:$0xff]
    %v6850 = vld [vmem:[%s3 + $0x68] sm:$0xff]
    %v6851 = vld [vmem:[%s3 + $0x70] sm:$0xff]
    %v6852 = vld [vmem:[%s3 + $0x78] sm:$0xff]
    %v6854 = vsel %vm165, %v6781, 0
    %v6857 = vsel %vm165, %v6782, 0
    %v6860 = vsel %vm165, %v6783, 0
    %v6863 = vsel %vm165, %v6784, 0
    %v6866 = vsel %vm165, %v6785, 0
    %v6869 = vsel %vm165, %v6786, 0
    %v6872 = vsel %vm165, %v6787, 0
    %v6875 = vsel %vm165, %v6788, 0
    %v6878 = vsel %vm165, %v6789, 0
    %v6881 = vsel %vm165, %v6790, 0
    %v6884 = vsel %vm165, %v6791, 0
    %v6887 = vsel %vm165, %v6792, 0
    %v6890 = vsel %vm165, %v6793, 0
    %v6893 = vsel %vm165, %v6794, 0
    %v6896 = vsel %vm165, %v6795, 0
    %v6899 = vsel %vm165, %v6796, 0
    %v6902 = vsel %vm165, %v6797, 0
    %v6905 = vsel %vm165, %v6798, 0
    %v6908 = vsel %vm165, %v6799, 0
    %v6911 = vsel %vm165, %v6800, 0
    %v6914 = vsel %vm165, %v6801, 0
    %v6917 = vsel %vm165, %v6802, 0
    %v6920 = vsel %vm165, %v6803, 0
    %v6923 = vsel %vm165, %v6804, 0
    %v6926 = vsel %vm165, %v6805, 0
    %v6929 = vsel %vm165, %v6806, 0
    %v6932 = vsel %vm165, %v6807, 0
    %v6935 = vsel %vm165, %v6808, 0
    %v6938 = vsel %vm165, %v6809, 0
    %v6941 = vsel %vm165, %v6810, 0
    %v6944 = vsel %vm165, %v6811, 0
    %v6947 = vsel %vm165, %v6812, 0
    %v6950 = vsel %vm165, %v6813, 0
    %v6953 = vsel %vm165, %v6814, 0
    %v6956 = vsel %vm165, %v6815, 0
    %v6959 = vsel %vm165, %v6816, 0
    %v6962 = vsel %vm165, %v6817, 0
    %v6965 = vsel %vm165, %v6818, 0
    %v6968 = vsel %vm165, %v6819, 0
    %v6971 = vsel %vm165, %v6820, 0
    %v6974 = vsel %vm165, %v6821, 0
    %v6977 = vsel %vm165, %v6822, 0
    %v6980 = vsel %vm165, %v6823, 0
    %v6983 = vsel %vm165, %v6824, 0
    %v6986 = vsel %vm165, %v6825, 0
    %v6989 = vsel %vm165, %v6826, 0
    %v6992 = vsel %vm165, %v6827, 0
    %v6995 = vsel %vm165, %v6828, 0
    %v6998 = vsel %vm165, %v6829, 0
    %v7001 = vsel %vm165, %v6830, 0
    %v7004 = vsel %vm165, %v6831, 0
    %v7007 = vsel %vm165, %v6832, 0
    %v7010 = vsel %vm165, %v6833, 0
    %v7013 = vsel %vm165, %v6834, 0
    %v7016 = vsel %vm165, %v6835, 0
    %v7019 = vsel %vm165, %v6836, 0
    %v7022 = vsel %vm165, %v6837, 0
    %v7025 = vsel %vm165, %v6838, 0
    %v7028 = vsel %vm165, %v6839, 0
    %v7031 = vsel %vm165, %v6840, 0
    %v7034 = vsel %vm165, %v6841, 0
    %v7037 = vsel %vm165, %v6842, 0
    %v7040 = vsel %vm165, %v6843, 0
    %v7043 = vsel %vm165, %v6844, 0
    %7045 = vmatprep.subr.mxu0 0.0
    %7046 = vmatpush1.msra.mxu0 %v6845
    %7047 = vmatprep.subr.mxu0 0.0
    %7048 = vmatpush1.msra.mxu0 %v6846
    %7049 = vmatprep.subr.mxu0 0.0
    %7050 = vmatpush1.msra.mxu0 %v6847
    %7051 = vmatprep.subr.mxu0 0.0
    %7052 = vmatpush1.msra.mxu0 %v6848
    %7053 = vmatprep.subr.mxu0 0.0
    %7054 = vmatpush1.msra.mxu0 %v6849
    %7055 = vmatprep.subr.mxu0 0.0
    %7056 = vmatpush1.msra.mxu0 %v6850
    %7057 = vmatprep.subr.mxu0 0.0
    %7058 = vmatpush1.msra.mxu0 %v6851
    %7059 = vmatprep.subr.mxu0 0.0
    %7060 = vmatpush1.msra.mxu0 %v6852
    %7061 = vmatprep.subr.mxu0 0.0
    %7062 = vmatpush1.msra.mxu0 0.0
    %7063 = vmatprep.subr.mxu0 0.0
    %7064 = vmatpush1.msra.mxu0 0.0
    %7065 = vmatprep.subr.mxu0 0.0
    %7066 = vmatpush1.msra.mxu0 0.0
    %7067 = vmatprep.subr.mxu0 0.0
    %7068 = vmatpush1.msra.mxu0 0.0
    %7069 = vmatprep.subr.mxu0 0.0
    %7070 = vmatpush1.msra.mxu0 0.0
    %7071 = vmatprep.subr.mxu0 0.0
    %7072 = vmatpush1.msra.mxu0 0.0
    %7073 = vmatprep.subr.mxu0 0.0
    %7074 = vmatpush1.msra.mxu0 0.0
    %7075 = vmatprep.subr.mxu0 0.0
    %7076 = vmatpush1.msra.mxu0 0.0
    %7077 = vmatprep.subr.mxu0 0.0
    %7078 = vmatpush1.msra.mxu0 0.0
    %7079 = vmatprep.subr.mxu0 0.0
    %7080 = vmatpush1.msra.mxu0 0.0
    %7081 = vmatprep.subr.mxu0 0.0
    %7082 = vmatpush1.msra.mxu0 0.0
    %7083 = vmatprep.subr.mxu0 0.0
    %7084 = vmatpush1.msra.mxu0 0.0
    %7085 = vmatprep.subr.mxu0 0.0
    %7086 = vmatpush1.msra.mxu0 0.0
    %7087 = vmatprep.subr.mxu0 0.0
    %7088 = vmatpush1.msra.mxu0 0.0
    %7089 = vmatprep.subr.mxu0 0.0
    %7090 = vmatpush1.msra.mxu0 0.0
    %7091 = vmatprep.subr.mxu0 0.0
    %7092 = vmatpush1.msra.mxu0 0.0
    %7093 = vmatprep.subr.mxu0 0.0
    %7094 = vmatpush1.msra.mxu0 0.0
    %7095 = vmatprep.subr.mxu0 0.0
    %7096 = vmatpush1.msra.mxu0 0.0
    %7097 = vmatprep.subr.mxu0 0.0
    %7098 = vmatpush1.msra.mxu0 0.0
    %7099 = vmatprep.subr.mxu0 0.0
    %7100 = vmatpush1.msra.mxu0 0.0
    %7101 = vmatprep.subr.mxu0 0.0
    %7102 = vmatpush1.msra.mxu0 0.0
    %7103 = vmatprep.subr.mxu0 0.0
    %7104 = vmatpush1.msra.mxu0 0.0
    %7105 = vmatprep.subr.mxu0 0.0
    %7106 = vmatpush1.msra.mxu0 0.0
    %7107 = vmatprep.subr.mxu0 0.0
    %7108 = vmatpush1.msra.mxu0 0.0
    %7109 = vmatprep.mubr.f32.mxu0 0.0
    %7110 = vmatmul.mubr.f32.gmra.mrb[0].mxu0 %v6854
    %v7111 = vpop.f32.mrb[0].mxu0
    %v7112 = vadd.f32 0.0, %v7111
    %v7113 = vpop.f32.mrb[0].mxu0
    %7114 = vmatprep.mubr.f32.mxu0 0.0
    %7115 = vmatmul.mubr.f32.gmra.mrb[0].mxu0 %v6857
    %v7116 = vpop.f32.mrb[0].mxu0
    %v7117 = vadd.f32 0.0, %v7116
    %v7118 = vpop.f32.mrb[0].mxu0
    %7119 = vmatprep.mubr.f32.mxu0 0.0
    %7120 = vmatmul.mubr.f32.gmra.mrb[0].mxu0 %v6860
    %v7121 = vpop.f32.mrb[0].mxu0
    %v7122 = vadd.f32 0.0, %v7121
    %v7123 = vpop.f32.mrb[0].mxu0
    %7124 = vmatprep.mubr.f32.mxu0 0.0
    %7125 = vmatmul.mubr.f32.gmra.mrb[0].mxu0 %v6863
    %v7126 = vpop.f32.mrb[0].mxu0
    %v7127 = vadd.f32 0.0, %v7126
    %v7128 = vpop.f32.mrb[0].mxu0
    %7129 = vmatprep.mubr.f32.mxu0 0.0
    %7130 = vmatmul.mubr.f32.gmra.mrb[0].mxu0 %v6866
    %v7131 = vpop.f32.mrb[0].mxu0
    %v7132 = vadd.f32 0.0, %v7131
    %v7133 = vpop.f32.mrb[0].mxu0
    %7134 = vmatprep.mubr.f32.mxu0 0.0
    %7135 = vmatmul.mubr.f32.gmra.mrb[0].mxu0 %v6869
    %v7136 = vpop.f32.mrb[0].mxu0
    %v7137 = vadd.f32 0.0, %v7136
    %v7138 = vpop.f32.mrb[0].mxu0
    %7139 = vmatprep.mubr.f32.mxu0 0.0
    %7140 = vmatmul.mubr.f32.gmra.mrb[0].mxu0 %v6872
    %v7141 = vpop.f32.mrb[0].mxu0
    %v7142 = vadd.f32 0.0, %v7141
    %v7143 = vpop.f32.mrb[0].mxu0
    %7144 = vmatprep.mubr.f32.mxu0 0.0
    %7145 = vmatmul.mubr.f32.gmra.mrb[0].mxu0 %v6875
    %v7146 = vpop.f32.mrb[0].mxu0
    %v7147 = vadd.f32 0.0, %v7146
    %v7148 = vpop.f32.mrb[0].mxu0
    %7149 = vmatprep.mubr.f32.mxu0 0.0
    %7150 = vmatmul.mubr.f32.gmra.mrb[0].mxu0 %v6878
    %v7151 = vpop.f32.mrb[0].mxu0
    %v7152 = vadd.f32 0.0, %v7151
    %v7153 = vpop.f32.mrb[0].mxu0
    %7154 = vmatprep.mubr.f32.mxu0 0.0
    %7155 = vmatmul.mubr.f32.gmra.mrb[0].mxu0 %v6881
    %v7156 = vpop.f32.mrb[0].mxu0
    %v7157 = vadd.f32 0.0, %v7156
    %v7158 = vpop.f32.mrb[0].mxu0
    %7159 = vmatprep.mubr.f32.mxu0 0.0
    %7160 = vmatmul.mubr.f32.gmra.mrb[0].mxu0 %v6884
    %v7161 = vpop.f32.mrb[0].mxu0
    %v7162 = vadd.f32 0.0, %v7161
    %v7163 = vpop.f32.mrb[0].mxu0
    %7164 = vmatprep.mubr.f32.mxu0 0.0
    %7165 = vmatmul.mubr.f32.gmra.mrb[0].mxu0 %v6887
    %v7166 = vpop.f32.mrb[0].mxu0
    %v7167 = vadd.f32 0.0, %v7166
    %v7168 = vpop.f32.mrb[0].mxu0
    %7169 = vmatprep.mubr.f32.mxu0 0.0
    %7170 = vmatmul.mubr.f32.gmra.mrb[0].mxu0 %v6890
    %v7171 = vpop.f32.mrb[0].mxu0
    %v7172 = vadd.f32 0.0, %v7171
    %v7173 = vpop.f32.mrb[0].mxu0
    %7174 = vmatprep.mubr.f32.mxu0 0.0
    %7175 = vmatmul.mubr.f32.gmra.mrb[0].mxu0 %v6893
    %v7176 = vpop.f32.mrb[0].mxu0
    %v7177 = vadd.f32 0.0, %v7176
    %v7178 = vpop.f32.mrb[0].mxu0
    %7179 = vmatprep.mubr.f32.mxu0 0.0
    %7180 = vmatmul.mubr.f32.gmra.mrb[0].mxu0 %v6896
    %v7181 = vpop.f32.mrb[0].mxu0
    %v7182 = vadd.f32 0.0, %v7181
    %v7183 = vpop.f32.mrb[0].mxu0
    %7184 = vmatprep.mubr.f32.mxu0 0.0
    %7185 = vmatmul.mubr.f32.gmra.mrb[0].mxu0 %v6899
    %v7186 = vpop.f32.mrb[0].mxu0
    %v7187 = vadd.f32 0.0, %v7186
    %v7188 = vpop.f32.mrb[0].mxu0
    %7189 = vmatprep.mubr.f32.mxu0 0.0
    %7190 = vmatmul.mubr.f32.gmra.mrb[0].mxu0 %v6902
    %v7191 = vpop.f32.mrb[0].mxu0
    %v7192 = vadd.f32 0.0, %v7191
    %v7193 = vpop.f32.mrb[0].mxu0
    %7194 = vmatprep.mubr.f32.mxu0 0.0
    %7195 = vmatmul.mubr.f32.gmra.mrb[0].mxu0 %v6905
    %v7196 = vpop.f32.mrb[0].mxu0
    %v7197 = vadd.f32 0.0, %v7196
    %v7198 = vpop.f32.mrb[0].mxu0
    %7199 = vmatprep.mubr.f32.mxu0 0.0
    %7200 = vmatmul.mubr.f32.gmra.mrb[0].mxu0 %v6908
    %v7201 = vpop.f32.mrb[0].mxu0
    %v7202 = vadd.f32 0.0, %v7201
    %v7203 = vpop.f32.mrb[0].mxu0
    %7204 = vmatprep.mubr.f32.mxu0 0.0
    %7205 = vmatmul.mubr.f32.gmra.mrb[0].mxu0 %v6911
    %v7206 = vpop.f32.mrb[0].mxu0
    %v7207 = vadd.f32 0.0, %v7206
    %v7208 = vpop.f32.mrb[0].mxu0
    %7209 = vmatprep.mubr.f32.mxu0 0.0
    %7210 = vmatmul.mubr.f32.gmra.mrb[0].mxu0 %v6914
    %v7211 = vpop.f32.mrb[0].mxu0
    %v7212 = vadd.f32 0.0, %v7211
    %v7213 = vpop.f32.mrb[0].mxu0
    %7214 = vmatprep.mubr.f32.mxu0 0.0
    %7215 = vmatmul.mubr.f32.gmra.mrb[0].mxu0 %v6917
    %v7216 = vpop.f32.mrb[0].mxu0
    %v7217 = vadd.f32 0.0, %v7216
    %v7218 = vpop.f32.mrb[0].mxu0
    %7219 = vmatprep.mubr.f32.mxu0 0.0
    %7220 = vmatmul.mubr.f32.gmra.mrb[0].mxu0 %v6920
    %v7221 = vpop.f32.mrb[0].mxu0
    %v7222 = vadd.f32 0.0, %v7221
    %v7223 = vpop.f32.mrb[0].mxu0
    %7224 = vmatprep.mubr.f32.mxu0 0.0
    %7225 = vmatmul.mubr.f32.gmra.mrb[0].mxu0 %v6923
    %v7226 = vpop.f32.mrb[0].mxu0
    %v7227 = vadd.f32 0.0, %v7226
    %v7228 = vpop.f32.mrb[0].mxu0
    %7229 = vmatprep.mubr.f32.mxu0 0.0
    %7230 = vmatmul.mubr.f32.gmra.mrb[0].mxu0 %v6926
    %v7231 = vpop.f32.mrb[0].mxu0
    %v7232 = vadd.f32 0.0, %v7231
    %v7233 = vpop.f32.mrb[0].mxu0
    %7234 = vmatprep.mubr.f32.mxu0 0.0
    %7235 = vmatmul.mubr.f32.gmra.mrb[0].mxu0 %v6929
    %v7236 = vpop.f32.mrb[0].mxu0
    %v7237 = vadd.f32 0.0, %v7236
    %v7238 = vpop.f32.mrb[0].mxu0
    %7239 = vmatprep.mubr.f32.mxu0 0.0
    %7240 = vmatmul.mubr.f32.gmra.mrb[0].mxu0 %v6932
    %v7241 = vpop.f32.mrb[0].mxu0
    %v7242 = vadd.f32 0.0, %v7241
    %v7243 = vpop.f32.mrb[0].mxu0
    %7244 = vmatprep.mubr.f32.mxu0 0.0
    %7245 = vmatmul.mubr.f32.gmra.mrb[0].mxu0 %v6935
    %v7246 = vpop.f32.mrb[0].mxu0
    %v7247 = vadd.f32 0.0, %v7246
    %v7248 = vpop.f32.mrb[0].mxu0
    %7249 = vmatprep.mubr.f32.mxu0 0.0
    %7250 = vmatmul.mubr.f32.gmra.mrb[0].mxu0 %v6938
    %v7251 = vpop.f32.mrb[0].mxu0
    %v7252 = vadd.f32 0.0, %v7251
    %v7253 = vpop.f32.mrb[0].mxu0
    %7254 = vmatprep.mubr.f32.mxu0 0.0
    %7255 = vmatmul.mubr.f32.gmra.mrb[0].mxu0 %v6941
    %v7256 = vpop.f32.mrb[0].mxu0
    %v7257 = vadd.f32 0.0, %v7256
    %v7258 = vpop.f32.mrb[0].mxu0
    %7259 = vmatprep.mubr.f32.mxu0 0.0
    %7260 = vmatmul.mubr.f32.gmra.mrb[0].mxu0 %v6944
    %v7261 = vpop.f32.mrb[0].mxu0
    %v7262 = vadd.f32 0.0, %v7261
    %v7263 = vpop.f32.mrb[0].mxu0
    %7264 = vmatprep.mubr.f32.mxu0 0.0
    %7265 = vmatmul.mubr.f32.gmra.mrb[0].mxu0 %v6947
    %v7266 = vpop.f32.mrb[0].mxu0
    %v7267 = vadd.f32 0.0, %v7266
    %v7268 = vpop.f32.mrb[0].mxu0
    %7269 = vmatprep.mubr.f32.mxu0 0.0
    %7270 = vmatmul.mubr.f32.gmra.mrb[0].mxu0 %v6950
    %v7271 = vpop.f32.mrb[0].mxu0
    %v7272 = vadd.f32 0.0, %v7271
    %v7273 = vpop.f32.mrb[0].mxu0
    %7274 = vmatprep.mubr.f32.mxu0 0.0
    %7275 = vmatmul.mubr.f32.gmra.mrb[0].mxu0 %v6953
    %v7276 = vpop.f32.mrb[0].mxu0
    %v7277 = vadd.f32 0.0, %v7276
    %v7278 = vpop.f32.mrb[0].mxu0
    %7279 = vmatprep.mubr.f32.mxu0 0.0
    %7280 = vmatmul.mubr.f32.gmra.mrb[0].mxu0 %v6956
    %v7281 = vpop.f32.mrb[0].mxu0
    %v7282 = vadd.f32 0.0, %v7281
    %v7283 = vpop.f32.mrb[0].mxu0
    %7284 = vmatprep.mubr.f32.mxu0 0.0
    %7285 = vmatmul.mubr.f32.gmra.mrb[0].mxu0 %v6959
    %v7286 = vpop.f32.mrb[0].mxu0
    %v7287 = vadd.f32 0.0, %v7286
    %v7288 = vpop.f32.mrb[0].mxu0
    %7289 = vmatprep.mubr.f32.mxu0 0.0
    %7290 = vmatmul.mubr.f32.gmra.mrb[0].mxu0 %v6962
    %v7291 = vpop.f32.mrb[0].mxu0
    %v7292 = vadd.f32 0.0, %v7291
    %v7293 = vpop.f32.mrb[0].mxu0
    %7294 = vmatprep.mubr.f32.mxu0 0.0
    %7295 = vmatmul.mubr.f32.gmra.mrb[0].mxu0 %v6965
    %v7296 = vpop.f32.mrb[0].mxu0
    %v7297 = vadd.f32 0.0, %v7296
    %v7298 = vpop.f32.mrb[0].mxu0
    %7299 = vmatprep.mubr.f32.mxu0 0.0
    %7300 = vmatmul.mubr.f32.gmra.mrb[0].mxu0 %v6968
    %v7301 = vpop.f32.mrb[0].mxu0
    %v7302 = vadd.f32 0.0, %v7301
    %v7303 = vpop.f32.mrb[0].mxu0
    %7304 = vmatprep.mubr.f32.mxu0 0.0
    %7305 = vmatmul.mubr.f32.gmra.mrb[0].mxu0 %v6971
    %v7306 = vpop.f32.mrb[0].mxu0
    %v7307 = vadd.f32 0.0, %v7306
    %v7308 = vpop.f32.mrb[0].mxu0
    %7309 = vmatprep.mubr.f32.mxu0 0.0
    %7310 = vmatmul.mubr.f32.gmra.mrb[0].mxu0 %v6974
    %v7311 = vpop.f32.mrb[0].mxu0
    %v7312 = vadd.f32 0.0, %v7311
    %v7313 = vpop.f32.mrb[0].mxu0
    %7314 = vmatprep.mubr.f32.mxu0 0.0
    %7315 = vmatmul.mubr.f32.gmra.mrb[0].mxu0 %v6977
    %v7316 = vpop.f32.mrb[0].mxu0
    %v7317 = vadd.f32 0.0, %v7316
    %v7318 = vpop.f32.mrb[0].mxu0
    %7319 = vmatprep.mubr.f32.mxu0 0.0
    %7320 = vmatmul.mubr.f32.gmra.mrb[0].mxu0 %v6980
    %v7321 = vpop.f32.mrb[0].mxu0
    %v7322 = vadd.f32 0.0, %v7321
    %v7323 = vpop.f32.mrb[0].mxu0
    %7324 = vmatprep.mubr.f32.mxu0 0.0
    %7325 = vmatmul.mubr.f32.gmra.mrb[0].mxu0 %v6983
    %v7326 = vpop.f32.mrb[0].mxu0
    %v7327 = vadd.f32 0.0, %v7326
    %v7328 = vpop.f32.mrb[0].mxu0
    %7329 = vmatprep.mubr.f32.mxu0 0.0
    %7330 = vmatmul.mubr.f32.gmra.mrb[0].mxu0 %v6986
    %v7331 = vpop.f32.mrb[0].mxu0
    %v7332 = vadd.f32 0.0, %v7331
    %v7333 = vpop.f32.mrb[0].mxu0
    %7334 = vmatprep.mubr.f32.mxu0 0.0
    %7335 = vmatmul.mubr.f32.gmra.mrb[0].mxu0 %v6989
    %v7336 = vpop.f32.mrb[0].mxu0
    %v7337 = vadd.f32 0.0, %v7336
    %v7338 = vpop.f32.mrb[0].mxu0
    %7339 = vmatprep.mubr.f32.mxu0 0.0
    %7340 = vmatmul.mubr.f32.gmra.mrb[0].mxu0 %v6992
    %v7341 = vpop.f32.mrb[0].mxu0
    %v7342 = vadd.f32 0.0, %v7341
    %v7343 = vpop.f32.mrb[0].mxu0
    %7344 = vmatprep.mubr.f32.mxu0 0.0
    %7345 = vmatmul.mubr.f32.gmra.mrb[0].mxu0 %v6995
    %v7346 = vpop.f32.mrb[0].mxu0
    %v7347 = vadd.f32 0.0, %v7346
    %v7348 = vpop.f32.mrb[0].mxu0
    %7349 = vmatprep.mubr.f32.mxu0 0.0
    %7350 = vmatmul.mubr.f32.gmra.mrb[0].mxu0 %v6998
    %v7351 = vpop.f32.mrb[0].mxu0
    %v7352 = vadd.f32 0.0, %v7351
    %v7353 = vpop.f32.mrb[0].mxu0
    %7354 = vmatprep.mubr.f32.mxu0 0.0
    %7355 = vmatmul.mubr.f32.gmra.mrb[0].mxu0 %v7001
    %v7356 = vpop.f32.mrb[0].mxu0
    %v7357 = vadd.f32 0.0, %v7356
    %v7358 = vpop.f32.mrb[0].mxu0
    %7359 = vmatprep.mubr.f32.mxu0 0.0
    %7360 = vmatmul.mubr.f32.gmra.mrb[0].mxu0 %v7004
    %v7361 = vpop.f32.mrb[0].mxu0
    %v7362 = vadd.f32 0.0, %v7361
    %v7363 = vpop.f32.mrb[0].mxu0
    %7364 = vmatprep.mubr.f32.mxu0 0.0
    %7365 = vmatmul.mubr.f32.gmra.mrb[0].mxu0 %v7007
    %v7366 = vpop.f32.mrb[0].mxu0
    %v7367 = vadd.f32 0.0, %v7366
    %v7368 = vpop.f32.mrb[0].mxu0
    %7369 = vmatprep.mubr.f32.mxu0 0.0
    %7370 = vmatmul.mubr.f32.gmra.mrb[0].mxu0 %v7010
    %v7371 = vpop.f32.mrb[0].mxu0
    %v7372 = vadd.f32 0.0, %v7371
    %v7373 = vpop.f32.mrb[0].mxu0
    %7374 = vmatprep.mubr.f32.mxu0 0.0
    %7375 = vmatmul.mubr.f32.gmra.mrb[0].mxu0 %v7013
    %v7376 = vpop.f32.mrb[0].mxu0
    %v7377 = vadd.f32 0.0, %v7376
    %v7378 = vpop.f32.mrb[0].mxu0
    %7379 = vmatprep.mubr.f32.mxu0 0.0
    %7380 = vmatmul.mubr.f32.gmra.mrb[0].mxu0 %v7016
    %v7381 = vpop.f32.mrb[0].mxu0
    %v7382 = vadd.f32 0.0, %v7381
    %v7383 = vpop.f32.mrb[0].mxu0
    %7384 = vmatprep.mubr.f32.mxu0 0.0
    %7385 = vmatmul.mubr.f32.gmra.mrb[0].mxu0 %v7019
    %v7386 = vpop.f32.mrb[0].mxu0
    %v7387 = vadd.f32 0.0, %v7386
    %v7388 = vpop.f32.mrb[0].mxu0
    %7389 = vmatprep.mubr.f32.mxu0 0.0
    %7390 = vmatmul.mubr.f32.gmra.mrb[0].mxu0 %v7022
    %v7391 = vpop.f32.mrb[0].mxu0
    %v7392 = vadd.f32 0.0, %v7391
    %v7393 = vpop.f32.mrb[0].mxu0
    %7394 = vmatprep.mubr.f32.mxu0 0.0
    %7395 = vmatmul.mubr.f32.gmra.mrb[0].mxu0 %v7025
    %v7396 = vpop.f32.mrb[0].mxu0
    %v7397 = vadd.f32 0.0, %v7396
    %v7398 = vpop.f32.mrb[0].mxu0
    %7399 = vmatprep.mubr.f32.mxu0 0.0
    %7400 = vmatmul.mubr.f32.gmra.mrb[0].mxu0 %v7028
    %v7401 = vpop.f32.mrb[0].mxu0
    %v7402 = vadd.f32 0.0, %v7401
    %v7403 = vpop.f32.mrb[0].mxu0
    %7404 = vmatprep.mubr.f32.mxu0 0.0
    %7405 = vmatmul.mubr.f32.gmra.mrb[0].mxu0 %v7031
    %v7406 = vpop.f32.mrb[0].mxu0
    %v7407 = vadd.f32 0.0, %v7406
    %v7408 = vpop.f32.mrb[0].mxu0
    %7409 = vmatprep.mubr.f32.mxu0 0.0
    %7410 = vmatmul.mubr.f32.gmra.mrb[0].mxu0 %v7034
    %v7411 = vpop.f32.mrb[0].mxu0
    %v7412 = vadd.f32 0.0, %v7411
    %v7413 = vpop.f32.mrb[0].mxu0
    %7414 = vmatprep.mubr.f32.mxu0 0.0
    %7415 = vmatmul.mubr.f32.gmra.mrb[0].mxu0 %v7037
    %v7416 = vpop.f32.mrb[0].mxu0
    %v7417 = vadd.f32 0.0, %v7416
    %v7418 = vpop.f32.mrb[0].mxu0
    %7419 = vmatprep.mubr.f32.mxu0 0.0
    %7420 = vmatmul.mubr.f32.gmra.mrb[0].mxu0 %v7040
    %v7421 = vpop.f32.mrb[0].mxu0
    %v7422 = vadd.f32 0.0, %v7421
    %v7423 = vpop.f32.mrb[0].mxu0
    %7424 = vmatprep.mubr.f32.mxu0 0.0
    %7425 = vmatmul.mubr.f32.gmra.mrb[0].mxu0 %v7043
    %v7426 = vpop.f32.mrb[0].mxu0
    %v7427 = vadd.f32 0.0, %v7426
    %v7428 = vpop.f32.mrb[0].mxu0
    %7429 = vdwg.mxu0
    %v7431 = vsel %vm165, %v6708, 0
    %v7434 = vsel %vm165, %v6709, 0
    %v7437 = vsel %vm165, %v6710, 0
    %v7440 = vsel %vm165, %v6711, 0
    %v7443 = vsel %vm165, %v6712, 0
    %v7446 = vsel %vm165, %v6713, 0
    %v7449 = vsel %vm165, %v6714, 0
    %v7452 = vsel %vm165, %v6715, 0
    %v7455 = vsel %vm165, %v6716, 0
    %v7458 = vsel %vm165, %v6717, 0
    %v7461 = vsel %vm165, %v6718, 0
    %v7464 = vsel %vm165, %v6719, 0
    %v7467 = vsel %vm165, %v6720, 0
    %v7470 = vsel %vm165, %v6721, 0
    %v7473 = vsel %vm165, %v6722, 0
    %v7476 = vsel %vm165, %v6723, 0
    %v7479 = vsel %vm165, %v6724, 0
    %v7482 = vsel %vm165, %v6725, 0
    %v7485 = vsel %vm165, %v6726, 0
    %v7488 = vsel %vm165, %v6727, 0
    %v7491 = vsel %vm165, %v6728, 0
    %v7494 = vsel %vm165, %v6729, 0
    %v7497 = vsel %vm165, %v6730, 0
    %v7500 = vsel %vm165, %v6731, 0
    %v7503 = vsel %vm165, %v6732, 0
    %v7506 = vsel %vm165, %v6733, 0
    %v7509 = vsel %vm165, %v6734, 0
    %v7512 = vsel %vm165, %v6735, 0
    %v7515 = vsel %vm165, %v6736, 0
    %v7518 = vsel %vm165, %v6737, 0
    %v7521 = vsel %vm165, %v6738, 0
    %v7524 = vsel %vm165, %v6739, 0
    %v7527 = vsel %vm165, %v6740, 0
    %v7530 = vsel %vm165, %v6741, 0
    %v7533 = vsel %vm165, %v6742, 0
    %v7536 = vsel %vm165, %v6743, 0
    %v7539 = vsel %vm165, %v6744, 0
    %v7542 = vsel %vm165, %v6745, 0
    %v7545 = vsel %vm165, %v6746, 0
    %v7548 = vsel %vm165, %v6747, 0
    %v7551 = vsel %vm165, %v6748, 0
    %v7554 = vsel %vm165, %v6749, 0
    %v7557 = vsel %vm165, %v6750, 0
    %v7560 = vsel %vm165, %v6751, 0
    %v7563 = vsel %vm165, %v6752, 0
    %v7566 = vsel %vm165, %v6753, 0
    %v7569 = vsel %vm165, %v6754, 0
    %v7572 = vsel %vm165, %v6755, 0
    %v7575 = vsel %vm165, %v6756, 0
    %v7578 = vsel %vm165, %v6757, 0
    %v7581 = vsel %vm165, %v6758, 0
    %v7584 = vsel %vm165, %v6759, 0
    %v7587 = vsel %vm165, %v6760, 0
    %v7590 = vsel %vm165, %v6761, 0
    %v7593 = vsel %vm165, %v6762, 0
    %v7596 = vsel %vm165, %v6763, 0
    %v7599 = vsel %vm165, %v6764, 0
    %v7602 = vsel %vm165, %v6765, 0
    %v7605 = vsel %vm165, %v6766, 0
    %v7608 = vsel %vm165, %v6767, 0
    %v7611 = vsel %vm165, %v6768, 0
    %v7614 = vsel %vm165, %v6769, 0
    %v7617 = vsel %vm165, %v6770, 0
    %v7620 = vsel %vm165, %v6771, 0
    %7622 = vmatprep.subr.mxu0 0.0
    %7623 = vmatpush1.msra.mxu0 %v6772
    %7624 = vmatprep.subr.mxu0 0.0
    %7625 = vmatpush1.msra.mxu0 %v6773
    %7626 = vmatprep.subr.mxu0 0.0
    %7627 = vmatpush1.msra.mxu0 %v6774
    %7628 = vmatprep.subr.mxu0 0.0
    %7629 = vmatpush1.msra.mxu0 %v6775
    %7630 = vmatprep.subr.mxu0 0.0
    %7631 = vmatpush1.msra.mxu0 %v6776
    %7632 = vmatprep.subr.mxu0 0.0
    %7633 = vmatpush1.msra.mxu0 %v6777
    %7634 = vmatprep.subr.mxu0 0.0
    %7635 = vmatpush1.msra.mxu0 %v6778
    %7636 = vmatprep.subr.mxu0 0.0
    %7637 = vmatpush1.msra.mxu0 %v6779
    %7638 = vmatprep.subr.mxu0 0.0
    %7639 = vmatpush1.msra.mxu0 0.0
    %7640 = vmatprep.subr.mxu0 0.0
    %7641 = vmatpush1.msra.mxu0 0.0
    %7642 = vmatprep.subr.mxu0 0.0
    %7643 = vmatpush1.msra.mxu0 0.0
    %7644 = vmatprep.subr.mxu0 0.0
    %7645 = vmatpush1.msra.mxu0 0.0
    %7646 = vmatprep.subr.mxu0 0.0
    %7647 = vmatpush1.msra.mxu0 0.0
    %7648 = vmatprep.subr.mxu0 0.0
    %7649 = vmatpush1.msra.mxu0 0.0
    %7650 = vmatprep.subr.mxu0 0.0
    %7651 = vmatpush1.msra.mxu0 0.0
    %7652 = vmatprep.subr.mxu0 0.0
    %7653 = vmatpush1.msra.mxu0 0.0
    %7654 = vmatprep.subr.mxu0 0.0
    %7655 = vmatpush1.msra.mxu0 0.0
    %7656 = vmatprep.subr.mxu0 0.0
    %7657 = vmatpush1.msra.mxu0 0.0
    %7658 = vmatprep.subr.mxu0 0.0
    %7659 = vmatpush1.msra.mxu0 0.0
    %7660 = vmatprep.subr.mxu0 0.0
    %7661 = vmatpush1.msra.mxu0 0.0
    %7662 = vmatprep.subr.mxu0 0.0
    %7663 = vmatpush1.msra.mxu0 0.0
    %7664 = vmatprep.subr.mxu0 0.0
    %7665 = vmatpush1.msra.mxu0 0.0
    %7666 = vmatprep.subr.mxu0 0.0
    %7667 = vmatpush1.msra.mxu0 0.0
    %7668 = vmatprep.subr.mxu0 0.0
    %7669 = vmatpush1.msra.mxu0 0.0
    %7670 = vmatprep.subr.mxu0 0.0
    %7671 = vmatpush1.msra.mxu0 0.0
    %7672 = vmatprep.subr.mxu0 0.0
    %7673 = vmatpush1.msra.mxu0 0.0
    %7674 = vmatprep.subr.mxu0 0.0
    %7675 = vmatpush1.msra.mxu0 0.0
    %7676 = vmatprep.subr.mxu0 0.0
    %7677 = vmatpush1.msra.mxu0 0.0
    %7678 = vmatprep.subr.mxu0 0.0
    %7679 = vmatpush1.msra.mxu0 0.0
    %7680 = vmatprep.subr.mxu0 0.0
    %7681 = vmatpush1.msra.mxu0 0.0
    %7682 = vmatprep.subr.mxu0 0.0
    %7683 = vmatpush1.msra.mxu0 0.0
    %7684 = vmatprep.subr.mxu0 0.0
    %7685 = vmatpush1.msra.mxu0 0.0
    %7686 = vmatprep.mubr.f32.mxu0 0.0
    %7687 = vmatmul.mubr.f32.gmra.mrb[0].mxu0 %v7431
    %v7688 = vpop.f32.mrb[0].mxu0
    %v7689 = vadd.f32 %v7112, %v7688
    %v7690 = vpop.f32.mrb[0].mxu0
    %7691 = vmatprep.mubr.f32.mxu0 0.0
    %7692 = vmatmul.mubr.f32.gmra.mrb[0].mxu0 %v7434
    %v7693 = vpop.f32.mrb[0].mxu0
    %v7694 = vadd.f32 %v7117, %v7693
    %v7695 = vpop.f32.mrb[0].mxu0
    %7696 = vmatprep.mubr.f32.mxu0 0.0
    %7697 = vmatmul.mubr.f32.gmra.mrb[0].mxu0 %v7437
    %v7698 = vpop.f32.mrb[0].mxu0
    %v7699 = vadd.f32 %v7122, %v7698
    %v7700 = vpop.f32.mrb[0].mxu0
    %7701 = vmatprep.mubr.f32.mxu0 0.0
    %7702 = vmatmul.mubr.f32.gmra.mrb[0].mxu0 %v7440
    %v7703 = vpop.f32.mrb[0].mxu0
    %v7704 = vadd.f32 %v7127, %v7703
    %v7705 = vpop.f32.mrb[0].mxu0
    %7706 = vmatprep.mubr.f32.mxu0 0.0
    %7707 = vmatmul.mubr.f32.gmra.mrb[0].mxu0 %v7443
    %v7708 = vpop.f32.mrb[0].mxu0
    %v7709 = vadd.f32 %v7132, %v7708
    %v7710 = vpop.f32.mrb[0].mxu0
    %7711 = vmatprep.mubr.f32.mxu0 0.0
    %7712 = vmatmul.mubr.f32.gmra.mrb[0].mxu0 %v7446
    %v7713 = vpop.f32.mrb[0].mxu0
    %v7714 = vadd.f32 %v7137, %v7713
    %v7715 = vpop.f32.mrb[0].mxu0
    %7716 = vmatprep.mubr.f32.mxu0 0.0
    %7717 = vmatmul.mubr.f32.gmra.mrb[0].mxu0 %v7449
    %v7718 = vpop.f32.mrb[0].mxu0
    %v7719 = vadd.f32 %v7142, %v7718
    %v7720 = vpop.f32.mrb[0].mxu0
    %7721 = vmatprep.mubr.f32.mxu0 0.0
    %7722 = vmatmul.mubr.f32.gmra.mrb[0].mxu0 %v7452
    %v7723 = vpop.f32.mrb[0].mxu0
    %v7724 = vadd.f32 %v7147, %v7723
    %v7725 = vpop.f32.mrb[0].mxu0
    %7726 = vmatprep.mubr.f32.mxu0 0.0
    %7727 = vmatmul.mubr.f32.gmra.mrb[0].mxu0 %v7455
    %v7728 = vpop.f32.mrb[0].mxu0
    %v7729 = vadd.f32 %v7152, %v7728
    %v7730 = vpop.f32.mrb[0].mxu0
    %7731 = vmatprep.mubr.f32.mxu0 0.0
    %7732 = vmatmul.mubr.f32.gmra.mrb[0].mxu0 %v7458
    %v7733 = vpop.f32.mrb[0].mxu0
    %v7734 = vadd.f32 %v7157, %v7733
    %v7735 = vpop.f32.mrb[0].mxu0
    %7736 = vmatprep.mubr.f32.mxu0 0.0
    %7737 = vmatmul.mubr.f32.gmra.mrb[0].mxu0 %v7461
    %v7738 = vpop.f32.mrb[0].mxu0
    %v7739 = vadd.f32 %v7162, %v7738
    %v7740 = vpop.f32.mrb[0].mxu0
    %7741 = vmatprep.mubr.f32.mxu0 0.0
    %7742 = vmatmul.mubr.f32.gmra.mrb[0].mxu0 %v7464
    %v7743 = vpop.f32.mrb[0].mxu0
    %v7744 = vadd.f32 %v7167, %v7743
    %v7745 = vpop.f32.mrb[0].mxu0
    %7746 = vmatprep.mubr.f32.mxu0 0.0
    %7747 = vmatmul.mubr.f32.gmra.mrb[0].mxu0 %v7467
    %v7748 = vpop.f32.mrb[0].mxu0
    %v7749 = vadd.f32 %v7172, %v7748
    %v7750 = vpop.f32.mrb[0].mxu0
    %7751 = vmatprep.mubr.f32.mxu0 0.0
    %7752 = vmatmul.mubr.f32.gmra.mrb[0].mxu0 %v7470
    %v7753 = vpop.f32.mrb[0].mxu0
    %v7754 = vadd.f32 %v7177, %v7753
    %v7755 = vpop.f32.mrb[0].mxu0
    %7756 = vmatprep.mubr.f32.mxu0 0.0
    %7757 = vmatmul.mubr.f32.gmra.mrb[0].mxu0 %v7473
    %v7758 = vpop.f32.mrb[0].mxu0
    %v7759 = vadd.f32 %v7182, %v7758
    %v7760 = vpop.f32.mrb[0].mxu0
    %7761 = vmatprep.mubr.f32.mxu0 0.0
    %7762 = vmatmul.mubr.f32.gmra.mrb[0].mxu0 %v7476
    %v7763 = vpop.f32.mrb[0].mxu0
    %v7764 = vadd.f32 %v7187, %v7763
    %v7765 = vpop.f32.mrb[0].mxu0
    %7766 = vmatprep.mubr.f32.mxu0 0.0
    %7767 = vmatmul.mubr.f32.gmra.mrb[0].mxu0 %v7479
    %v7768 = vpop.f32.mrb[0].mxu0
    %v7769 = vadd.f32 %v7192, %v7768
    %v7770 = vpop.f32.mrb[0].mxu0
    %7771 = vmatprep.mubr.f32.mxu0 0.0
    %7772 = vmatmul.mubr.f32.gmra.mrb[0].mxu0 %v7482
    %v7773 = vpop.f32.mrb[0].mxu0
    %v7774 = vadd.f32 %v7197, %v7773
    %v7775 = vpop.f32.mrb[0].mxu0
    %7776 = vmatprep.mubr.f32.mxu0 0.0
    %7777 = vmatmul.mubr.f32.gmra.mrb[0].mxu0 %v7485
    %v7778 = vpop.f32.mrb[0].mxu0
    %v7779 = vadd.f32 %v7202, %v7778
    %v7780 = vpop.f32.mrb[0].mxu0
    %7781 = vmatprep.mubr.f32.mxu0 0.0
    %7782 = vmatmul.mubr.f32.gmra.mrb[0].mxu0 %v7488
    %v7783 = vpop.f32.mrb[0].mxu0
    %v7784 = vadd.f32 %v7207, %v7783
    %v7785 = vpop.f32.mrb[0].mxu0
    %7786 = vmatprep.mubr.f32.mxu0 0.0
    %7787 = vmatmul.mubr.f32.gmra.mrb[0].mxu0 %v7491
    %v7788 = vpop.f32.mrb[0].mxu0
    %v7789 = vadd.f32 %v7212, %v7788
    %v7790 = vpop.f32.mrb[0].mxu0
    %7791 = vmatprep.mubr.f32.mxu0 0.0
    %7792 = vmatmul.mubr.f32.gmra.mrb[0].mxu0 %v7494
    %v7793 = vpop.f32.mrb[0].mxu0
    %v7794 = vadd.f32 %v7217, %v7793
    %v7795 = vpop.f32.mrb[0].mxu0
    %7796 = vmatprep.mubr.f32.mxu0 0.0
    %7797 = vmatmul.mubr.f32.gmra.mrb[0].mxu0 %v7497
    %v7798 = vpop.f32.mrb[0].mxu0
    %v7799 = vadd.f32 %v7222, %v7798
    %v7800 = vpop.f32.mrb[0].mxu0
    %7801 = vmatprep.mubr.f32.mxu0 0.0
    %7802 = vmatmul.mubr.f32.gmra.mrb[0].mxu0 %v7500
    %v7803 = vpop.f32.mrb[0].mxu0
    %v7804 = vadd.f32 %v7227, %v7803
    %v7805 = vpop.f32.mrb[0].mxu0
    %7806 = vmatprep.mubr.f32.mxu0 0.0
    %7807 = vmatmul.mubr.f32.gmra.mrb[0].mxu0 %v7503
    %v7808 = vpop.f32.mrb[0].mxu0
    %v7809 = vadd.f32 %v7232, %v7808
    %v7810 = vpop.f32.mrb[0].mxu0
    %7811 = vmatprep.mubr.f32.mxu0 0.0
    %7812 = vmatmul.mubr.f32.gmra.mrb[0].mxu0 %v7506
    %v7813 = vpop.f32.mrb[0].mxu0
    %v7814 = vadd.f32 %v7237, %v7813
    %v7815 = vpop.f32.mrb[0].mxu0
    %7816 = vmatprep.mubr.f32.mxu0 0.0
    %7817 = vmatmul.mubr.f32.gmra.mrb[0].mxu0 %v7509
    %v7818 = vpop.f32.mrb[0].mxu0
    %v7819 = vadd.f32 %v7242, %v7818
    %v7820 = vpop.f32.mrb[0].mxu0
    %7821 = vmatprep.mubr.f32.mxu0 0.0
    %7822 = vmatmul.mubr.f32.gmra.mrb[0].mxu0 %v7512
    %v7823 = vpop.f32.mrb[0].mxu0
    %v7824 = vadd.f32 %v7247, %v7823
    %v7825 = vpop.f32.mrb[0].mxu0
    %7826 = vmatprep.mubr.f32.mxu0 0.0
    %7827 = vmatmul.mubr.f32.gmra.mrb[0].mxu0 %v7515
    %v7828 = vpop.f32.mrb[0].mxu0
    %v7829 = vadd.f32 %v7252, %v7828
    %v7830 = vpop.f32.mrb[0].mxu0
    %7831 = vmatprep.mubr.f32.mxu0 0.0
    %7832 = vmatmul.mubr.f32.gmra.mrb[0].mxu0 %v7518
    %v7833 = vpop.f32.mrb[0].mxu0
    %v7834 = vadd.f32 %v7257, %v7833
    %v7835 = vpop.f32.mrb[0].mxu0
    %7836 = vmatprep.mubr.f32.mxu0 0.0
    %7837 = vmatmul.mubr.f32.gmra.mrb[0].mxu0 %v7521
    %v7838 = vpop.f32.mrb[0].mxu0
    %v7839 = vadd.f32 %v7262, %v7838
    %v7840 = vpop.f32.mrb[0].mxu0
    %7841 = vmatprep.mubr.f32.mxu0 0.0
    %7842 = vmatmul.mubr.f32.gmra.mrb[0].mxu0 %v7524
    %v7843 = vpop.f32.mrb[0].mxu0
    %v7844 = vadd.f32 %v7267, %v7843
    %v7845 = vpop.f32.mrb[0].mxu0
    %7846 = vmatprep.mubr.f32.mxu0 0.0
    %7847 = vmatmul.mubr.f32.gmra.mrb[0].mxu0 %v7527
    %v7848 = vpop.f32.mrb[0].mxu0
    %v7849 = vadd.f32 %v7272, %v7848
    %v7850 = vpop.f32.mrb[0].mxu0
    %7851 = vmatprep.mubr.f32.mxu0 0.0
    %7852 = vmatmul.mubr.f32.gmra.mrb[0].mxu0 %v7530
    %v7853 = vpop.f32.mrb[0].mxu0
    %v7854 = vadd.f32 %v7277, %v7853
    %v7855 = vpop.f32.mrb[0].mxu0
    %7856 = vmatprep.mubr.f32.mxu0 0.0
    %7857 = vmatmul.mubr.f32.gmra.mrb[0].mxu0 %v7533
    %v7858 = vpop.f32.mrb[0].mxu0
    %v7859 = vadd.f32 %v7282, %v7858
    %v7860 = vpop.f32.mrb[0].mxu0
    %7861 = vmatprep.mubr.f32.mxu0 0.0
    %7862 = vmatmul.mubr.f32.gmra.mrb[0].mxu0 %v7536
    %v7863 = vpop.f32.mrb[0].mxu0
    %v7864 = vadd.f32 %v7287, %v7863
    %v7865 = vpop.f32.mrb[0].mxu0
    %7866 = vmatprep.mubr.f32.mxu0 0.0
    %7867 = vmatmul.mubr.f32.gmra.mrb[0].mxu0 %v7539
    %v7868 = vpop.f32.mrb[0].mxu0
    %v7869 = vadd.f32 %v7292, %v7868
    %v7870 = vpop.f32.mrb[0].mxu0
    %7871 = vmatprep.mubr.f32.mxu0 0.0
    %7872 = vmatmul.mubr.f32.gmra.mrb[0].mxu0 %v7542
    %v7873 = vpop.f32.mrb[0].mxu0
    %v7874 = vadd.f32 %v7297, %v7873
    %v7875 = vpop.f32.mrb[0].mxu0
    %7876 = vmatprep.mubr.f32.mxu0 0.0
    %7877 = vmatmul.mubr.f32.gmra.mrb[0].mxu0 %v7545
    %v7878 = vpop.f32.mrb[0].mxu0
    %v7879 = vadd.f32 %v7302, %v7878
    %v7880 = vpop.f32.mrb[0].mxu0
    %7881 = vmatprep.mubr.f32.mxu0 0.0
    %7882 = vmatmul.mubr.f32.gmra.mrb[0].mxu0 %v7548
    %v7883 = vpop.f32.mrb[0].mxu0
    %v7884 = vadd.f32 %v7307, %v7883
    %v7885 = vpop.f32.mrb[0].mxu0
    %7886 = vmatprep.mubr.f32.mxu0 0.0
    %7887 = vmatmul.mubr.f32.gmra.mrb[0].mxu0 %v7551
    %v7888 = vpop.f32.mrb[0].mxu0
    %v7889 = vadd.f32 %v7312, %v7888
    %v7890 = vpop.f32.mrb[0].mxu0
    %7891 = vmatprep.mubr.f32.mxu0 0.0
    %7892 = vmatmul.mubr.f32.gmra.mrb[0].mxu0 %v7554
    %v7893 = vpop.f32.mrb[0].mxu0
    %v7894 = vadd.f32 %v7317, %v7893
    %v7895 = vpop.f32.mrb[0].mxu0
    %7896 = vmatprep.mubr.f32.mxu0 0.0
    %7897 = vmatmul.mubr.f32.gmra.mrb[0].mxu0 %v7557
    %v7898 = vpop.f32.mrb[0].mxu0
    %v7899 = vadd.f32 %v7322, %v7898
    %v7900 = vpop.f32.mrb[0].mxu0
    %7901 = vmatprep.mubr.f32.mxu0 0.0
    %7902 = vmatmul.mubr.f32.gmra.mrb[0].mxu0 %v7560
    %v7903 = vpop.f32.mrb[0].mxu0
    %v7904 = vadd.f32 %v7327, %v7903
    %v7905 = vpop.f32.mrb[0].mxu0
    %7906 = vmatprep.mubr.f32.mxu0 0.0
    %7907 = vmatmul.mubr.f32.gmra.mrb[0].mxu0 %v7563
    %v7908 = vpop.f32.mrb[0].mxu0
    %v7909 = vadd.f32 %v7332, %v7908
    %v7910 = vpop.f32.mrb[0].mxu0
    %7911 = vmatprep.mubr.f32.mxu0 0.0
    %7912 = vmatmul.mubr.f32.gmra.mrb[0].mxu0 %v7566
    %v7913 = vpop.f32.mrb[0].mxu0
    %v7914 = vadd.f32 %v7337, %v7913
    %v7915 = vpop.f32.mrb[0].mxu0
    %7916 = vmatprep.mubr.f32.mxu0 0.0
    %7917 = vmatmul.mubr.f32.gmra.mrb[0].mxu0 %v7569
    %v7918 = vpop.f32.mrb[0].mxu0
    %v7919 = vadd.f32 %v7342, %v7918
    %v7920 = vpop.f32.mrb[0].mxu0
    %7921 = vmatprep.mubr.f32.mxu0 0.0
    %7922 = vmatmul.mubr.f32.gmra.mrb[0].mxu0 %v7572
    %v7923 = vpop.f32.mrb[0].mxu0
    %v7924 = vadd.f32 %v7347, %v7923
    %v7925 = vpop.f32.mrb[0].mxu0
    %7926 = vmatprep.mubr.f32.mxu0 0.0
    %7927 = vmatmul.mubr.f32.gmra.mrb[0].mxu0 %v7575
    %v7928 = vpop.f32.mrb[0].mxu0
    %v7929 = vadd.f32 %v7352, %v7928
    %v7930 = vpop.f32.mrb[0].mxu0
    %7931 = vmatprep.mubr.f32.mxu0 0.0
    %7932 = vmatmul.mubr.f32.gmra.mrb[0].mxu0 %v7578
    %v7933 = vpop.f32.mrb[0].mxu0
    %v7934 = vadd.f32 %v7357, %v7933
    %v7935 = vpop.f32.mrb[0].mxu0
    %7936 = vmatprep.mubr.f32.mxu0 0.0
    %7937 = vmatmul.mubr.f32.gmra.mrb[0].mxu0 %v7581
    %v7938 = vpop.f32.mrb[0].mxu0
    %v7939 = vadd.f32 %v7362, %v7938
    %v7940 = vpop.f32.mrb[0].mxu0
    %7941 = vmatprep.mubr.f32.mxu0 0.0
    %7942 = vmatmul.mubr.f32.gmra.mrb[0].mxu0 %v7584
    %v7943 = vpop.f32.mrb[0].mxu0
    %v7944 = vadd.f32 %v7367, %v7943
    %v7945 = vpop.f32.mrb[0].mxu0
    %7946 = vmatprep.mubr.f32.mxu0 0.0
    %7947 = vmatmul.mubr.f32.gmra.mrb[0].mxu0 %v7587
    %v7948 = vpop.f32.mrb[0].mxu0
    %v7949 = vadd.f32 %v7372, %v7948
    %v7950 = vpop.f32.mrb[0].mxu0
    %7951 = vmatprep.mubr.f32.mxu0 0.0
    %7952 = vmatmul.mubr.f32.gmra.mrb[0].mxu0 %v7590
    %v7953 = vpop.f32.mrb[0].mxu0
    %v7954 = vadd.f32 %v7377, %v7953
    %v7955 = vpop.f32.mrb[0].mxu0
    %7956 = vmatprep.mubr.f32.mxu0 0.0
    %7957 = vmatmul.mubr.f32.gmra.mrb[0].mxu0 %v7593
    %v7958 = vpop.f32.mrb[0].mxu0
    %v7959 = vadd.f32 %v7382, %v7958
    %v7960 = vpop.f32.mrb[0].mxu0
    %7961 = vmatprep.mubr.f32.mxu0 0.0
    %7962 = vmatmul.mubr.f32.gmra.mrb[0].mxu0 %v7596
    %v7963 = vpop.f32.mrb[0].mxu0
    %v7964 = vadd.f32 %v7387, %v7963
    %v7965 = vpop.f32.mrb[0].mxu0
    %7966 = vmatprep.mubr.f32.mxu0 0.0
    %7967 = vmatmul.mubr.f32.gmra.mrb[0].mxu0 %v7599
    %v7968 = vpop.f32.mrb[0].mxu0
    %v7969 = vadd.f32 %v7392, %v7968
    %v7970 = vpop.f32.mrb[0].mxu0
    %7971 = vmatprep.mubr.f32.mxu0 0.0
    %7972 = vmatmul.mubr.f32.gmra.mrb[0].mxu0 %v7602
    %v7973 = vpop.f32.mrb[0].mxu0
    %v7974 = vadd.f32 %v7397, %v7973
    %v7975 = vpop.f32.mrb[0].mxu0
    %7976 = vmatprep.mubr.f32.mxu0 0.0
    %7977 = vmatmul.mubr.f32.gmra.mrb[0].mxu0 %v7605
    %v7978 = vpop.f32.mrb[0].mxu0
    %v7979 = vadd.f32 %v7402, %v7978
    %v7980 = vpop.f32.mrb[0].mxu0
    %7981 = vmatprep.mubr.f32.mxu0 0.0
    %7982 = vmatmul.mubr.f32.gmra.mrb[0].mxu0 %v7608
    %v7983 = vpop.f32.mrb[0].mxu0
    %v7984 = vadd.f32 %v7407, %v7983
    %v7985 = vpop.f32.mrb[0].mxu0
    %7986 = vmatprep.mubr.f32.mxu0 0.0
    %7987 = vmatmul.mubr.f32.gmra.mrb[0].mxu0 %v7611
    %v7988 = vpop.f32.mrb[0].mxu0
    %v7989 = vadd.f32 %v7412, %v7988
    %v7990 = vpop.f32.mrb[0].mxu0
    %7991 = vmatprep.mubr.f32.mxu0 0.0
    %7992 = vmatmul.mubr.f32.gmra.mrb[0].mxu0 %v7614
    %v7993 = vpop.f32.mrb[0].mxu0
    %v7994 = vadd.f32 %v7417, %v7993
    %v7995 = vpop.f32.mrb[0].mxu0
    %7996 = vmatprep.mubr.f32.mxu0 0.0
    %7997 = vmatmul.mubr.f32.gmra.mrb[0].mxu0 %v7617
    %v7998 = vpop.f32.mrb[0].mxu0
    %v7999 = vadd.f32 %v7422, %v7998
    %v8000 = vpop.f32.mrb[0].mxu0
    %8001 = vmatprep.mubr.f32.mxu0 0.0
    %8002 = vmatmul.mubr.f32.gmra.mrb[0].mxu0 %v7620
    %v8003 = vpop.f32.mrb[0].mxu0
    %v8004 = vadd.f32 %v7427, %v8003
    %v8005 = vpop.f32.mrb[0].mxu0
    %8006 = vdwg.mxu0
    %s8007 = scalar_lea.vmem [#allocation2], 128
    %v8008 = vld [vmem:[%s8007] sm:$0xff]
    %v8009 = vld [vmem:[%s8007 + $0x8] sm:$0xff]
    %v8010 = vld [vmem:[%s8007 + $0x10] sm:$0xff]
    %v8011 = vld [vmem:[%s8007 + $0x18] sm:$0xff]
    %v8012 = vld [vmem:[%s8007 + $0x20] sm:$0xff]
    %v8013 = vld [vmem:[%s8007 + $0x28] sm:$0xff]
    %v8014 = vld [vmem:[%s8007 + $0x30] sm:$0xff]
    %v8015 = vld [vmem:[%s8007 + $0x38] sm:$0xff]
    %v8016 = vld [vmem:[%s8007 + $0x40] sm:$0xff]
    %v8017 = vld [vmem:[%s8007 + $0x48] sm:$0xff]
    %v8018 = vld [vmem:[%s8007 + $0x50] sm:$0xff]
    %v8019 = vld [vmem:[%s8007 + $0x58] sm:$0xff]
    %v8020 = vld [vmem:[%s8007 + $0x60] sm:$0xff]
    %v8021 = vld [vmem:[%s8007 + $0x68] sm:$0xff]
    %v8022 = vld [vmem:[%s8007 + $0x70] sm:$0xff]
    %v8023 = vld [vmem:[%s8007 + $0x78] sm:$0xff]
    %v8024 = vld [vmem:[%s8007 + $0x100] sm:$0xff]
    %v8025 = vld [vmem:[%s8007 + $0x108] sm:$0xff]
    %v8026 = vld [vmem:[%s8007 + $0x110] sm:$0xff]
    %v8027 = vld [vmem:[%s8007 + $0x118] sm:$0xff]
    %v8028 = vld [vmem:[%s8007 + $0x120] sm:$0xff]
    %v8029 = vld [vmem:[%s8007 + $0x128] sm:$0xff]
    %v8030 = vld [vmem:[%s8007 + $0x130] sm:$0xff]
    %v8031 = vld [vmem:[%s8007 + $0x138] sm:$0xff]
    %v8032 = vld [vmem:[%s8007 + $0x140] sm:$0xff]
    %v8033 = vld [vmem:[%s8007 + $0x148] sm:$0xff]
    %v8034 = vld [vmem:[%s8007 + $0x150] sm:$0xff]
    %v8035 = vld [vmem:[%s8007 + $0x158] sm:$0xff]
    %v8036 = vld [vmem:[%s8007 + $0x160] sm:$0xff]
    %v8037 = vld [vmem:[%s8007 + $0x168] sm:$0xff]
    %v8038 = vld [vmem:[%s8007 + $0x170] sm:$0xff]
    %v8039 = vld [vmem:[%s8007 + $0x178] sm:$0xff]
    %v8040 = vld [vmem:[%s8007 + $0x400] sm:$0xff]
    %v8041 = vld [vmem:[%s8007 + $0x408] sm:$0xff]
    %v8042 = vld [vmem:[%s8007 + $0x410] sm:$0xff]
    %v8043 = vld [vmem:[%s8007 + $0x418] sm:$0xff]
    %v8044 = vld [vmem:[%s8007 + $0x420] sm:$0xff]
    %v8045 = vld [vmem:[%s8007 + $0x428] sm:$0xff]
    %v8046 = vld [vmem:[%s8007 + $0x430] sm:$0xff]
    %v8047 = vld [vmem:[%s8007 + $0x438] sm:$0xff]
    %v8048 = vld [vmem:[%s8007 + $0x440] sm:$0xff]
    %v8049 = vld [vmem:[%s8007 + $0x448] sm:$0xff]
    %v8050 = vld [vmem:[%s8007 + $0x450] sm:$0xff]
    %v8051 = vld [vmem:[%s8007 + $0x458] sm:$0xff]
    %v8052 = vld [vmem:[%s8007 + $0x460] sm:$0xff]
    %v8053 = vld [vmem:[%s8007 + $0x468] sm:$0xff]
    %v8054 = vld [vmem:[%s8007 + $0x470] sm:$0xff]
    %v8055 = vld [vmem:[%s8007 + $0x478] sm:$0xff]
    %v8056 = vld [vmem:[%s8007 + $0x500] sm:$0xff]
    %v8057 = vld [vmem:[%s8007 + $0x508] sm:$0xff]
    %v8058 = vld [vmem:[%s8007 + $0x510] sm:$0xff]
    %v8059 = vld [vmem:[%s8007 + $0x518] sm:$0xff]
    %v8060 = vld [vmem:[%s8007 + $0x520] sm:$0xff]
    %v8061 = vld [vmem:[%s8007 + $0x528] sm:$0xff]
    %v8062 = vld [vmem:[%s8007 + $0x530] sm:$0xff]
    %v8063 = vld [vmem:[%s8007 + $0x538] sm:$0xff]
    %v8064 = vld [vmem:[%s8007 + $0x540] sm:$0xff]
    %v8065 = vld [vmem:[%s8007 + $0x548] sm:$0xff]
    %v8066 = vld [vmem:[%s8007 + $0x550] sm:$0xff]
    %v8067 = vld [vmem:[%s8007 + $0x558] sm:$0xff]
    %v8068 = vld [vmem:[%s8007 + $0x560] sm:$0xff]
    %v8069 = vld [vmem:[%s8007 + $0x568] sm:$0xff]
    %v8070 = vld [vmem:[%s8007 + $0x570] sm:$0xff]
    %v8071 = vld [vmem:[%s8007 + $0x578] sm:$0xff]
    %v8072 = vld [vmem:[%s3 + $0x80] sm:$0xff]
    %v8073 = vld [vmem:[%s3 + $0x88] sm:$0xff]
    %v8074 = vld [vmem:[%s3 + $0x90] sm:$0xff]
    %v8075 = vld [vmem:[%s3 + $0x98] sm:$0xff]
    %v8076 = vld [vmem:[%s3 + $0xa0] sm:$0xff]
    %v8077 = vld [vmem:[%s3 + $0xa8] sm:$0xff]
    %v8078 = vld [vmem:[%s3 + $0xb0] sm:$0xff]
    %v8079 = vld [vmem:[%s3 + $0xb8] sm:$0xff]
    %v8081 = vsel %vm165, %v8008, 0
    %v8084 = vsel %vm165, %v8009, 0
    %v8087 = vsel %vm165, %v8010, 0
    %v8090 = vsel %vm165, %v8011, 0
    %v8093 = vsel %vm165, %v8012, 0
    %v8096 = vsel %vm165, %v8013, 0
    %v8099 = vsel %vm165, %v8014, 0
    %v8102 = vsel %vm165, %v8015, 0
    %v8105 = vsel %vm165, %v8016, 0
    %v8108 = vsel %vm165, %v8017, 0
    %v8111 = vsel %vm165, %v8018, 0
    %v8114 = vsel %vm165, %v8019, 0
    %v8117 = vsel %vm165, %v8020, 0
    %v8120 = vsel %vm165, %v8021, 0
    %v8123 = vsel %vm165, %v8022, 0
    %v8126 = vsel %vm165, %v8023, 0
    %v8129 = vsel %vm165, %v8024, 0
    %v8132 = vsel %vm165, %v8025, 0
    %v8135 = vsel %vm165, %v8026, 0
    %v8138 = vsel %vm165, %v8027, 0
    %v8141 = vsel %vm165, %v8028, 0
    %v8144 = vsel %vm165, %v8029, 0
    %v8147 = vsel %vm165, %v8030, 0
    %v8150 = vsel %vm165, %v8031, 0
    %v8153 = vsel %vm165, %v8032, 0
    %v8156 = vsel %vm165, %v8033, 0
    %v8159 = vsel %vm165, %v8034, 0
    %v8162 = vsel %vm165, %v8035, 0
    %v8165 = vsel %vm165, %v8036, 0
    %v8168 = vsel %vm165, %v8037, 0
    %v8171 = vsel %vm165, %v8038, 0
    %v8174 = vsel %vm165, %v8039, 0
    %v8177 = vsel %vm165, %v8040, 0
    %v8180 = vsel %vm165, %v8041, 0
    %v8183 = vsel %vm165, %v8042, 0
    %v8186 = vsel %vm165, %v8043, 0
    %v8189 = vsel %vm165, %v8044, 0
    %v8192 = vsel %vm165, %v8045, 0
    %v8195 = vsel %vm165, %v8046, 0
    %v8198 = vsel %vm165, %v8047, 0
    %v8201 = vsel %vm165, %v8048, 0
    %v8204 = vsel %vm165, %v8049, 0
    %v8207 = vsel %vm165, %v8050, 0
    %v8210 = vsel %vm165, %v8051, 0
    %v8213 = vsel %vm165, %v8052, 0
    %v8216 = vsel %vm165, %v8053, 0
    %v8219 = vsel %vm165, %v8054, 0
    %v8222 = vsel %vm165, %v8055, 0
    %v8225 = vsel %vm165, %v8056, 0
    %v8228 = vsel %vm165, %v8057, 0
    %v8231 = vsel %vm165, %v8058, 0
    %v8234 = vsel %vm165, %v8059, 0
    %v8237 = vsel %vm165, %v8060, 0
    %v8240 = vsel %vm165, %v8061, 0
    %v8243 = vsel %vm165, %v8062, 0
    %v8246 = vsel %vm165, %v8063, 0
    %v8249 = vsel %vm165, %v8064, 0
    %v8252 = vsel %vm165, %v8065, 0
    %v8255 = vsel %vm165, %v8066, 0
    %v8258 = vsel %vm165, %v8067, 0
    %v8261 = vsel %vm165, %v8068, 0
    %v8264 = vsel %vm165, %v8069, 0
    %v8267 = vsel %vm165, %v8070, 0
    %v8270 = vsel %vm165, %v8071, 0
    %8272 = vmatprep.subr.mxu0 0.0
    %8273 = vmatpush1.msra.mxu0 %v8072
    %8274 = vmatprep.subr.mxu0 0.0
    %8275 = vmatpush1.msra.mxu0 %v8073
    %8276 = vmatprep.subr.mxu0 0.0
    %8277 = vmatpush1.msra.mxu0 %v8074
    %8278 = vmatprep.subr.mxu0 0.0
    %8279 = vmatpush1.msra.mxu0 %v8075
    %8280 = vmatprep.subr.mxu0 0.0
    %8281 = vmatpush1.msra.mxu0 %v8076
    %8282 = vmatprep.subr.mxu0 0.0
    %8283 = vmatpush1.msra.mxu0 %v8077
    %8284 = vmatprep.subr.mxu0 0.0
    %8285 = vmatpush1.msra.mxu0 %v8078
    %8286 = vmatprep.subr.mxu0 0.0
    %8287 = vmatpush1.msra.mxu0 %v8079
    %8288 = vmatprep.subr.mxu0 0.0
    %8289 = vmatpush1.msra.mxu0 0.0
    %8290 = vmatprep.subr.mxu0 0.0
    %8291 = vmatpush1.msra.mxu0 0.0
    %8292 = vmatprep.subr.mxu0 0.0
    %8293 = vmatpush1.msra.mxu0 0.0
    %8294 = vmatprep.subr.mxu0 0.0
    %8295 = vmatpush1.msra.mxu0 0.0
    %8296 = vmatprep.subr.mxu0 0.0
    %8297 = vmatpush1.msra.mxu0 0.0
    %8298 = vmatprep.subr.mxu0 0.0
    %8299 = vmatpush1.msra.mxu0 0.0
    %8300 = vmatprep.subr.mxu0 0.0
    %8301 = vmatpush1.msra.mxu0 0.0
    %8302 = vmatprep.subr.mxu0 0.0
    %8303 = vmatpush1.msra.mxu0 0.0
    %8304 = vmatprep.subr.mxu0 0.0
    %8305 = vmatpush1.msra.mxu0 0.0
    %8306 = vmatprep.subr.mxu0 0.0
    %8307 = vmatpush1.msra.mxu0 0.0
    %8308 = vmatprep.subr.mxu0 0.0
    %8309 = vmatpush1.msra.mxu0 0.0
    %8310 = vmatprep.subr.mxu0 0.0
    %8311 = vmatpush1.msra.mxu0 0.0
    %8312 = vmatprep.subr.mxu0 0.0
    %8313 = vmatpush1.msra.mxu0 0.0
    %8314 = vmatprep.subr.mxu0 0.0
    %8315 = vmatpush1.msra.mxu0 0.0
    %8316 = vmatprep.subr.mxu0 0.0
    %8317 = vmatpush1.msra.mxu0 0.0
    %8318 = vmatprep.subr.mxu0 0.0
    %8319 = vmatpush1.msra.mxu0 0.0
    %8320 = vmatprep.subr.mxu0 0.0
    %8321 = vmatpush1.msra.mxu0 0.0
    %8322 = vmatprep.subr.mxu0 0.0
    %8323 = vmatpush1.msra.mxu0 0.0
    %8324 = vmatprep.subr.mxu0 0.0
    %8325 = vmatpush1.msra.mxu0 0.0
    %8326 = vmatprep.subr.mxu0 0.0
    %8327 = vmatpush1.msra.mxu0 0.0
    %8328 = vmatprep.subr.mxu0 0.0
    %8329 = vmatpush1.msra.mxu0 0.0
    %8330 = vmatprep.subr.mxu0 0.0
    %8331 = vmatpush1.msra.mxu0 0.0
    %8332 = vmatprep.subr.mxu0 0.0
    %8333 = vmatpush1.msra.mxu0 0.0
    %8334 = vmatprep.subr.mxu0 0.0
    %8335 = vmatpush1.msra.mxu0 0.0
    %8336 = vmatprep.mubr.f32.mxu0 0.0
    %8337 = vmatmul.mubr.f32.gmra.mrb[0].mxu0 %v8081
    %v8338 = vpop.f32.mrb[0].mxu0
    %v8339 = vadd.f32 0.0, %v8338
    %v8340 = vpop.f32.mrb[0].mxu0
    %8341 = vmatprep.mubr.f32.mxu0 0.0
    %8342 = vmatmul.mubr.f32.gmra.mrb[0].mxu0 %v8084
    %v8343 = vpop.f32.mrb[0].mxu0
    %v8344 = vadd.f32 0.0, %v8343
    %v8345 = vpop.f32.mrb[0].mxu0
    %8346 = vmatprep.mubr.f32.mxu0 0.0
    %8347 = vmatmul.mubr.f32.gmra.mrb[0].mxu0 %v8087
    %v8348 = vpop.f32.mrb[0].mxu0
    %v8349 = vadd.f32 0.0, %v8348
    %v8350 = vpop.f32.mrb[0].mxu0
    %8351 = vmatprep.mubr.f32.mxu0 0.0
    %8352 = vmatmul.mubr.f32.gmra.mrb[0].mxu0 %v8090
    %v8353 = vpop.f32.mrb[0].mxu0
    %v8354 = vadd.f32 0.0, %v8353
    %v8355 = vpop.f32.mrb[0].mxu0
    %8356 = vmatprep.mubr.f32.mxu0 0.0
    %8357 = vmatmul.mubr.f32.gmra.mrb[0].mxu0 %v8093
    %v8358 = vpop.f32.mrb[0].mxu0
    %v8359 = vadd.f32 0.0, %v8358
    %v8360 = vpop.f32.mrb[0].mxu0
    %8361 = vmatprep.mubr.f32.mxu0 0.0
    %8362 = vmatmul.mubr.f32.gmra.mrb[0].mxu0 %v8096
    %v8363 = vpop.f32.mrb[0].mxu0
    %v8364 = vadd.f32 0.0, %v8363
    %v8365 = vpop.f32.mrb[0].mxu0
    %8366 = vmatprep.mubr.f32.mxu0 0.0
    %8367 = vmatmul.mubr.f32.gmra.mrb[0].mxu0 %v8099
    %v8368 = vpop.f32.mrb[0].mxu0
    %v8369 = vadd.f32 0.0, %v8368
    %v8370 = vpop.f32.mrb[0].mxu0
    %8371 = vmatprep.mubr.f32.mxu0 0.0
    %8372 = vmatmul.mubr.f32.gmra.mrb[0].mxu0 %v8102
    %v8373 = vpop.f32.mrb[0].mxu0
    %v8374 = vadd.f32 0.0, %v8373
    %v8375 = vpop.f32.mrb[0].mxu0
    %8376 = vmatprep.mubr.f32.mxu0 0.0
    %8377 = vmatmul.mubr.f32.gmra.mrb[0].mxu0 %v8105
    %v8378 = vpop.f32.mrb[0].mxu0
    %v8379 = vadd.f32 0.0, %v8378
    %v8380 = vpop.f32.mrb[0].mxu0
    %8381 = vmatprep.mubr.f32.mxu0 0.0
    %8382 = vmatmul.mubr.f32.gmra.mrb[0].mxu0 %v8108
    %v8383 = vpop.f32.mrb[0].mxu0
    %v8384 = vadd.f32 0.0, %v8383
    %v8385 = vpop.f32.mrb[0].mxu0
    %8386 = vmatprep.mubr.f32.mxu0 0.0
    %8387 = vmatmul.mubr.f32.gmra.mrb[0].mxu0 %v8111
    %v8388 = vpop.f32.mrb[0].mxu0
    %v8389 = vadd.f32 0.0, %v8388
    %v8390 = vpop.f32.mrb[0].mxu0
    %8391 = vmatprep.mubr.f32.mxu0 0.0
    %8392 = vmatmul.mubr.f32.gmra.mrb[0].mxu0 %v8114
    %v8393 = vpop.f32.mrb[0].mxu0
    %v8394 = vadd.f32 0.0, %v8393
    %v8395 = vpop.f32.mrb[0].mxu0
    %8396 = vmatprep.mubr.f32.mxu0 0.0
    %8397 = vmatmul.mubr.f32.gmra.mrb[0].mxu0 %v8117
    %v8398 = vpop.f32.mrb[0].mxu0
    %v8399 = vadd.f32 0.0, %v8398
    %v8400 = vpop.f32.mrb[0].mxu0
    %8401 = vmatprep.mubr.f32.mxu0 0.0
    %8402 = vmatmul.mubr.f32.gmra.mrb[0].mxu0 %v8120
    %v8403 = vpop.f32.mrb[0].mxu0
    %v8404 = vadd.f32 0.0, %v8403
    %v8405 = vpop.f32.mrb[0].mxu0
    %8406 = vmatprep.mubr.f32.mxu0 0.0
    %8407 = vmatmul.mubr.f32.gmra.mrb[0].mxu0 %v8123
    %v8408 = vpop.f32.mrb[0].mxu0
    %v8409 = vadd.f32 0.0, %v8408
    %v8410 = vpop.f32.mrb[0].mxu0
    %8411 = vmatprep.mubr.f32.mxu0 0.0
    %8412 = vmatmul.mubr.f32.gmra.mrb[0].mxu0 %v8126
    %v8413 = vpop.f32.mrb[0].mxu0
    %v8414 = vadd.f32 0.0, %v8413
    %v8415 = vpop.f32.mrb[0].mxu0
    %8416 = vmatprep.mubr.f32.mxu0 0.0
    %8417 = vmatmul.mubr.f32.gmra.mrb[0].mxu0 %v8129
    %v8418 = vpop.f32.mrb[0].mxu0
    %v8419 = vadd.f32 0.0, %v8418
    %v8420 = vpop.f32.mrb[0].mxu0
    %8421 = vmatprep.mubr.f32.mxu0 0.0
    %8422 = vmatmul.mubr.f32.gmra.mrb[0].mxu0 %v8132
    %v8423 = vpop.f32.mrb[0].mxu0
    %v8424 = vadd.f32 0.0, %v8423
    %v8425 = vpop.f32.mrb[0].mxu0
    %8426 = vmatprep.mubr.f32.mxu0 0.0
    %8427 = vmatmul.mubr.f32.gmra.mrb[0].mxu0 %v8135
    %v8428 = vpop.f32.mrb[0].mxu0
    %v8429 = vadd.f32 0.0, %v8428
    %v8430 = vpop.f32.mrb[0].mxu0
    %8431 = vmatprep.mubr.f32.mxu0 0.0
    %8432 = vmatmul.mubr.f32.gmra.mrb[0].mxu0 %v8138
    %v8433 = vpop.f32.mrb[0].mxu0
    %v8434 = vadd.f32 0.0, %v8433
    %v8435 = vpop.f32.mrb[0].mxu0
    %8436 = vmatprep.mubr.f32.mxu0 0.0
    %8437 = vmatmul.mubr.f32.gmra.mrb[0].mxu0 %v8141
    %v8438 = vpop.f32.mrb[0].mxu0
    %v8439 = vadd.f32 0.0, %v8438
    %v8440 = vpop.f32.mrb[0].mxu0
    %8441 = vmatprep.mubr.f32.mxu0 0.0
    %8442 = vmatmul.mubr.f32.gmra.mrb[0].mxu0 %v8144
    %v8443 = vpop.f32.mrb[0].mxu0
    %v8444 = vadd.f32 0.0, %v8443
    %v8445 = vpop.f32.mrb[0].mxu0
    %8446 = vmatprep.mubr.f32.mxu0 0.0
    %8447 = vmatmul.mubr.f32.gmra.mrb[0].mxu0 %v8147
    %v8448 = vpop.f32.mrb[0].mxu0
    %v8449 = vadd.f32 0.0, %v8448
    %v8450 = vpop.f32.mrb[0].mxu0
    %8451 = vmatprep.mubr.f32.mxu0 0.0
    %8452 = vmatmul.mubr.f32.gmra.mrb[0].mxu0 %v8150
    %v8453 = vpop.f32.mrb[0].mxu0
    %v8454 = vadd.f32 0.0, %v8453
    %v8455 = vpop.f32.mrb[0].mxu0
    %8456 = vmatprep.mubr.f32.mxu0 0.0
    %8457 = vmatmul.mubr.f32.gmra.mrb[0].mxu0 %v8153
    %v8458 = vpop.f32.mrb[0].mxu0
    %v8459 = vadd.f32 0.0, %v8458
    %v8460 = vpop.f32.mrb[0].mxu0
    %8461 = vmatprep.mubr.f32.mxu0 0.0
    %8462 = vmatmul.mubr.f32.gmra.mrb[0].mxu0 %v8156
    %v8463 = vpop.f32.mrb[0].mxu0
    %v8464 = vadd.f32 0.0, %v8463
    %v8465 = vpop.f32.mrb[0].mxu0
    %8466 = vmatprep.mubr.f32.mxu0 0.0
    %8467 = vmatmul.mubr.f32.gmra.mrb[0].mxu0 %v8159
    %v8468 = vpop.f32.mrb[0].mxu0
    %v8469 = vadd.f32 0.0, %v8468
    %v8470 = vpop.f32.mrb[0].mxu0
    %8471 = vmatprep.mubr.f32.mxu0 0.0
    %8472 = vmatmul.mubr.f32.gmra.mrb[0].mxu0 %v8162
    %v8473 = vpop.f32.mrb[0].mxu0
    %v8474 = vadd.f32 0.0, %v8473
    %v8475 = vpop.f32.mrb[0].mxu0
    %8476 = vmatprep.mubr.f32.mxu0 0.0
    %8477 = vmatmul.mubr.f32.gmra.mrb[0].mxu0 %v8165
    %v8478 = vpop.f32.mrb[0].mxu0
    %v8479 = vadd.f32 0.0, %v8478
    %v8480 = vpop.f32.mrb[0].mxu0
    %8481 = vmatprep.mubr.f32.mxu0 0.0
    %8482 = vmatmul.mubr.f32.gmra.mrb[0].mxu0 %v8168
    %v8483 = vpop.f32.mrb[0].mxu0
    %v8484 = vadd.f32 0.0, %v8483
    %v8485 = vpop.f32.mrb[0].mxu0
    %8486 = vmatprep.mubr.f32.mxu0 0.0
    %8487 = vmatmul.mubr.f32.gmra.mrb[0].mxu0 %v8171
    %v8488 = vpop.f32.mrb[0].mxu0
    %v8489 = vadd.f32 0.0, %v8488
    %v8490 = vpop.f32.mrb[0].mxu0
    %8491 = vmatprep.mubr.f32.mxu0 0.0
    %8492 = vmatmul.mubr.f32.gmra.mrb[0].mxu0 %v8174
    %v8493 = vpop.f32.mrb[0].mxu0
    %v8494 = vadd.f32 0.0, %v8493
    %v8495 = vpop.f32.mrb[0].mxu0
    %8496 = vmatprep.mubr.f32.mxu0 0.0
    %8497 = vmatmul.mubr.f32.gmra.mrb[0].mxu0 %v8177
    %v8498 = vpop.f32.mrb[0].mxu0
    %v8499 = vadd.f32 0.0, %v8498
    %v8500 = vpop.f32.mrb[0].mxu0
    %8501 = vmatprep.mubr.f32.mxu0 0.0
    %8502 = vmatmul.mubr.f32.gmra.mrb[0].mxu0 %v8180
    %v8503 = vpop.f32.mrb[0].mxu0
    %v8504 = vadd.f32 0.0, %v8503
    %v8505 = vpop.f32.mrb[0].mxu0
    %8506 = vmatprep.mubr.f32.mxu0 0.0
    %8507 = vmatmul.mubr.f32.gmra.mrb[0].mxu0 %v8183
    %v8508 = vpop.f32.mrb[0].mxu0
    %v8509 = vadd.f32 0.0, %v8508
    %v8510 = vpop.f32.mrb[0].mxu0
    %8511 = vmatprep.mubr.f32.mxu0 0.0
    %8512 = vmatmul.mubr.f32.gmra.mrb[0].mxu0 %v8186
    %v8513 = vpop.f32.mrb[0].mxu0
    %v8514 = vadd.f32 0.0, %v8513
    %v8515 = vpop.f32.mrb[0].mxu0
    %8516 = vmatprep.mubr.f32.mxu0 0.0
    %8517 = vmatmul.mubr.f32.gmra.mrb[0].mxu0 %v8189
    %v8518 = vpop.f32.mrb[0].mxu0
    %v8519 = vadd.f32 0.0, %v8518
    %v8520 = vpop.f32.mrb[0].mxu0
    %8521 = vmatprep.mubr.f32.mxu0 0.0
    %8522 = vmatmul.mubr.f32.gmra.mrb[0].mxu0 %v8192
    %v8523 = vpop.f32.mrb[0].mxu0
    %v8524 = vadd.f32 0.0, %v8523
    %v8525 = vpop.f32.mrb[0].mxu0
    %8526 = vmatprep.mubr.f32.mxu0 0.0
    %8527 = vmatmul.mubr.f32.gmra.mrb[0].mxu0 %v8195
    %v8528 = vpop.f32.mrb[0].mxu0
    %v8529 = vadd.f32 0.0, %v8528
    %v8530 = vpop.f32.mrb[0].mxu0
    %8531 = vmatprep.mubr.f32.mxu0 0.0
    %8532 = vmatmul.mubr.f32.gmra.mrb[0].mxu0 %v8198
    %v8533 = vpop.f32.mrb[0].mxu0
    %v8534 = vadd.f32 0.0, %v8533
    %v8535 = vpop.f32.mrb[0].mxu0
    %8536 = vmatprep.mubr.f32.mxu0 0.0
    %8537 = vmatmul.mubr.f32.gmra.mrb[0].mxu0 %v8201
    %v8538 = vpop.f32.mrb[0].mxu0
    %v8539 = vadd.f32 0.0, %v8538
    %v8540 = vpop.f32.mrb[0].mxu0
    %8541 = vmatprep.mubr.f32.mxu0 0.0
    %8542 = vmatmul.mubr.f32.gmra.mrb[0].mxu0 %v8204
    %v8543 = vpop.f32.mrb[0].mxu0
    %v8544 = vadd.f32 0.0, %v8543
    %v8545 = vpop.f32.mrb[0].mxu0
    %8546 = vmatprep.mubr.f32.mxu0 0.0
    %8547 = vmatmul.mubr.f32.gmra.mrb[0].mxu0 %v8207
    %v8548 = vpop.f32.mrb[0].mxu0
    %v8549 = vadd.f32 0.0, %v8548
    %v8550 = vpop.f32.mrb[0].mxu0
    %8551 = vmatprep.mubr.f32.mxu0 0.0
    %8552 = vmatmul.mubr.f32.gmra.mrb[0].mxu0 %v8210
    %v8553 = vpop.f32.mrb[0].mxu0
    %v8554 = vadd.f32 0.0, %v8553
    %v8555 = vpop.f32.mrb[0].mxu0
    %8556 = vmatprep.mubr.f32.mxu0 0.0
    %8557 = vmatmul.mubr.f32.gmra.mrb[0].mxu0 %v8213
    %v8558 = vpop.f32.mrb[0].mxu0
    %v8559 = vadd.f32 0.0, %v8558
    %v8560 = vpop.f32.mrb[0].mxu0
    %8561 = vmatprep.mubr.f32.mxu0 0.0
    %8562 = vmatmul.mubr.f32.gmra.mrb[0].mxu0 %v8216
    %v8563 = vpop.f32.mrb[0].mxu0
    %v8564 = vadd.f32 0.0, %v8563
    %v8565 = vpop.f32.mrb[0].mxu0
    %8566 = vmatprep.mubr.f32.mxu0 0.0
    %8567 = vmatmul.mubr.f32.gmra.mrb[0].mxu0 %v8219
    %v8568 = vpop.f32.mrb[0].mxu0
    %v8569 = vadd.f32 0.0, %v8568
    %v8570 = vpop.f32.mrb[0].mxu0
    %8571 = vmatprep.mubr.f32.mxu0 0.0
    %8572 = vmatmul.mubr.f32.gmra.mrb[0].mxu0 %v8222
    %v8573 = vpop.f32.mrb[0].mxu0
    %v8574 = vadd.f32 0.0, %v8573
    %v8575 = vpop.f32.mrb[0].mxu0
    %8576 = vmatprep.mubr.f32.mxu0 0.0
    %8577 = vmatmul.mubr.f32.gmra.mrb[0].mxu0 %v8225
    %v8578 = vpop.f32.mrb[0].mxu0
    %v8579 = vadd.f32 0.0, %v8578
    %v8580 = vpop.f32.mrb[0].mxu0
    %8581 = vmatprep.mubr.f32.mxu0 0.0
    %8582 = vmatmul.mubr.f32.gmra.mrb[0].mxu0 %v8228
    %v8583 = vpop.f32.mrb[0].mxu0
    %v8584 = vadd.f32 0.0, %v8583
    %v8585 = vpop.f32.mrb[0].mxu0
    %8586 = vmatprep.mubr.f32.mxu0 0.0
    %8587 = vmatmul.mubr.f32.gmra.mrb[0].mxu0 %v8231
    %v8588 = vpop.f32.mrb[0].mxu0
    %v8589 = vadd.f32 0.0, %v8588
    %v8590 = vpop.f32.mrb[0].mxu0
    %8591 = vmatprep.mubr.f32.mxu0 0.0
    %8592 = vmatmul.mubr.f32.gmra.mrb[0].mxu0 %v8234
    %v8593 = vpop.f32.mrb[0].mxu0
    %v8594 = vadd.f32 0.0, %v8593
    %v8595 = vpop.f32.mrb[0].mxu0
    %8596 = vmatprep.mubr.f32.mxu0 0.0
    %8597 = vmatmul.mubr.f32.gmra.mrb[0].mxu0 %v8237
    %v8598 = vpop.f32.mrb[0].mxu0
    %v8599 = vadd.f32 0.0, %v8598
    %v8600 = vpop.f32.mrb[0].mxu0
    %8601 = vmatprep.mubr.f32.mxu0 0.0
    %8602 = vmatmul.mubr.f32.gmra.mrb[0].mxu0 %v8240
    %v8603 = vpop.f32.mrb[0].mxu0
    %v8604 = vadd.f32 0.0, %v8603
    %v8605 = vpop.f32.mrb[0].mxu0
    %8606 = vmatprep.mubr.f32.mxu0 0.0
    %8607 = vmatmul.mubr.f32.gmra.mrb[0].mxu0 %v8243
    %v8608 = vpop.f32.mrb[0].mxu0
    %v8609 = vadd.f32 0.0, %v8608
    %v8610 = vpop.f32.mrb[0].mxu0
    %8611 = vmatprep.mubr.f32.mxu0 0.0
    %8612 = vmatmul.mubr.f32.gmra.mrb[0].mxu0 %v8246
    %v8613 = vpop.f32.mrb[0].mxu0
    %v8614 = vadd.f32 0.0, %v8613
    %v8615 = vpop.f32.mrb[0].mxu0
    %8616 = vmatprep.mubr.f32.mxu0 0.0
    %8617 = vmatmul.mubr.f32.gmra.mrb[0].mxu0 %v8249
    %v8618 = vpop.f32.mrb[0].mxu0
    %v8619 = vadd.f32 0.0, %v8618
    %v8620 = vpop.f32.mrb[0].mxu0
    %8621 = vmatprep.mubr.f32.mxu0 0.0
    %8622 = vmatmul.mubr.f32.gmra.mrb[0].mxu0 %v8252
    %v8623 = vpop.f32.mrb[0].mxu0
    %v8624 = vadd.f32 0.0, %v8623
    %v8625 = vpop.f32.mrb[0].mxu0
    %8626 = vmatprep.mubr.f32.mxu0 0.0
    %8627 = vmatmul.mubr.f32.gmra.mrb[0].mxu0 %v8255
    %v8628 = vpop.f32.mrb[0].mxu0
    %v8629 = vadd.f32 0.0, %v8628
    %v8630 = vpop.f32.mrb[0].mxu0
    %8631 = vmatprep.mubr.f32.mxu0 0.0
    %8632 = vmatmul.mubr.f32.gmra.mrb[0].mxu0 %v8258
    %v8633 = vpop.f32.mrb[0].mxu0
    %v8634 = vadd.f32 0.0, %v8633
    %v8635 = vpop.f32.mrb[0].mxu0
    %8636 = vmatprep.mubr.f32.mxu0 0.0
    %8637 = vmatmul.mubr.f32.gmra.mrb[0].mxu0 %v8261
    %v8638 = vpop.f32.mrb[0].mxu0
    %v8639 = vadd.f32 0.0, %v8638
    %v8640 = vpop.f32.mrb[0].mxu0
    %8641 = vmatprep.mubr.f32.mxu0 0.0
    %8642 = vmatmul.mubr.f32.gmra.mrb[0].mxu0 %v8264
    %v8643 = vpop.f32.mrb[0].mxu0
    %v8644 = vadd.f32 0.0, %v8643
    %v8645 = vpop.f32.mrb[0].mxu0
    %8646 = vmatprep.mubr.f32.mxu0 0.0
    %8647 = vmatmul.mubr.f32.gmra.mrb[0].mxu0 %v8267
    %v8648 = vpop.f32.mrb[0].mxu0
    %v8649 = vadd.f32 0.0, %v8648
    %v8650 = vpop.f32.mrb[0].mxu0
    %8651 = vmatprep.mubr.f32.mxu0 0.0
    %8652 = vmatmul.mubr.f32.gmra.mrb[0].mxu0 %v8270
    %v8653 = vpop.f32.mrb[0].mxu0
    %v8654 = vadd.f32 0.0, %v8653
    %v8655 = vpop.f32.mrb[0].mxu0
    %8656 = vdwg.mxu0
    %v8657 = vadd.f32 %v7689, %v8339
    %v8658 = vadd.f32 %v7694, %v8344
    %v8659 = vadd.f32 %v7699, %v8349
    %v8660 = vadd.f32 %v7704, %v8354
    %v8661 = vadd.f32 %v7709, %v8359
    %v8662 = vadd.f32 %v7714, %v8364
    %v8663 = vadd.f32 %v7719, %v8369
    %v8664 = vadd.f32 %v7724, %v8374
    %v8665 = vadd.f32 %v7729, %v8379
    %v8666 = vadd.f32 %v7734, %v8384
    %v8667 = vadd.f32 %v7739, %v8389
    %v8668 = vadd.f32 %v7744, %v8394
    %v8669 = vadd.f32 %v7749, %v8399
    %v8670 = vadd.f32 %v7754, %v8404
    %v8671 = vadd.f32 %v7759, %v8409
    %v8672 = vadd.f32 %v7764, %v8414
    %v8673 = vadd.f32 %v7769, %v8419
    %v8674 = vadd.f32 %v7774, %v8424
    %v8675 = vadd.f32 %v7779, %v8429
    %v8676 = vadd.f32 %v7784, %v8434
    %v8677 = vadd.f32 %v7789, %v8439
    %v8678 = vadd.f32 %v7794, %v8444
    %v8679 = vadd.f32 %v7799, %v8449
    %v8680 = vadd.f32 %v7804, %v8454
    %v8681 = vadd.f32 %v7809, %v8459
    %v8682 = vadd.f32 %v7814, %v8464
    %v8683 = vadd.f32 %v7819, %v8469
    %v8684 = vadd.f32 %v7824, %v8474
    %v8685 = vadd.f32 %v7829, %v8479
    %v8686 = vadd.f32 %v7834, %v8484
    %v8687 = vadd.f32 %v7839, %v8489
    %v8688 = vadd.f32 %v7844, %v8494
    %v8689 = vadd.f32 %v7849, %v8499
    %v8690 = vadd.f32 %v7854, %v8504
    %v8691 = vadd.f32 %v7859, %v8509
    %v8692 = vadd.f32 %v7864, %v8514
    %v8693 = vadd.f32 %v7869, %v8519
    %v8694 = vadd.f32 %v7874, %v8524
    %v8695 = vadd.f32 %v7879, %v8529
    %v8696 = vadd.f32 %v7884, %v8534
    %v8697 = vadd.f32 %v7889, %v8539
    %v8698 = vadd.f32 %v7894, %v8544
    %v8699 = vadd.f32 %v7899, %v8549
    %v8700 = vadd.f32 %v7904, %v8554
    %v8701 = vadd.f32 %v7909, %v8559
    %v8702 = vadd.f32 %v7914, %v8564
    %v8703 = vadd.f32 %v7919, %v8569
    %v8704 = vadd.f32 %v7924, %v8574
    %v8705 = vadd.f32 %v7929, %v8579
    %v8706 = vadd.f32 %v7934, %v8584
    %v8707 = vadd.f32 %v7939, %v8589
    %v8708 = vadd.f32 %v7944, %v8594
    %v8709 = vadd.f32 %v7949, %v8599
    %v8710 = vadd.f32 %v7954, %v8604
    %v8711 = vadd.f32 %v7959, %v8609
    %v8712 = vadd.f32 %v7964, %v8614
    %v8713 = vadd.f32 %v7969, %v8619
    %v8714 = vadd.f32 %v7974, %v8624
    %v8715 = vadd.f32 %v7979, %v8629
    %v8716 = vadd.f32 %v7984, %v8634
    %v8717 = vadd.f32 %v7989, %v8639
    %v8718 = vadd.f32 %v7994, %v8644
    %v8719 = vadd.f32 %v7999, %v8649
    %v8720 = vadd.f32 %v8004, %v8654
    %v8721 = vld [vmem:[%s6577] sm:$0xff]
    %v8722 = vld [vmem:[%s6577 + $0x8] sm:$0xff]
    %v8723 = vld [vmem:[%s6577 + $0x10] sm:$0xff]
    %v8724 = vld [vmem:[%s6577 + $0x18] sm:$0xff]
    %v8725 = vld [vmem:[%s6577 + $0x20] sm:$0xff]
    %v8726 = vld [vmem:[%s6577 + $0x28] sm:$0xff]
    %v8727 = vld [vmem:[%s6577 + $0x30] sm:$0xff]
    %v8728 = vld [vmem:[%s6577 + $0x38] sm:$0xff]
    %v8729 = vld [vmem:[%s6577 + $0x40] sm:$0xff]
    %v8730 = vld [vmem:[%s6577 + $0x48] sm:$0xff]
    %v8731 = vld [vmem:[%s6577 + $0x50] sm:$0xff]
    %v8732 = vld [vmem:[%s6577 + $0x58] sm:$0xff]
    %v8733 = vld [vmem:[%s6577 + $0x60] sm:$0xff]
    %v8734 = vld [vmem:[%s6577 + $0x68] sm:$0xff]
    %v8735 = vld [vmem:[%s6577 + $0x70] sm:$0xff]
    %v8736 = vld [vmem:[%s6577 + $0x78] sm:$0xff]
    %v8737 = vld [vmem:[%s6577 + $0x100] sm:$0xff]
    %v8738 = vld [vmem:[%s6577 + $0x108] sm:$0xff]
    %v8739 = vld [vmem:[%s6577 + $0x110] sm:$0xff]
    %v8740 = vld [vmem:[%s6577 + $0x118] sm:$0xff]
    %v8741 = vld [vmem:[%s6577 + $0x120] sm:$0xff]
    %v8742 = vld [vmem:[%s6577 + $0x128] sm:$0xff]
    %v8743 = vld [vmem:[%s6577 + $0x130] sm:$0xff]
    %v8744 = vld [vmem:[%s6577 + $0x138] sm:$0xff]
    %v8745 = vld [vmem:[%s6577 + $0x140] sm:$0xff]
    %v8746 = vld [vmem:[%s6577 + $0x148] sm:$0xff]
    %v8747 = vld [vmem:[%s6577 + $0x150] sm:$0xff]
    %v8748 = vld [vmem:[%s6577 + $0x158] sm:$0xff]
    %v8749 = vld [vmem:[%s6577 + $0x160] sm:$0xff]
    %v8750 = vld [vmem:[%s6577 + $0x168] sm:$0xff]
    %v8751 = vld [vmem:[%s6577 + $0x170] sm:$0xff]
    %v8752 = vld [vmem:[%s6577 + $0x178] sm:$0xff]
    %v8753 = vld [vmem:[%s6577 + $0x400] sm:$0xff]
    %v8754 = vld [vmem:[%s6577 + $0x408] sm:$0xff]
    %v8755 = vld [vmem:[%s6577 + $0x410] sm:$0xff]
    %v8756 = vld [vmem:[%s6577 + $0x418] sm:$0xff]
    %v8757 = vld [vmem:[%s6577 + $0x420] sm:$0xff]
    %v8758 = vld [vmem:[%s6577 + $0x428] sm:$0xff]
    %v8759 = vld [vmem:[%s6577 + $0x430] sm:$0xff]
    %v8760 = vld [vmem:[%s6577 + $0x438] sm:$0xff]
    %v8761 = vld [vmem:[%s6577 + $0x440] sm:$0xff]
    %v8762 = vld [vmem:[%s6577 + $0x448] sm:$0xff]
    %v8763 = vld [vmem:[%s6577 + $0x450] sm:$0xff]
    %v8764 = vld [vmem:[%s6577 + $0x458] sm:$0xff]
    %v8765 = vld [vmem:[%s6577 + $0x460] sm:$0xff]
    %v8766 = vld [vmem:[%s6577 + $0x468] sm:$0xff]
    %v8767 = vld [vmem:[%s6577 + $0x470] sm:$0xff]
    %v8768 = vld [vmem:[%s6577 + $0x478] sm:$0xff]
    %v8769 = vld [vmem:[%s6577 + $0x500] sm:$0xff]
    %v8770 = vld [vmem:[%s6577 + $0x508] sm:$0xff]
    %v8771 = vld [vmem:[%s6577 + $0x510] sm:$0xff]
    %v8772 = vld [vmem:[%s6577 + $0x518] sm:$0xff]
    %v8773 = vld [vmem:[%s6577 + $0x520] sm:$0xff]
    %v8774 = vld [vmem:[%s6577 + $0x528] sm:$0xff]
    %v8775 = vld [vmem:[%s6577 + $0x530] sm:$0xff]
    %v8776 = vld [vmem:[%s6577 + $0x538] sm:$0xff]
    %v8777 = vld [vmem:[%s6577 + $0x540] sm:$0xff]
    %v8778 = vld [vmem:[%s6577 + $0x548] sm:$0xff]
    %v8779 = vld [vmem:[%s6577 + $0x550] sm:$0xff]
    %v8780 = vld [vmem:[%s6577 + $0x558] sm:$0xff]
    %v8781 = vld [vmem:[%s6577 + $0x560] sm:$0xff]
    %v8782 = vld [vmem:[%s6577 + $0x568] sm:$0xff]
    %v8783 = vld [vmem:[%s6577 + $0x570] sm:$0xff]
    %v8784 = vld [vmem:[%s6577 + $0x578] sm:$0xff]
    %v8785 = vld [vmem:[%s3 + $0xc0] sm:$0xff]
    %v8786 = vld [vmem:[%s3 + $0xc8] sm:$0xff]
    %v8787 = vld [vmem:[%s3 + $0xd0] sm:$0xff]
    %v8788 = vld [vmem:[%s3 + $0xd8] sm:$0xff]
    %v8789 = vld [vmem:[%s3 + $0xe0] sm:$0xff]
    %v8790 = vld [vmem:[%s3 + $0xe8] sm:$0xff]
    %v8791 = vld [vmem:[%s3 + $0xf0] sm:$0xff]
    %v8792 = vld [vmem:[%s3 + $0xf8] sm:$0xff]
    %v8794 = vsel %vm165, %v8721, 0
    %v8797 = vsel %vm165, %v8722, 0
    %v8800 = vsel %vm165, %v8723, 0
    %v8803 = vsel %vm165, %v8724, 0
    %v8806 = vsel %vm165, %v8725, 0
    %v8809 = vsel %vm165, %v8726, 0
    %v8812 = vsel %vm165, %v8727, 0
    %v8815 = vsel %vm165, %v8728, 0
    %v8818 = vsel %vm165, %v8729, 0
    %v8821 = vsel %vm165, %v8730, 0
    %v8824 = vsel %vm165, %v8731, 0
    %v8827 = vsel %vm165, %v8732, 0
    %v8830 = vsel %vm165, %v8733, 0
    %v8833 = vsel %vm165, %v8734, 0
    %v8836 = vsel %vm165, %v8735, 0
    %v8839 = vsel %vm165, %v8736, 0
    %v8842 = vsel %vm165, %v8737, 0
    %v8845 = vsel %vm165, %v8738, 0
    %v8848 = vsel %vm165, %v8739, 0
    %v8851 = vsel %vm165, %v8740, 0
    %v8854 = vsel %vm165, %v8741, 0
    %v8857 = vsel %vm165, %v8742, 0
    %v8860 = vsel %vm165, %v8743, 0
    %v8863 = vsel %vm165, %v8744, 0
    %v8866 = vsel %vm165, %v8745, 0
    %v8869 = vsel %vm165, %v8746, 0
    %v8872 = vsel %vm165, %v8747, 0
    %v8875 = vsel %vm165, %v8748, 0
    %v8878 = vsel %vm165, %v8749, 0
    %v8881 = vsel %vm165, %v8750, 0
    %v8884 = vsel %vm165, %v8751, 0
    %v8887 = vsel %vm165, %v8752, 0
    %v8890 = vsel %vm165, %v8753, 0
    %v8893 = vsel %vm165, %v8754, 0
    %v8896 = vsel %vm165, %v8755, 0
    %v8899 = vsel %vm165, %v8756, 0
    %v8902 = vsel %vm165, %v8757, 0
    %v8905 = vsel %vm165, %v8758, 0
    %v8908 = vsel %vm165, %v8759, 0
    %v8911 = vsel %vm165, %v8760, 0
    %v8914 = vsel %vm165, %v8761, 0
    %v8917 = vsel %vm165, %v8762, 0
    %v8920 = vsel %vm165, %v8763, 0
    %v8923 = vsel %vm165, %v8764, 0
    %v8926 = vsel %vm165, %v8765, 0
    %v8929 = vsel %vm165, %v8766, 0
    %v8932 = vsel %vm165, %v8767, 0
    %v8935 = vsel %vm165, %v8768, 0
    %v8938 = vsel %vm165, %v8769, 0
    %v8941 = vsel %vm165, %v8770, 0
    %v8944 = vsel %vm165, %v8771, 0
    %v8947 = vsel %vm165, %v8772, 0
    %v8950 = vsel %vm165, %v8773, 0
    %v8953 = vsel %vm165, %v8774, 0
    %v8956 = vsel %vm165, %v8775, 0
    %v8959 = vsel %vm165, %v8776, 0
    %v8962 = vsel %vm165, %v8777, 0
    %v8965 = vsel %vm165, %v8778, 0
    %v8968 = vsel %vm165, %v8779, 0
    %v8971 = vsel %vm165, %v8780, 0
    %v8974 = vsel %vm165, %v8781, 0
    %v8977 = vsel %vm165, %v8782, 0
    %v8980 = vsel %vm165, %v8783, 0
    %v8983 = vsel %vm165, %v8784, 0
    %8985 = vmatprep.subr.mxu0 0.0
    %8986 = vmatpush1.msra.mxu0 %v8785
    %8987 = vmatprep.subr.mxu0 0.0
    %8988 = vmatpush1.msra.mxu0 %v8786
    %8989 = vmatprep.subr.mxu0 0.0
    %8990 = vmatpush1.msra.mxu0 %v8787
    %8991 = vmatprep.subr.mxu0 0.0
    %8992 = vmatpush1.msra.mxu0 %v8788
    %8993 = vmatprep.subr.mxu0 0.0
    %8994 = vmatpush1.msra.mxu0 %v8789
    %8995 = vmatprep.subr.mxu0 0.0
    %8996 = vmatpush1.msra.mxu0 %v8790
    %8997 = vmatprep.subr.mxu0 0.0
    %8998 = vmatpush1.msra.mxu0 %v8791
    %8999 = vmatprep.subr.mxu0 0.0
    %9000 = vmatpush1.msra.mxu0 %v8792
    %9001 = vmatprep.subr.mxu0 0.0
    %9002 = vmatpush1.msra.mxu0 0.0
    %9003 = vmatprep.subr.mxu0 0.0
    %9004 = vmatpush1.msra.mxu0 0.0
    %9005 = vmatprep.subr.mxu0 0.0
    %9006 = vmatpush1.msra.mxu0 0.0
    %9007 = vmatprep.subr.mxu0 0.0
    %9008 = vmatpush1.msra.mxu0 0.0
    %9009 = vmatprep.subr.mxu0 0.0
    %9010 = vmatpush1.msra.mxu0 0.0
    %9011 = vmatprep.subr.mxu0 0.0
    %9012 = vmatpush1.msra.mxu0 0.0
    %9013 = vmatprep.subr.mxu0 0.0
    %9014 = vmatpush1.msra.mxu0 0.0
    %9015 = vmatprep.subr.mxu0 0.0
    %9016 = vmatpush1.msra.mxu0 0.0
    %9017 = vmatprep.subr.mxu0 0.0
    %9018 = vmatpush1.msra.mxu0 0.0
    %9019 = vmatprep.subr.mxu0 0.0
    %9020 = vmatpush1.msra.mxu0 0.0
    %9021 = vmatprep.subr.mxu0 0.0
    %9022 = vmatpush1.msra.mxu0 0.0
    %9023 = vmatprep.subr.mxu0 0.0
    %9024 = vmatpush1.msra.mxu0 0.0
    %9025 = vmatprep.subr.mxu0 0.0
    %9026 = vmatpush1.msra.mxu0 0.0
    %9027 = vmatprep.subr.mxu0 0.0
    %9028 = vmatpush1.msra.mxu0 0.0
    %9029 = vmatprep.subr.mxu0 0.0
    %9030 = vmatpush1.msra.mxu0 0.0
    %9031 = vmatprep.subr.mxu0 0.0
    %9032 = vmatpush1.msra.mxu0 0.0
    %9033 = vmatprep.subr.mxu0 0.0
    %9034 = vmatpush1.msra.mxu0 0.0
    %9035 = vmatprep.subr.mxu0 0.0
    %9036 = vmatpush1.msra.mxu0 0.0
    %9037 = vmatprep.subr.mxu0 0.0
    %9038 = vmatpush1.msra.mxu0 0.0
    %9039 = vmatprep.subr.mxu0 0.0
    %9040 = vmatpush1.msra.mxu0 0.0
    %9041 = vmatprep.subr.mxu0 0.0
    %9042 = vmatpush1.msra.mxu0 0.0
    %9043 = vmatprep.subr.mxu0 0.0
    %9044 = vmatpush1.msra.mxu0 0.0
    %9045 = vmatprep.subr.mxu0 0.0
    %9046 = vmatpush1.msra.mxu0 0.0
    %9047 = vmatprep.subr.mxu0 0.0
    %9048 = vmatpush1.msra.mxu0 0.0
    %9049 = vmatprep.mubr.f32.mxu0 0.0
    %9050 = vmatmul.mubr.f32.gmra.mrb[0].mxu0 %v8794
    %v9051 = vpop.f32.mrb[0].mxu0
    %v9052 = vadd.f32 0.0, %v9051
    %v9053 = vpop.f32.mrb[0].mxu0
    %9054 = vmatprep.mubr.f32.mxu0 0.0
    %9055 = vmatmul.mubr.f32.gmra.mrb[0].mxu0 %v8797
    %v9056 = vpop.f32.mrb[0].mxu0
    %v9057 = vadd.f32 0.0, %v9056
    %v9058 = vpop.f32.mrb[0].mxu0
    %9059 = vmatprep.mubr.f32.mxu0 0.0
    %9060 = vmatmul.mubr.f32.gmra.mrb[0].mxu0 %v8800
    %v9061 = vpop.f32.mrb[0].mxu0
    %v9062 = vadd.f32 0.0, %v9061
    %v9063 = vpop.f32.mrb[0].mxu0
    %9064 = vmatprep.mubr.f32.mxu0 0.0
    %9065 = vmatmul.mubr.f32.gmra.mrb[0].mxu0 %v8803
    %v9066 = vpop.f32.mrb[0].mxu0
    %v9067 = vadd.f32 0.0, %v9066
    %v9068 = vpop.f32.mrb[0].mxu0
    %9069 = vmatprep.mubr.f32.mxu0 0.0
    %9070 = vmatmul.mubr.f32.gmra.mrb[0].mxu0 %v8806
    %v9071 = vpop.f32.mrb[0].mxu0
    %v9072 = vadd.f32 0.0, %v9071
    %v9073 = vpop.f32.mrb[0].mxu0
    %9074 = vmatprep.mubr.f32.mxu0 0.0
    %9075 = vmatmul.mubr.f32.gmra.mrb[0].mxu0 %v8809
    %v9076 = vpop.f32.mrb[0].mxu0
    %v9077 = vadd.f32 0.0, %v9076
    %v9078 = vpop.f32.mrb[0].mxu0
    %9079 = vmatprep.mubr.f32.mxu0 0.0
    %9080 = vmatmul.mubr.f32.gmra.mrb[0].mxu0 %v8812
    %v9081 = vpop.f32.mrb[0].mxu0
    %v9082 = vadd.f32 0.0, %v9081
    %v9083 = vpop.f32.mrb[0].mxu0
    %9084 = vmatprep.mubr.f32.mxu0 0.0
    %9085 = vmatmul.mubr.f32.gmra.mrb[0].mxu0 %v8815
    %v9086 = vpop.f32.mrb[0].mxu0
    %v9087 = vadd.f32 0.0, %v9086
    %v9088 = vpop.f32.mrb[0].mxu0
    %9089 = vmatprep.mubr.f32.mxu0 0.0
    %9090 = vmatmul.mubr.f32.gmra.mrb[0].mxu0 %v8818
    %v9091 = vpop.f32.mrb[0].mxu0
    %v9092 = vadd.f32 0.0, %v9091
    %v9093 = vpop.f32.mrb[0].mxu0
    %9094 = vmatprep.mubr.f32.mxu0 0.0
    %9095 = vmatmul.mubr.f32.gmra.mrb[0].mxu0 %v8821
    %v9096 = vpop.f32.mrb[0].mxu0
    %v9097 = vadd.f32 0.0, %v9096
    %v9098 = vpop.f32.mrb[0].mxu0
    %9099 = vmatprep.mubr.f32.mxu0 0.0
    %9100 = vmatmul.mubr.f32.gmra.mrb[0].mxu0 %v8824
    %v9101 = vpop.f32.mrb[0].mxu0
    %v9102 = vadd.f32 0.0, %v9101
    %v9103 = vpop.f32.mrb[0].mxu0
    %9104 = vmatprep.mubr.f32.mxu0 0.0
    %9105 = vmatmul.mubr.f32.gmra.mrb[0].mxu0 %v8827
    %v9106 = vpop.f32.mrb[0].mxu0
    %v9107 = vadd.f32 0.0, %v9106
    %v9108 = vpop.f32.mrb[0].mxu0
    %9109 = vmatprep.mubr.f32.mxu0 0.0
    %9110 = vmatmul.mubr.f32.gmra.mrb[0].mxu0 %v8830
    %v9111 = vpop.f32.mrb[0].mxu0
    %v9112 = vadd.f32 0.0, %v9111
    %v9113 = vpop.f32.mrb[0].mxu0
    %9114 = vmatprep.mubr.f32.mxu0 0.0
    %9115 = vmatmul.mubr.f32.gmra.mrb[0].mxu0 %v8833
    %v9116 = vpop.f32.mrb[0].mxu0
    %v9117 = vadd.f32 0.0, %v9116
    %v9118 = vpop.f32.mrb[0].mxu0
    %9119 = vmatprep.mubr.f32.mxu0 0.0
    %9120 = vmatmul.mubr.f32.gmra.mrb[0].mxu0 %v8836
    %v9121 = vpop.f32.mrb[0].mxu0
    %v9122 = vadd.f32 0.0, %v9121
    %v9123 = vpop.f32.mrb[0].mxu0
    %9124 = vmatprep.mubr.f32.mxu0 0.0
    %9125 = vmatmul.mubr.f32.gmra.mrb[0].mxu0 %v8839
    %v9126 = vpop.f32.mrb[0].mxu0
    %v9127 = vadd.f32 0.0, %v9126
    %v9128 = vpop.f32.mrb[0].mxu0
    %9129 = vmatprep.mubr.f32.mxu0 0.0
    %9130 = vmatmul.mubr.f32.gmra.mrb[0].mxu0 %v8842
    %v9131 = vpop.f32.mrb[0].mxu0
    %v9132 = vadd.f32 0.0, %v9131
    %v9133 = vpop.f32.mrb[0].mxu0
    %9134 = vmatprep.mubr.f32.mxu0 0.0
    %9135 = vmatmul.mubr.f32.gmra.mrb[0].mxu0 %v8845
    %v9136 = vpop.f32.mrb[0].mxu0
    %v9137 = vadd.f32 0.0, %v9136
    %v9138 = vpop.f32.mrb[0].mxu0
    %9139 = vmatprep.mubr.f32.mxu0 0.0
    %9140 = vmatmul.mubr.f32.gmra.mrb[0].mxu0 %v8848
    %v9141 = vpop.f32.mrb[0].mxu0
    %v9142 = vadd.f32 0.0, %v9141
    %v9143 = vpop.f32.mrb[0].mxu0
    %9144 = vmatprep.mubr.f32.mxu0 0.0
    %9145 = vmatmul.mubr.f32.gmra.mrb[0].mxu0 %v8851
    %v9146 = vpop.f32.mrb[0].mxu0
    %v9147 = vadd.f32 0.0, %v9146
    %v9148 = vpop.f32.mrb[0].mxu0
    %9149 = vmatprep.mubr.f32.mxu0 0.0
    %9150 = vmatmul.mubr.f32.gmra.mrb[0].mxu0 %v8854
    %v9151 = vpop.f32.mrb[0].mxu0
    %v9152 = vadd.f32 0.0, %v9151
    %v9153 = vpop.f32.mrb[0].mxu0
    %9154 = vmatprep.mubr.f32.mxu0 0.0
    %9155 = vmatmul.mubr.f32.gmra.mrb[0].mxu0 %v8857
    %v9156 = vpop.f32.mrb[0].mxu0
    %v9157 = vadd.f32 0.0, %v9156
    %v9158 = vpop.f32.mrb[0].mxu0
    %9159 = vmatprep.mubr.f32.mxu0 0.0
    %9160 = vmatmul.mubr.f32.gmra.mrb[0].mxu0 %v8860
    %v9161 = vpop.f32.mrb[0].mxu0
    %v9162 = vadd.f32 0.0, %v9161
    %v9163 = vpop.f32.mrb[0].mxu0
    %9164 = vmatprep.mubr.f32.mxu0 0.0
    %9165 = vmatmul.mubr.f32.gmra.mrb[0].mxu0 %v8863
    %v9166 = vpop.f32.mrb[0].mxu0
    %v9167 = vadd.f32 0.0, %v9166
    %v9168 = vpop.f32.mrb[0].mxu0
    %9169 = vmatprep.mubr.f32.mxu0 0.0
    %9170 = vmatmul.mubr.f32.gmra.mrb[0].mxu0 %v8866
    %v9171 = vpop.f32.mrb[0].mxu0
    %v9172 = vadd.f32 0.0, %v9171
    %v9173 = vpop.f32.mrb[0].mxu0
    %9174 = vmatprep.mubr.f32.mxu0 0.0
    %9175 = vmatmul.mubr.f32.gmra.mrb[0].mxu0 %v8869
    %v9176 = vpop.f32.mrb[0].mxu0
    %v9177 = vadd.f32 0.0, %v9176
    %v9178 = vpop.f32.mrb[0].mxu0
    %9179 = vmatprep.mubr.f32.mxu0 0.0
    %9180 = vmatmul.mubr.f32.gmra.mrb[0].mxu0 %v8872
    %v9181 = vpop.f32.mrb[0].mxu0
    %v9182 = vadd.f32 0.0, %v9181
    %v9183 = vpop.f32.mrb[0].mxu0
    %9184 = vmatprep.mubr.f32.mxu0 0.0
    %9185 = vmatmul.mubr.f32.gmra.mrb[0].mxu0 %v8875
    %v9186 = vpop.f32.mrb[0].mxu0
    %v9187 = vadd.f32 0.0, %v9186
    %v9188 = vpop.f32.mrb[0].mxu0
    %9189 = vmatprep.mubr.f32.mxu0 0.0
    %9190 = vmatmul.mubr.f32.gmra.mrb[0].mxu0 %v8878
    %v9191 = vpop.f32.mrb[0].mxu0
    %v9192 = vadd.f32 0.0, %v9191
    %v9193 = vpop.f32.mrb[0].mxu0
    %9194 = vmatprep.mubr.f32.mxu0 0.0
    %9195 = vmatmul.mubr.f32.gmra.mrb[0].mxu0 %v8881
    %v9196 = vpop.f32.mrb[0].mxu0
    %v9197 = vadd.f32 0.0, %v9196
    %v9198 = vpop.f32.mrb[0].mxu0
    %9199 = vmatprep.mubr.f32.mxu0 0.0
    %9200 = vmatmul.mubr.f32.gmra.mrb[0].mxu0 %v8884
    %v9201 = vpop.f32.mrb[0].mxu0
    %v9202 = vadd.f32 0.0, %v9201
    %v9203 = vpop.f32.mrb[0].mxu0
    %9204 = vmatprep.mubr.f32.mxu0 0.0
    %9205 = vmatmul.mubr.f32.gmra.mrb[0].mxu0 %v8887
    %v9206 = vpop.f32.mrb[0].mxu0
    %v9207 = vadd.f32 0.0, %v9206
    %v9208 = vpop.f32.mrb[0].mxu0
    %9209 = vmatprep.mubr.f32.mxu0 0.0
    %9210 = vmatmul.mubr.f32.gmra.mrb[0].mxu0 %v8890
    %v9211 = vpop.f32.mrb[0].mxu0
    %v9212 = vadd.f32 0.0, %v9211
    %v9213 = vpop.f32.mrb[0].mxu0
    %9214 = vmatprep.mubr.f32.mxu0 0.0
    %9215 = vmatmul.mubr.f32.gmra.mrb[0].mxu0 %v8893
    %v9216 = vpop.f32.mrb[0].mxu0
    %v9217 = vadd.f32 0.0, %v9216
    %v9218 = vpop.f32.mrb[0].mxu0
    %9219 = vmatprep.mubr.f32.mxu0 0.0
    %9220 = vmatmul.mubr.f32.gmra.mrb[0].mxu0 %v8896
    %v9221 = vpop.f32.mrb[0].mxu0
    %v9222 = vadd.f32 0.0, %v9221
    %v9223 = vpop.f32.mrb[0].mxu0
    %9224 = vmatprep.mubr.f32.mxu0 0.0
    %9225 = vmatmul.mubr.f32.gmra.mrb[0].mxu0 %v8899
    %v9226 = vpop.f32.mrb[0].mxu0
    %v9227 = vadd.f32 0.0, %v9226
    %v9228 = vpop.f32.mrb[0].mxu0
    %9229 = vmatprep.mubr.f32.mxu0 0.0
    %9230 = vmatmul.mubr.f32.gmra.mrb[0].mxu0 %v8902
    %v9231 = vpop.f32.mrb[0].mxu0
    %v9232 = vadd.f32 0.0, %v9231
    %v9233 = vpop.f32.mrb[0].mxu0
    %9234 = vmatprep.mubr.f32.mxu0 0.0
    %9235 = vmatmul.mubr.f32.gmra.mrb[0].mxu0 %v8905
    %v9236 = vpop.f32.mrb[0].mxu0
    %v9237 = vadd.f32 0.0, %v9236
    %v9238 = vpop.f32.mrb[0].mxu0
    %9239 = vmatprep.mubr.f32.mxu0 0.0
    %9240 = vmatmul.mubr.f32.gmra.mrb[0].mxu0 %v8908
    %v9241 = vpop.f32.mrb[0].mxu0
    %v9242 = vadd.f32 0.0, %v9241
    %v9243 = vpop.f32.mrb[0].mxu0
    %9244 = vmatprep.mubr.f32.mxu0 0.0
    %9245 = vmatmul.mubr.f32.gmra.mrb[0].mxu0 %v8911
    %v9246 = vpop.f32.mrb[0].mxu0
    %v9247 = vadd.f32 0.0, %v9246
    %v9248 = vpop.f32.mrb[0].mxu0
    %9249 = vmatprep.mubr.f32.mxu0 0.0
    %9250 = vmatmul.mubr.f32.gmra.mrb[0].mxu0 %v8914
    %v9251 = vpop.f32.mrb[0].mxu0
    %v9252 = vadd.f32 0.0, %v9251
    %v9253 = vpop.f32.mrb[0].mxu0
    %9254 = vmatprep.mubr.f32.mxu0 0.0
    %9255 = vmatmul.mubr.f32.gmra.mrb[0].mxu0 %v8917
    %v9256 = vpop.f32.mrb[0].mxu0
    %v9257 = vadd.f32 0.0, %v9256
    %v9258 = vpop.f32.mrb[0].mxu0
    %9259 = vmatprep.mubr.f32.mxu0 0.0
    %9260 = vmatmul.mubr.f32.gmra.mrb[0].mxu0 %v8920
    %v9261 = vpop.f32.mrb[0].mxu0
    %v9262 = vadd.f32 0.0, %v9261
    %v9263 = vpop.f32.mrb[0].mxu0
    %9264 = vmatprep.mubr.f32.mxu0 0.0
    %9265 = vmatmul.mubr.f32.gmra.mrb[0].mxu0 %v8923
    %v9266 = vpop.f32.mrb[0].mxu0
    %v9267 = vadd.f32 0.0, %v9266
    %v9268 = vpop.f32.mrb[0].mxu0
    %9269 = vmatprep.mubr.f32.mxu0 0.0
    %9270 = vmatmul.mubr.f32.gmra.mrb[0].mxu0 %v8926
    %v9271 = vpop.f32.mrb[0].mxu0
    %v9272 = vadd.f32 0.0, %v9271
    %v9273 = vpop.f32.mrb[0].mxu0
    %9274 = vmatprep.mubr.f32.mxu0 0.0
    %9275 = vmatmul.mubr.f32.gmra.mrb[0].mxu0 %v8929
    %v9276 = vpop.f32.mrb[0].mxu0
    %v9277 = vadd.f32 0.0, %v9276
    %v9278 = vpop.f32.mrb[0].mxu0
    %9279 = vmatprep.mubr.f32.mxu0 0.0
    %9280 = vmatmul.mubr.f32.gmra.mrb[0].mxu0 %v8932
    %v9281 = vpop.f32.mrb[0].mxu0
    %v9282 = vadd.f32 0.0, %v9281
    %v9283 = vpop.f32.mrb[0].mxu0
    %9284 = vmatprep.mubr.f32.mxu0 0.0
    %9285 = vmatmul.mubr.f32.gmra.mrb[0].mxu0 %v8935
    %v9286 = vpop.f32.mrb[0].mxu0
    %v9287 = vadd.f32 0.0, %v9286
    %v9288 = vpop.f32.mrb[0].mxu0
    %9289 = vmatprep.mubr.f32.mxu0 0.0
    %9290 = vmatmul.mubr.f32.gmra.mrb[0].mxu0 %v8938
    %v9291 = vpop.f32.mrb[0].mxu0
    %v9292 = vadd.f32 0.0, %v9291
    %v9293 = vpop.f32.mrb[0].mxu0
    %9294 = vmatprep.mubr.f32.mxu0 0.0
    %9295 = vmatmul.mubr.f32.gmra.mrb[0].mxu0 %v8941
    %v9296 = vpop.f32.mrb[0].mxu0
    %v9297 = vadd.f32 0.0, %v9296
    %v9298 = vpop.f32.mrb[0].mxu0
    %9299 = vmatprep.mubr.f32.mxu0 0.0
    %9300 = vmatmul.mubr.f32.gmra.mrb[0].mxu0 %v8944
    %v9301 = vpop.f32.mrb[0].mxu0
    %v9302 = vadd.f32 0.0, %v9301
    %v9303 = vpop.f32.mrb[0].mxu0
    %9304 = vmatprep.mubr.f32.mxu0 0.0
    %9305 = vmatmul.mubr.f32.gmra.mrb[0].mxu0 %v8947
    %v9306 = vpop.f32.mrb[0].mxu0
    %v9307 = vadd.f32 0.0, %v9306
    %v9308 = vpop.f32.mrb[0].mxu0
    %9309 = vmatprep.mubr.f32.mxu0 0.0
    %9310 = vmatmul.mubr.f32.gmra.mrb[0].mxu0 %v8950
    %v9311 = vpop.f32.mrb[0].mxu0
    %v9312 = vadd.f32 0.0, %v9311
    %v9313 = vpop.f32.mrb[0].mxu0
    %9314 = vmatprep.mubr.f32.mxu0 0.0
    %9315 = vmatmul.mubr.f32.gmra.mrb[0].mxu0 %v8953
    %v9316 = vpop.f32.mrb[0].mxu0
    %v9317 = vadd.f32 0.0, %v9316
    %v9318 = vpop.f32.mrb[0].mxu0
    %9319 = vmatprep.mubr.f32.mxu0 0.0
    %9320 = vmatmul.mubr.f32.gmra.mrb[0].mxu0 %v8956
    %v9321 = vpop.f32.mrb[0].mxu0
    %v9322 = vadd.f32 0.0, %v9321
    %v9323 = vpop.f32.mrb[0].mxu0
    %9324 = vmatprep.mubr.f32.mxu0 0.0
    %9325 = vmatmul.mubr.f32.gmra.mrb[0].mxu0 %v8959
    %v9326 = vpop.f32.mrb[0].mxu0
    %v9327 = vadd.f32 0.0, %v9326
    %v9328 = vpop.f32.mrb[0].mxu0
    %9329 = vmatprep.mubr.f32.mxu0 0.0
    %9330 = vmatmul.mubr.f32.gmra.mrb[0].mxu0 %v8962
    %v9331 = vpop.f32.mrb[0].mxu0
    %v9332 = vadd.f32 0.0, %v9331
    %v9333 = vpop.f32.mrb[0].mxu0
    %9334 = vmatprep.mubr.f32.mxu0 0.0
    %9335 = vmatmul.mubr.f32.gmra.mrb[0].mxu0 %v8965
    %v9336 = vpop.f32.mrb[0].mxu0
    %v9337 = vadd.f32 0.0, %v9336
    %v9338 = vpop.f32.mrb[0].mxu0
    %9339 = vmatprep.mubr.f32.mxu0 0.0
    %9340 = vmatmul.mubr.f32.gmra.mrb[0].mxu0 %v8968
    %v9341 = vpop.f32.mrb[0].mxu0
    %v9342 = vadd.f32 0.0, %v9341
    %v9343 = vpop.f32.mrb[0].mxu0
    %9344 = vmatprep.mubr.f32.mxu0 0.0
    %9345 = vmatmul.mubr.f32.gmra.mrb[0].mxu0 %v8971
    %v9346 = vpop.f32.mrb[0].mxu0
    %v9347 = vadd.f32 0.0, %v9346
    %v9348 = vpop.f32.mrb[0].mxu0
    %9349 = vmatprep.mubr.f32.mxu0 0.0
    %9350 = vmatmul.mubr.f32.gmra.mrb[0].mxu0 %v8974
    %v9351 = vpop.f32.mrb[0].mxu0
    %v9352 = vadd.f32 0.0, %v9351
    %v9353 = vpop.f32.mrb[0].mxu0
    %9354 = vmatprep.mubr.f32.mxu0 0.0
    %9355 = vmatmul.mubr.f32.gmra.mrb[0].mxu0 %v8977
    %v9356 = vpop.f32.mrb[0].mxu0
    %v9357 = vadd.f32 0.0, %v9356
    %v9358 = vpop.f32.mrb[0].mxu0
    %9359 = vmatprep.mubr.f32.mxu0 0.0
    %9360 = vmatmul.mubr.f32.gmra.mrb[0].mxu0 %v8980
    %v9361 = vpop.f32.mrb[0].mxu0
    %v9362 = vadd.f32 0.0, %v9361
    %v9363 = vpop.f32.mrb[0].mxu0
    %9364 = vmatprep.mubr.f32.mxu0 0.0
    %9365 = vmatmul.mubr.f32.gmra.mrb[0].mxu0 %v8983
    %v9366 = vpop.f32.mrb[0].mxu0
    %v9367 = vadd.f32 0.0, %v9366
    %v9368 = vpop.f32.mrb[0].mxu0
    %9369 = vdwg.mxu0
    %v9370 = vadd.f32 %v8657, %v9052
    %v9371 = vadd.f32 %v8658, %v9057
    %v9372 = vadd.f32 %v8659, %v9062
    %v9373 = vadd.f32 %v8660, %v9067
    %v9374 = vadd.f32 %v8661, %v9072
    %v9375 = vadd.f32 %v8662, %v9077
    %v9376 = vadd.f32 %v8663, %v9082
    %v9377 = vadd.f32 %v8664, %v9087
    %v9378 = vadd.f32 %v8665, %v9092
    %v9379 = vadd.f32 %v8666, %v9097
    %v9380 = vadd.f32 %v8667, %v9102
    %v9381 = vadd.f32 %v8668, %v9107
    %v9382 = vadd.f32 %v8669, %v9112
    %v9383 = vadd.f32 %v8670, %v9117
    %v9384 = vadd.f32 %v8671, %v9122
    %v9385 = vadd.f32 %v8672, %v9127
    %v9386 = vadd.f32 %v8673, %v9132
    %v9387 = vadd.f32 %v8674, %v9137
    %v9388 = vadd.f32 %v8675, %v9142
    %v9389 = vadd.f32 %v8676, %v9147
    %v9390 = vadd.f32 %v8677, %v9152
    %v9391 = vadd.f32 %v8678, %v9157
    %v9392 = vadd.f32 %v8679, %v9162
    %v9393 = vadd.f32 %v8680, %v9167
    %v9394 = vadd.f32 %v8681, %v9172
    %v9395 = vadd.f32 %v8682, %v9177
    %v9396 = vadd.f32 %v8683, %v9182
    %v9397 = vadd.f32 %v8684, %v9187
    %v9398 = vadd.f32 %v8685, %v9192
    %v9399 = vadd.f32 %v8686, %v9197
    %v9400 = vadd.f32 %v8687, %v9202
    %v9401 = vadd.f32 %v8688, %v9207
    %v9402 = vadd.f32 %v8689, %v9212
    %v9403 = vadd.f32 %v8690, %v9217
    %v9404 = vadd.f32 %v8691, %v9222
    %v9405 = vadd.f32 %v8692, %v9227
    %v9406 = vadd.f32 %v8693, %v9232
    %v9407 = vadd.f32 %v8694, %v9237
    %v9408 = vadd.f32 %v8695, %v9242
    %v9409 = vadd.f32 %v8696, %v9247
    %v9410 = vadd.f32 %v8697, %v9252
    %v9411 = vadd.f32 %v8698, %v9257
    %v9412 = vadd.f32 %v8699, %v9262
    %v9413 = vadd.f32 %v8700, %v9267
    %v9414 = vadd.f32 %v8701, %v9272
    %v9415 = vadd.f32 %v8702, %v9277
    %v9416 = vadd.f32 %v8703, %v9282
    %v9417 = vadd.f32 %v8704, %v9287
    %v9418 = vadd.f32 %v8705, %v9292
    %v9419 = vadd.f32 %v8706, %v9297
    %v9420 = vadd.f32 %v8707, %v9302
    %v9421 = vadd.f32 %v8708, %v9307
    %v9422 = vadd.f32 %v8709, %v9312
    %v9423 = vadd.f32 %v8710, %v9317
    %v9424 = vadd.f32 %v8711, %v9322
    %v9425 = vadd.f32 %v8712, %v9327
    %v9426 = vadd.f32 %v8713, %v9332
    %v9427 = vadd.f32 %v8714, %v9337
    %v9428 = vadd.f32 %v8715, %v9342
    %v9429 = vadd.f32 %v8716, %v9347
    %v9430 = vadd.f32 %v8717, %v9352
    %v9431 = vadd.f32 %v8718, %v9357
    %v9432 = vadd.f32 %v8719, %v9362
    %v9433 = vadd.f32 %v8720, %v9367
    %v9434 = vld [vmem:[%s6643] sm:$0xff]
    %v9435 = vld [vmem:[%s6643 + $0x8] sm:$0xff]
    %v9436 = vld [vmem:[%s6643 + $0x10] sm:$0xff]
    %v9437 = vld [vmem:[%s6643 + $0x18] sm:$0xff]
    %v9438 = vld [vmem:[%s6643 + $0x20] sm:$0xff]
    %v9439 = vld [vmem:[%s6643 + $0x28] sm:$0xff]
    %v9440 = vld [vmem:[%s6643 + $0x30] sm:$0xff]
    %v9441 = vld [vmem:[%s6643 + $0x38] sm:$0xff]
    %v9442 = vld [vmem:[%s6643 + $0x40] sm:$0xff]
    %v9443 = vld [vmem:[%s6643 + $0x48] sm:$0xff]
    %v9444 = vld [vmem:[%s6643 + $0x50] sm:$0xff]
    %v9445 = vld [vmem:[%s6643 + $0x58] sm:$0xff]
    %v9446 = vld [vmem:[%s6643 + $0x60] sm:$0xff]
    %v9447 = vld [vmem:[%s6643 + $0x68] sm:$0xff]
    %v9448 = vld [vmem:[%s6643 + $0x70] sm:$0xff]
    %v9449 = vld [vmem:[%s6643 + $0x78] sm:$0xff]
    %v9450 = vld [vmem:[%s6643 + $0x100] sm:$0xff]
    %v9451 = vld [vmem:[%s6643 + $0x108] sm:$0xff]
    %v9452 = vld [vmem:[%s6643 + $0x110] sm:$0xff]
    %v9453 = vld [vmem:[%s6643 + $0x118] sm:$0xff]
    %v9454 = vld [vmem:[%s6643 + $0x120] sm:$0xff]
    %v9455 = vld [vmem:[%s6643 + $0x128] sm:$0xff]
    %v9456 = vld [vmem:[%s6643 + $0x130] sm:$0xff]
    %v9457 = vld [vmem:[%s6643 + $0x138] sm:$0xff]
    %v9458 = vld [vmem:[%s6643 + $0x140] sm:$0xff]
    %v9459 = vld [vmem:[%s6643 + $0x148] sm:$0xff]
    %v9460 = vld [vmem:[%s6643 + $0x150] sm:$0xff]
    %v9461 = vld [vmem:[%s6643 + $0x158] sm:$0xff]
    %v9462 = vld [vmem:[%s6643 + $0x160] sm:$0xff]
    %v9463 = vld [vmem:[%s6643 + $0x168] sm:$0xff]
    %v9464 = vld [vmem:[%s6643 + $0x170] sm:$0xff]
    %v9465 = vld [vmem:[%s6643 + $0x178] sm:$0xff]
    %v9466 = vld [vmem:[%s6643 + $0x400] sm:$0xff]
    %v9467 = vld [vmem:[%s6643 + $0x408] sm:$0xff]
    %v9468 = vld [vmem:[%s6643 + $0x410] sm:$0xff]
    %v9469 = vld [vmem:[%s6643 + $0x418] sm:$0xff]
    %v9470 = vld [vmem:[%s6643 + $0x420] sm:$0xff]
    %v9471 = vld [vmem:[%s6643 + $0x428] sm:$0xff]
    %v9472 = vld [vmem:[%s6643 + $0x430] sm:$0xff]
    %v9473 = vld [vmem:[%s6643 + $0x438] sm:$0xff]
    %v9474 = vld [vmem:[%s6643 + $0x440] sm:$0xff]
    %v9475 = vld [vmem:[%s6643 + $0x448] sm:$0xff]
    %v9476 = vld [vmem:[%s6643 + $0x450] sm:$0xff]
    %v9477 = vld [vmem:[%s6643 + $0x458] sm:$0xff]
    %v9478 = vld [vmem:[%s6643 + $0x460] sm:$0xff]
    %v9479 = vld [vmem:[%s6643 + $0x468] sm:$0xff]
    %v9480 = vld [vmem:[%s6643 + $0x470] sm:$0xff]
    %v9481 = vld [vmem:[%s6643 + $0x478] sm:$0xff]
    %v9482 = vld [vmem:[%s6643 + $0x500] sm:$0xff]
    %v9483 = vld [vmem:[%s6643 + $0x508] sm:$0xff]
    %v9484 = vld [vmem:[%s6643 + $0x510] sm:$0xff]
    %v9485 = vld [vmem:[%s6643 + $0x518] sm:$0xff]
    %v9486 = vld [vmem:[%s6643 + $0x520] sm:$0xff]
    %v9487 = vld [vmem:[%s6643 + $0x528] sm:$0xff]
    %v9488 = vld [vmem:[%s6643 + $0x530] sm:$0xff]
    %v9489 = vld [vmem:[%s6643 + $0x538] sm:$0xff]
    %v9490 = vld [vmem:[%s6643 + $0x540] sm:$0xff]
    %v9491 = vld [vmem:[%s6643 + $0x548] sm:$0xff]
    %v9492 = vld [vmem:[%s6643 + $0x550] sm:$0xff]
    %v9493 = vld [vmem:[%s6643 + $0x558] sm:$0xff]
    %v9494 = vld [vmem:[%s6643 + $0x560] sm:$0xff]
    %v9495 = vld [vmem:[%s6643 + $0x568] sm:$0xff]
    %v9496 = vld [vmem:[%s6643 + $0x570] sm:$0xff]
    %v9497 = vld [vmem:[%s6643 + $0x578] sm:$0xff]
    %v9498 = vld [vmem:[%s3 + $0x100] sm:$0xff]
    %v9499 = vld [vmem:[%s3 + $0x108] sm:$0xff]
    %v9500 = vld [vmem:[%s3 + $0x110] sm:$0xff]
    %v9501 = vld [vmem:[%s3 + $0x118] sm:$0xff]
    %v9502 = vld [vmem:[%s3 + $0x120] sm:$0xff]
    %v9503 = vld [vmem:[%s3 + $0x128] sm:$0xff]
    %v9504 = vld [vmem:[%s3 + $0x130] sm:$0xff]
    %v9505 = vld [vmem:[%s3 + $0x138] sm:$0xff]
    %v9507 = vsel %vm165, %v9434, 0
    %v9510 = vsel %vm165, %v9435, 0
    %v9513 = vsel %vm165, %v9436, 0
    %v9516 = vsel %vm165, %v9437, 0
    %v9519 = vsel %vm165, %v9438, 0
    %v9522 = vsel %vm165, %v9439, 0
    %v9525 = vsel %vm165, %v9440, 0
    %v9528 = vsel %vm165, %v9441, 0
    %v9531 = vsel %vm165, %v9442, 0
    %v9534 = vsel %vm165, %v9443, 0
    %v9537 = vsel %vm165, %v9444, 0
    %v9540 = vsel %vm165, %v9445, 0
    %v9543 = vsel %vm165, %v9446, 0
    %v9546 = vsel %vm165, %v9447, 0
    %v9549 = vsel %vm165, %v9448, 0
    %v9552 = vsel %vm165, %v9449, 0
    %v9555 = vsel %vm165, %v9450, 0
    %v9558 = vsel %vm165, %v9451, 0
    %v9561 = vsel %vm165, %v9452, 0
    %v9564 = vsel %vm165, %v9453, 0
    %v9567 = vsel %vm165, %v9454, 0
    %v9570 = vsel %vm165, %v9455, 0
    %v9573 = vsel %vm165, %v9456, 0
    %v9576 = vsel %vm165, %v9457, 0
    %v9579 = vsel %vm165, %v9458, 0
    %v9582 = vsel %vm165, %v9459, 0
    %v9585 = vsel %vm165, %v9460, 0
    %v9588 = vsel %vm165, %v9461, 0
    %v9591 = vsel %vm165, %v9462, 0
    %v9594 = vsel %vm165, %v9463, 0
    %v9597 = vsel %vm165, %v9464, 0
    %v9600 = vsel %vm165, %v9465, 0
    %v9603 = vsel %vm165, %v9466, 0
    %v9606 = vsel %vm165, %v9467, 0
    %v9609 = vsel %vm165, %v9468, 0
    %v9612 = vsel %vm165, %v9469, 0
    %v9615 = vsel %vm165, %v9470, 0
    %v9618 = vsel %vm165, %v9471, 0
    %v9621 = vsel %vm165, %v9472, 0
    %v9624 = vsel %vm165, %v9473, 0
    %v9627 = vsel %vm165, %v9474, 0
    %v9630 = vsel %vm165, %v9475, 0
    %v9633 = vsel %vm165, %v9476, 0
    %v9636 = vsel %vm165, %v9477, 0
    %v9639 = vsel %vm165, %v9478, 0
    %v9642 = vsel %vm165, %v9479, 0
    %v9645 = vsel %vm165, %v9480, 0
    %v9648 = vsel %vm165, %v9481, 0
    %v9651 = vsel %vm165, %v9482, 0
    %v9654 = vsel %vm165, %v9483, 0
    %v9657 = vsel %vm165, %v9484, 0
    %v9660 = vsel %vm165, %v9485, 0
    %v9663 = vsel %vm165, %v9486, 0
    %v9666 = vsel %vm165, %v9487, 0
    %v9669 = vsel %vm165, %v9488, 0
    %v9672 = vsel %vm165, %v9489, 0
    %v9675 = vsel %vm165, %v9490, 0
    %v9678 = vsel %vm165, %v9491, 0
    %v9681 = vsel %vm165, %v9492, 0
    %v9684 = vsel %vm165, %v9493, 0
    %v9687 = vsel %vm165, %v9494, 0
    %v9690 = vsel %vm165, %v9495, 0
    %v9693 = vsel %vm165, %v9496, 0
    %v9696 = vsel %vm165, %v9497, 0
    %9698 = vmatprep.subr.mxu0 0.0
    %9699 = vmatpush1.msra.mxu0 %v9498
    %9700 = vmatprep.subr.mxu0 0.0
    %9701 = vmatpush1.msra.mxu0 %v9499
    %9702 = vmatprep.subr.mxu0 0.0
    %9703 = vmatpush1.msra.mxu0 %v9500
    %9704 = vmatprep.subr.mxu0 0.0
    %9705 = vmatpush1.msra.mxu0 %v9501
    %9706 = vmatprep.subr.mxu0 0.0
    %9707 = vmatpush1.msra.mxu0 %v9502
    %9708 = vmatprep.subr.mxu0 0.0
    %9709 = vmatpush1.msra.mxu0 %v9503
    %9710 = vmatprep.subr.mxu0 0.0
    %9711 = vmatpush1.msra.mxu0 %v9504
    %9712 = vmatprep.subr.mxu0 0.0
    %9713 = vmatpush1.msra.mxu0 %v9505
    %9714 = vmatprep.subr.mxu0 0.0
    %9715 = vmatpush1.msra.mxu0 0.0
    %9716 = vmatprep.subr.mxu0 0.0
    %9717 = vmatpush1.msra.mxu0 0.0
    %9718 = vmatprep.subr.mxu0 0.0
    %9719 = vmatpush1.msra.mxu0 0.0
    %9720 = vmatprep.subr.mxu0 0.0
    %9721 = vmatpush1.msra.mxu0 0.0
    %9722 = vmatprep.subr.mxu0 0.0
    %9723 = vmatpush1.msra.mxu0 0.0
    %9724 = vmatprep.subr.mxu0 0.0
    %9725 = vmatpush1.msra.mxu0 0.0
    %9726 = vmatprep.subr.mxu0 0.0
    %9727 = vmatpush1.msra.mxu0 0.0
    %9728 = vmatprep.subr.mxu0 0.0
    %9729 = vmatpush1.msra.mxu0 0.0
    %9730 = vmatprep.subr.mxu0 0.0
    %9731 = vmatpush1.msra.mxu0 0.0
    %9732 = vmatprep.subr.mxu0 0.0
    %9733 = vmatpush1.msra.mxu0 0.0
    %9734 = vmatprep.subr.mxu0 0.0
    %9735 = vmatpush1.msra.mxu0 0.0
    %9736 = vmatprep.subr.mxu0 0.0
    %9737 = vmatpush1.msra.mxu0 0.0
    %9738 = vmatprep.subr.mxu0 0.0
    %9739 = vmatpush1.msra.mxu0 0.0
    %9740 = vmatprep.subr.mxu0 0.0
    %9741 = vmatpush1.msra.mxu0 0.0
    %9742 = vmatprep.subr.mxu0 0.0
    %9743 = vmatpush1.msra.mxu0 0.0
    %9744 = vmatprep.subr.mxu0 0.0
    %9745 = vmatpush1.msra.mxu0 0.0
    %9746 = vmatprep.subr.mxu0 0.0
    %9747 = vmatpush1.msra.mxu0 0.0
    %9748 = vmatprep.subr.mxu0 0.0
    %9749 = vmatpush1.msra.mxu0 0.0
    %9750 = vmatprep.subr.mxu0 0.0
    %9751 = vmatpush1.msra.mxu0 0.0
    %9752 = vmatprep.subr.mxu0 0.0
    %9753 = vmatpush1.msra.mxu0 0.0
    %9754 = vmatprep.subr.mxu0 0.0
    %9755 = vmatpush1.msra.mxu0 0.0
    %9756 = vmatprep.subr.mxu0 0.0
    %9757 = vmatpush1.msra.mxu0 0.0
    %9758 = vmatprep.subr.mxu0 0.0
    %9759 = vmatpush1.msra.mxu0 0.0
    %9760 = vmatprep.subr.mxu0 0.0
    %9761 = vmatpush1.msra.mxu0 0.0
    %9762 = vmatprep.mubr.f32.mxu0 0.0
    %9763 = vmatmul.mubr.f32.gmra.mrb[0].mxu0 %v9507
    %v9764 = vpop.f32.mrb[0].mxu0
    %v9765 = vadd.f32 0.0, %v9764
    %v9766 = vpop.f32.mrb[0].mxu0
    %9767 = vmatprep.mubr.f32.mxu0 0.0
    %9768 = vmatmul.mubr.f32.gmra.mrb[0].mxu0 %v9510
    %v9769 = vpop.f32.mrb[0].mxu0
    %v9770 = vadd.f32 0.0, %v9769
    %v9771 = vpop.f32.mrb[0].mxu0
    %9772 = vmatprep.mubr.f32.mxu0 0.0
    %9773 = vmatmul.mubr.f32.gmra.mrb[0].mxu0 %v9513
    %v9774 = vpop.f32.mrb[0].mxu0
    %v9775 = vadd.f32 0.0, %v9774
    %v9776 = vpop.f32.mrb[0].mxu0
    %9777 = vmatprep.mubr.f32.mxu0 0.0
    %9778 = vmatmul.mubr.f32.gmra.mrb[0].mxu0 %v9516
    %v9779 = vpop.f32.mrb[0].mxu0
    %v9780 = vadd.f32 0.0, %v9779
    %v9781 = vpop.f32.mrb[0].mxu0
    %9782 = vmatprep.mubr.f32.mxu0 0.0
    %9783 = vmatmul.mubr.f32.gmra.mrb[0].mxu0 %v9519
    %v9784 = vpop.f32.mrb[0].mxu0
    %v9785 = vadd.f32 0.0, %v9784
    %v9786 = vpop.f32.mrb[0].mxu0
    %9787 = vmatprep.mubr.f32.mxu0 0.0
    %9788 = vmatmul.mubr.f32.gmra.mrb[0].mxu0 %v9522
    %v9789 = vpop.f32.mrb[0].mxu0
    %v9790 = vadd.f32 0.0, %v9789
    %v9791 = vpop.f32.mrb[0].mxu0
    %9792 = vmatprep.mubr.f32.mxu0 0.0
    %9793 = vmatmul.mubr.f32.gmra.mrb[0].mxu0 %v9525
    %v9794 = vpop.f32.mrb[0].mxu0
    %v9795 = vadd.f32 0.0, %v9794
    %v9796 = vpop.f32.mrb[0].mxu0
    %9797 = vmatprep.mubr.f32.mxu0 0.0
    %9798 = vmatmul.mubr.f32.gmra.mrb[0].mxu0 %v9528
    %v9799 = vpop.f32.mrb[0].mxu0
    %v9800 = vadd.f32 0.0, %v9799
    %v9801 = vpop.f32.mrb[0].mxu0
    %9802 = vmatprep.mubr.f32.mxu0 0.0
    %9803 = vmatmul.mubr.f32.gmra.mrb[0].mxu0 %v9531
    %v9804 = vpop.f32.mrb[0].mxu0
    %v9805 = vadd.f32 0.0, %v9804
    %v9806 = vpop.f32.mrb[0].mxu0
    %9807 = vmatprep.mubr.f32.mxu0 0.0
    %9808 = vmatmul.mubr.f32.gmra.mrb[0].mxu0 %v9534
    %v9809 = vpop.f32.mrb[0].mxu0
    %v9810 = vadd.f32 0.0, %v9809
    %v9811 = vpop.f32.mrb[0].mxu0
    %9812 = vmatprep.mubr.f32.mxu0 0.0
    %9813 = vmatmul.mubr.f32.gmra.mrb[0].mxu0 %v9537
    %v9814 = vpop.f32.mrb[0].mxu0
    %v9815 = vadd.f32 0.0, %v9814
    %v9816 = vpop.f32.mrb[0].mxu0
    %9817 = vmatprep.mubr.f32.mxu0 0.0
    %9818 = vmatmul.mubr.f32.gmra.mrb[0].mxu0 %v9540
    %v9819 = vpop.f32.mrb[0].mxu0
    %v9820 = vadd.f32 0.0, %v9819
    %v9821 = vpop.f32.mrb[0].mxu0
    %9822 = vmatprep.mubr.f32.mxu0 0.0
    %9823 = vmatmul.mubr.f32.gmra.mrb[0].mxu0 %v9543
    %v9824 = vpop.f32.mrb[0].mxu0
    %v9825 = vadd.f32 0.0, %v9824
    %v9826 = vpop.f32.mrb[0].mxu0
    %9827 = vmatprep.mubr.f32.mxu0 0.0
    %9828 = vmatmul.mubr.f32.gmra.mrb[0].mxu0 %v9546
    %v9829 = vpop.f32.mrb[0].mxu0
    %v9830 = vadd.f32 0.0, %v9829
    %v9831 = vpop.f32.mrb[0].mxu0
    %9832 = vmatprep.mubr.f32.mxu0 0.0
    %9833 = vmatmul.mubr.f32.gmra.mrb[0].mxu0 %v9549
    %v9834 = vpop.f32.mrb[0].mxu0
    %v9835 = vadd.f32 0.0, %v9834
    %v9836 = vpop.f32.mrb[0].mxu0
    %9837 = vmatprep.mubr.f32.mxu0 0.0
    %9838 = vmatmul.mubr.f32.gmra.mrb[0].mxu0 %v9552
    %v9839 = vpop.f32.mrb[0].mxu0
    %v9840 = vadd.f32 0.0, %v9839
    %v9841 = vpop.f32.mrb[0].mxu0
    %9842 = vmatprep.mubr.f32.mxu0 0.0
    %9843 = vmatmul.mubr.f32.gmra.mrb[0].mxu0 %v9555
    %v9844 = vpop.f32.mrb[0].mxu0
    %v9845 = vadd.f32 0.0, %v9844
    %v9846 = vpop.f32.mrb[0].mxu0
    %9847 = vmatprep.mubr.f32.mxu0 0.0
    %9848 = vmatmul.mubr.f32.gmra.mrb[0].mxu0 %v9558
    %v9849 = vpop.f32.mrb[0].mxu0
    %v9850 = vadd.f32 0.0, %v9849
    %v9851 = vpop.f32.mrb[0].mxu0
    %9852 = vmatprep.mubr.f32.mxu0 0.0
    %9853 = vmatmul.mubr.f32.gmra.mrb[0].mxu0 %v9561
    %v9854 = vpop.f32.mrb[0].mxu0
    %v9855 = vadd.f32 0.0, %v9854
    %v9856 = vpop.f32.mrb[0].mxu0
    %9857 = vmatprep.mubr.f32.mxu0 0.0
    %9858 = vmatmul.mubr.f32.gmra.mrb[0].mxu0 %v9564
    %v9859 = vpop.f32.mrb[0].mxu0
    %v9860 = vadd.f32 0.0, %v9859
    %v9861 = vpop.f32.mrb[0].mxu0
    %9862 = vmatprep.mubr.f32.mxu0 0.0
    %9863 = vmatmul.mubr.f32.gmra.mrb[0].mxu0 %v9567
    %v9864 = vpop.f32.mrb[0].mxu0
    %v9865 = vadd.f32 0.0, %v9864
    %v9866 = vpop.f32.mrb[0].mxu0
    %9867 = vmatprep.mubr.f32.mxu0 0.0
    %9868 = vmatmul.mubr.f32.gmra.mrb[0].mxu0 %v9570
    %v9869 = vpop.f32.mrb[0].mxu0
    %v9870 = vadd.f32 0.0, %v9869
    %v9871 = vpop.f32.mrb[0].mxu0
    %9872 = vmatprep.mubr.f32.mxu0 0.0
    %9873 = vmatmul.mubr.f32.gmra.mrb[0].mxu0 %v9573
    %v9874 = vpop.f32.mrb[0].mxu0
    %v9875 = vadd.f32 0.0, %v9874
    %v9876 = vpop.f32.mrb[0].mxu0
    %9877 = vmatprep.mubr.f32.mxu0 0.0
    %9878 = vmatmul.mubr.f32.gmra.mrb[0].mxu0 %v9576
    %v9879 = vpop.f32.mrb[0].mxu0
    %v9880 = vadd.f32 0.0, %v9879
    %v9881 = vpop.f32.mrb[0].mxu0
    %9882 = vmatprep.mubr.f32.mxu0 0.0
    %9883 = vmatmul.mubr.f32.gmra.mrb[0].mxu0 %v9579
    %v9884 = vpop.f32.mrb[0].mxu0
    %v9885 = vadd.f32 0.0, %v9884
    %v9886 = vpop.f32.mrb[0].mxu0
    %9887 = vmatprep.mubr.f32.mxu0 0.0
    %9888 = vmatmul.mubr.f32.gmra.mrb[0].mxu0 %v9582
    %v9889 = vpop.f32.mrb[0].mxu0
    %v9890 = vadd.f32 0.0, %v9889
    %v9891 = vpop.f32.mrb[0].mxu0
    %9892 = vmatprep.mubr.f32.mxu0 0.0
    %9893 = vmatmul.mubr.f32.gmra.mrb[0].mxu0 %v9585
    %v9894 = vpop.f32.mrb[0].mxu0
    %v9895 = vadd.f32 0.0, %v9894
    %v9896 = vpop.f32.mrb[0].mxu0
    %9897 = vmatprep.mubr.f32.mxu0 0.0
    %9898 = vmatmul.mubr.f32.gmra.mrb[0].mxu0 %v9588
    %v9899 = vpop.f32.mrb[0].mxu0
    %v9900 = vadd.f32 0.0, %v9899
    %v9901 = vpop.f32.mrb[0].mxu0
    %9902 = vmatprep.mubr.f32.mxu0 0.0
    %9903 = vmatmul.mubr.f32.gmra.mrb[0].mxu0 %v9591
    %v9904 = vpop.f32.mrb[0].mxu0
    %v9905 = vadd.f32 0.0, %v9904
    %v9906 = vpop.f32.mrb[0].mxu0
    %9907 = vmatprep.mubr.f32.mxu0 0.0
    %9908 = vmatmul.mubr.f32.gmra.mrb[0].mxu0 %v9594
    %v9909 = vpop.f32.mrb[0].mxu0
    %v9910 = vadd.f32 0.0, %v9909
    %v9911 = vpop.f32.mrb[0].mxu0
    %9912 = vmatprep.mubr.f32.mxu0 0.0
    %9913 = vmatmul.mubr.f32.gmra.mrb[0].mxu0 %v9597
    %v9914 = vpop.f32.mrb[0].mxu0
    %v9915 = vadd.f32 0.0, %v9914
    %v9916 = vpop.f32.mrb[0].mxu0
    %9917 = vmatprep.mubr.f32.mxu0 0.0
    %9918 = vmatmul.mubr.f32.gmra.mrb[0].mxu0 %v9600
    %v9919 = vpop.f32.mrb[0].mxu0
    %v9920 = vadd.f32 0.0, %v9919
    %v9921 = vpop.f32.mrb[0].mxu0
    %9922 = vmatprep.mubr.f32.mxu0 0.0
    %9923 = vmatmul.mubr.f32.gmra.mrb[0].mxu0 %v9603
    %v9924 = vpop.f32.mrb[0].mxu0
    %v9925 = vadd.f32 0.0, %v9924
    %v9926 = vpop.f32.mrb[0].mxu0
    %9927 = vmatprep.mubr.f32.mxu0 0.0
    %9928 = vmatmul.mubr.f32.gmra.mrb[0].mxu0 %v9606
    %v9929 = vpop.f32.mrb[0].mxu0
    %v9930 = vadd.f32 0.0, %v9929
    %v9931 = vpop.f32.mrb[0].mxu0
    %9932 = vmatprep.mubr.f32.mxu0 0.0
    %9933 = vmatmul.mubr.f32.gmra.mrb[0].mxu0 %v9609
    %v9934 = vpop.f32.mrb[0].mxu0
    %v9935 = vadd.f32 0.0, %v9934
    %v9936 = vpop.f32.mrb[0].mxu0
    %9937 = vmatprep.mubr.f32.mxu0 0.0
    %9938 = vmatmul.mubr.f32.gmra.mrb[0].mxu0 %v9612
    %v9939 = vpop.f32.mrb[0].mxu0
    %v9940 = vadd.f32 0.0, %v9939
    %v9941 = vpop.f32.mrb[0].mxu0
    %9942 = vmatprep.mubr.f32.mxu0 0.0
    %9943 = vmatmul.mubr.f32.gmra.mrb[0].mxu0 %v9615
    %v9944 = vpop.f32.mrb[0].mxu0
    %v9945 = vadd.f32 0.0, %v9944
    %v9946 = vpop.f32.mrb[0].mxu0
    %9947 = vmatprep.mubr.f32.mxu0 0.0
    %9948 = vmatmul.mubr.f32.gmra.mrb[0].mxu0 %v9618
    %v9949 = vpop.f32.mrb[0].mxu0
    %v9950 = vadd.f32 0.0, %v9949
    %v9951 = vpop.f32.mrb[0].mxu0
    %9952 = vmatprep.mubr.f32.mxu0 0.0
    %9953 = vmatmul.mubr.f32.gmra.mrb[0].mxu0 %v9621
    %v9954 = vpop.f32.mrb[0].mxu0
    %v9955 = vadd.f32 0.0, %v9954
    %v9956 = vpop.f32.mrb[0].mxu0
    %9957 = vmatprep.mubr.f32.mxu0 0.0
    %9958 = vmatmul.mubr.f32.gmra.mrb[0].mxu0 %v9624
    %v9959 = vpop.f32.mrb[0].mxu0
    %v9960 = vadd.f32 0.0, %v9959
    %v9961 = vpop.f32.mrb[0].mxu0
    %9962 = vmatprep.mubr.f32.mxu0 0.0
    %9963 = vmatmul.mubr.f32.gmra.mrb[0].mxu0 %v9627
    %v9964 = vpop.f32.mrb[0].mxu0
    %v9965 = vadd.f32 0.0, %v9964
    %v9966 = vpop.f32.mrb[0].mxu0
    %9967 = vmatprep.mubr.f32.mxu0 0.0
    %9968 = vmatmul.mubr.f32.gmra.mrb[0].mxu0 %v9630
    %v9969 = vpop.f32.mrb[0].mxu0
    %v9970 = vadd.f32 0.0, %v9969
    %v9971 = vpop.f32.mrb[0].mxu0
    %9972 = vmatprep.mubr.f32.mxu0 0.0
    %9973 = vmatmul.mubr.f32.gmra.mrb[0].mxu0 %v9633
    %v9974 = vpop.f32.mrb[0].mxu0
    %v9975 = vadd.f32 0.0, %v9974
    %v9976 = vpop.f32.mrb[0].mxu0
    %9977 = vmatprep.mubr.f32.mxu0 0.0
    %9978 = vmatmul.mubr.f32.gmra.mrb[0].mxu0 %v9636
    %v9979 = vpop.f32.mrb[0].mxu0
    %v9980 = vadd.f32 0.0, %v9979
    %v9981 = vpop.f32.mrb[0].mxu0
    %9982 = vmatprep.mubr.f32.mxu0 0.0
    %9983 = vmatmul.mubr.f32.gmra.mrb[0].mxu0 %v9639
    %v9984 = vpop.f32.mrb[0].mxu0
    %v9985 = vadd.f32 0.0, %v9984
    %v9986 = vpop.f32.mrb[0].mxu0
    %9987 = vmatprep.mubr.f32.mxu0 0.0
    %9988 = vmatmul.mubr.f32.gmra.mrb[0].mxu0 %v9642
    %v9989 = vpop.f32.mrb[0].mxu0
    %v9990 = vadd.f32 0.0, %v9989
    %v9991 = vpop.f32.mrb[0].mxu0
    %9992 = vmatprep.mubr.f32.mxu0 0.0
    %9993 = vmatmul.mubr.f32.gmra.mrb[0].mxu0 %v9645
    %v9994 = vpop.f32.mrb[0].mxu0
    %v9995 = vadd.f32 0.0, %v9994
    %v9996 = vpop.f32.mrb[0].mxu0
    %9997 = vmatprep.mubr.f32.mxu0 0.0
    %9998 = vmatmul.mubr.f32.gmra.mrb[0].mxu0 %v9648
    %v9999 = vpop.f32.mrb[0].mxu0
    %v10000 = vadd.f32 0.0, %v9999
    %v10001 = vpop.f32.mrb[0].mxu0
    %10002 = vmatprep.mubr.f32.mxu0 0.0
    %10003 = vmatmul.mubr.f32.gmra.mrb[0].mxu0 %v9651
    %v10004 = vpop.f32.mrb[0].mxu0
    %v10005 = vadd.f32 0.0, %v10004
    %v10006 = vpop.f32.mrb[0].mxu0
    %10007 = vmatprep.mubr.f32.mxu0 0.0
    %10008 = vmatmul.mubr.f32.gmra.mrb[0].mxu0 %v9654
    %v10009 = vpop.f32.mrb[0].mxu0
    %v10010 = vadd.f32 0.0, %v10009
    %v10011 = vpop.f32.mrb[0].mxu0
    %10012 = vmatprep.mubr.f32.mxu0 0.0
    %10013 = vmatmul.mubr.f32.gmra.mrb[0].mxu0 %v9657
    %v10014 = vpop.f32.mrb[0].mxu0
    %v10015 = vadd.f32 0.0, %v10014
    %v10016 = vpop.f32.mrb[0].mxu0
    %10017 = vmatprep.mubr.f32.mxu0 0.0
    %10018 = vmatmul.mubr.f32.gmra.mrb[0].mxu0 %v9660
    %v10019 = vpop.f32.mrb[0].mxu0
    %v10020 = vadd.f32 0.0, %v10019
    %v10021 = vpop.f32.mrb[0].mxu0
    %10022 = vmatprep.mubr.f32.mxu0 0.0
    %10023 = vmatmul.mubr.f32.gmra.mrb[0].mxu0 %v9663
    %v10024 = vpop.f32.mrb[0].mxu0
    %v10025 = vadd.f32 0.0, %v10024
    %v10026 = vpop.f32.mrb[0].mxu0
    %10027 = vmatprep.mubr.f32.mxu0 0.0
    %10028 = vmatmul.mubr.f32.gmra.mrb[0].mxu0 %v9666
    %v10029 = vpop.f32.mrb[0].mxu0
    %v10030 = vadd.f32 0.0, %v10029
    %v10031 = vpop.f32.mrb[0].mxu0
    %10032 = vmatprep.mubr.f32.mxu0 0.0
    %10033 = vmatmul.mubr.f32.gmra.mrb[0].mxu0 %v9669
    %v10034 = vpop.f32.mrb[0].mxu0
    %v10035 = vadd.f32 0.0, %v10034
    %v10036 = vpop.f32.mrb[0].mxu0
    %10037 = vmatprep.mubr.f32.mxu0 0.0
    %10038 = vmatmul.mubr.f32.gmra.mrb[0].mxu0 %v9672
    %v10039 = vpop.f32.mrb[0].mxu0
    %v10040 = vadd.f32 0.0, %v10039
    %v10041 = vpop.f32.mrb[0].mxu0
    %10042 = vmatprep.mubr.f32.mxu0 0.0
    %10043 = vmatmul.mubr.f32.gmra.mrb[0].mxu0 %v9675
    %v10044 = vpop.f32.mrb[0].mxu0
    %v10045 = vadd.f32 0.0, %v10044
    %v10046 = vpop.f32.mrb[0].mxu0
    %10047 = vmatprep.mubr.f32.mxu0 0.0
    %10048 = vmatmul.mubr.f32.gmra.mrb[0].mxu0 %v9678
    %v10049 = vpop.f32.mrb[0].mxu0
    %v10050 = vadd.f32 0.0, %v10049
    %v10051 = vpop.f32.mrb[0].mxu0
    %10052 = vmatprep.mubr.f32.mxu0 0.0
    %10053 = vmatmul.mubr.f32.gmra.mrb[0].mxu0 %v9681
    %v10054 = vpop.f32.mrb[0].mxu0
    %v10055 = vadd.f32 0.0, %v10054
    %v10056 = vpop.f32.mrb[0].mxu0
    %10057 = vmatprep.mubr.f32.mxu0 0.0
    %10058 = vmatmul.mubr.f32.gmra.mrb[0].mxu0 %v9684
    %v10059 = vpop.f32.mrb[0].mxu0
    %v10060 = vadd.f32 0.0, %v10059
    %v10061 = vpop.f32.mrb[0].mxu0
    %10062 = vmatprep.mubr.f32.mxu0 0.0
    %10063 = vmatmul.mubr.f32.gmra.mrb[0].mxu0 %v9687
    %v10064 = vpop.f32.mrb[0].mxu0
    %v10065 = vadd.f32 0.0, %v10064
    %v10066 = vpop.f32.mrb[0].mxu0
    %10067 = vmatprep.mubr.f32.mxu0 0.0
    %10068 = vmatmul.mubr.f32.gmra.mrb[0].mxu0 %v9690
    %v10069 = vpop.f32.mrb[0].mxu0
    %v10070 = vadd.f32 0.0, %v10069
    %v10071 = vpop.f32.mrb[0].mxu0
    %10072 = vmatprep.mubr.f32.mxu0 0.0
    %10073 = vmatmul.mubr.f32.gmra.mrb[0].mxu0 %v9693
    %v10074 = vpop.f32.mrb[0].mxu0
    %v10075 = vadd.f32 0.0, %v10074
    %v10076 = vpop.f32.mrb[0].mxu0
    %10077 = vmatprep.mubr.f32.mxu0 0.0
    %10078 = vmatmul.mubr.f32.gmra.mrb[0].mxu0 %v9696
    %v10079 = vpop.f32.mrb[0].mxu0
    %v10080 = vadd.f32 0.0, %v10079
    %v10081 = vpop.f32.mrb[0].mxu0
    %10082 = vdwg.mxu0
    %v10083 = vadd.f32 %v9370, %v9765
    %v10084 = vadd.f32 %v9371, %v9770
    %v10085 = vadd.f32 %v9372, %v9775
    %v10086 = vadd.f32 %v9373, %v9780
    %v10087 = vadd.f32 %v9374, %v9785
    %v10088 = vadd.f32 %v9375, %v9790
    %v10089 = vadd.f32 %v9376, %v9795
    %v10090 = vadd.f32 %v9377, %v9800
    %v10091 = vadd.f32 %v9378, %v9805
    %v10092 = vadd.f32 %v9379, %v9810
    %v10093 = vadd.f32 %v9380, %v9815
    %v10094 = vadd.f32 %v9381, %v9820
    %v10095 = vadd.f32 %v9382, %v9825
    %v10096 = vadd.f32 %v9383, %v9830
    %v10097 = vadd.f32 %v9384, %v9835
    %v10098 = vadd.f32 %v9385, %v9840
    %v10099 = vadd.f32 %v9386, %v9845
    %v10100 = vadd.f32 %v9387, %v9850
    %v10101 = vadd.f32 %v9388, %v9855
    %v10102 = vadd.f32 %v9389, %v9860
    %v10103 = vadd.f32 %v9390, %v9865
    %v10104 = vadd.f32 %v9391, %v9870
    %v10105 = vadd.f32 %v9392, %v9875
    %v10106 = vadd.f32 %v9393, %v9880
    %v10107 = vadd.f32 %v9394, %v9885
    %v10108 = vadd.f32 %v9395, %v9890
    %v10109 = vadd.f32 %v9396, %v9895
    %v10110 = vadd.f32 %v9397, %v9900
    %v10111 = vadd.f32 %v9398, %v9905
    %v10112 = vadd.f32 %v9399, %v9910
    %v10113 = vadd.f32 %v9400, %v9915
    %v10114 = vadd.f32 %v9401, %v9920
    %v10115 = vadd.f32 %v9402, %v9925
    %v10116 = vadd.f32 %v9403, %v9930
    %v10117 = vadd.f32 %v9404, %v9935
    %v10118 = vadd.f32 %v9405, %v9940
    %v10119 = vadd.f32 %v9406, %v9945
    %v10120 = vadd.f32 %v9407, %v9950
    %v10121 = vadd.f32 %v9408, %v9955
    %v10122 = vadd.f32 %v9409, %v9960
    %v10123 = vadd.f32 %v9410, %v9965
    %v10124 = vadd.f32 %v9411, %v9970
    %v10125 = vadd.f32 %v9412, %v9975
    %v10126 = vadd.f32 %v9413, %v9980
    %v10127 = vadd.f32 %v9414, %v9985
    %v10128 = vadd.f32 %v9415, %v9990
    %v10129 = vadd.f32 %v9416, %v9995
    %v10130 = vadd.f32 %v9417, %v10000
    %v10131 = vadd.f32 %v9418, %v10005
    %v10132 = vadd.f32 %v9419, %v10010
    %v10133 = vadd.f32 %v9420, %v10015
    %v10134 = vadd.f32 %v9421, %v10020
    %v10135 = vadd.f32 %v9422, %v10025
    %v10136 = vadd.f32 %v9423, %v10030
    %v10137 = vadd.f32 %v9424, %v10035
    %v10138 = vadd.f32 %v9425, %v10040
    %v10139 = vadd.f32 %v9426, %v10045
    %v10140 = vadd.f32 %v9427, %v10050
    %v10141 = vadd.f32 %v9428, %v10055
    %v10142 = vadd.f32 %v9429, %v10060
    %v10143 = vadd.f32 %v9430, %v10065
    %v10144 = vadd.f32 %v9431, %v10070
    %v10145 = vadd.f32 %v9432, %v10075
    %v10146 = vadd.f32 %v9433, %v10080
    %s10147 = scalar_lea.vmem [#allocation2], 384
    %v10148 = vld [vmem:[%s10147] sm:$0xff]
    %v10149 = vld [vmem:[%s10147 + $0x8] sm:$0xff]
    %v10150 = vld [vmem:[%s10147 + $0x10] sm:$0xff]
    %v10151 = vld [vmem:[%s10147 + $0x18] sm:$0xff]
    %v10152 = vld [vmem:[%s10147 + $0x20] sm:$0xff]
    %v10153 = vld [vmem:[%s10147 + $0x28] sm:$0xff]
    %v10154 = vld [vmem:[%s10147 + $0x30] sm:$0xff]
    %v10155 = vld [vmem:[%s10147 + $0x38] sm:$0xff]
    %v10156 = vld [vmem:[%s10147 + $0x40] sm:$0xff]
    %v10157 = vld [vmem:[%s10147 + $0x48] sm:$0xff]
    %v10158 = vld [vmem:[%s10147 + $0x50] sm:$0xff]
    %v10159 = vld [vmem:[%s10147 + $0x58] sm:$0xff]
    %v10160 = vld [vmem:[%s10147 + $0x60] sm:$0xff]
    %v10161 = vld [vmem:[%s10147 + $0x68] sm:$0xff]
    %v10162 = vld [vmem:[%s10147 + $0x70] sm:$0xff]
    %v10163 = vld [vmem:[%s10147 + $0x78] sm:$0xff]
    %v10164 = vld [vmem:[%s10147 + $0x100] sm:$0xff]
    %v10165 = vld [vmem:[%s10147 + $0x108] sm:$0xff]
    %v10166 = vld [vmem:[%s10147 + $0x110] sm:$0xff]
    %v10167 = vld [vmem:[%s10147 + $0x118] sm:$0xff]
    %v10168 = vld [vmem:[%s10147 + $0x120] sm:$0xff]
    %v10169 = vld [vmem:[%s10147 + $0x128] sm:$0xff]
    %v10170 = vld [vmem:[%s10147 + $0x130] sm:$0xff]
    %v10171 = vld [vmem:[%s10147 + $0x138] sm:$0xff]
    %v10172 = vld [vmem:[%s10147 + $0x140] sm:$0xff]
    %v10173 = vld [vmem:[%s10147 + $0x148] sm:$0xff]
    %v10174 = vld [vmem:[%s10147 + $0x150] sm:$0xff]
    %v10175 = vld [vmem:[%s10147 + $0x158] sm:$0xff]
    %v10176 = vld [vmem:[%s10147 + $0x160] sm:$0xff]
    %v10177 = vld [vmem:[%s10147 + $0x168] sm:$0xff]
    %v10178 = vld [vmem:[%s10147 + $0x170] sm:$0xff]
    %v10179 = vld [vmem:[%s10147 + $0x178] sm:$0xff]
    %v10180 = vld [vmem:[%s10147 + $0x400] sm:$0xff]
    %v10181 = vld [vmem:[%s10147 + $0x408] sm:$0xff]
    %v10182 = vld [vmem:[%s10147 + $0x410] sm:$0xff]
    %v10183 = vld [vmem:[%s10147 + $0x418] sm:$0xff]
    %v10184 = vld [vmem:[%s10147 + $0x420] sm:$0xff]
    %v10185 = vld [vmem:[%s10147 + $0x428] sm:$0xff]
    %v10186 = vld [vmem:[%s10147 + $0x430] sm:$0xff]
    %v10187 = vld [vmem:[%s10147 + $0x438] sm:$0xff]
    %v10188 = vld [vmem:[%s10147 + $0x440] sm:$0xff]
    %v10189 = vld [vmem:[%s10147 + $0x448] sm:$0xff]
    %v10190 = vld [vmem:[%s10147 + $0x450] sm:$0xff]
    %v10191 = vld [vmem:[%s10147 + $0x458] sm:$0xff]
    %v10192 = vld [vmem:[%s10147 + $0x460] sm:$0xff]
    %v10193 = vld [vmem:[%s10147 + $0x468] sm:$0xff]
    %v10194 = vld [vmem:[%s10147 + $0x470] sm:$0xff]
    %v10195 = vld [vmem:[%s10147 + $0x478] sm:$0xff]
    %v10196 = vld [vmem:[%s10147 + $0x500] sm:$0xff]
    %v10197 = vld [vmem:[%s10147 + $0x508] sm:$0xff]
    %v10198 = vld [vmem:[%s10147 + $0x510] sm:$0xff]
    %v10199 = vld [vmem:[%s10147 + $0x518] sm:$0xff]
    %v10200 = vld [vmem:[%s10147 + $0x520] sm:$0xff]
    %v10201 = vld [vmem:[%s10147 + $0x528] sm:$0xff]
    %v10202 = vld [vmem:[%s10147 + $0x530] sm:$0xff]
    %v10203 = vld [vmem:[%s10147 + $0x538] sm:$0xff]
    %v10204 = vld [vmem:[%s10147 + $0x540] sm:$0xff]
    %v10205 = vld [vmem:[%s10147 + $0x548] sm:$0xff]
    %v10206 = vld [vmem:[%s10147 + $0x550] sm:$0xff]
    %v10207 = vld [vmem:[%s10147 + $0x558] sm:$0xff]
    %v10208 = vld [vmem:[%s10147 + $0x560] sm:$0xff]
    %v10209 = vld [vmem:[%s10147 + $0x568] sm:$0xff]
    %v10210 = vld [vmem:[%s10147 + $0x570] sm:$0xff]
    %v10211 = vld [vmem:[%s10147 + $0x578] sm:$0xff]
    %v10212 = vld [vmem:[%s3 + $0x140] sm:$0xff]
    %v10213 = vld [vmem:[%s3 + $0x148] sm:$0xff]
    %v10214 = vld [vmem:[%s3 + $0x150] sm:$0xff]
    %v10215 = vld [vmem:[%s3 + $0x158] sm:$0xff]
    %v10216 = vld [vmem:[%s3 + $0x160] sm:$0xff]
    %v10217 = vld [vmem:[%s3 + $0x168] sm:$0xff]
    %v10218 = vld [vmem:[%s3 + $0x170] sm:$0xff]
    %v10219 = vld [vmem:[%s3 + $0x178] sm:$0xff]
    %v10221 = vsel %vm165, %v10148, 0
    %v10224 = vsel %vm165, %v10149, 0
    %v10227 = vsel %vm165, %v10150, 0
    %v10230 = vsel %vm165, %v10151, 0
    %v10233 = vsel %vm165, %v10152, 0
    %v10236 = vsel %vm165, %v10153, 0
    %v10239 = vsel %vm165, %v10154, 0
    %v10242 = vsel %vm165, %v10155, 0
    %v10245 = vsel %vm165, %v10156, 0
    %v10248 = vsel %vm165, %v10157, 0
    %v10251 = vsel %vm165, %v10158, 0
    %v10254 = vsel %vm165, %v10159, 0
    %v10257 = vsel %vm165, %v10160, 0
    %v10260 = vsel %vm165, %v10161, 0
    %v10263 = vsel %vm165, %v10162, 0
    %v10266 = vsel %vm165, %v10163, 0
    %v10269 = vsel %vm165, %v10164, 0
    %v10272 = vsel %vm165, %v10165, 0
    %v10275 = vsel %vm165, %v10166, 0
    %v10278 = vsel %vm165, %v10167, 0
    %v10281 = vsel %vm165, %v10168, 0
    %v10284 = vsel %vm165, %v10169, 0
    %v10287 = vsel %vm165, %v10170, 0
    %v10290 = vsel %vm165, %v10171, 0
    %v10293 = vsel %vm165, %v10172, 0
    %v10296 = vsel %vm165, %v10173, 0
    %v10299 = vsel %vm165, %v10174, 0
    %v10302 = vsel %vm165, %v10175, 0
    %v10305 = vsel %vm165, %v10176, 0
    %v10308 = vsel %vm165, %v10177, 0
    %v10311 = vsel %vm165, %v10178, 0
    %v10314 = vsel %vm165, %v10179, 0
    %v10317 = vsel %vm165, %v10180, 0
    %v10320 = vsel %vm165, %v10181, 0
    %v10323 = vsel %vm165, %v10182, 0
    %v10326 = vsel %vm165, %v10183, 0
    %v10329 = vsel %vm165, %v10184, 0
    %v10332 = vsel %vm165, %v10185, 0
    %v10335 = vsel %vm165, %v10186, 0
    %v10338 = vsel %vm165, %v10187, 0
    %v10341 = vsel %vm165, %v10188, 0
    %v10344 = vsel %vm165, %v10189, 0
    %v10347 = vsel %vm165, %v10190, 0
    %v10350 = vsel %vm165, %v10191, 0
    %v10353 = vsel %vm165, %v10192, 0
    %v10356 = vsel %vm165, %v10193, 0
    %v10359 = vsel %vm165, %v10194, 0
    %v10362 = vsel %vm165, %v10195, 0
    %v10365 = vsel %vm165, %v10196, 0
    %v10368 = vsel %vm165, %v10197, 0
    %v10371 = vsel %vm165, %v10198, 0
    %v10374 = vsel %vm165, %v10199, 0
    %v10377 = vsel %vm165, %v10200, 0
    %v10380 = vsel %vm165, %v10201, 0
    %v10383 = vsel %vm165, %v10202, 0
    %v10386 = vsel %vm165, %v10203, 0
    %v10389 = vsel %vm165, %v10204, 0
    %v10392 = vsel %vm165, %v10205, 0
    %v10395 = vsel %vm165, %v10206, 0
    %v10398 = vsel %vm165, %v10207, 0
    %v10401 = vsel %vm165, %v10208, 0
    %v10404 = vsel %vm165, %v10209, 0
    %v10407 = vsel %vm165, %v10210, 0
    %v10410 = vsel %vm165, %v10211, 0
    %10412 = vmatprep.subr.mxu0 0.0
    %10413 = vmatpush1.msra.mxu0 %v10212
    %10414 = vmatprep.subr.mxu0 0.0
    %10415 = vmatpush1.msra.mxu0 %v10213
    %10416 = vmatprep.subr.mxu0 0.0
    %10417 = vmatpush1.msra.mxu0 %v10214
    %10418 = vmatprep.subr.mxu0 0.0
    %10419 = vmatpush1.msra.mxu0 %v10215
    %10420 = vmatprep.subr.mxu0 0.0
    %10421 = vmatpush1.msra.mxu0 %v10216
    %10422 = vmatprep.subr.mxu0 0.0
    %10423 = vmatpush1.msra.mxu0 %v10217
    %10424 = vmatprep.subr.mxu0 0.0
    %10425 = vmatpush1.msra.mxu0 %v10218
    %10426 = vmatprep.subr.mxu0 0.0
    %10427 = vmatpush1.msra.mxu0 %v10219
    %10428 = vmatprep.subr.mxu0 0.0
    %10429 = vmatpush1.msra.mxu0 0.0
    %10430 = vmatprep.subr.mxu0 0.0
    %10431 = vmatpush1.msra.mxu0 0.0
    %10432 = vmatprep.subr.mxu0 0.0
    %10433 = vmatpush1.msra.mxu0 0.0
    %10434 = vmatprep.subr.mxu0 0.0
    %10435 = vmatpush1.msra.mxu0 0.0
    %10436 = vmatprep.subr.mxu0 0.0
    %10437 = vmatpush1.msra.mxu0 0.0
    %10438 = vmatprep.subr.mxu0 0.0
    %10439 = vmatpush1.msra.mxu0 0.0
    %10440 = vmatprep.subr.mxu0 0.0
    %10441 = vmatpush1.msra.mxu0 0.0
    %10442 = vmatprep.subr.mxu0 0.0
    %10443 = vmatpush1.msra.mxu0 0.0
    %10444 = vmatprep.subr.mxu0 0.0
    %10445 = vmatpush1.msra.mxu0 0.0
    %10446 = vmatprep.subr.mxu0 0.0
    %10447 = vmatpush1.msra.mxu0 0.0
    %10448 = vmatprep.subr.mxu0 0.0
    %10449 = vmatpush1.msra.mxu0 0.0
    %10450 = vmatprep.subr.mxu0 0.0
    %10451 = vmatpush1.msra.mxu0 0.0
    %10452 = vmatprep.subr.mxu0 0.0
    %10453 = vmatpush1.msra.mxu0 0.0
    %10454 = vmatprep.subr.mxu0 0.0
    %10455 = vmatpush1.msra.mxu0 0.0
    %10456 = vmatprep.subr.mxu0 0.0
    %10457 = vmatpush1.msra.mxu0 0.0
    %10458 = vmatprep.subr.mxu0 0.0
    %10459 = vmatpush1.msra.mxu0 0.0
    %10460 = vmatprep.subr.mxu0 0.0
    %10461 = vmatpush1.msra.mxu0 0.0
    %10462 = vmatprep.subr.mxu0 0.0
    %10463 = vmatpush1.msra.mxu0 0.0
    %10464 = vmatprep.subr.mxu0 0.0
    %10465 = vmatpush1.msra.mxu0 0.0
    %10466 = vmatprep.subr.mxu0 0.0
    %10467 = vmatpush1.msra.mxu0 0.0
    %10468 = vmatprep.subr.mxu0 0.0
    %10469 = vmatpush1.msra.mxu0 0.0
    %10470 = vmatprep.subr.mxu0 0.0
    %10471 = vmatpush1.msra.mxu0 0.0
    %10472 = vmatprep.subr.mxu0 0.0
    %10473 = vmatpush1.msra.mxu0 0.0
    %10474 = vmatprep.subr.mxu0 0.0
    %10475 = vmatpush1.msra.mxu0 0.0
    %10476 = vmatprep.mubr.f32.mxu0 0.0
    %10477 = vmatmul.mubr.f32.gmra.mrb[0].mxu0 %v10221
    %v10478 = vpop.f32.mrb[0].mxu0
    %v10479 = vadd.f32 0.0, %v10478
    %v10480 = vpop.f32.mrb[0].mxu0
    %10481 = vmatprep.mubr.f32.mxu0 0.0
    %10482 = vmatmul.mubr.f32.gmra.mrb[0].mxu0 %v10224
    %v10483 = vpop.f32.mrb[0].mxu0
    %v10484 = vadd.f32 0.0, %v10483
    %v10485 = vpop.f32.mrb[0].mxu0
    %10486 = vmatprep.mubr.f32.mxu0 0.0
    %10487 = vmatmul.mubr.f32.gmra.mrb[0].mxu0 %v10227
    %v10488 = vpop.f32.mrb[0].mxu0
    %v10489 = vadd.f32 0.0, %v10488
    %v10490 = vpop.f32.mrb[0].mxu0
    %10491 = vmatprep.mubr.f32.mxu0 0.0
    %10492 = vmatmul.mubr.f32.gmra.mrb[0].mxu0 %v10230
    %v10493 = vpop.f32.mrb[0].mxu0
    %v10494 = vadd.f32 0.0, %v10493
    %v10495 = vpop.f32.mrb[0].mxu0
    %10496 = vmatprep.mubr.f32.mxu0 0.0
    %10497 = vmatmul.mubr.f32.gmra.mrb[0].mxu0 %v10233
    %v10498 = vpop.f32.mrb[0].mxu0
    %v10499 = vadd.f32 0.0, %v10498
    %v10500 = vpop.f32.mrb[0].mxu0
    %10501 = vmatprep.mubr.f32.mxu0 0.0
    %10502 = vmatmul.mubr.f32.gmra.mrb[0].mxu0 %v10236
    %v10503 = vpop.f32.mrb[0].mxu0
    %v10504 = vadd.f32 0.0, %v10503
    %v10505 = vpop.f32.mrb[0].mxu0
    %10506 = vmatprep.mubr.f32.mxu0 0.0
    %10507 = vmatmul.mubr.f32.gmra.mrb[0].mxu0 %v10239
    %v10508 = vpop.f32.mrb[0].mxu0
    %v10509 = vadd.f32 0.0, %v10508
    %v10510 = vpop.f32.mrb[0].mxu0
    %10511 = vmatprep.mubr.f32.mxu0 0.0
    %10512 = vmatmul.mubr.f32.gmra.mrb[0].mxu0 %v10242
    %v10513 = vpop.f32.mrb[0].mxu0
    %v10514 = vadd.f32 0.0, %v10513
    %v10515 = vpop.f32.mrb[0].mxu0
    %10516 = vmatprep.mubr.f32.mxu0 0.0
    %10517 = vmatmul.mubr.f32.gmra.mrb[0].mxu0 %v10245
    %v10518 = vpop.f32.mrb[0].mxu0
    %v10519 = vadd.f32 0.0, %v10518
    %v10520 = vpop.f32.mrb[0].mxu0
    %10521 = vmatprep.mubr.f32.mxu0 0.0
    %10522 = vmatmul.mubr.f32.gmra.mrb[0].mxu0 %v10248
    %v10523 = vpop.f32.mrb[0].mxu0
    %v10524 = vadd.f32 0.0, %v10523
    %v10525 = vpop.f32.mrb[0].mxu0
    %10526 = vmatprep.mubr.f32.mxu0 0.0
    %10527 = vmatmul.mubr.f32.gmra.mrb[0].mxu0 %v10251
    %v10528 = vpop.f32.mrb[0].mxu0
    %v10529 = vadd.f32 0.0, %v10528
    %v10530 = vpop.f32.mrb[0].mxu0
    %10531 = vmatprep.mubr.f32.mxu0 0.0
    %10532 = vmatmul.mubr.f32.gmra.mrb[0].mxu0 %v10254
    %v10533 = vpop.f32.mrb[0].mxu0
    %v10534 = vadd.f32 0.0, %v10533
    %v10535 = vpop.f32.mrb[0].mxu0
    %10536 = vmatprep.mubr.f32.mxu0 0.0
    %10537 = vmatmul.mubr.f32.gmra.mrb[0].mxu0 %v10257
    %v10538 = vpop.f32.mrb[0].mxu0
    %v10539 = vadd.f32 0.0, %v10538
    %v10540 = vpop.f32.mrb[0].mxu0
    %10541 = vmatprep.mubr.f32.mxu0 0.0
    %10542 = vmatmul.mubr.f32.gmra.mrb[0].mxu0 %v10260
    %v10543 = vpop.f32.mrb[0].mxu0
    %v10544 = vadd.f32 0.0, %v10543
    %v10545 = vpop.f32.mrb[0].mxu0
    %10546 = vmatprep.mubr.f32.mxu0 0.0
    %10547 = vmatmul.mubr.f32.gmra.mrb[0].mxu0 %v10263
    %v10548 = vpop.f32.mrb[0].mxu0
    %v10549 = vadd.f32 0.0, %v10548
    %v10550 = vpop.f32.mrb[0].mxu0
    %10551 = vmatprep.mubr.f32.mxu0 0.0
    %10552 = vmatmul.mubr.f32.gmra.mrb[0].mxu0 %v10266
    %v10553 = vpop.f32.mrb[0].mxu0
    %v10554 = vadd.f32 0.0, %v10553
    %v10555 = vpop.f32.mrb[0].mxu0
    %10556 = vmatprep.mubr.f32.mxu0 0.0
    %10557 = vmatmul.mubr.f32.gmra.mrb[0].mxu0 %v10269
    %v10558 = vpop.f32.mrb[0].mxu0
    %v10559 = vadd.f32 0.0, %v10558
    %v10560 = vpop.f32.mrb[0].mxu0
    %10561 = vmatprep.mubr.f32.mxu0 0.0
    %10562 = vmatmul.mubr.f32.gmra.mrb[0].mxu0 %v10272
    %v10563 = vpop.f32.mrb[0].mxu0
    %v10564 = vadd.f32 0.0, %v10563
    %v10565 = vpop.f32.mrb[0].mxu0
    %10566 = vmatprep.mubr.f32.mxu0 0.0
    %10567 = vmatmul.mubr.f32.gmra.mrb[0].mxu0 %v10275
    %v10568 = vpop.f32.mrb[0].mxu0
    %v10569 = vadd.f32 0.0, %v10568
    %v10570 = vpop.f32.mrb[0].mxu0
    %10571 = vmatprep.mubr.f32.mxu0 0.0
    %10572 = vmatmul.mubr.f32.gmra.mrb[0].mxu0 %v10278
    %v10573 = vpop.f32.mrb[0].mxu0
    %v10574 = vadd.f32 0.0, %v10573
    %v10575 = vpop.f32.mrb[0].mxu0
    %10576 = vmatprep.mubr.f32.mxu0 0.0
    %10577 = vmatmul.mubr.f32.gmra.mrb[0].mxu0 %v10281
    %v10578 = vpop.f32.mrb[0].mxu0
    %v10579 = vadd.f32 0.0, %v10578
    %v10580 = vpop.f32.mrb[0].mxu0
    %10581 = vmatprep.mubr.f32.mxu0 0.0
    %10582 = vmatmul.mubr.f32.gmra.mrb[0].mxu0 %v10284
    %v10583 = vpop.f32.mrb[0].mxu0
    %v10584 = vadd.f32 0.0, %v10583
    %v10585 = vpop.f32.mrb[0].mxu0
    %10586 = vmatprep.mubr.f32.mxu0 0.0
    %10587 = vmatmul.mubr.f32.gmra.mrb[0].mxu0 %v10287
    %v10588 = vpop.f32.mrb[0].mxu0
    %v10589 = vadd.f32 0.0, %v10588
    %v10590 = vpop.f32.mrb[0].mxu0
    %10591 = vmatprep.mubr.f32.mxu0 0.0
    %10592 = vmatmul.mubr.f32.gmra.mrb[0].mxu0 %v10290
    %v10593 = vpop.f32.mrb[0].mxu0
    %v10594 = vadd.f32 0.0, %v10593
    %v10595 = vpop.f32.mrb[0].mxu0
    %10596 = vmatprep.mubr.f32.mxu0 0.0
    %10597 = vmatmul.mubr.f32.gmra.mrb[0].mxu0 %v10293
    %v10598 = vpop.f32.mrb[0].mxu0
    %v10599 = vadd.f32 0.0, %v10598
    %v10600 = vpop.f32.mrb[0].mxu0
    %10601 = vmatprep.mubr.f32.mxu0 0.0
    %10602 = vmatmul.mubr.f32.gmra.mrb[0].mxu0 %v10296
    %v10603 = vpop.f32.mrb[0].mxu0
    %v10604 = vadd.f32 0.0, %v10603
    %v10605 = vpop.f32.mrb[0].mxu0
    %10606 = vmatprep.mubr.f32.mxu0 0.0
    %10607 = vmatmul.mubr.f32.gmra.mrb[0].mxu0 %v10299
    %v10608 = vpop.f32.mrb[0].mxu0
    %v10609 = vadd.f32 0.0, %v10608
    %v10610 = vpop.f32.mrb[0].mxu0
    %10611 = vmatprep.mubr.f32.mxu0 0.0
    %10612 = vmatmul.mubr.f32.gmra.mrb[0].mxu0 %v10302
    %v10613 = vpop.f32.mrb[0].mxu0
    %v10614 = vadd.f32 0.0, %v10613
    %v10615 = vpop.f32.mrb[0].mxu0
    %10616 = vmatprep.mubr.f32.mxu0 0.0
    %10617 = vmatmul.mubr.f32.gmra.mrb[0].mxu0 %v10305
    %v10618 = vpop.f32.mrb[0].mxu0
    %v10619 = vadd.f32 0.0, %v10618
    %v10620 = vpop.f32.mrb[0].mxu0
    %10621 = vmatprep.mubr.f32.mxu0 0.0
    %10622 = vmatmul.mubr.f32.gmra.mrb[0].mxu0 %v10308
    %v10623 = vpop.f32.mrb[0].mxu0
    %v10624 = vadd.f32 0.0, %v10623
    %v10625 = vpop.f32.mrb[0].mxu0
    %10626 = vmatprep.mubr.f32.mxu0 0.0
    %10627 = vmatmul.mubr.f32.gmra.mrb[0].mxu0 %v10311
    %v10628 = vpop.f32.mrb[0].mxu0
    %v10629 = vadd.f32 0.0, %v10628
    %v10630 = vpop.f32.mrb[0].mxu0
    %10631 = vmatprep.mubr.f32.mxu0 0.0
    %10632 = vmatmul.mubr.f32.gmra.mrb[0].mxu0 %v10314
    %v10633 = vpop.f32.mrb[0].mxu0
    %v10634 = vadd.f32 0.0, %v10633
    %v10635 = vpop.f32.mrb[0].mxu0
    %10636 = vmatprep.mubr.f32.mxu0 0.0
    %10637 = vmatmul.mubr.f32.gmra.mrb[0].mxu0 %v10317
    %v10638 = vpop.f32.mrb[0].mxu0
    %v10639 = vadd.f32 0.0, %v10638
    %v10640 = vpop.f32.mrb[0].mxu0
    %10641 = vmatprep.mubr.f32.mxu0 0.0
    %10642 = vmatmul.mubr.f32.gmra.mrb[0].mxu0 %v10320
    %v10643 = vpop.f32.mrb[0].mxu0
    %v10644 = vadd.f32 0.0, %v10643
    %v10645 = vpop.f32.mrb[0].mxu0
    %10646 = vmatprep.mubr.f32.mxu0 0.0
    %10647 = vmatmul.mubr.f32.gmra.mrb[0].mxu0 %v10323
    %v10648 = vpop.f32.mrb[0].mxu0
    %v10649 = vadd.f32 0.0, %v10648
    %v10650 = vpop.f32.mrb[0].mxu0
    %10651 = vmatprep.mubr.f32.mxu0 0.0
    %10652 = vmatmul.mubr.f32.gmra.mrb[0].mxu0 %v10326
    %v10653 = vpop.f32.mrb[0].mxu0
    %v10654 = vadd.f32 0.0, %v10653
    %v10655 = vpop.f32.mrb[0].mxu0
    %10656 = vmatprep.mubr.f32.mxu0 0.0
    %10657 = vmatmul.mubr.f32.gmra.mrb[0].mxu0 %v10329
    %v10658 = vpop.f32.mrb[0].mxu0
    %v10659 = vadd.f32 0.0, %v10658
    %v10660 = vpop.f32.mrb[0].mxu0
    %10661 = vmatprep.mubr.f32.mxu0 0.0
    %10662 = vmatmul.mubr.f32.gmra.mrb[0].mxu0 %v10332
    %v10663 = vpop.f32.mrb[0].mxu0
    %v10664 = vadd.f32 0.0, %v10663
    %v10665 = vpop.f32.mrb[0].mxu0
    %10666 = vmatprep.mubr.f32.mxu0 0.0
    %10667 = vmatmul.mubr.f32.gmra.mrb[0].mxu0 %v10335
    %v10668 = vpop.f32.mrb[0].mxu0
    %v10669 = vadd.f32 0.0, %v10668
    %v10670 = vpop.f32.mrb[0].mxu0
    %10671 = vmatprep.mubr.f32.mxu0 0.0
    %10672 = vmatmul.mubr.f32.gmra.mrb[0].mxu0 %v10338
    %v10673 = vpop.f32.mrb[0].mxu0
    %v10674 = vadd.f32 0.0, %v10673
    %v10675 = vpop.f32.mrb[0].mxu0
    %10676 = vmatprep.mubr.f32.mxu0 0.0
    %10677 = vmatmul.mubr.f32.gmra.mrb[0].mxu0 %v10341
    %v10678 = vpop.f32.mrb[0].mxu0
    %v10679 = vadd.f32 0.0, %v10678
    %v10680 = vpop.f32.mrb[0].mxu0
    %10681 = vmatprep.mubr.f32.mxu0 0.0
    %10682 = vmatmul.mubr.f32.gmra.mrb[0].mxu0 %v10344
    %v10683 = vpop.f32.mrb[0].mxu0
    %v10684 = vadd.f32 0.0, %v10683
    %v10685 = vpop.f32.mrb[0].mxu0
    %10686 = vmatprep.mubr.f32.mxu0 0.0
    %10687 = vmatmul.mubr.f32.gmra.mrb[0].mxu0 %v10347
    %v10688 = vpop.f32.mrb[0].mxu0
    %v10689 = vadd.f32 0.0, %v10688
    %v10690 = vpop.f32.mrb[0].mxu0
    %10691 = vmatprep.mubr.f32.mxu0 0.0
    %10692 = vmatmul.mubr.f32.gmra.mrb[0].mxu0 %v10350
    %v10693 = vpop.f32.mrb[0].mxu0
    %v10694 = vadd.f32 0.0, %v10693
    %v10695 = vpop.f32.mrb[0].mxu0
    %10696 = vmatprep.mubr.f32.mxu0 0.0
    %10697 = vmatmul.mubr.f32.gmra.mrb[0].mxu0 %v10353
    %v10698 = vpop.f32.mrb[0].mxu0
    %v10699 = vadd.f32 0.0, %v10698
    %v10700 = vpop.f32.mrb[0].mxu0
    %10701 = vmatprep.mubr.f32.mxu0 0.0
    %10702 = vmatmul.mubr.f32.gmra.mrb[0].mxu0 %v10356
    %v10703 = vpop.f32.mrb[0].mxu0
    %v10704 = vadd.f32 0.0, %v10703
    %v10705 = vpop.f32.mrb[0].mxu0
    %10706 = vmatprep.mubr.f32.mxu0 0.0
    %10707 = vmatmul.mubr.f32.gmra.mrb[0].mxu0 %v10359
    %v10708 = vpop.f32.mrb[0].mxu0
    %v10709 = vadd.f32 0.0, %v10708
    %v10710 = vpop.f32.mrb[0].mxu0
    %10711 = vmatprep.mubr.f32.mxu0 0.0
    %10712 = vmatmul.mubr.f32.gmra.mrb[0].mxu0 %v10362
    %v10713 = vpop.f32.mrb[0].mxu0
    %v10714 = vadd.f32 0.0, %v10713
    %v10715 = vpop.f32.mrb[0].mxu0
    %10716 = vmatprep.mubr.f32.mxu0 0.0
    %10717 = vmatmul.mubr.f32.gmra.mrb[0].mxu0 %v10365
    %v10718 = vpop.f32.mrb[0].mxu0
    %v10719 = vadd.f32 0.0, %v10718
    %v10720 = vpop.f32.mrb[0].mxu0
    %10721 = vmatprep.mubr.f32.mxu0 0.0
    %10722 = vmatmul.mubr.f32.gmra.mrb[0].mxu0 %v10368
    %v10723 = vpop.f32.mrb[0].mxu0
    %v10724 = vadd.f32 0.0, %v10723
    %v10725 = vpop.f32.mrb[0].mxu0
    %10726 = vmatprep.mubr.f32.mxu0 0.0
    %10727 = vmatmul.mubr.f32.gmra.mrb[0].mxu0 %v10371
    %v10728 = vpop.f32.mrb[0].mxu0
    %v10729 = vadd.f32 0.0, %v10728
    %v10730 = vpop.f32.mrb[0].mxu0
    %10731 = vmatprep.mubr.f32.mxu0 0.0
    %10732 = vmatmul.mubr.f32.gmra.mrb[0].mxu0 %v10374
    %v10733 = vpop.f32.mrb[0].mxu0
    %v10734 = vadd.f32 0.0, %v10733
    %v10735 = vpop.f32.mrb[0].mxu0
    %10736 = vmatprep.mubr.f32.mxu0 0.0
    %10737 = vmatmul.mubr.f32.gmra.mrb[0].mxu0 %v10377
    %v10738 = vpop.f32.mrb[0].mxu0
    %v10739 = vadd.f32 0.0, %v10738
    %v10740 = vpop.f32.mrb[0].mxu0
    %10741 = vmatprep.mubr.f32.mxu0 0.0
    %10742 = vmatmul.mubr.f32.gmra.mrb[0].mxu0 %v10380
    %v10743 = vpop.f32.mrb[0].mxu0
    %v10744 = vadd.f32 0.0, %v10743
    %v10745 = vpop.f32.mrb[0].mxu0
    %10746 = vmatprep.mubr.f32.mxu0 0.0
    %10747 = vmatmul.mubr.f32.gmra.mrb[0].mxu0 %v10383
    %v10748 = vpop.f32.mrb[0].mxu0
    %v10749 = vadd.f32 0.0, %v10748
    %v10750 = vpop.f32.mrb[0].mxu0
    %10751 = vmatprep.mubr.f32.mxu0 0.0
    %10752 = vmatmul.mubr.f32.gmra.mrb[0].mxu0 %v10386
    %v10753 = vpop.f32.mrb[0].mxu0
    %v10754 = vadd.f32 0.0, %v10753
    %v10755 = vpop.f32.mrb[0].mxu0
    %10756 = vmatprep.mubr.f32.mxu0 0.0
    %10757 = vmatmul.mubr.f32.gmra.mrb[0].mxu0 %v10389
    %v10758 = vpop.f32.mrb[0].mxu0
    %v10759 = vadd.f32 0.0, %v10758
    %v10760 = vpop.f32.mrb[0].mxu0
    %10761 = vmatprep.mubr.f32.mxu0 0.0
    %10762 = vmatmul.mubr.f32.gmra.mrb[0].mxu0 %v10392
    %v10763 = vpop.f32.mrb[0].mxu0
    %v10764 = vadd.f32 0.0, %v10763
    %v10765 = vpop.f32.mrb[0].mxu0
    %10766 = vmatprep.mubr.f32.mxu0 0.0
    %10767 = vmatmul.mubr.f32.gmra.mrb[0].mxu0 %v10395
    %v10768 = vpop.f32.mrb[0].mxu0
    %v10769 = vadd.f32 0.0, %v10768
    %v10770 = vpop.f32.mrb[0].mxu0
    %10771 = vmatprep.mubr.f32.mxu0 0.0
    %10772 = vmatmul.mubr.f32.gmra.mrb[0].mxu0 %v10398
    %v10773 = vpop.f32.mrb[0].mxu0
    %v10774 = vadd.f32 0.0, %v10773
    %v10775 = vpop.f32.mrb[0].mxu0
    %10776 = vmatprep.mubr.f32.mxu0 0.0
    %10777 = vmatmul.mubr.f32.gmra.mrb[0].mxu0 %v10401
    %v10778 = vpop.f32.mrb[0].mxu0
    %v10779 = vadd.f32 0.0, %v10778
    %v10780 = vpop.f32.mrb[0].mxu0
    %10781 = vmatprep.mubr.f32.mxu0 0.0
    %10782 = vmatmul.mubr.f32.gmra.mrb[0].mxu0 %v10404
    %v10783 = vpop.f32.mrb[0].mxu0
    %v10784 = vadd.f32 0.0, %v10783
    %v10785 = vpop.f32.mrb[0].mxu0
    %10786 = vmatprep.mubr.f32.mxu0 0.0
    %10787 = vmatmul.mubr.f32.gmra.mrb[0].mxu0 %v10407
    %v10788 = vpop.f32.mrb[0].mxu0
    %v10789 = vadd.f32 0.0, %v10788
    %v10790 = vpop.f32.mrb[0].mxu0
    %10791 = vmatprep.mubr.f32.mxu0 0.0
    %10792 = vmatmul.mubr.f32.gmra.mrb[0].mxu0 %v10410
    %v10793 = vpop.f32.mrb[0].mxu0
    %v10794 = vadd.f32 0.0, %v10793
    %v10795 = vpop.f32.mrb[0].mxu0
    %10796 = vdwg.mxu0
    %v10797 = vadd.f32 %v10083, %v10479
    %v10798 = vadd.f32 %v10084, %v10484
    %v10799 = vadd.f32 %v10085, %v10489
    %v10800 = vadd.f32 %v10086, %v10494
    %v10801 = vadd.f32 %v10087, %v10499
    %v10802 = vadd.f32 %v10088, %v10504
    %v10803 = vadd.f32 %v10089, %v10509
    %v10804 = vadd.f32 %v10090, %v10514
    %v10805 = vadd.f32 %v10091, %v10519
    %v10806 = vadd.f32 %v10092, %v10524
    %v10807 = vadd.f32 %v10093, %v10529
    %v10808 = vadd.f32 %v10094, %v10534
    %v10809 = vadd.f32 %v10095, %v10539
    %v10810 = vadd.f32 %v10096, %v10544
    %v10811 = vadd.f32 %v10097, %v10549
    %v10812 = vadd.f32 %v10098, %v10554
    %v10813 = vadd.f32 %v10099, %v10559
    %v10814 = vadd.f32 %v10100, %v10564
    %v10815 = vadd.f32 %v10101, %v10569
    %v10816 = vadd.f32 %v10102, %v10574
    %v10817 = vadd.f32 %v10103, %v10579
    %v10818 = vadd.f32 %v10104, %v10584
    %v10819 = vadd.f32 %v10105, %v10589
    %v10820 = vadd.f32 %v10106, %v10594
    %v10821 = vadd.f32 %v10107, %v10599
    %v10822 = vadd.f32 %v10108, %v10604
    %v10823 = vadd.f32 %v10109, %v10609
    %v10824 = vadd.f32 %v10110, %v10614
    %v10825 = vadd.f32 %v10111, %v10619
    %v10826 = vadd.f32 %v10112, %v10624
    %v10827 = vadd.f32 %v10113, %v10629
    %v10828 = vadd.f32 %v10114, %v10634
    %v10829 = vadd.f32 %v10115, %v10639
    %v10830 = vadd.f32 %v10116, %v10644
    %v10831 = vadd.f32 %v10117, %v10649
    %v10832 = vadd.f32 %v10118, %v10654
    %v10833 = vadd.f32 %v10119, %v10659
    %v10834 = vadd.f32 %v10120, %v10664
    %v10835 = vadd.f32 %v10121, %v10669
    %v10836 = vadd.f32 %v10122, %v10674
    %v10837 = vadd.f32 %v10123, %v10679
    %v10838 = vadd.f32 %v10124, %v10684
    %v10839 = vadd.f32 %v10125, %v10689
    %v10840 = vadd.f32 %v10126, %v10694
    %v10841 = vadd.f32 %v10127, %v10699
    %v10842 = vadd.f32 %v10128, %v10704
    %v10843 = vadd.f32 %v10129, %v10709
    %v10844 = vadd.f32 %v10130, %v10714
    %v10845 = vadd.f32 %v10131, %v10719
    %v10846 = vadd.f32 %v10132, %v10724
    %v10847 = vadd.f32 %v10133, %v10729
    %v10848 = vadd.f32 %v10134, %v10734
    %v10849 = vadd.f32 %v10135, %v10739
    %v10850 = vadd.f32 %v10136, %v10744
    %v10851 = vadd.f32 %v10137, %v10749
    %v10852 = vadd.f32 %v10138, %v10754
    %v10853 = vadd.f32 %v10139, %v10759
    %v10854 = vadd.f32 %v10140, %v10764
    %v10855 = vadd.f32 %v10141, %v10769
    %v10856 = vadd.f32 %v10142, %v10774
    %v10857 = vadd.f32 %v10143, %v10779
    %v10858 = vadd.f32 %v10144, %v10784
    %v10859 = vadd.f32 %v10145, %v10789
    %v10860 = vadd.f32 %v10146, %v10794
    %s10861 = scalar_lea.vmem [#allocation2], 512
    %v10862 = vld [vmem:[%s10861] sm:$0xff]
    %v10863 = vld [vmem:[%s10861 + $0x8] sm:$0xff]
    %v10864 = vld [vmem:[%s10861 + $0x10] sm:$0xff]
    %v10865 = vld [vmem:[%s10861 + $0x18] sm:$0xff]
    %v10866 = vld [vmem:[%s10861 + $0x20] sm:$0xff]
    %v10867 = vld [vmem:[%s10861 + $0x28] sm:$0xff]
    %v10868 = vld [vmem:[%s10861 + $0x30] sm:$0xff]
    %v10869 = vld [vmem:[%s10861 + $0x38] sm:$0xff]
    %v10870 = vld [vmem:[%s10861 + $0x40] sm:$0xff]
    %v10871 = vld [vmem:[%s10861 + $0x48] sm:$0xff]
    %v10872 = vld [vmem:[%s10861 + $0x50] sm:$0xff]
    %v10873 = vld [vmem:[%s10861 + $0x58] sm:$0xff]
    %v10874 = vld [vmem:[%s10861 + $0x60] sm:$0xff]
    %v10875 = vld [vmem:[%s10861 + $0x68] sm:$0xff]
    %v10876 = vld [vmem:[%s10861 + $0x70] sm:$0xff]
    %v10877 = vld [vmem:[%s10861 + $0x78] sm:$0xff]
    %v10878 = vld [vmem:[%s10861 + $0x100] sm:$0xff]
    %v10879 = vld [vmem:[%s10861 + $0x108] sm:$0xff]
    %v10880 = vld [vmem:[%s10861 + $0x110] sm:$0xff]
    %v10881 = vld [vmem:[%s10861 + $0x118] sm:$0xff]
    %v10882 = vld [vmem:[%s10861 + $0x120] sm:$0xff]
    %v10883 = vld [vmem:[%s10861 + $0x128] sm:$0xff]
    %v10884 = vld [vmem:[%s10861 + $0x130] sm:$0xff]
    %v10885 = vld [vmem:[%s10861 + $0x138] sm:$0xff]
    %v10886 = vld [vmem:[%s10861 + $0x140] sm:$0xff]
    %v10887 = vld [vmem:[%s10861 + $0x148] sm:$0xff]
    %v10888 = vld [vmem:[%s10861 + $0x150] sm:$0xff]
    %v10889 = vld [vmem:[%s10861 + $0x158] sm:$0xff]
    %v10890 = vld [vmem:[%s10861 + $0x160] sm:$0xff]
    %v10891 = vld [vmem:[%s10861 + $0x168] sm:$0xff]
    %v10892 = vld [vmem:[%s10861 + $0x170] sm:$0xff]
    %v10893 = vld [vmem:[%s10861 + $0x178] sm:$0xff]
    %v10894 = vld [vmem:[%s10861 + $0x400] sm:$0xff]
    %v10895 = vld [vmem:[%s10861 + $0x408] sm:$0xff]
    %v10896 = vld [vmem:[%s10861 + $0x410] sm:$0xff]
    %v10897 = vld [vmem:[%s10861 + $0x418] sm:$0xff]
    %v10898 = vld [vmem:[%s10861 + $0x420] sm:$0xff]
    %v10899 = vld [vmem:[%s10861 + $0x428] sm:$0xff]
    %v10900 = vld [vmem:[%s10861 + $0x430] sm:$0xff]
    %v10901 = vld [vmem:[%s10861 + $0x438] sm:$0xff]
    %v10902 = vld [vmem:[%s10861 + $0x440] sm:$0xff]
    %v10903 = vld [vmem:[%s10861 + $0x448] sm:$0xff]
    %v10904 = vld [vmem:[%s10861 + $0x450] sm:$0xff]
    %v10905 = vld [vmem:[%s10861 + $0x458] sm:$0xff]
    %v10906 = vld [vmem:[%s10861 + $0x460] sm:$0xff]
    %v10907 = vld [vmem:[%s10861 + $0x468] sm:$0xff]
    %v10908 = vld [vmem:[%s10861 + $0x470] sm:$0xff]
    %v10909 = vld [vmem:[%s10861 + $0x478] sm:$0xff]
    %v10910 = vld [vmem:[%s10861 + $0x500] sm:$0xff]
    %v10911 = vld [vmem:[%s10861 + $0x508] sm:$0xff]
    %v10912 = vld [vmem:[%s10861 + $0x510] sm:$0xff]
    %v10913 = vld [vmem:[%s10861 + $0x518] sm:$0xff]
    %v10914 = vld [vmem:[%s10861 + $0x520] sm:$0xff]
    %v10915 = vld [vmem:[%s10861 + $0x528] sm:$0xff]
    %v10916 = vld [vmem:[%s10861 + $0x530] sm:$0xff]
    %v10917 = vld [vmem:[%s10861 + $0x538] sm:$0xff]
    %v10918 = vld [vmem:[%s10861 + $0x540] sm:$0xff]
    %v10919 = vld [vmem:[%s10861 + $0x548] sm:$0xff]
    %v10920 = vld [vmem:[%s10861 + $0x550] sm:$0xff]
    %v10921 = vld [vmem:[%s10861 + $0x558] sm:$0xff]
    %v10922 = vld [vmem:[%s10861 + $0x560] sm:$0xff]
    %v10923 = vld [vmem:[%s10861 + $0x568] sm:$0xff]
    %v10924 = vld [vmem:[%s10861 + $0x570] sm:$0xff]
    %v10925 = vld [vmem:[%s10861 + $0x578] sm:$0xff]
    %v10926 = vld [vmem:[%s3 + $0x180] sm:$0xff]
    %v10927 = vld [vmem:[%s3 + $0x188] sm:$0xff]
    %v10928 = vld [vmem:[%s3 + $0x190] sm:$0xff]
    %v10929 = vld [vmem:[%s3 + $0x198] sm:$0xff]
    %v10930 = vld [vmem:[%s3 + $0x1a0] sm:$0xff]
    %v10931 = vld [vmem:[%s3 + $0x1a8] sm:$0xff]
    %v10932 = vld [vmem:[%s3 + $0x1b0] sm:$0xff]
    %v10933 = vld [vmem:[%s3 + $0x1b8] sm:$0xff]
    %v10935 = vsel %vm165, %v10862, 0
    %v10938 = vsel %vm165, %v10863, 0
    %v10941 = vsel %vm165, %v10864, 0
    %v10944 = vsel %vm165, %v10865, 0
    %v10947 = vsel %vm165, %v10866, 0
    %v10950 = vsel %vm165, %v10867, 0
    %v10953 = vsel %vm165, %v10868, 0
    %v10956 = vsel %vm165, %v10869, 0
    %v10959 = vsel %vm165, %v10870, 0
    %v10962 = vsel %vm165, %v10871, 0
    %v10965 = vsel %vm165, %v10872, 0
    %v10968 = vsel %vm165, %v10873, 0
    %v10971 = vsel %vm165, %v10874, 0
    %v10974 = vsel %vm165, %v10875, 0
    %v10977 = vsel %vm165, %v10876, 0
    %v10980 = vsel %vm165, %v10877, 0
    %v10983 = vsel %vm165, %v10878, 0
    %v10986 = vsel %vm165, %v10879, 0
    %v10989 = vsel %vm165, %v10880, 0
    %v10992 = vsel %vm165, %v10881, 0
    %v10995 = vsel %vm165, %v10882, 0
    %v10998 = vsel %vm165, %v10883, 0
    %v11001 = vsel %vm165, %v10884, 0
    %v11004 = vsel %vm165, %v10885, 0
    %v11007 = vsel %vm165, %v10886, 0
    %v11010 = vsel %vm165, %v10887, 0
    %v11013 = vsel %vm165, %v10888, 0
    %v11016 = vsel %vm165, %v10889, 0
    %v11019 = vsel %vm165, %v10890, 0
    %v11022 = vsel %vm165, %v10891, 0
    %v11025 = vsel %vm165, %v10892, 0
    %v11028 = vsel %vm165, %v10893, 0
    %v11031 = vsel %vm165, %v10894, 0
    %v11034 = vsel %vm165, %v10895, 0
    %v11037 = vsel %vm165, %v10896, 0
    %v11040 = vsel %vm165, %v10897, 0
    %v11043 = vsel %vm165, %v10898, 0
    %v11046 = vsel %vm165, %v10899, 0
    %v11049 = vsel %vm165, %v10900, 0
    %v11052 = vsel %vm165, %v10901, 0
    %v11055 = vsel %vm165, %v10902, 0
    %v11058 = vsel %vm165, %v10903, 0
    %v11061 = vsel %vm165, %v10904, 0
    %v11064 = vsel %vm165, %v10905, 0
    %v11067 = vsel %vm165, %v10906, 0
    %v11070 = vsel %vm165, %v10907, 0
    %v11073 = vsel %vm165, %v10908, 0
    %v11076 = vsel %vm165, %v10909, 0
    %v11079 = vsel %vm165, %v10910, 0
    %v11082 = vsel %vm165, %v10911, 0
    %v11085 = vsel %vm165, %v10912, 0
    %v11088 = vsel %vm165, %v10913, 0
    %v11091 = vsel %vm165, %v10914, 0
    %v11094 = vsel %vm165, %v10915, 0
    %v11097 = vsel %vm165, %v10916, 0
    %v11100 = vsel %vm165, %v10917, 0
    %v11103 = vsel %vm165, %v10918, 0
    %v11106 = vsel %vm165, %v10919, 0
    %v11109 = vsel %vm165, %v10920, 0
    %v11112 = vsel %vm165, %v10921, 0
    %v11115 = vsel %vm165, %v10922, 0
    %v11118 = vsel %vm165, %v10923, 0
    %v11121 = vsel %vm165, %v10924, 0
    %v11124 = vsel %vm165, %v10925, 0
    %11126 = vmatprep.subr.mxu0 0.0
    %11127 = vmatpush1.msra.mxu0 %v10926
    %11128 = vmatprep.subr.mxu0 0.0
    %11129 = vmatpush1.msra.mxu0 %v10927
    %11130 = vmatprep.subr.mxu0 0.0
    %11131 = vmatpush1.msra.mxu0 %v10928
    %11132 = vmatprep.subr.mxu0 0.0
    %11133 = vmatpush1.msra.mxu0 %v10929
    %11134 = vmatprep.subr.mxu0 0.0
    %11135 = vmatpush1.msra.mxu0 %v10930
    %11136 = vmatprep.subr.mxu0 0.0
    %11137 = vmatpush1.msra.mxu0 %v10931
    %11138 = vmatprep.subr.mxu0 0.0
    %11139 = vmatpush1.msra.mxu0 %v10932
    %11140 = vmatprep.subr.mxu0 0.0
    %11141 = vmatpush1.msra.mxu0 %v10933
    %11142 = vmatprep.subr.mxu0 0.0
    %11143 = vmatpush1.msra.mxu0 0.0
    %11144 = vmatprep.subr.mxu0 0.0
    %11145 = vmatpush1.msra.mxu0 0.0
    %11146 = vmatprep.subr.mxu0 0.0
    %11147 = vmatpush1.msra.mxu0 0.0
    %11148 = vmatprep.subr.mxu0 0.0
    %11149 = vmatpush1.msra.mxu0 0.0
    %11150 = vmatprep.subr.mxu0 0.0
    %11151 = vmatpush1.msra.mxu0 0.0
    %11152 = vmatprep.subr.mxu0 0.0
    %11153 = vmatpush1.msra.mxu0 0.0
    %11154 = vmatprep.subr.mxu0 0.0
    %11155 = vmatpush1.msra.mxu0 0.0
    %11156 = vmatprep.subr.mxu0 0.0
    %11157 = vmatpush1.msra.mxu0 0.0
    %11158 = vmatprep.subr.mxu0 0.0
    %11159 = vmatpush1.msra.mxu0 0.0
    %11160 = vmatprep.subr.mxu0 0.0
    %11161 = vmatpush1.msra.mxu0 0.0
    %11162 = vmatprep.subr.mxu0 0.0
    %11163 = vmatpush1.msra.mxu0 0.0
    %11164 = vmatprep.subr.mxu0 0.0
    %11165 = vmatpush1.msra.mxu0 0.0
    %11166 = vmatprep.subr.mxu0 0.0
    %11167 = vmatpush1.msra.mxu0 0.0
    %11168 = vmatprep.subr.mxu0 0.0
    %11169 = vmatpush1.msra.mxu0 0.0
    %11170 = vmatprep.subr.mxu0 0.0
    %11171 = vmatpush1.msra.mxu0 0.0
    %11172 = vmatprep.subr.mxu0 0.0
    %11173 = vmatpush1.msra.mxu0 0.0
    %11174 = vmatprep.subr.mxu0 0.0
    %11175 = vmatpush1.msra.mxu0 0.0
    %11176 = vmatprep.subr.mxu0 0.0
    %11177 = vmatpush1.msra.mxu0 0.0
    %11178 = vmatprep.subr.mxu0 0.0
    %11179 = vmatpush1.msra.mxu0 0.0
    %11180 = vmatprep.subr.mxu0 0.0
    %11181 = vmatpush1.msra.mxu0 0.0
    %11182 = vmatprep.subr.mxu0 0.0
    %11183 = vmatpush1.msra.mxu0 0.0
    %11184 = vmatprep.subr.mxu0 0.0
    %11185 = vmatpush1.msra.mxu0 0.0
    %11186 = vmatprep.subr.mxu0 0.0
    %11187 = vmatpush1.msra.mxu0 0.0
    %11188 = vmatprep.subr.mxu0 0.0
    %11189 = vmatpush1.msra.mxu0 0.0
    %11190 = vmatprep.mubr.f32.mxu0 0.0
    %11191 = vmatmul.mubr.f32.gmra.mrb[0].mxu0 %v10935
    %v11192 = vpop.f32.mrb[0].mxu0
    %v11193 = vadd.f32 0.0, %v11192
    %v11194 = vpop.f32.mrb[0].mxu0
    %11195 = vmatprep.mubr.f32.mxu0 0.0
    %11196 = vmatmul.mubr.f32.gmra.mrb[0].mxu0 %v10938
    %v11197 = vpop.f32.mrb[0].mxu0
    %v11198 = vadd.f32 0.0, %v11197
    %v11199 = vpop.f32.mrb[0].mxu0
    %11200 = vmatprep.mubr.f32.mxu0 0.0
    %11201 = vmatmul.mubr.f32.gmra.mrb[0].mxu0 %v10941
    %v11202 = vpop.f32.mrb[0].mxu0
    %v11203 = vadd.f32 0.0, %v11202
    %v11204 = vpop.f32.mrb[0].mxu0
    %11205 = vmatprep.mubr.f32.mxu0 0.0
    %11206 = vmatmul.mubr.f32.gmra.mrb[0].mxu0 %v10944
    %v11207 = vpop.f32.mrb[0].mxu0
    %v11208 = vadd.f32 0.0, %v11207
    %v11209 = vpop.f32.mrb[0].mxu0
    %11210 = vmatprep.mubr.f32.mxu0 0.0
    %11211 = vmatmul.mubr.f32.gmra.mrb[0].mxu0 %v10947
    %v11212 = vpop.f32.mrb[0].mxu0
    %v11213 = vadd.f32 0.0, %v11212
    %v11214 = vpop.f32.mrb[0].mxu0
    %11215 = vmatprep.mubr.f32.mxu0 0.0
    %11216 = vmatmul.mubr.f32.gmra.mrb[0].mxu0 %v10950
    %v11217 = vpop.f32.mrb[0].mxu0
    %v11218 = vadd.f32 0.0, %v11217
    %v11219 = vpop.f32.mrb[0].mxu0
    %11220 = vmatprep.mubr.f32.mxu0 0.0
    %11221 = vmatmul.mubr.f32.gmra.mrb[0].mxu0 %v10953
    %v11222 = vpop.f32.mrb[0].mxu0
    %v11223 = vadd.f32 0.0, %v11222
    %v11224 = vpop.f32.mrb[0].mxu0
    %11225 = vmatprep.mubr.f32.mxu0 0.0
    %11226 = vmatmul.mubr.f32.gmra.mrb[0].mxu0 %v10956
    %v11227 = vpop.f32.mrb[0].mxu0
    %v11228 = vadd.f32 0.0, %v11227
    %v11229 = vpop.f32.mrb[0].mxu0
    %11230 = vmatprep.mubr.f32.mxu0 0.0
    %11231 = vmatmul.mubr.f32.gmra.mrb[0].mxu0 %v10959
    %v11232 = vpop.f32.mrb[0].mxu0
    %v11233 = vadd.f32 0.0, %v11232
    %v11234 = vpop.f32.mrb[0].mxu0
    %11235 = vmatprep.mubr.f32.mxu0 0.0
    %11236 = vmatmul.mubr.f32.gmra.mrb[0].mxu0 %v10962
    %v11237 = vpop.f32.mrb[0].mxu0
    %v11238 = vadd.f32 0.0, %v11237
    %v11239 = vpop.f32.mrb[0].mxu0
    %11240 = vmatprep.mubr.f32.mxu0 0.0
    %11241 = vmatmul.mubr.f32.gmra.mrb[0].mxu0 %v10965
    %v11242 = vpop.f32.mrb[0].mxu0
    %v11243 = vadd.f32 0.0, %v11242
    %v11244 = vpop.f32.mrb[0].mxu0
    %11245 = vmatprep.mubr.f32.mxu0 0.0
    %11246 = vmatmul.mubr.f32.gmra.mrb[0].mxu0 %v10968
    %v11247 = vpop.f32.mrb[0].mxu0
    %v11248 = vadd.f32 0.0, %v11247
    %v11249 = vpop.f32.mrb[0].mxu0
    %11250 = vmatprep.mubr.f32.mxu0 0.0
    %11251 = vmatmul.mubr.f32.gmra.mrb[0].mxu0 %v10971
    %v11252 = vpop.f32.mrb[0].mxu0
    %v11253 = vadd.f32 0.0, %v11252
    %v11254 = vpop.f32.mrb[0].mxu0
    %11255 = vmatprep.mubr.f32.mxu0 0.0
    %11256 = vmatmul.mubr.f32.gmra.mrb[0].mxu0 %v10974
    %v11257 = vpop.f32.mrb[0].mxu0
    %v11258 = vadd.f32 0.0, %v11257
    %v11259 = vpop.f32.mrb[0].mxu0
    %11260 = vmatprep.mubr.f32.mxu0 0.0
    %11261 = vmatmul.mubr.f32.gmra.mrb[0].mxu0 %v10977
    %v11262 = vpop.f32.mrb[0].mxu0
    %v11263 = vadd.f32 0.0, %v11262
    %v11264 = vpop.f32.mrb[0].mxu0
    %11265 = vmatprep.mubr.f32.mxu0 0.0
    %11266 = vmatmul.mubr.f32.gmra.mrb[0].mxu0 %v10980
    %v11267 = vpop.f32.mrb[0].mxu0
    %v11268 = vadd.f32 0.0, %v11267
    %v11269 = vpop.f32.mrb[0].mxu0
    %11270 = vmatprep.mubr.f32.mxu0 0.0
    %11271 = vmatmul.mubr.f32.gmra.mrb[0].mxu0 %v10983
    %v11272 = vpop.f32.mrb[0].mxu0
    %v11273 = vadd.f32 0.0, %v11272
    %v11274 = vpop.f32.mrb[0].mxu0
    %11275 = vmatprep.mubr.f32.mxu0 0.0
    %11276 = vmatmul.mubr.f32.gmra.mrb[0].mxu0 %v10986
    %v11277 = vpop.f32.mrb[0].mxu0
    %v11278 = vadd.f32 0.0, %v11277
    %v11279 = vpop.f32.mrb[0].mxu0
    %11280 = vmatprep.mubr.f32.mxu0 0.0
    %11281 = vmatmul.mubr.f32.gmra.mrb[0].mxu0 %v10989
    %v11282 = vpop.f32.mrb[0].mxu0
    %v11283 = vadd.f32 0.0, %v11282
    %v11284 = vpop.f32.mrb[0].mxu0
    %11285 = vmatprep.mubr.f32.mxu0 0.0
    %11286 = vmatmul.mubr.f32.gmra.mrb[0].mxu0 %v10992
    %v11287 = vpop.f32.mrb[0].mxu0
    %v11288 = vadd.f32 0.0, %v11287
    %v11289 = vpop.f32.mrb[0].mxu0
    %11290 = vmatprep.mubr.f32.mxu0 0.0
    %11291 = vmatmul.mubr.f32.gmra.mrb[0].mxu0 %v10995
    %v11292 = vpop.f32.mrb[0].mxu0
    %v11293 = vadd.f32 0.0, %v11292
    %v11294 = vpop.f32.mrb[0].mxu0
    %11295 = vmatprep.mubr.f32.mxu0 0.0
    %11296 = vmatmul.mubr.f32.gmra.mrb[0].mxu0 %v10998
    %v11297 = vpop.f32.mrb[0].mxu0
    %v11298 = vadd.f32 0.0, %v11297
    %v11299 = vpop.f32.mrb[0].mxu0
    %11300 = vmatprep.mubr.f32.mxu0 0.0
    %11301 = vmatmul.mubr.f32.gmra.mrb[0].mxu0 %v11001
    %v11302 = vpop.f32.mrb[0].mxu0
    %v11303 = vadd.f32 0.0, %v11302
    %v11304 = vpop.f32.mrb[0].mxu0
    %11305 = vmatprep.mubr.f32.mxu0 0.0
    %11306 = vmatmul.mubr.f32.gmra.mrb[0].mxu0 %v11004
    %v11307 = vpop.f32.mrb[0].mxu0
    %v11308 = vadd.f32 0.0, %v11307
    %v11309 = vpop.f32.mrb[0].mxu0
    %11310 = vmatprep.mubr.f32.mxu0 0.0
    %11311 = vmatmul.mubr.f32.gmra.mrb[0].mxu0 %v11007
    %v11312 = vpop.f32.mrb[0].mxu0
    %v11313 = vadd.f32 0.0, %v11312
    %v11314 = vpop.f32.mrb[0].mxu0
    %11315 = vmatprep.mubr.f32.mxu0 0.0
    %11316 = vmatmul.mubr.f32.gmra.mrb[0].mxu0 %v11010
    %v11317 = vpop.f32.mrb[0].mxu0
    %v11318 = vadd.f32 0.0, %v11317
    %v11319 = vpop.f32.mrb[0].mxu0
    %11320 = vmatprep.mubr.f32.mxu0 0.0
    %11321 = vmatmul.mubr.f32.gmra.mrb[0].mxu0 %v11013
    %v11322 = vpop.f32.mrb[0].mxu0
    %v11323 = vadd.f32 0.0, %v11322
    %v11324 = vpop.f32.mrb[0].mxu0
    %11325 = vmatprep.mubr.f32.mxu0 0.0
    %11326 = vmatmul.mubr.f32.gmra.mrb[0].mxu0 %v11016
    %v11327 = vpop.f32.mrb[0].mxu0
    %v11328 = vadd.f32 0.0, %v11327
    %v11329 = vpop.f32.mrb[0].mxu0
    %11330 = vmatprep.mubr.f32.mxu0 0.0
    %11331 = vmatmul.mubr.f32.gmra.mrb[0].mxu0 %v11019
    %v11332 = vpop.f32.mrb[0].mxu0
    %v11333 = vadd.f32 0.0, %v11332
    %v11334 = vpop.f32.mrb[0].mxu0
    %11335 = vmatprep.mubr.f32.mxu0 0.0
    %11336 = vmatmul.mubr.f32.gmra.mrb[0].mxu0 %v11022
    %v11337 = vpop.f32.mrb[0].mxu0
    %v11338 = vadd.f32 0.0, %v11337
    %v11339 = vpop.f32.mrb[0].mxu0
    %11340 = vmatprep.mubr.f32.mxu0 0.0
    %11341 = vmatmul.mubr.f32.gmra.mrb[0].mxu0 %v11025
    %v11342 = vpop.f32.mrb[0].mxu0
    %v11343 = vadd.f32 0.0, %v11342
    %v11344 = vpop.f32.mrb[0].mxu0
    %11345 = vmatprep.mubr.f32.mxu0 0.0
    %11346 = vmatmul.mubr.f32.gmra.mrb[0].mxu0 %v11028
    %v11347 = vpop.f32.mrb[0].mxu0
    %v11348 = vadd.f32 0.0, %v11347
    %v11349 = vpop.f32.mrb[0].mxu0
    %11350 = vmatprep.mubr.f32.mxu0 0.0
    %11351 = vmatmul.mubr.f32.gmra.mrb[0].mxu0 %v11031
    %v11352 = vpop.f32.mrb[0].mxu0
    %v11353 = vadd.f32 0.0, %v11352
    %v11354 = vpop.f32.mrb[0].mxu0
    %11355 = vmatprep.mubr.f32.mxu0 0.0
    %11356 = vmatmul.mubr.f32.gmra.mrb[0].mxu0 %v11034
    %v11357 = vpop.f32.mrb[0].mxu0
    %v11358 = vadd.f32 0.0, %v11357
    %v11359 = vpop.f32.mrb[0].mxu0
    %11360 = vmatprep.mubr.f32.mxu0 0.0
    %11361 = vmatmul.mubr.f32.gmra.mrb[0].mxu0 %v11037
    %v11362 = vpop.f32.mrb[0].mxu0
    %v11363 = vadd.f32 0.0, %v11362
    %v11364 = vpop.f32.mrb[0].mxu0
    %11365 = vmatprep.mubr.f32.mxu0 0.0
    %11366 = vmatmul.mubr.f32.gmra.mrb[0].mxu0 %v11040
    %v11367 = vpop.f32.mrb[0].mxu0
    %v11368 = vadd.f32 0.0, %v11367
    %v11369 = vpop.f32.mrb[0].mxu0
    %11370 = vmatprep.mubr.f32.mxu0 0.0
    %11371 = vmatmul.mubr.f32.gmra.mrb[0].mxu0 %v11043
    %v11372 = vpop.f32.mrb[0].mxu0
    %v11373 = vadd.f32 0.0, %v11372
    %v11374 = vpop.f32.mrb[0].mxu0
    %11375 = vmatprep.mubr.f32.mxu0 0.0
    %11376 = vmatmul.mubr.f32.gmra.mrb[0].mxu0 %v11046
    %v11377 = vpop.f32.mrb[0].mxu0
    %v11378 = vadd.f32 0.0, %v11377
    %v11379 = vpop.f32.mrb[0].mxu0
    %11380 = vmatprep.mubr.f32.mxu0 0.0
    %11381 = vmatmul.mubr.f32.gmra.mrb[0].mxu0 %v11049
    %v11382 = vpop.f32.mrb[0].mxu0
    %v11383 = vadd.f32 0.0, %v11382
    %v11384 = vpop.f32.mrb[0].mxu0
    %11385 = vmatprep.mubr.f32.mxu0 0.0
    %11386 = vmatmul.mubr.f32.gmra.mrb[0].mxu0 %v11052
    %v11387 = vpop.f32.mrb[0].mxu0
    %v11388 = vadd.f32 0.0, %v11387
    %v11389 = vpop.f32.mrb[0].mxu0
    %11390 = vmatprep.mubr.f32.mxu0 0.0
    %11391 = vmatmul.mubr.f32.gmra.mrb[0].mxu0 %v11055
    %v11392 = vpop.f32.mrb[0].mxu0
    %v11393 = vadd.f32 0.0, %v11392
    %v11394 = vpop.f32.mrb[0].mxu0
    %11395 = vmatprep.mubr.f32.mxu0 0.0
    %11396 = vmatmul.mubr.f32.gmra.mrb[0].mxu0 %v11058
    %v11397 = vpop.f32.mrb[0].mxu0
    %v11398 = vadd.f32 0.0, %v11397
    %v11399 = vpop.f32.mrb[0].mxu0
    %11400 = vmatprep.mubr.f32.mxu0 0.0
    %11401 = vmatmul.mubr.f32.gmra.mrb[0].mxu0 %v11061
    %v11402 = vpop.f32.mrb[0].mxu0
    %v11403 = vadd.f32 0.0, %v11402
    %v11404 = vpop.f32.mrb[0].mxu0
    %11405 = vmatprep.mubr.f32.mxu0 0.0
    %11406 = vmatmul.mubr.f32.gmra.mrb[0].mxu0 %v11064
    %v11407 = vpop.f32.mrb[0].mxu0
    %v11408 = vadd.f32 0.0, %v11407
    %v11409 = vpop.f32.mrb[0].mxu0
    %11410 = vmatprep.mubr.f32.mxu0 0.0
    %11411 = vmatmul.mubr.f32.gmra.mrb[0].mxu0 %v11067
    %v11412 = vpop.f32.mrb[0].mxu0
    %v11413 = vadd.f32 0.0, %v11412
    %v11414 = vpop.f32.mrb[0].mxu0
    %11415 = vmatprep.mubr.f32.mxu0 0.0
    %11416 = vmatmul.mubr.f32.gmra.mrb[0].mxu0 %v11070
    %v11417 = vpop.f32.mrb[0].mxu0
    %v11418 = vadd.f32 0.0, %v11417
    %v11419 = vpop.f32.mrb[0].mxu0
    %11420 = vmatprep.mubr.f32.mxu0 0.0
    %11421 = vmatmul.mubr.f32.gmra.mrb[0].mxu0 %v11073
    %v11422 = vpop.f32.mrb[0].mxu0
    %v11423 = vadd.f32 0.0, %v11422
    %v11424 = vpop.f32.mrb[0].mxu0
    %11425 = vmatprep.mubr.f32.mxu0 0.0
    %11426 = vmatmul.mubr.f32.gmra.mrb[0].mxu0 %v11076
    %v11427 = vpop.f32.mrb[0].mxu0
    %v11428 = vadd.f32 0.0, %v11427
    %v11429 = vpop.f32.mrb[0].mxu0
    %11430 = vmatprep.mubr.f32.mxu0 0.0
    %11431 = vmatmul.mubr.f32.gmra.mrb[0].mxu0 %v11079
    %v11432 = vpop.f32.mrb[0].mxu0
    %v11433 = vadd.f32 0.0, %v11432
    %v11434 = vpop.f32.mrb[0].mxu0
    %11435 = vmatprep.mubr.f32.mxu0 0.0
    %11436 = vmatmul.mubr.f32.gmra.mrb[0].mxu0 %v11082
    %v11437 = vpop.f32.mrb[0].mxu0
    %v11438 = vadd.f32 0.0, %v11437
    %v11439 = vpop.f32.mrb[0].mxu0
    %11440 = vmatprep.mubr.f32.mxu0 0.0
    %11441 = vmatmul.mubr.f32.gmra.mrb[0].mxu0 %v11085
    %v11442 = vpop.f32.mrb[0].mxu0
    %v11443 = vadd.f32 0.0, %v11442
    %v11444 = vpop.f32.mrb[0].mxu0
    %11445 = vmatprep.mubr.f32.mxu0 0.0
    %11446 = vmatmul.mubr.f32.gmra.mrb[0].mxu0 %v11088
    %v11447 = vpop.f32.mrb[0].mxu0
    %v11448 = vadd.f32 0.0, %v11447
    %v11449 = vpop.f32.mrb[0].mxu0
    %11450 = vmatprep.mubr.f32.mxu0 0.0
    %11451 = vmatmul.mubr.f32.gmra.mrb[0].mxu0 %v11091
    %v11452 = vpop.f32.mrb[0].mxu0
    %v11453 = vadd.f32 0.0, %v11452
    %v11454 = vpop.f32.mrb[0].mxu0
    %11455 = vmatprep.mubr.f32.mxu0 0.0
    %11456 = vmatmul.mubr.f32.gmra.mrb[0].mxu0 %v11094
    %v11457 = vpop.f32.mrb[0].mxu0
    %v11458 = vadd.f32 0.0, %v11457
    %v11459 = vpop.f32.mrb[0].mxu0
    %11460 = vmatprep.mubr.f32.mxu0 0.0
    %11461 = vmatmul.mubr.f32.gmra.mrb[0].mxu0 %v11097
    %v11462 = vpop.f32.mrb[0].mxu0
    %v11463 = vadd.f32 0.0, %v11462
    %v11464 = vpop.f32.mrb[0].mxu0
    %11465 = vmatprep.mubr.f32.mxu0 0.0
    %11466 = vmatmul.mubr.f32.gmra.mrb[0].mxu0 %v11100
    %v11467 = vpop.f32.mrb[0].mxu0
    %v11468 = vadd.f32 0.0, %v11467
    %v11469 = vpop.f32.mrb[0].mxu0
    %11470 = vmatprep.mubr.f32.mxu0 0.0
    %11471 = vmatmul.mubr.f32.gmra.mrb[0].mxu0 %v11103
    %v11472 = vpop.f32.mrb[0].mxu0
    %v11473 = vadd.f32 0.0, %v11472
    %v11474 = vpop.f32.mrb[0].mxu0
    %11475 = vmatprep.mubr.f32.mxu0 0.0
    %11476 = vmatmul.mubr.f32.gmra.mrb[0].mxu0 %v11106
    %v11477 = vpop.f32.mrb[0].mxu0
    %v11478 = vadd.f32 0.0, %v11477
    %v11479 = vpop.f32.mrb[0].mxu0
    %11480 = vmatprep.mubr.f32.mxu0 0.0
    %11481 = vmatmul.mubr.f32.gmra.mrb[0].mxu0 %v11109
    %v11482 = vpop.f32.mrb[0].mxu0
    %v11483 = vadd.f32 0.0, %v11482
    %v11484 = vpop.f32.mrb[0].mxu0
    %11485 = vmatprep.mubr.f32.mxu0 0.0
    %11486 = vmatmul.mubr.f32.gmra.mrb[0].mxu0 %v11112
    %v11487 = vpop.f32.mrb[0].mxu0
    %v11488 = vadd.f32 0.0, %v11487
    %v11489 = vpop.f32.mrb[0].mxu0
    %11490 = vmatprep.mubr.f32.mxu0 0.0
    %11491 = vmatmul.mubr.f32.gmra.mrb[0].mxu0 %v11115
    %v11492 = vpop.f32.mrb[0].mxu0
    %v11493 = vadd.f32 0.0, %v11492
    %v11494 = vpop.f32.mrb[0].mxu0
    %11495 = vmatprep.mubr.f32.mxu0 0.0
    %11496 = vmatmul.mubr.f32.gmra.mrb[0].mxu0 %v11118
    %v11497 = vpop.f32.mrb[0].mxu0
    %v11498 = vadd.f32 0.0, %v11497
    %v11499 = vpop.f32.mrb[0].mxu0
    %11500 = vmatprep.mubr.f32.mxu0 0.0
    %11501 = vmatmul.mubr.f32.gmra.mrb[0].mxu0 %v11121
    %v11502 = vpop.f32.mrb[0].mxu0
    %v11503 = vadd.f32 0.0, %v11502
    %v11504 = vpop.f32.mrb[0].mxu0
    %11505 = vmatprep.mubr.f32.mxu0 0.0
    %11506 = vmatmul.mubr.f32.gmra.mrb[0].mxu0 %v11124
    %v11507 = vpop.f32.mrb[0].mxu0
    %v11508 = vadd.f32 0.0, %v11507
    %v11509 = vpop.f32.mrb[0].mxu0
    %11510 = vdwg.mxu0
    %v11511 = vadd.f32 %v10797, %v11193
    %v11512 = vadd.f32 %v10798, %v11198
    %v11513 = vadd.f32 %v10799, %v11203
    %v11514 = vadd.f32 %v10800, %v11208
    %v11515 = vadd.f32 %v10801, %v11213
    %v11516 = vadd.f32 %v10802, %v11218
    %v11517 = vadd.f32 %v10803, %v11223
    %v11518 = vadd.f32 %v10804, %v11228
    %v11519 = vadd.f32 %v10805, %v11233
    %v11520 = vadd.f32 %v10806, %v11238
    %v11521 = vadd.f32 %v10807, %v11243
    %v11522 = vadd.f32 %v10808, %v11248
    %v11523 = vadd.f32 %v10809, %v11253
    %v11524 = vadd.f32 %v10810, %v11258
    %v11525 = vadd.f32 %v10811, %v11263
    %v11526 = vadd.f32 %v10812, %v11268
    %v11527 = vadd.f32 %v10813, %v11273
    %v11528 = vadd.f32 %v10814, %v11278
    %v11529 = vadd.f32 %v10815, %v11283
    %v11530 = vadd.f32 %v10816, %v11288
    %v11531 = vadd.f32 %v10817, %v11293
    %v11532 = vadd.f32 %v10818, %v11298
    %v11533 = vadd.f32 %v10819, %v11303
    %v11534 = vadd.f32 %v10820, %v11308
    %v11535 = vadd.f32 %v10821, %v11313
    %v11536 = vadd.f32 %v10822, %v11318
    %v11537 = vadd.f32 %v10823, %v11323
    %v11538 = vadd.f32 %v10824, %v11328
    %v11539 = vadd.f32 %v10825, %v11333
    %v11540 = vadd.f32 %v10826, %v11338
    %v11541 = vadd.f32 %v10827, %v11343
    %v11542 = vadd.f32 %v10828, %v11348
    %v11543 = vadd.f32 %v10829, %v11353
    %v11544 = vadd.f32 %v10830, %v11358
    %v11545 = vadd.f32 %v10831, %v11363
    %v11546 = vadd.f32 %v10832, %v11368
    %v11547 = vadd.f32 %v10833, %v11373
    %v11548 = vadd.f32 %v10834, %v11378
    %v11549 = vadd.f32 %v10835, %v11383
    %v11550 = vadd.f32 %v10836, %v11388
    %v11551 = vadd.f32 %v10837, %v11393
    %v11552 = vadd.f32 %v10838, %v11398
    %v11553 = vadd.f32 %v10839, %v11403
    %v11554 = vadd.f32 %v10840, %v11408
    %v11555 = vadd.f32 %v10841, %v11413
    %v11556 = vadd.f32 %v10842, %v11418
    %v11557 = vadd.f32 %v10843, %v11423
    %v11558 = vadd.f32 %v10844, %v11428
    %v11559 = vadd.f32 %v10845, %v11433
    %v11560 = vadd.f32 %v10846, %v11438
    %v11561 = vadd.f32 %v10847, %v11443
    %v11562 = vadd.f32 %v10848, %v11448
    %v11563 = vadd.f32 %v10849, %v11453
    %v11564 = vadd.f32 %v10850, %v11458
    %v11565 = vadd.f32 %v10851, %v11463
    %v11566 = vadd.f32 %v10852, %v11468
    %v11567 = vadd.f32 %v10853, %v11473
    %v11568 = vadd.f32 %v10854, %v11478
    %v11569 = vadd.f32 %v10855, %v11483
    %v11570 = vadd.f32 %v10856, %v11488
    %v11571 = vadd.f32 %v10857, %v11493
    %v11572 = vadd.f32 %v10858, %v11498
    %v11573 = vadd.f32 %v10859, %v11503
    %v11574 = vadd.f32 %v10860, %v11508
    %s11575 = scalar_lea.vmem [#allocation2], 576
    %v11576 = vld [vmem:[%s11575] sm:$0xff]
    %v11577 = vld [vmem:[%s11575 + $0x8] sm:$0xff]
    %v11578 = vld [vmem:[%s11575 + $0x10] sm:$0xff]
    %v11579 = vld [vmem:[%s11575 + $0x18] sm:$0xff]
    %v11580 = vld [vmem:[%s11575 + $0x20] sm:$0xff]
    %v11581 = vld [vmem:[%s11575 + $0x28] sm:$0xff]
    %v11582 = vld [vmem:[%s11575 + $0x30] sm:$0xff]
    %v11583 = vld [vmem:[%s11575 + $0x38] sm:$0xff]
    %v11584 = vld [vmem:[%s11575 + $0x40] sm:$0xff]
    %v11585 = vld [vmem:[%s11575 + $0x48] sm:$0xff]
    %v11586 = vld [vmem:[%s11575 + $0x50] sm:$0xff]
    %v11587 = vld [vmem:[%s11575 + $0x58] sm:$0xff]
    %v11588 = vld [vmem:[%s11575 + $0x60] sm:$0xff]
    %v11589 = vld [vmem:[%s11575 + $0x68] sm:$0xff]
    %v11590 = vld [vmem:[%s11575 + $0x70] sm:$0xff]
    %v11591 = vld [vmem:[%s11575 + $0x78] sm:$0xff]
    %v11592 = vld [vmem:[%s11575 + $0x100] sm:$0xff]
    %v11593 = vld [vmem:[%s11575 + $0x108] sm:$0xff]
    %v11594 = vld [vmem:[%s11575 + $0x110] sm:$0xff]
    %v11595 = vld [vmem:[%s11575 + $0x118] sm:$0xff]
    %v11596 = vld [vmem:[%s11575 + $0x120] sm:$0xff]
    %v11597 = vld [vmem:[%s11575 + $0x128] sm:$0xff]
    %v11598 = vld [vmem:[%s11575 + $0x130] sm:$0xff]
    %v11599 = vld [vmem:[%s11575 + $0x138] sm:$0xff]
    %v11600 = vld [vmem:[%s11575 + $0x140] sm:$0xff]
    %v11601 = vld [vmem:[%s11575 + $0x148] sm:$0xff]
    %v11602 = vld [vmem:[%s11575 + $0x150] sm:$0xff]
    %v11603 = vld [vmem:[%s11575 + $0x158] sm:$0xff]
    %v11604 = vld [vmem:[%s11575 + $0x160] sm:$0xff]
    %v11605 = vld [vmem:[%s11575 + $0x168] sm:$0xff]
    %v11606 = vld [vmem:[%s11575 + $0x170] sm:$0xff]
    %v11607 = vld [vmem:[%s11575 + $0x178] sm:$0xff]
    %v11608 = vld [vmem:[%s11575 + $0x400] sm:$0xff]
    %v11609 = vld [vmem:[%s11575 + $0x408] sm:$0xff]
    %v11610 = vld [vmem:[%s11575 + $0x410] sm:$0xff]
    %v11611 = vld [vmem:[%s11575 + $0x418] sm:$0xff]
    %v11612 = vld [vmem:[%s11575 + $0x420] sm:$0xff]
    %v11613 = vld [vmem:[%s11575 + $0x428] sm:$0xff]
    %v11614 = vld [vmem:[%s11575 + $0x430] sm:$0xff]
    %v11615 = vld [vmem:[%s11575 + $0x438] sm:$0xff]
    %v11616 = vld [vmem:[%s11575 + $0x440] sm:$0xff]
    %v11617 = vld [vmem:[%s11575 + $0x448] sm:$0xff]
    %v11618 = vld [vmem:[%s11575 + $0x450] sm:$0xff]
    %v11619 = vld [vmem:[%s11575 + $0x458] sm:$0xff]
    %v11620 = vld [vmem:[%s11575 + $0x460] sm:$0xff]
    %v11621 = vld [vmem:[%s11575 + $0x468] sm:$0xff]
    %v11622 = vld [vmem:[%s11575 + $0x470] sm:$0xff]
    %v11623 = vld [vmem:[%s11575 + $0x478] sm:$0xff]
    %v11624 = vld [vmem:[%s11575 + $0x500] sm:$0xff]
    %v11625 = vld [vmem:[%s11575 + $0x508] sm:$0xff]
    %v11626 = vld [vmem:[%s11575 + $0x510] sm:$0xff]
    %v11627 = vld [vmem:[%s11575 + $0x518] sm:$0xff]
    %v11628 = vld [vmem:[%s11575 + $0x520] sm:$0xff]
    %v11629 = vld [vmem:[%s11575 + $0x528] sm:$0xff]
    %v11630 = vld [vmem:[%s11575 + $0x530] sm:$0xff]
    %v11631 = vld [vmem:[%s11575 + $0x538] sm:$0xff]
    %v11632 = vld [vmem:[%s11575 + $0x540] sm:$0xff]
    %v11633 = vld [vmem:[%s11575 + $0x548] sm:$0xff]
    %v11634 = vld [vmem:[%s11575 + $0x550] sm:$0xff]
    %v11635 = vld [vmem:[%s11575 + $0x558] sm:$0xff]
    %v11636 = vld [vmem:[%s11575 + $0x560] sm:$0xff]
    %v11637 = vld [vmem:[%s11575 + $0x568] sm:$0xff]
    %v11638 = vld [vmem:[%s11575 + $0x570] sm:$0xff]
    %v11639 = vld [vmem:[%s11575 + $0x578] sm:$0xff]
    %v11640 = vld [vmem:[%s3 + $0x1c0] sm:$0xff]
    %v11641 = vld [vmem:[%s3 + $0x1c8] sm:$0xff]
    %v11642 = vld [vmem:[%s3 + $0x1d0] sm:$0xff]
    %v11643 = vld [vmem:[%s3 + $0x1d8] sm:$0xff]
    %v11644 = vld [vmem:[%s3 + $0x1e0] sm:$0xff]
    %v11645 = vld [vmem:[%s3 + $0x1e8] sm:$0xff]
    %v11646 = vld [vmem:[%s3 + $0x1f0] sm:$0xff]
    %v11647 = vld [vmem:[%s3 + $0x1f8] sm:$0xff]
    %v11649 = vsel %vm165, %v11576, 0
    %v11652 = vsel %vm165, %v11577, 0
    %v11655 = vsel %vm165, %v11578, 0
    %v11658 = vsel %vm165, %v11579, 0
    %v11661 = vsel %vm165, %v11580, 0
    %v11664 = vsel %vm165, %v11581, 0
    %v11667 = vsel %vm165, %v11582, 0
    %v11670 = vsel %vm165, %v11583, 0
    %v11673 = vsel %vm165, %v11584, 0
    %v11676 = vsel %vm165, %v11585, 0
    %v11679 = vsel %vm165, %v11586, 0
    %v11682 = vsel %vm165, %v11587, 0
    %v11685 = vsel %vm165, %v11588, 0
    %v11688 = vsel %vm165, %v11589, 0
    %v11691 = vsel %vm165, %v11590, 0
    %v11694 = vsel %vm165, %v11591, 0
    %v11697 = vsel %vm165, %v11592, 0
    %v11700 = vsel %vm165, %v11593, 0
    %v11703 = vsel %vm165, %v11594, 0
    %v11706 = vsel %vm165, %v11595, 0
    %v11709 = vsel %vm165, %v11596, 0
    %v11712 = vsel %vm165, %v11597, 0
    %v11715 = vsel %vm165, %v11598, 0
    %v11718 = vsel %vm165, %v11599, 0
    %v11721 = vsel %vm165, %v11600, 0
    %v11724 = vsel %vm165, %v11601, 0
    %v11727 = vsel %vm165, %v11602, 0
    %v11730 = vsel %vm165, %v11603, 0
    %v11733 = vsel %vm165, %v11604, 0
    %v11736 = vsel %vm165, %v11605, 0
    %v11739 = vsel %vm165, %v11606, 0
    %v11742 = vsel %vm165, %v11607, 0
    %v11745 = vsel %vm165, %v11608, 0
    %v11748 = vsel %vm165, %v11609, 0
    %v11751 = vsel %vm165, %v11610, 0
    %v11754 = vsel %vm165, %v11611, 0
    %v11757 = vsel %vm165, %v11612, 0
    %v11760 = vsel %vm165, %v11613, 0
    %v11763 = vsel %vm165, %v11614, 0
    %v11766 = vsel %vm165, %v11615, 0
    %v11769 = vsel %vm165, %v11616, 0
    %v11772 = vsel %vm165, %v11617, 0
    %v11775 = vsel %vm165, %v11618, 0
    %v11778 = vsel %vm165, %v11619, 0
    %v11781 = vsel %vm165, %v11620, 0
    %v11784 = vsel %vm165, %v11621, 0
    %v11787 = vsel %vm165, %v11622, 0
    %v11790 = vsel %vm165, %v11623, 0
    %v11793 = vsel %vm165, %v11624, 0
    %v11796 = vsel %vm165, %v11625, 0
    %v11799 = vsel %vm165, %v11626, 0
    %v11802 = vsel %vm165, %v11627, 0
    %v11805 = vsel %vm165, %v11628, 0
    %v11808 = vsel %vm165, %v11629, 0
    %v11811 = vsel %vm165, %v11630, 0
    %v11814 = vsel %vm165, %v11631, 0
    %v11817 = vsel %vm165, %v11632, 0
    %v11820 = vsel %vm165, %v11633, 0
    %v11823 = vsel %vm165, %v11634, 0
    %v11826 = vsel %vm165, %v11635, 0
    %v11829 = vsel %vm165, %v11636, 0
    %v11832 = vsel %vm165, %v11637, 0
    %v11835 = vsel %vm165, %v11638, 0
    %v11838 = vsel %vm165, %v11639, 0
    %11840 = vmatprep.subr.mxu0 0.0
    %11841 = vmatpush1.msra.mxu0 %v11640
    %11842 = vmatprep.subr.mxu0 0.0
    %11843 = vmatpush1.msra.mxu0 %v11641
    %11844 = vmatprep.subr.mxu0 0.0
    %11845 = vmatpush1.msra.mxu0 %v11642
    %11846 = vmatprep.subr.mxu0 0.0
    %11847 = vmatpush1.msra.mxu0 %v11643
    %11848 = vmatprep.subr.mxu0 0.0
    %11849 = vmatpush1.msra.mxu0 %v11644
    %11850 = vmatprep.subr.mxu0 0.0
    %11851 = vmatpush1.msra.mxu0 %v11645
    %11852 = vmatprep.subr.mxu0 0.0
    %11853 = vmatpush1.msra.mxu0 %v11646
    %11854 = vmatprep.subr.mxu0 0.0
    %11855 = vmatpush1.msra.mxu0 %v11647
    %11856 = vmatprep.subr.mxu0 0.0
    %11857 = vmatpush1.msra.mxu0 0.0
    %11858 = vmatprep.subr.mxu0 0.0
    %11859 = vmatpush1.msra.mxu0 0.0
    %11860 = vmatprep.subr.mxu0 0.0
    %11861 = vmatpush1.msra.mxu0 0.0
    %11862 = vmatprep.subr.mxu0 0.0
    %11863 = vmatpush1.msra.mxu0 0.0
    %11864 = vmatprep.subr.mxu0 0.0
    %11865 = vmatpush1.msra.mxu0 0.0
    %11866 = vmatprep.subr.mxu0 0.0
    %11867 = vmatpush1.msra.mxu0 0.0
    %11868 = vmatprep.subr.mxu0 0.0
    %11869 = vmatpush1.msra.mxu0 0.0
    %11870 = vmatprep.subr.mxu0 0.0
    %11871 = vmatpush1.msra.mxu0 0.0
    %11872 = vmatprep.subr.mxu0 0.0
    %11873 = vmatpush1.msra.mxu0 0.0
    %11874 = vmatprep.subr.mxu0 0.0
    %11875 = vmatpush1.msra.mxu0 0.0
    %11876 = vmatprep.subr.mxu0 0.0
    %11877 = vmatpush1.msra.mxu0 0.0
    %11878 = vmatprep.subr.mxu0 0.0
    %11879 = vmatpush1.msra.mxu0 0.0
    %11880 = vmatprep.subr.mxu0 0.0
    %11881 = vmatpush1.msra.mxu0 0.0
    %11882 = vmatprep.subr.mxu0 0.0
    %11883 = vmatpush1.msra.mxu0 0.0
    %11884 = vmatprep.subr.mxu0 0.0
    %11885 = vmatpush1.msra.mxu0 0.0
    %11886 = vmatprep.subr.mxu0 0.0
    %11887 = vmatpush1.msra.mxu0 0.0
    %11888 = vmatprep.subr.mxu0 0.0
    %11889 = vmatpush1.msra.mxu0 0.0
    %11890 = vmatprep.subr.mxu0 0.0
    %11891 = vmatpush1.msra.mxu0 0.0
    %11892 = vmatprep.subr.mxu0 0.0
    %11893 = vmatpush1.msra.mxu0 0.0
    %11894 = vmatprep.subr.mxu0 0.0
    %11895 = vmatpush1.msra.mxu0 0.0
    %11896 = vmatprep.subr.mxu0 0.0
    %11897 = vmatpush1.msra.mxu0 0.0
    %11898 = vmatprep.subr.mxu0 0.0
    %11899 = vmatpush1.msra.mxu0 0.0
    %11900 = vmatprep.subr.mxu0 0.0
    %11901 = vmatpush1.msra.mxu0 0.0
    %11902 = vmatprep.subr.mxu0 0.0
    %11903 = vmatpush1.msra.mxu0 0.0
    %11904 = vmatprep.mubr.f32.mxu0 0.0
    %11905 = vmatmul.mubr.f32.gmra.mrb[0].mxu0 %v11649
    %v11906 = vpop.f32.mrb[0].mxu0
    %v11907 = vadd.f32 0.0, %v11906
    %v11908 = vpop.f32.mrb[0].mxu0
    %11909 = vmatprep.mubr.f32.mxu0 0.0
    %11910 = vmatmul.mubr.f32.gmra.mrb[0].mxu0 %v11652
    %v11911 = vpop.f32.mrb[0].mxu0
    %v11912 = vadd.f32 0.0, %v11911
    %v11913 = vpop.f32.mrb[0].mxu0
    %11914 = vmatprep.mubr.f32.mxu0 0.0
    %11915 = vmatmul.mubr.f32.gmra.mrb[0].mxu0 %v11655
    %v11916 = vpop.f32.mrb[0].mxu0
    %v11917 = vadd.f32 0.0, %v11916
    %v11918 = vpop.f32.mrb[0].mxu0
    %11919 = vmatprep.mubr.f32.mxu0 0.0
    %11920 = vmatmul.mubr.f32.gmra.mrb[0].mxu0 %v11658
    %v11921 = vpop.f32.mrb[0].mxu0
    %v11922 = vadd.f32 0.0, %v11921
    %v11923 = vpop.f32.mrb[0].mxu0
    %11924 = vmatprep.mubr.f32.mxu0 0.0
    %11925 = vmatmul.mubr.f32.gmra.mrb[0].mxu0 %v11661
    %v11926 = vpop.f32.mrb[0].mxu0
    %v11927 = vadd.f32 0.0, %v11926
    %v11928 = vpop.f32.mrb[0].mxu0
    %11929 = vmatprep.mubr.f32.mxu0 0.0
    %11930 = vmatmul.mubr.f32.gmra.mrb[0].mxu0 %v11664
    %v11931 = vpop.f32.mrb[0].mxu0
    %v11932 = vadd.f32 0.0, %v11931
    %v11933 = vpop.f32.mrb[0].mxu0
    %11934 = vmatprep.mubr.f32.mxu0 0.0
    %11935 = vmatmul.mubr.f32.gmra.mrb[0].mxu0 %v11667
    %v11936 = vpop.f32.mrb[0].mxu0
    %v11937 = vadd.f32 0.0, %v11936
    %v11938 = vpop.f32.mrb[0].mxu0
    %11939 = vmatprep.mubr.f32.mxu0 0.0
    %11940 = vmatmul.mubr.f32.gmra.mrb[0].mxu0 %v11670
    %v11941 = vpop.f32.mrb[0].mxu0
    %v11942 = vadd.f32 0.0, %v11941
    %v11943 = vpop.f32.mrb[0].mxu0
    %11944 = vmatprep.mubr.f32.mxu0 0.0
    %11945 = vmatmul.mubr.f32.gmra.mrb[0].mxu0 %v11673
    %v11946 = vpop.f32.mrb[0].mxu0
    %v11947 = vadd.f32 0.0, %v11946
    %v11948 = vpop.f32.mrb[0].mxu0
    %11949 = vmatprep.mubr.f32.mxu0 0.0
    %11950 = vmatmul.mubr.f32.gmra.mrb[0].mxu0 %v11676
    %v11951 = vpop.f32.mrb[0].mxu0
    %v11952 = vadd.f32 0.0, %v11951
    %v11953 = vpop.f32.mrb[0].mxu0
    %11954 = vmatprep.mubr.f32.mxu0 0.0
    %11955 = vmatmul.mubr.f32.gmra.mrb[0].mxu0 %v11679
    %v11956 = vpop.f32.mrb[0].mxu0
    %v11957 = vadd.f32 0.0, %v11956
    %v11958 = vpop.f32.mrb[0].mxu0
    %11959 = vmatprep.mubr.f32.mxu0 0.0
    %11960 = vmatmul.mubr.f32.gmra.mrb[0].mxu0 %v11682
    %v11961 = vpop.f32.mrb[0].mxu0
    %v11962 = vadd.f32 0.0, %v11961
    %v11963 = vpop.f32.mrb[0].mxu0
    %11964 = vmatprep.mubr.f32.mxu0 0.0
    %11965 = vmatmul.mubr.f32.gmra.mrb[0].mxu0 %v11685
    %v11966 = vpop.f32.mrb[0].mxu0
    %v11967 = vadd.f32 0.0, %v11966
    %v11968 = vpop.f32.mrb[0].mxu0
    %11969 = vmatprep.mubr.f32.mxu0 0.0
    %11970 = vmatmul.mubr.f32.gmra.mrb[0].mxu0 %v11688
    %v11971 = vpop.f32.mrb[0].mxu0
    %v11972 = vadd.f32 0.0, %v11971
    %v11973 = vpop.f32.mrb[0].mxu0
    %11974 = vmatprep.mubr.f32.mxu0 0.0
    %11975 = vmatmul.mubr.f32.gmra.mrb[0].mxu0 %v11691
    %v11976 = vpop.f32.mrb[0].mxu0
    %v11977 = vadd.f32 0.0, %v11976
    %v11978 = vpop.f32.mrb[0].mxu0
    %11979 = vmatprep.mubr.f32.mxu0 0.0
    %11980 = vmatmul.mubr.f32.gmra.mrb[0].mxu0 %v11694
    %v11981 = vpop.f32.mrb[0].mxu0
    %v11982 = vadd.f32 0.0, %v11981
    %v11983 = vpop.f32.mrb[0].mxu0
    %11984 = vmatprep.mubr.f32.mxu0 0.0
    %11985 = vmatmul.mubr.f32.gmra.mrb[0].mxu0 %v11697
    %v11986 = vpop.f32.mrb[0].mxu0
    %v11987 = vadd.f32 0.0, %v11986
    %v11988 = vpop.f32.mrb[0].mxu0
    %11989 = vmatprep.mubr.f32.mxu0 0.0
    %11990 = vmatmul.mubr.f32.gmra.mrb[0].mxu0 %v11700
    %v11991 = vpop.f32.mrb[0].mxu0
    %v11992 = vadd.f32 0.0, %v11991
    %v11993 = vpop.f32.mrb[0].mxu0
    %11994 = vmatprep.mubr.f32.mxu0 0.0
    %11995 = vmatmul.mubr.f32.gmra.mrb[0].mxu0 %v11703
    %v11996 = vpop.f32.mrb[0].mxu0
    %v11997 = vadd.f32 0.0, %v11996
    %v11998 = vpop.f32.mrb[0].mxu0
    %11999 = vmatprep.mubr.f32.mxu0 0.0
    %12000 = vmatmul.mubr.f32.gmra.mrb[0].mxu0 %v11706
    %v12001 = vpop.f32.mrb[0].mxu0
    %v12002 = vadd.f32 0.0, %v12001
    %v12003 = vpop.f32.mrb[0].mxu0
    %12004 = vmatprep.mubr.f32.mxu0 0.0
    %12005 = vmatmul.mubr.f32.gmra.mrb[0].mxu0 %v11709
    %v12006 = vpop.f32.mrb[0].mxu0
    %v12007 = vadd.f32 0.0, %v12006
    %v12008 = vpop.f32.mrb[0].mxu0
    %12009 = vmatprep.mubr.f32.mxu0 0.0
    %12010 = vmatmul.mubr.f32.gmra.mrb[0].mxu0 %v11712
    %v12011 = vpop.f32.mrb[0].mxu0
    %v12012 = vadd.f32 0.0, %v12011
    %v12013 = vpop.f32.mrb[0].mxu0
    %12014 = vmatprep.mubr.f32.mxu0 0.0
    %12015 = vmatmul.mubr.f32.gmra.mrb[0].mxu0 %v11715
    %v12016 = vpop.f32.mrb[0].mxu0
    %v12017 = vadd.f32 0.0, %v12016
    %v12018 = vpop.f32.mrb[0].mxu0
    %12019 = vmatprep.mubr.f32.mxu0 0.0
    %12020 = vmatmul.mubr.f32.gmra.mrb[0].mxu0 %v11718
    %v12021 = vpop.f32.mrb[0].mxu0
    %v12022 = vadd.f32 0.0, %v12021
    %v12023 = vpop.f32.mrb[0].mxu0
    %12024 = vmatprep.mubr.f32.mxu0 0.0
    %12025 = vmatmul.mubr.f32.gmra.mrb[0].mxu0 %v11721
    %v12026 = vpop.f32.mrb[0].mxu0
    %v12027 = vadd.f32 0.0, %v12026
    %v12028 = vpop.f32.mrb[0].mxu0
    %12029 = vmatprep.mubr.f32.mxu0 0.0
    %12030 = vmatmul.mubr.f32.gmra.mrb[0].mxu0 %v11724
    %v12031 = vpop.f32.mrb[0].mxu0
    %v12032 = vadd.f32 0.0, %v12031
    %v12033 = vpop.f32.mrb[0].mxu0
    %12034 = vmatprep.mubr.f32.mxu0 0.0
    %12035 = vmatmul.mubr.f32.gmra.mrb[0].mxu0 %v11727
    %v12036 = vpop.f32.mrb[0].mxu0
    %v12037 = vadd.f32 0.0, %v12036
    %v12038 = vpop.f32.mrb[0].mxu0
    %12039 = vmatprep.mubr.f32.mxu0 0.0
    %12040 = vmatmul.mubr.f32.gmra.mrb[0].mxu0 %v11730
    %v12041 = vpop.f32.mrb[0].mxu0
    %v12042 = vadd.f32 0.0, %v12041
    %v12043 = vpop.f32.mrb[0].mxu0
    %12044 = vmatprep.mubr.f32.mxu0 0.0
    %12045 = vmatmul.mubr.f32.gmra.mrb[0].mxu0 %v11733
    %v12046 = vpop.f32.mrb[0].mxu0
    %v12047 = vadd.f32 0.0, %v12046
    %v12048 = vpop.f32.mrb[0].mxu0
    %12049 = vmatprep.mubr.f32.mxu0 0.0
    %12050 = vmatmul.mubr.f32.gmra.mrb[0].mxu0 %v11736
    %v12051 = vpop.f32.mrb[0].mxu0
    %v12052 = vadd.f32 0.0, %v12051
    %v12053 = vpop.f32.mrb[0].mxu0
    %12054 = vmatprep.mubr.f32.mxu0 0.0
    %12055 = vmatmul.mubr.f32.gmra.mrb[0].mxu0 %v11739
    %v12056 = vpop.f32.mrb[0].mxu0
    %v12057 = vadd.f32 0.0, %v12056
    %v12058 = vpop.f32.mrb[0].mxu0
    %12059 = vmatprep.mubr.f32.mxu0 0.0
    %12060 = vmatmul.mubr.f32.gmra.mrb[0].mxu0 %v11742
    %v12061 = vpop.f32.mrb[0].mxu0
    %v12062 = vadd.f32 0.0, %v12061
    %v12063 = vpop.f32.mrb[0].mxu0
    %12064 = vmatprep.mubr.f32.mxu0 0.0
    %12065 = vmatmul.mubr.f32.gmra.mrb[0].mxu0 %v11745
    %v12066 = vpop.f32.mrb[0].mxu0
    %v12067 = vadd.f32 0.0, %v12066
    %v12068 = vpop.f32.mrb[0].mxu0
    %12069 = vmatprep.mubr.f32.mxu0 0.0
    %12070 = vmatmul.mubr.f32.gmra.mrb[0].mxu0 %v11748
    %v12071 = vpop.f32.mrb[0].mxu0
    %v12072 = vadd.f32 0.0, %v12071
    %v12073 = vpop.f32.mrb[0].mxu0
    %12074 = vmatprep.mubr.f32.mxu0 0.0
    %12075 = vmatmul.mubr.f32.gmra.mrb[0].mxu0 %v11751
    %v12076 = vpop.f32.mrb[0].mxu0
    %v12077 = vadd.f32 0.0, %v12076
    %v12078 = vpop.f32.mrb[0].mxu0
    %12079 = vmatprep.mubr.f32.mxu0 0.0
    %12080 = vmatmul.mubr.f32.gmra.mrb[0].mxu0 %v11754
    %v12081 = vpop.f32.mrb[0].mxu0
    %v12082 = vadd.f32 0.0, %v12081
    %v12083 = vpop.f32.mrb[0].mxu0
    %12084 = vmatprep.mubr.f32.mxu0 0.0
    %12085 = vmatmul.mubr.f32.gmra.mrb[0].mxu0 %v11757
    %v12086 = vpop.f32.mrb[0].mxu0
    %v12087 = vadd.f32 0.0, %v12086
    %v12088 = vpop.f32.mrb[0].mxu0
    %12089 = vmatprep.mubr.f32.mxu0 0.0
    %12090 = vmatmul.mubr.f32.gmra.mrb[0].mxu0 %v11760
    %v12091 = vpop.f32.mrb[0].mxu0
    %v12092 = vadd.f32 0.0, %v12091
    %v12093 = vpop.f32.mrb[0].mxu0
    %12094 = vmatprep.mubr.f32.mxu0 0.0
    %12095 = vmatmul.mubr.f32.gmra.mrb[0].mxu0 %v11763
    %v12096 = vpop.f32.mrb[0].mxu0
    %v12097 = vadd.f32 0.0, %v12096
    %v12098 = vpop.f32.mrb[0].mxu0
    %12099 = vmatprep.mubr.f32.mxu0 0.0
    %12100 = vmatmul.mubr.f32.gmra.mrb[0].mxu0 %v11766
    %v12101 = vpop.f32.mrb[0].mxu0
    %v12102 = vadd.f32 0.0, %v12101
    %v12103 = vpop.f32.mrb[0].mxu0
    %12104 = vmatprep.mubr.f32.mxu0 0.0
    %12105 = vmatmul.mubr.f32.gmra.mrb[0].mxu0 %v11769
    %v12106 = vpop.f32.mrb[0].mxu0
    %v12107 = vadd.f32 0.0, %v12106
    %v12108 = vpop.f32.mrb[0].mxu0
    %12109 = vmatprep.mubr.f32.mxu0 0.0
    %12110 = vmatmul.mubr.f32.gmra.mrb[0].mxu0 %v11772
    %v12111 = vpop.f32.mrb[0].mxu0
    %v12112 = vadd.f32 0.0, %v12111
    %v12113 = vpop.f32.mrb[0].mxu0
    %12114 = vmatprep.mubr.f32.mxu0 0.0
    %12115 = vmatmul.mubr.f32.gmra.mrb[0].mxu0 %v11775
    %v12116 = vpop.f32.mrb[0].mxu0
    %v12117 = vadd.f32 0.0, %v12116
    %v12118 = vpop.f32.mrb[0].mxu0
    %12119 = vmatprep.mubr.f32.mxu0 0.0
    %12120 = vmatmul.mubr.f32.gmra.mrb[0].mxu0 %v11778
    %v12121 = vpop.f32.mrb[0].mxu0
    %v12122 = vadd.f32 0.0, %v12121
    %v12123 = vpop.f32.mrb[0].mxu0
    %12124 = vmatprep.mubr.f32.mxu0 0.0
    %12125 = vmatmul.mubr.f32.gmra.mrb[0].mxu0 %v11781
    %v12126 = vpop.f32.mrb[0].mxu0
    %v12127 = vadd.f32 0.0, %v12126
    %v12128 = vpop.f32.mrb[0].mxu0
    %12129 = vmatprep.mubr.f32.mxu0 0.0
    %12130 = vmatmul.mubr.f32.gmra.mrb[0].mxu0 %v11784
    %v12131 = vpop.f32.mrb[0].mxu0
    %v12132 = vadd.f32 0.0, %v12131
    %v12133 = vpop.f32.mrb[0].mxu0
    %12134 = vmatprep.mubr.f32.mxu0 0.0
    %12135 = vmatmul.mubr.f32.gmra.mrb[0].mxu0 %v11787
    %v12136 = vpop.f32.mrb[0].mxu0
    %v12137 = vadd.f32 0.0, %v12136
    %v12138 = vpop.f32.mrb[0].mxu0
    %12139 = vmatprep.mubr.f32.mxu0 0.0
    %12140 = vmatmul.mubr.f32.gmra.mrb[0].mxu0 %v11790
    %v12141 = vpop.f32.mrb[0].mxu0
    %v12142 = vadd.f32 0.0, %v12141
    %v12143 = vpop.f32.mrb[0].mxu0
    %12144 = vmatprep.mubr.f32.mxu0 0.0
    %12145 = vmatmul.mubr.f32.gmra.mrb[0].mxu0 %v11793
    %v12146 = vpop.f32.mrb[0].mxu0
    %v12147 = vadd.f32 0.0, %v12146
    %v12148 = vpop.f32.mrb[0].mxu0
    %12149 = vmatprep.mubr.f32.mxu0 0.0
    %12150 = vmatmul.mubr.f32.gmra.mrb[0].mxu0 %v11796
    %v12151 = vpop.f32.mrb[0].mxu0
    %v12152 = vadd.f32 0.0, %v12151
    %v12153 = vpop.f32.mrb[0].mxu0
    %12154 = vmatprep.mubr.f32.mxu0 0.0
    %12155 = vmatmul.mubr.f32.gmra.mrb[0].mxu0 %v11799
    %v12156 = vpop.f32.mrb[0].mxu0
    %v12157 = vadd.f32 0.0, %v12156
    %v12158 = vpop.f32.mrb[0].mxu0
    %12159 = vmatprep.mubr.f32.mxu0 0.0
    %12160 = vmatmul.mubr.f32.gmra.mrb[0].mxu0 %v11802
    %v12161 = vpop.f32.mrb[0].mxu0
    %v12162 = vadd.f32 0.0, %v12161
    %v12163 = vpop.f32.mrb[0].mxu0
    %12164 = vmatprep.mubr.f32.mxu0 0.0
    %12165 = vmatmul.mubr.f32.gmra.mrb[0].mxu0 %v11805
    %v12166 = vpop.f32.mrb[0].mxu0
    %v12167 = vadd.f32 0.0, %v12166
    %v12168 = vpop.f32.mrb[0].mxu0
    %12169 = vmatprep.mubr.f32.mxu0 0.0
    %12170 = vmatmul.mubr.f32.gmra.mrb[0].mxu0 %v11808
    %v12171 = vpop.f32.mrb[0].mxu0
    %v12172 = vadd.f32 0.0, %v12171
    %v12173 = vpop.f32.mrb[0].mxu0
    %12174 = vmatprep.mubr.f32.mxu0 0.0
    %12175 = vmatmul.mubr.f32.gmra.mrb[0].mxu0 %v11811
    %v12176 = vpop.f32.mrb[0].mxu0
    %v12177 = vadd.f32 0.0, %v12176
    %v12178 = vpop.f32.mrb[0].mxu0
    %12179 = vmatprep.mubr.f32.mxu0 0.0
    %12180 = vmatmul.mubr.f32.gmra.mrb[0].mxu0 %v11814
    %v12181 = vpop.f32.mrb[0].mxu0
    %v12182 = vadd.f32 0.0, %v12181
    %v12183 = vpop.f32.mrb[0].mxu0
    %12184 = vmatprep.mubr.f32.mxu0 0.0
    %12185 = vmatmul.mubr.f32.gmra.mrb[0].mxu0 %v11817
    %v12186 = vpop.f32.mrb[0].mxu0
    %v12187 = vadd.f32 0.0, %v12186
    %v12188 = vpop.f32.mrb[0].mxu0
    %12189 = vmatprep.mubr.f32.mxu0 0.0
    %12190 = vmatmul.mubr.f32.gmra.mrb[0].mxu0 %v11820
    %v12191 = vpop.f32.mrb[0].mxu0
    %v12192 = vadd.f32 0.0, %v12191
    %v12193 = vpop.f32.mrb[0].mxu0
    %12194 = vmatprep.mubr.f32.mxu0 0.0
    %12195 = vmatmul.mubr.f32.gmra.mrb[0].mxu0 %v11823
    %v12196 = vpop.f32.mrb[0].mxu0
    %v12197 = vadd.f32 0.0, %v12196
    %v12198 = vpop.f32.mrb[0].mxu0
    %12199 = vmatprep.mubr.f32.mxu0 0.0
    %12200 = vmatmul.mubr.f32.gmra.mrb[0].mxu0 %v11826
    %v12201 = vpop.f32.mrb[0].mxu0
    %v12202 = vadd.f32 0.0, %v12201
    %v12203 = vpop.f32.mrb[0].mxu0
    %12204 = vmatprep.mubr.f32.mxu0 0.0
    %12205 = vmatmul.mubr.f32.gmra.mrb[0].mxu0 %v11829
    %v12206 = vpop.f32.mrb[0].mxu0
    %v12207 = vadd.f32 0.0, %v12206
    %v12208 = vpop.f32.mrb[0].mxu0
    %12209 = vmatprep.mubr.f32.mxu0 0.0
    %12210 = vmatmul.mubr.f32.gmra.mrb[0].mxu0 %v11832
    %v12211 = vpop.f32.mrb[0].mxu0
    %v12212 = vadd.f32 0.0, %v12211
    %v12213 = vpop.f32.mrb[0].mxu0
    %12214 = vmatprep.mubr.f32.mxu0 0.0
    %12215 = vmatmul.mubr.f32.gmra.mrb[0].mxu0 %v11835
    %v12216 = vpop.f32.mrb[0].mxu0
    %v12217 = vadd.f32 0.0, %v12216
    %v12218 = vpop.f32.mrb[0].mxu0
    %12219 = vmatprep.mubr.f32.mxu0 0.0
    %12220 = vmatmul.mubr.f32.gmra.mrb[0].mxu0 %v11838
    %v12221 = vpop.f32.mrb[0].mxu0
    %v12222 = vadd.f32 0.0, %v12221
    %v12223 = vpop.f32.mrb[0].mxu0
    %12224 = vdwg.mxu0
    %v12225 = vadd.f32 %v11511, %v11907
    %v12226 = vadd.f32 %v11512, %v11912
    %v12227 = vadd.f32 %v11513, %v11917
    %v12228 = vadd.f32 %v11514, %v11922
    %v12229 = vadd.f32 %v11515, %v11927
    %v12230 = vadd.f32 %v11516, %v11932
    %v12231 = vadd.f32 %v11517, %v11937
    %v12232 = vadd.f32 %v11518, %v11942
    %v12233 = vadd.f32 %v11519, %v11947
    %v12234 = vadd.f32 %v11520, %v11952
    %v12235 = vadd.f32 %v11521, %v11957
    %v12236 = vadd.f32 %v11522, %v11962
    %v12237 = vadd.f32 %v11523, %v11967
    %v12238 = vadd.f32 %v11524, %v11972
    %v12239 = vadd.f32 %v11525, %v11977
    %v12240 = vadd.f32 %v11526, %v11982
    %v12241 = vadd.f32 %v11527, %v11987
    %v12242 = vadd.f32 %v11528, %v11992
    %v12243 = vadd.f32 %v11529, %v11997
    %v12244 = vadd.f32 %v11530, %v12002
    %v12245 = vadd.f32 %v11531, %v12007
    %v12246 = vadd.f32 %v11532, %v12012
    %v12247 = vadd.f32 %v11533, %v12017
    %v12248 = vadd.f32 %v11534, %v12022
    %v12249 = vadd.f32 %v11535, %v12027
    %v12250 = vadd.f32 %v11536, %v12032
    %v12251 = vadd.f32 %v11537, %v12037
    %v12252 = vadd.f32 %v11538, %v12042
    %v12253 = vadd.f32 %v11539, %v12047
    %v12254 = vadd.f32 %v11540, %v12052
    %v12255 = vadd.f32 %v11541, %v12057
    %v12256 = vadd.f32 %v11542, %v12062
    %v12257 = vadd.f32 %v11543, %v12067
    %v12258 = vadd.f32 %v11544, %v12072
    %v12259 = vadd.f32 %v11545, %v12077
    %v12260 = vadd.f32 %v11546, %v12082
    %v12261 = vadd.f32 %v11547, %v12087
    %v12262 = vadd.f32 %v11548, %v12092
    %v12263 = vadd.f32 %v11549, %v12097
    %v12264 = vadd.f32 %v11550, %v12102
    %v12265 = vadd.f32 %v11551, %v12107
    %v12266 = vadd.f32 %v11552, %v12112
    %v12267 = vadd.f32 %v11553, %v12117
    %v12268 = vadd.f32 %v11554, %v12122
    %v12269 = vadd.f32 %v11555, %v12127
    %v12270 = vadd.f32 %v11556, %v12132
    %v12271 = vadd.f32 %v11557, %v12137
    %v12272 = vadd.f32 %v11558, %v12142
    %v12273 = vadd.f32 %v11559, %v12147
    %v12274 = vadd.f32 %v11560, %v12152
    %v12275 = vadd.f32 %v11561, %v12157
    %v12276 = vadd.f32 %v11562, %v12162
    %v12277 = vadd.f32 %v11563, %v12167
    %v12278 = vadd.f32 %v11564, %v12172
    %v12279 = vadd.f32 %v11565, %v12177
    %v12280 = vadd.f32 %v11566, %v12182
    %v12281 = vadd.f32 %v11567, %v12187
    %v12282 = vadd.f32 %v11568, %v12192
    %v12283 = vadd.f32 %v11569, %v12197
    %v12284 = vadd.f32 %v11570, %v12202
    %v12285 = vadd.f32 %v11571, %v12207
    %v12286 = vadd.f32 %v11572, %v12212
    %v12287 = vadd.f32 %v11573, %v12217
    %v12288 = vadd.f32 %v11574, %v12222
    %s12289 = scalar_lea.vmem [#allocation2], 640
    %v12290 = vld [vmem:[%s12289] sm:$0xff]
    %v12291 = vld [vmem:[%s12289 + $0x8] sm:$0xff]
    %v12292 = vld [vmem:[%s12289 + $0x10] sm:$0xff]
    %v12293 = vld [vmem:[%s12289 + $0x18] sm:$0xff]
    %v12294 = vld [vmem:[%s12289 + $0x20] sm:$0xff]
    %v12295 = vld [vmem:[%s12289 + $0x28] sm:$0xff]
    %v12296 = vld [vmem:[%s12289 + $0x30] sm:$0xff]
    %v12297 = vld [vmem:[%s12289 + $0x38] sm:$0xff]
    %v12298 = vld [vmem:[%s12289 + $0x40] sm:$0xff]
    %v12299 = vld [vmem:[%s12289 + $0x48] sm:$0xff]
    %v12300 = vld [vmem:[%s12289 + $0x50] sm:$0xff]
    %v12301 = vld [vmem:[%s12289 + $0x58] sm:$0xff]
    %v12302 = vld [vmem:[%s12289 + $0x60] sm:$0xff]
    %v12303 = vld [vmem:[%s12289 + $0x68] sm:$0xff]
    %v12304 = vld [vmem:[%s12289 + $0x70] sm:$0xff]
    %v12305 = vld [vmem:[%s12289 + $0x78] sm:$0xff]
    %v12306 = vld [vmem:[%s12289 + $0x100] sm:$0xff]
    %v12307 = vld [vmem:[%s12289 + $0x108] sm:$0xff]
    %v12308 = vld [vmem:[%s12289 + $0x110] sm:$0xff]
    %v12309 = vld [vmem:[%s12289 + $0x118] sm:$0xff]
    %v12310 = vld [vmem:[%s12289 + $0x120] sm:$0xff]
    %v12311 = vld [vmem:[%s12289 + $0x128] sm:$0xff]
    %v12312 = vld [vmem:[%s12289 + $0x130] sm:$0xff]
    %v12313 = vld [vmem:[%s12289 + $0x138] sm:$0xff]
    %v12314 = vld [vmem:[%s12289 + $0x140] sm:$0xff]
    %v12315 = vld [vmem:[%s12289 + $0x148] sm:$0xff]
    %v12316 = vld [vmem:[%s12289 + $0x150] sm:$0xff]
    %v12317 = vld [vmem:[%s12289 + $0x158] sm:$0xff]
    %v12318 = vld [vmem:[%s12289 + $0x160] sm:$0xff]
    %v12319 = vld [vmem:[%s12289 + $0x168] sm:$0xff]
    %v12320 = vld [vmem:[%s12289 + $0x170] sm:$0xff]
    %v12321 = vld [vmem:[%s12289 + $0x178] sm:$0xff]
    %v12322 = vld [vmem:[%s12289 + $0x400] sm:$0xff]
    %v12323 = vld [vmem:[%s12289 + $0x408] sm:$0xff]
    %v12324 = vld [vmem:[%s12289 + $0x410] sm:$0xff]
    %v12325 = vld [vmem:[%s12289 + $0x418] sm:$0xff]
    %v12326 = vld [vmem:[%s12289 + $0x420] sm:$0xff]
    %v12327 = vld [vmem:[%s12289 + $0x428] sm:$0xff]
    %v12328 = vld [vmem:[%s12289 + $0x430] sm:$0xff]
    %v12329 = vld [vmem:[%s12289 + $0x438] sm:$0xff]
    %v12330 = vld [vmem:[%s12289 + $0x440] sm:$0xff]
    %v12331 = vld [vmem:[%s12289 + $0x448] sm:$0xff]
    %v12332 = vld [vmem:[%s12289 + $0x450] sm:$0xff]
    %v12333 = vld [vmem:[%s12289 + $0x458] sm:$0xff]
    %v12334 = vld [vmem:[%s12289 + $0x460] sm:$0xff]
    %v12335 = vld [vmem:[%s12289 + $0x468] sm:$0xff]
    %v12336 = vld [vmem:[%s12289 + $0x470] sm:$0xff]
    %v12337 = vld [vmem:[%s12289 + $0x478] sm:$0xff]
    %v12338 = vld [vmem:[%s12289 + $0x500] sm:$0xff]
    %v12339 = vld [vmem:[%s12289 + $0x508] sm:$0xff]
    %v12340 = vld [vmem:[%s12289 + $0x510] sm:$0xff]
    %v12341 = vld [vmem:[%s12289 + $0x518] sm:$0xff]
    %v12342 = vld [vmem:[%s12289 + $0x520] sm:$0xff]
    %v12343 = vld [vmem:[%s12289 + $0x528] sm:$0xff]
    %v12344 = vld [vmem:[%s12289 + $0x530] sm:$0xff]
    %v12345 = vld [vmem:[%s12289 + $0x538] sm:$0xff]
    %v12346 = vld [vmem:[%s12289 + $0x540] sm:$0xff]
    %v12347 = vld [vmem:[%s12289 + $0x548] sm:$0xff]
    %v12348 = vld [vmem:[%s12289 + $0x550] sm:$0xff]
    %v12349 = vld [vmem:[%s12289 + $0x558] sm:$0xff]
    %v12350 = vld [vmem:[%s12289 + $0x560] sm:$0xff]
    %v12351 = vld [vmem:[%s12289 + $0x568] sm:$0xff]
    %v12352 = vld [vmem:[%s12289 + $0x570] sm:$0xff]
    %v12353 = vld [vmem:[%s12289 + $0x578] sm:$0xff]
    %v12354 = vld [vmem:[%s3 + $0x200] sm:$0xff]
    %v12355 = vld [vmem:[%s3 + $0x208] sm:$0xff]
    %v12356 = vld [vmem:[%s3 + $0x210] sm:$0xff]
    %v12357 = vld [vmem:[%s3 + $0x218] sm:$0xff]
    %v12358 = vld [vmem:[%s3 + $0x220] sm:$0xff]
    %v12359 = vld [vmem:[%s3 + $0x228] sm:$0xff]
    %v12360 = vld [vmem:[%s3 + $0x230] sm:$0xff]
    %v12361 = vld [vmem:[%s3 + $0x238] sm:$0xff]
    %v12363 = vsel %vm165, %v12290, 0
    %v12366 = vsel %vm165, %v12291, 0
    %v12369 = vsel %vm165, %v12292, 0
    %v12372 = vsel %vm165, %v12293, 0
    %v12375 = vsel %vm165, %v12294, 0
    %v12378 = vsel %vm165, %v12295, 0
    %v12381 = vsel %vm165, %v12296, 0
    %v12384 = vsel %vm165, %v12297, 0
    %v12387 = vsel %vm165, %v12298, 0
    %v12390 = vsel %vm165, %v12299, 0
    %v12393 = vsel %vm165, %v12300, 0
    %v12396 = vsel %vm165, %v12301, 0
    %v12399 = vsel %vm165, %v12302, 0
    %v12402 = vsel %vm165, %v12303, 0
    %v12405 = vsel %vm165, %v12304, 0
    %v12408 = vsel %vm165, %v12305, 0
    %v12411 = vsel %vm165, %v12306, 0
    %v12414 = vsel %vm165, %v12307, 0
    %v12417 = vsel %vm165, %v12308, 0
    %v12420 = vsel %vm165, %v12309, 0
    %v12423 = vsel %vm165, %v12310, 0
    %v12426 = vsel %vm165, %v12311, 0
    %v12429 = vsel %vm165, %v12312, 0
    %v12432 = vsel %vm165, %v12313, 0
    %v12435 = vsel %vm165, %v12314, 0
    %v12438 = vsel %vm165, %v12315, 0
    %v12441 = vsel %vm165, %v12316, 0
    %v12444 = vsel %vm165, %v12317, 0
    %v12447 = vsel %vm165, %v12318, 0
    %v12450 = vsel %vm165, %v12319, 0
    %v12453 = vsel %vm165, %v12320, 0
    %v12456 = vsel %vm165, %v12321, 0
    %v12459 = vsel %vm165, %v12322, 0
    %v12462 = vsel %vm165, %v12323, 0
    %v12465 = vsel %vm165, %v12324, 0
    %v12468 = vsel %vm165, %v12325, 0
    %v12471 = vsel %vm165, %v12326, 0
    %v12474 = vsel %vm165, %v12327, 0
    %v12477 = vsel %vm165, %v12328, 0
    %v12480 = vsel %vm165, %v12329, 0
    %v12483 = vsel %vm165, %v12330, 0
    %v12486 = vsel %vm165, %v12331, 0
    %v12489 = vsel %vm165, %v12332, 0
    %v12492 = vsel %vm165, %v12333, 0
    %v12495 = vsel %vm165, %v12334, 0
    %v12498 = vsel %vm165, %v12335, 0
    %v12501 = vsel %vm165, %v12336, 0
    %v12504 = vsel %vm165, %v12337, 0
    %v12507 = vsel %vm165, %v12338, 0
    %v12510 = vsel %vm165, %v12339, 0
    %v12513 = vsel %vm165, %v12340, 0
    %v12516 = vsel %vm165, %v12341, 0
    %v12519 = vsel %vm165, %v12342, 0
    %v12522 = vsel %vm165, %v12343, 0
    %v12525 = vsel %vm165, %v12344, 0
    %v12528 = vsel %vm165, %v12345, 0
    %v12531 = vsel %vm165, %v12346, 0
    %v12534 = vsel %vm165, %v12347, 0
    %v12537 = vsel %vm165, %v12348, 0
    %v12540 = vsel %vm165, %v12349, 0
    %v12543 = vsel %vm165, %v12350, 0
    %v12546 = vsel %vm165, %v12351, 0
    %v12549 = vsel %vm165, %v12352, 0
    %v12552 = vsel %vm165, %v12353, 0
    %12554 = vmatprep.subr.mxu0 0.0
    %12555 = vmatpush1.msra.mxu0 %v12354
    %12556 = vmatprep.subr.mxu0 0.0
    %12557 = vmatpush1.msra.mxu0 %v12355
    %12558 = vmatprep.subr.mxu0 0.0
    %12559 = vmatpush1.msra.mxu0 %v12356
    %12560 = vmatprep.subr.mxu0 0.0
    %12561 = vmatpush1.msra.mxu0 %v12357
    %12562 = vmatprep.subr.mxu0 0.0
    %12563 = vmatpush1.msra.mxu0 %v12358
    %12564 = vmatprep.subr.mxu0 0.0
    %12565 = vmatpush1.msra.mxu0 %v12359
    %12566 = vmatprep.subr.mxu0 0.0
    %12567 = vmatpush1.msra.mxu0 %v12360
    %12568 = vmatprep.subr.mxu0 0.0
    %12569 = vmatpush1.msra.mxu0 %v12361
    %12570 = vmatprep.subr.mxu0 0.0
    %12571 = vmatpush1.msra.mxu0 0.0
    %12572 = vmatprep.subr.mxu0 0.0
    %12573 = vmatpush1.msra.mxu0 0.0
    %12574 = vmatprep.subr.mxu0 0.0
    %12575 = vmatpush1.msra.mxu0 0.0
    %12576 = vmatprep.subr.mxu0 0.0
    %12577 = vmatpush1.msra.mxu0 0.0
    %12578 = vmatprep.subr.mxu0 0.0
    %12579 = vmatpush1.msra.mxu0 0.0
    %12580 = vmatprep.subr.mxu0 0.0
    %12581 = vmatpush1.msra.mxu0 0.0
    %12582 = vmatprep.subr.mxu0 0.0
    %12583 = vmatpush1.msra.mxu0 0.0
    %12584 = vmatprep.subr.mxu0 0.0
    %12585 = vmatpush1.msra.mxu0 0.0
    %12586 = vmatprep.subr.mxu0 0.0
    %12587 = vmatpush1.msra.mxu0 0.0
    %12588 = vmatprep.subr.mxu0 0.0
    %12589 = vmatpush1.msra.mxu0 0.0
    %12590 = vmatprep.subr.mxu0 0.0
    %12591 = vmatpush1.msra.mxu0 0.0
    %12592 = vmatprep.subr.mxu0 0.0
    %12593 = vmatpush1.msra.mxu0 0.0
    %12594 = vmatprep.subr.mxu0 0.0
    %12595 = vmatpush1.msra.mxu0 0.0
    %12596 = vmatprep.subr.mxu0 0.0
    %12597 = vmatpush1.msra.mxu0 0.0
    %12598 = vmatprep.subr.mxu0 0.0
    %12599 = vmatpush1.msra.mxu0 0.0
    %12600 = vmatprep.subr.mxu0 0.0
    %12601 = vmatpush1.msra.mxu0 0.0
    %12602 = vmatprep.subr.mxu0 0.0
    %12603 = vmatpush1.msra.mxu0 0.0
    %12604 = vmatprep.subr.mxu0 0.0
    %12605 = vmatpush1.msra.mxu0 0.0
    %12606 = vmatprep.subr.mxu0 0.0
    %12607 = vmatpush1.msra.mxu0 0.0
    %12608 = vmatprep.subr.mxu0 0.0
    %12609 = vmatpush1.msra.mxu0 0.0
    %12610 = vmatprep.subr.mxu0 0.0
    %12611 = vmatpush1.msra.mxu0 0.0
    %12612 = vmatprep.subr.mxu0 0.0
    %12613 = vmatpush1.msra.mxu0 0.0
    %12614 = vmatprep.subr.mxu0 0.0
    %12615 = vmatpush1.msra.mxu0 0.0
    %12616 = vmatprep.subr.mxu0 0.0
    %12617 = vmatpush1.msra.mxu0 0.0
    %12618 = vmatprep.mubr.f32.mxu0 0.0
    %12619 = vmatmul.mubr.f32.gmra.mrb[0].mxu0 %v12363
    %v12620 = vpop.f32.mrb[0].mxu0
    %v12621 = vadd.f32 0.0, %v12620
    %v12622 = vpop.f32.mrb[0].mxu0
    %12623 = vmatprep.mubr.f32.mxu0 0.0
    %12624 = vmatmul.mubr.f32.gmra.mrb[0].mxu0 %v12366
    %v12625 = vpop.f32.mrb[0].mxu0
    %v12626 = vadd.f32 0.0, %v12625
    %v12627 = vpop.f32.mrb[0].mxu0
    %12628 = vmatprep.mubr.f32.mxu0 0.0
    %12629 = vmatmul.mubr.f32.gmra.mrb[0].mxu0 %v12369
    %v12630 = vpop.f32.mrb[0].mxu0
    %v12631 = vadd.f32 0.0, %v12630
    %v12632 = vpop.f32.mrb[0].mxu0
    %12633 = vmatprep.mubr.f32.mxu0 0.0
    %12634 = vmatmul.mubr.f32.gmra.mrb[0].mxu0 %v12372
    %v12635 = vpop.f32.mrb[0].mxu0
    %v12636 = vadd.f32 0.0, %v12635
    %v12637 = vpop.f32.mrb[0].mxu0
    %12638 = vmatprep.mubr.f32.mxu0 0.0
    %12639 = vmatmul.mubr.f32.gmra.mrb[0].mxu0 %v12375
    %v12640 = vpop.f32.mrb[0].mxu0
    %v12641 = vadd.f32 0.0, %v12640
    %v12642 = vpop.f32.mrb[0].mxu0
    %12643 = vmatprep.mubr.f32.mxu0 0.0
    %12644 = vmatmul.mubr.f32.gmra.mrb[0].mxu0 %v12378
    %v12645 = vpop.f32.mrb[0].mxu0
    %v12646 = vadd.f32 0.0, %v12645
    %v12647 = vpop.f32.mrb[0].mxu0
    %12648 = vmatprep.mubr.f32.mxu0 0.0
    %12649 = vmatmul.mubr.f32.gmra.mrb[0].mxu0 %v12381
    %v12650 = vpop.f32.mrb[0].mxu0
    %v12651 = vadd.f32 0.0, %v12650
    %v12652 = vpop.f32.mrb[0].mxu0
    %12653 = vmatprep.mubr.f32.mxu0 0.0
    %12654 = vmatmul.mubr.f32.gmra.mrb[0].mxu0 %v12384
    %v12655 = vpop.f32.mrb[0].mxu0
    %v12656 = vadd.f32 0.0, %v12655
    %v12657 = vpop.f32.mrb[0].mxu0
    %12658 = vmatprep.mubr.f32.mxu0 0.0
    %12659 = vmatmul.mubr.f32.gmra.mrb[0].mxu0 %v12387
    %v12660 = vpop.f32.mrb[0].mxu0
    %v12661 = vadd.f32 0.0, %v12660
    %v12662 = vpop.f32.mrb[0].mxu0
    %12663 = vmatprep.mubr.f32.mxu0 0.0
    %12664 = vmatmul.mubr.f32.gmra.mrb[0].mxu0 %v12390
    %v12665 = vpop.f32.mrb[0].mxu0
    %v12666 = vadd.f32 0.0, %v12665
    %v12667 = vpop.f32.mrb[0].mxu0
    %12668 = vmatprep.mubr.f32.mxu0 0.0
    %12669 = vmatmul.mubr.f32.gmra.mrb[0].mxu0 %v12393
    %v12670 = vpop.f32.mrb[0].mxu0
    %v12671 = vadd.f32 0.0, %v12670
    %v12672 = vpop.f32.mrb[0].mxu0
    %12673 = vmatprep.mubr.f32.mxu0 0.0
    %12674 = vmatmul.mubr.f32.gmra.mrb[0].mxu0 %v12396
    %v12675 = vpop.f32.mrb[0].mxu0
    %v12676 = vadd.f32 0.0, %v12675
    %v12677 = vpop.f32.mrb[0].mxu0
    %12678 = vmatprep.mubr.f32.mxu0 0.0
    %12679 = vmatmul.mubr.f32.gmra.mrb[0].mxu0 %v12399
    %v12680 = vpop.f32.mrb[0].mxu0
    %v12681 = vadd.f32 0.0, %v12680
    %v12682 = vpop.f32.mrb[0].mxu0
    %12683 = vmatprep.mubr.f32.mxu0 0.0
    %12684 = vmatmul.mubr.f32.gmra.mrb[0].mxu0 %v12402
    %v12685 = vpop.f32.mrb[0].mxu0
    %v12686 = vadd.f32 0.0, %v12685
    %v12687 = vpop.f32.mrb[0].mxu0
    %12688 = vmatprep.mubr.f32.mxu0 0.0
    %12689 = vmatmul.mubr.f32.gmra.mrb[0].mxu0 %v12405
    %v12690 = vpop.f32.mrb[0].mxu0
    %v12691 = vadd.f32 0.0, %v12690
    %v12692 = vpop.f32.mrb[0].mxu0
    %12693 = vmatprep.mubr.f32.mxu0 0.0
    %12694 = vmatmul.mubr.f32.gmra.mrb[0].mxu0 %v12408
    %v12695 = vpop.f32.mrb[0].mxu0
    %v12696 = vadd.f32 0.0, %v12695
    %v12697 = vpop.f32.mrb[0].mxu0
    %12698 = vmatprep.mubr.f32.mxu0 0.0
    %12699 = vmatmul.mubr.f32.gmra.mrb[0].mxu0 %v12411
    %v12700 = vpop.f32.mrb[0].mxu0
    %v12701 = vadd.f32 0.0, %v12700
    %v12702 = vpop.f32.mrb[0].mxu0
    %12703 = vmatprep.mubr.f32.mxu0 0.0
    %12704 = vmatmul.mubr.f32.gmra.mrb[0].mxu0 %v12414
    %v12705 = vpop.f32.mrb[0].mxu0
    %v12706 = vadd.f32 0.0, %v12705
    %v12707 = vpop.f32.mrb[0].mxu0
    %12708 = vmatprep.mubr.f32.mxu0 0.0
    %12709 = vmatmul.mubr.f32.gmra.mrb[0].mxu0 %v12417
    %v12710 = vpop.f32.mrb[0].mxu0
    %v12711 = vadd.f32 0.0, %v12710
    %v12712 = vpop.f32.mrb[0].mxu0
    %12713 = vmatprep.mubr.f32.mxu0 0.0
    %12714 = vmatmul.mubr.f32.gmra.mrb[0].mxu0 %v12420
    %v12715 = vpop.f32.mrb[0].mxu0
    %v12716 = vadd.f32 0.0, %v12715
    %v12717 = vpop.f32.mrb[0].mxu0
    %12718 = vmatprep.mubr.f32.mxu0 0.0
    %12719 = vmatmul.mubr.f32.gmra.mrb[0].mxu0 %v12423
    %v12720 = vpop.f32.mrb[0].mxu0
    %v12721 = vadd.f32 0.0, %v12720
    %v12722 = vpop.f32.mrb[0].mxu0
    %12723 = vmatprep.mubr.f32.mxu0 0.0
    %12724 = vmatmul.mubr.f32.gmra.mrb[0].mxu0 %v12426
    %v12725 = vpop.f32.mrb[0].mxu0
    %v12726 = vadd.f32 0.0, %v12725
    %v12727 = vpop.f32.mrb[0].mxu0
    %12728 = vmatprep.mubr.f32.mxu0 0.0
    %12729 = vmatmul.mubr.f32.gmra.mrb[0].mxu0 %v12429
    %v12730 = vpop.f32.mrb[0].mxu0
    %v12731 = vadd.f32 0.0, %v12730
    %v12732 = vpop.f32.mrb[0].mxu0
    %12733 = vmatprep.mubr.f32.mxu0 0.0
    %12734 = vmatmul.mubr.f32.gmra.mrb[0].mxu0 %v12432
    %v12735 = vpop.f32.mrb[0].mxu0
    %v12736 = vadd.f32 0.0, %v12735
    %v12737 = vpop.f32.mrb[0].mxu0
    %12738 = vmatprep.mubr.f32.mxu0 0.0
    %12739 = vmatmul.mubr.f32.gmra.mrb[0].mxu0 %v12435
    %v12740 = vpop.f32.mrb[0].mxu0
    %v12741 = vadd.f32 0.0, %v12740
    %v12742 = vpop.f32.mrb[0].mxu0
    %12743 = vmatprep.mubr.f32.mxu0 0.0
    %12744 = vmatmul.mubr.f32.gmra.mrb[0].mxu0 %v12438
    %v12745 = vpop.f32.mrb[0].mxu0
    %v12746 = vadd.f32 0.0, %v12745
    %v12747 = vpop.f32.mrb[0].mxu0
    %12748 = vmatprep.mubr.f32.mxu0 0.0
    %12749 = vmatmul.mubr.f32.gmra.mrb[0].mxu0 %v12441
    %v12750 = vpop.f32.mrb[0].mxu0
    %v12751 = vadd.f32 0.0, %v12750
    %v12752 = vpop.f32.mrb[0].mxu0
    %12753 = vmatprep.mubr.f32.mxu0 0.0
    %12754 = vmatmul.mubr.f32.gmra.mrb[0].mxu0 %v12444
    %v12755 = vpop.f32.mrb[0].mxu0
    %v12756 = vadd.f32 0.0, %v12755
    %v12757 = vpop.f32.mrb[0].mxu0
    %12758 = vmatprep.mubr.f32.mxu0 0.0
    %12759 = vmatmul.mubr.f32.gmra.mrb[0].mxu0 %v12447
    %v12760 = vpop.f32.mrb[0].mxu0
    %v12761 = vadd.f32 0.0, %v12760
    %v12762 = vpop.f32.mrb[0].mxu0
    %12763 = vmatprep.mubr.f32.mxu0 0.0
    %12764 = vmatmul.mubr.f32.gmra.mrb[0].mxu0 %v12450
    %v12765 = vpop.f32.mrb[0].mxu0
    %v12766 = vadd.f32 0.0, %v12765
    %v12767 = vpop.f32.mrb[0].mxu0
    %12768 = vmatprep.mubr.f32.mxu0 0.0
    %12769 = vmatmul.mubr.f32.gmra.mrb[0].mxu0 %v12453
    %v12770 = vpop.f32.mrb[0].mxu0
    %v12771 = vadd.f32 0.0, %v12770
    %v12772 = vpop.f32.mrb[0].mxu0
    %12773 = vmatprep.mubr.f32.mxu0 0.0
    %12774 = vmatmul.mubr.f32.gmra.mrb[0].mxu0 %v12456
    %v12775 = vpop.f32.mrb[0].mxu0
    %v12776 = vadd.f32 0.0, %v12775
    %v12777 = vpop.f32.mrb[0].mxu0
    %12778 = vmatprep.mubr.f32.mxu0 0.0
    %12779 = vmatmul.mubr.f32.gmra.mrb[0].mxu0 %v12459
    %v12780 = vpop.f32.mrb[0].mxu0
    %v12781 = vadd.f32 0.0, %v12780
    %v12782 = vpop.f32.mrb[0].mxu0
    %12783 = vmatprep.mubr.f32.mxu0 0.0
    %12784 = vmatmul.mubr.f32.gmra.mrb[0].mxu0 %v12462
    %v12785 = vpop.f32.mrb[0].mxu0
    %v12786 = vadd.f32 0.0, %v12785
    %v12787 = vpop.f32.mrb[0].mxu0
    %12788 = vmatprep.mubr.f32.mxu0 0.0
    %12789 = vmatmul.mubr.f32.gmra.mrb[0].mxu0 %v12465
    %v12790 = vpop.f32.mrb[0].mxu0
    %v12791 = vadd.f32 0.0, %v12790
    %v12792 = vpop.f32.mrb[0].mxu0
    %12793 = vmatprep.mubr.f32.mxu0 0.0
    %12794 = vmatmul.mubr.f32.gmra.mrb[0].mxu0 %v12468
    %v12795 = vpop.f32.mrb[0].mxu0
    %v12796 = vadd.f32 0.0, %v12795
    %v12797 = vpop.f32.mrb[0].mxu0
    %12798 = vmatprep.mubr.f32.mxu0 0.0
    %12799 = vmatmul.mubr.f32.gmra.mrb[0].mxu0 %v12471
    %v12800 = vpop.f32.mrb[0].mxu0
    %v12801 = vadd.f32 0.0, %v12800
    %v12802 = vpop.f32.mrb[0].mxu0
    %12803 = vmatprep.mubr.f32.mxu0 0.0
    %12804 = vmatmul.mubr.f32.gmra.mrb[0].mxu0 %v12474
    %v12805 = vpop.f32.mrb[0].mxu0
    %v12806 = vadd.f32 0.0, %v12805
    %v12807 = vpop.f32.mrb[0].mxu0
    %12808 = vmatprep.mubr.f32.mxu0 0.0
    %12809 = vmatmul.mubr.f32.gmra.mrb[0].mxu0 %v12477
    %v12810 = vpop.f32.mrb[0].mxu0
    %v12811 = vadd.f32 0.0, %v12810
    %v12812 = vpop.f32.mrb[0].mxu0
    %12813 = vmatprep.mubr.f32.mxu0 0.0
    %12814 = vmatmul.mubr.f32.gmra.mrb[0].mxu0 %v12480
    %v12815 = vpop.f32.mrb[0].mxu0
    %v12816 = vadd.f32 0.0, %v12815
    %v12817 = vpop.f32.mrb[0].mxu0
    %12818 = vmatprep.mubr.f32.mxu0 0.0
    %12819 = vmatmul.mubr.f32.gmra.mrb[0].mxu0 %v12483
    %v12820 = vpop.f32.mrb[0].mxu0
    %v12821 = vadd.f32 0.0, %v12820
    %v12822 = vpop.f32.mrb[0].mxu0
    %12823 = vmatprep.mubr.f32.mxu0 0.0
    %12824 = vmatmul.mubr.f32.gmra.mrb[0].mxu0 %v12486
    %v12825 = vpop.f32.mrb[0].mxu0
    %v12826 = vadd.f32 0.0, %v12825
    %v12827 = vpop.f32.mrb[0].mxu0
    %12828 = vmatprep.mubr.f32.mxu0 0.0
    %12829 = vmatmul.mubr.f32.gmra.mrb[0].mxu0 %v12489
    %v12830 = vpop.f32.mrb[0].mxu0
    %v12831 = vadd.f32 0.0, %v12830
    %v12832 = vpop.f32.mrb[0].mxu0
    %12833 = vmatprep.mubr.f32.mxu0 0.0
    %12834 = vmatmul.mubr.f32.gmra.mrb[0].mxu0 %v12492
    %v12835 = vpop.f32.mrb[0].mxu0
    %v12836 = vadd.f32 0.0, %v12835
    %v12837 = vpop.f32.mrb[0].mxu0
    %12838 = vmatprep.mubr.f32.mxu0 0.0
    %12839 = vmatmul.mubr.f32.gmra.mrb[0].mxu0 %v12495
    %v12840 = vpop.f32.mrb[0].mxu0
    %v12841 = vadd.f32 0.0, %v12840
    %v12842 = vpop.f32.mrb[0].mxu0
    %12843 = vmatprep.mubr.f32.mxu0 0.0
    %12844 = vmatmul.mubr.f32.gmra.mrb[0].mxu0 %v12498
    %v12845 = vpop.f32.mrb[0].mxu0
    %v12846 = vadd.f32 0.0, %v12845
    %v12847 = vpop.f32.mrb[0].mxu0
    %12848 = vmatprep.mubr.f32.mxu0 0.0
    %12849 = vmatmul.mubr.f32.gmra.mrb[0].mxu0 %v12501
    %v12850 = vpop.f32.mrb[0].mxu0
    %v12851 = vadd.f32 0.0, %v12850
    %v12852 = vpop.f32.mrb[0].mxu0
    %12853 = vmatprep.mubr.f32.mxu0 0.0
    %12854 = vmatmul.mubr.f32.gmra.mrb[0].mxu0 %v12504
    %v12855 = vpop.f32.mrb[0].mxu0
    %v12856 = vadd.f32 0.0, %v12855
    %v12857 = vpop.f32.mrb[0].mxu0
    %12858 = vmatprep.mubr.f32.mxu0 0.0
    %12859 = vmatmul.mubr.f32.gmra.mrb[0].mxu0 %v12507
    %v12860 = vpop.f32.mrb[0].mxu0
    %v12861 = vadd.f32 0.0, %v12860
    %v12862 = vpop.f32.mrb[0].mxu0
    %12863 = vmatprep.mubr.f32.mxu0 0.0
    %12864 = vmatmul.mubr.f32.gmra.mrb[0].mxu0 %v12510
    %v12865 = vpop.f32.mrb[0].mxu0
    %v12866 = vadd.f32 0.0, %v12865
    %v12867 = vpop.f32.mrb[0].mxu0
    %12868 = vmatprep.mubr.f32.mxu0 0.0
    %12869 = vmatmul.mubr.f32.gmra.mrb[0].mxu0 %v12513
    %v12870 = vpop.f32.mrb[0].mxu0
    %v12871 = vadd.f32 0.0, %v12870
    %v12872 = vpop.f32.mrb[0].mxu0
    %12873 = vmatprep.mubr.f32.mxu0 0.0
    %12874 = vmatmul.mubr.f32.gmra.mrb[0].mxu0 %v12516
    %v12875 = vpop.f32.mrb[0].mxu0
    %v12876 = vadd.f32 0.0, %v12875
    %v12877 = vpop.f32.mrb[0].mxu0
    %12878 = vmatprep.mubr.f32.mxu0 0.0
    %12879 = vmatmul.mubr.f32.gmra.mrb[0].mxu0 %v12519
    %v12880 = vpop.f32.mrb[0].mxu0
    %v12881 = vadd.f32 0.0, %v12880
    %v12882 = vpop.f32.mrb[0].mxu0
    %12883 = vmatprep.mubr.f32.mxu0 0.0
    %12884 = vmatmul.mubr.f32.gmra.mrb[0].mxu0 %v12522
    %v12885 = vpop.f32.mrb[0].mxu0
    %v12886 = vadd.f32 0.0, %v12885
    %v12887 = vpop.f32.mrb[0].mxu0
    %12888 = vmatprep.mubr.f32.mxu0 0.0
    %12889 = vmatmul.mubr.f32.gmra.mrb[0].mxu0 %v12525
    %v12890 = vpop.f32.mrb[0].mxu0
    %v12891 = vadd.f32 0.0, %v12890
    %v12892 = vpop.f32.mrb[0].mxu0
    %12893 = vmatprep.mubr.f32.mxu0 0.0
    %12894 = vmatmul.mubr.f32.gmra.mrb[0].mxu0 %v12528
    %v12895 = vpop.f32.mrb[0].mxu0
    %v12896 = vadd.f32 0.0, %v12895
    %v12897 = vpop.f32.mrb[0].mxu0
    %12898 = vmatprep.mubr.f32.mxu0 0.0
    %12899 = vmatmul.mubr.f32.gmra.mrb[0].mxu0 %v12531
    %v12900 = vpop.f32.mrb[0].mxu0
    %v12901 = vadd.f32 0.0, %v12900
    %v12902 = vpop.f32.mrb[0].mxu0
    %12903 = vmatprep.mubr.f32.mxu0 0.0
    %12904 = vmatmul.mubr.f32.gmra.mrb[0].mxu0 %v12534
    %v12905 = vpop.f32.mrb[0].mxu0
    %v12906 = vadd.f32 0.0, %v12905
    %v12907 = vpop.f32.mrb[0].mxu0
    %12908 = vmatprep.mubr.f32.mxu0 0.0
    %12909 = vmatmul.mubr.f32.gmra.mrb[0].mxu0 %v12537
    %v12910 = vpop.f32.mrb[0].mxu0
    %v12911 = vadd.f32 0.0, %v12910
    %v12912 = vpop.f32.mrb[0].mxu0
    %12913 = vmatprep.mubr.f32.mxu0 0.0
    %12914 = vmatmul.mubr.f32.gmra.mrb[0].mxu0 %v12540
    %v12915 = vpop.f32.mrb[0].mxu0
    %v12916 = vadd.f32 0.0, %v12915
    %v12917 = vpop.f32.mrb[0].mxu0
    %12918 = vmatprep.mubr.f32.mxu0 0.0
    %12919 = vmatmul.mubr.f32.gmra.mrb[0].mxu0 %v12543
    %v12920 = vpop.f32.mrb[0].mxu0
    %v12921 = vadd.f32 0.0, %v12920
    %v12922 = vpop.f32.mrb[0].mxu0
    %12923 = vmatprep.mubr.f32.mxu0 0.0
    %12924 = vmatmul.mubr.f32.gmra.mrb[0].mxu0 %v12546
    %v12925 = vpop.f32.mrb[0].mxu0
    %v12926 = vadd.f32 0.0, %v12925
    %v12927 = vpop.f32.mrb[0].mxu0
    %12928 = vmatprep.mubr.f32.mxu0 0.0
    %12929 = vmatmul.mubr.f32.gmra.mrb[0].mxu0 %v12549
    %v12930 = vpop.f32.mrb[0].mxu0
    %v12931 = vadd.f32 0.0, %v12930
    %v12932 = vpop.f32.mrb[0].mxu0
    %12933 = vmatprep.mubr.f32.mxu0 0.0
    %12934 = vmatmul.mubr.f32.gmra.mrb[0].mxu0 %v12552
    %v12935 = vpop.f32.mrb[0].mxu0
    %v12936 = vadd.f32 0.0, %v12935
    %v12937 = vpop.f32.mrb[0].mxu0
    %12938 = vdwg.mxu0
    %v12939 = vadd.f32 %v12225, %v12621
    %v12940 = vadd.f32 %v12226, %v12626
    %v12941 = vadd.f32 %v12227, %v12631
    %v12942 = vadd.f32 %v12228, %v12636
    %v12943 = vadd.f32 %v12229, %v12641
    %v12944 = vadd.f32 %v12230, %v12646
    %v12945 = vadd.f32 %v12231, %v12651
    %v12946 = vadd.f32 %v12232, %v12656
    %v12947 = vadd.f32 %v12233, %v12661
    %v12948 = vadd.f32 %v12234, %v12666
    %v12949 = vadd.f32 %v12235, %v12671
    %v12950 = vadd.f32 %v12236, %v12676
    %v12951 = vadd.f32 %v12237, %v12681
    %v12952 = vadd.f32 %v12238, %v12686
    %v12953 = vadd.f32 %v12239, %v12691
    %v12954 = vadd.f32 %v12240, %v12696
    %v12955 = vadd.f32 %v12241, %v12701
    %v12956 = vadd.f32 %v12242, %v12706
    %v12957 = vadd.f32 %v12243, %v12711
    %v12958 = vadd.f32 %v12244, %v12716
    %v12959 = vadd.f32 %v12245, %v12721
    %v12960 = vadd.f32 %v12246, %v12726
    %v12961 = vadd.f32 %v12247, %v12731
    %v12962 = vadd.f32 %v12248, %v12736
    %v12963 = vadd.f32 %v12249, %v12741
    %v12964 = vadd.f32 %v12250, %v12746
    %v12965 = vadd.f32 %v12251, %v12751
    %v12966 = vadd.f32 %v12252, %v12756
    %v12967 = vadd.f32 %v12253, %v12761
    %v12968 = vadd.f32 %v12254, %v12766
    %v12969 = vadd.f32 %v12255, %v12771
    %v12970 = vadd.f32 %v12256, %v12776
    %v12971 = vadd.f32 %v12257, %v12781
    %v12972 = vadd.f32 %v12258, %v12786
    %v12973 = vadd.f32 %v12259, %v12791
    %v12974 = vadd.f32 %v12260, %v12796
    %v12975 = vadd.f32 %v12261, %v12801
    %v12976 = vadd.f32 %v12262, %v12806
    %v12977 = vadd.f32 %v12263, %v12811
    %v12978 = vadd.f32 %v12264, %v12816
    %v12979 = vadd.f32 %v12265, %v12821
    %v12980 = vadd.f32 %v12266, %v12826
    %v12981 = vadd.f32 %v12267, %v12831
    %v12982 = vadd.f32 %v12268, %v12836
    %v12983 = vadd.f32 %v12269, %v12841
    %v12984 = vadd.f32 %v12270, %v12846
    %v12985 = vadd.f32 %v12271, %v12851
    %v12986 = vadd.f32 %v12272, %v12856
    %v12987 = vadd.f32 %v12273, %v12861
    %v12988 = vadd.f32 %v12274, %v12866
    %v12989 = vadd.f32 %v12275, %v12871
    %v12990 = vadd.f32 %v12276, %v12876
    %v12991 = vadd.f32 %v12277, %v12881
    %v12992 = vadd.f32 %v12278, %v12886
    %v12993 = vadd.f32 %v12279, %v12891
    %v12994 = vadd.f32 %v12280, %v12896
    %v12995 = vadd.f32 %v12281, %v12901
    %v12996 = vadd.f32 %v12282, %v12906
    %v12997 = vadd.f32 %v12283, %v12911
    %v12998 = vadd.f32 %v12284, %v12916
    %v12999 = vadd.f32 %v12285, %v12921
    %v13000 = vadd.f32 %v12286, %v12926
    %v13001 = vadd.f32 %v12287, %v12931
    %v13002 = vadd.f32 %v12288, %v12936
    %v13003 = vld [vmem:[%s4] sm:$0x1]
    %v13005 = vlaneseq
    %v13006 = vshrl.u32 %v13005, 7
    %v13007 = vsub.s32 0, %v13006
    %v13008 = vrot.slane %v13003, %v13007
    %v13010 = vadd.f32 %v12939, %v13008
    %v13011 = vadd.f32 %v12940, %v13008
    %v13012 = vadd.f32 %v12941, %v13008
    %v13013 = vadd.f32 %v12942, %v13008
    %v13014 = vadd.f32 %v12943, %v13008
    %v13015 = vadd.f32 %v12944, %v13008
    %v13016 = vadd.f32 %v12945, %v13008
    %v13017 = vadd.f32 %v12946, %v13008
    %v13018 = vadd.f32 %v12947, %v13008
    %v13019 = vadd.f32 %v12948, %v13008
    %v13020 = vadd.f32 %v12949, %v13008
    %v13021 = vadd.f32 %v12950, %v13008
    %v13022 = vadd.f32 %v12951, %v13008
    %v13023 = vadd.f32 %v12952, %v13008
    %v13024 = vadd.f32 %v12953, %v13008
    %v13025 = vadd.f32 %v12954, %v13008
    %v13026 = vadd.f32 %v12955, %v13008
    %v13027 = vadd.f32 %v12956, %v13008
    %v13028 = vadd.f32 %v12957, %v13008
    %v13029 = vadd.f32 %v12958, %v13008
    %v13030 = vadd.f32 %v12959, %v13008
    %v13031 = vadd.f32 %v12960, %v13008
    %v13032 = vadd.f32 %v12961, %v13008
    %v13033 = vadd.f32 %v12962, %v13008
    %v13034 = vadd.f32 %v12963, %v13008
    %v13035 = vadd.f32 %v12964, %v13008
    %v13036 = vadd.f32 %v12965, %v13008
    %v13037 = vadd.f32 %v12966, %v13008
    %v13038 = vadd.f32 %v12967, %v13008
    %v13039 = vadd.f32 %v12968, %v13008
    %v13040 = vadd.f32 %v12969, %v13008
    %v13041 = vadd.f32 %v12970, %v13008
    %v13042 = vadd.f32 %v12971, %v13008
    %v13043 = vadd.f32 %v12972, %v13008
    %v13044 = vadd.f32 %v12973, %v13008
    %v13045 = vadd.f32 %v12974, %v13008
    %v13046 = vadd.f32 %v12975, %v13008
    %v13047 = vadd.f32 %v12976, %v13008
    %v13048 = vadd.f32 %v12977, %v13008
    %v13049 = vadd.f32 %v12978, %v13008
    %v13050 = vadd.f32 %v12979, %v13008
    %v13051 = vadd.f32 %v12980, %v13008
    %v13052 = vadd.f32 %v12981, %v13008
    %v13053 = vadd.f32 %v12982, %v13008
    %v13054 = vadd.f32 %v12983, %v13008
    %v13055 = vadd.f32 %v12984, %v13008
    %v13056 = vadd.f32 %v12985, %v13008
    %v13057 = vadd.f32 %v12986, %v13008
    %v13058 = vadd.f32 %v12987, %v13008
    %v13059 = vadd.f32 %v12988, %v13008
    %v13060 = vadd.f32 %v12989, %v13008
    %v13061 = vadd.f32 %v12990, %v13008
    %v13062 = vadd.f32 %v12991, %v13008
    %v13063 = vadd.f32 %v12992, %v13008
    %v13064 = vadd.f32 %v12993, %v13008
    %v13065 = vadd.f32 %v12994, %v13008
    %v13066 = vadd.f32 %v12995, %v13008
    %v13067 = vadd.f32 %v12996, %v13008
    %v13068 = vadd.f32 %v12997, %v13008
    %v13069 = vadd.f32 %v12998, %v13008
    %v13070 = vadd.f32 %v12999, %v13008
    %v13071 = vadd.f32 %v13000, %v13008
    %v13072 = vadd.f32 %v13001, %v13008
    %v13073 = vadd.f32 %v13002, %v13008
    %v13074 = vmax.f32 %v13010, 0.0
    %v13075 = vmax.f32 %v13011, 0.0
    %v13076 = vmax.f32 %v13012, 0.0
    %v13077 = vmax.f32 %v13013, 0.0
    %v13078 = vmax.f32 %v13014, 0.0
    %v13079 = vmax.f32 %v13015, 0.0
    %v13080 = vmax.f32 %v13016, 0.0
    %v13081 = vmax.f32 %v13017, 0.0
    %v13082 = vmax.f32 %v13018, 0.0
    %v13083 = vmax.f32 %v13019, 0.0
    %v13084 = vmax.f32 %v13020, 0.0
    %v13085 = vmax.f32 %v13021, 0.0
    %v13086 = vmax.f32 %v13022, 0.0
    %v13087 = vmax.f32 %v13023, 0.0
    %v13088 = vmax.f32 %v13024, 0.0
    %v13089 = vmax.f32 %v13025, 0.0
    %v13090 = vmax.f32 %v13026, 0.0
    %v13091 = vmax.f32 %v13027, 0.0
    %v13092 = vmax.f32 %v13028, 0.0
    %v13093 = vmax.f32 %v13029, 0.0
    %v13094 = vmax.f32 %v13030, 0.0
    %v13095 = vmax.f32 %v13031, 0.0
    %v13096 = vmax.f32 %v13032, 0.0
    %v13097 = vmax.f32 %v13033, 0.0
    %v13098 = vmax.f32 %v13034, 0.0
    %v13099 = vmax.f32 %v13035, 0.0
    %v13100 = vmax.f32 %v13036, 0.0
    %v13101 = vmax.f32 %v13037, 0.0
    %v13102 = vmax.f32 %v13038, 0.0
    %v13103 = vmax.f32 %v13039, 0.0
    %v13104 = vmax.f32 %v13040, 0.0
    %v13105 = vmax.f32 %v13041, 0.0
    %v13106 = vmax.f32 %v13042, 0.0
    %v13107 = vmax.f32 %v13043, 0.0
    %v13108 = vmax.f32 %v13044, 0.0
    %v13109 = vmax.f32 %v13045, 0.0
    %v13110 = vmax.f32 %v13046, 0.0
    %v13111 = vmax.f32 %v13047, 0.0
    %v13112 = vmax.f32 %v13048, 0.0
    %v13113 = vmax.f32 %v13049, 0.0
    %v13114 = vmax.f32 %v13050, 0.0
    %v13115 = vmax.f32 %v13051, 0.0
    %v13116 = vmax.f32 %v13052, 0.0
    %v13117 = vmax.f32 %v13053, 0.0
    %v13118 = vmax.f32 %v13054, 0.0
    %v13119 = vmax.f32 %v13055, 0.0
    %v13120 = vmax.f32 %v13056, 0.0
    %v13121 = vmax.f32 %v13057, 0.0
    %v13122 = vmax.f32 %v13058, 0.0
    %v13123 = vmax.f32 %v13059, 0.0
    %v13124 = vmax.f32 %v13060, 0.0
    %v13125 = vmax.f32 %v13061, 0.0
    %v13126 = vmax.f32 %v13062, 0.0
    %v13127 = vmax.f32 %v13063, 0.0
    %v13128 = vmax.f32 %v13064, 0.0
    %v13129 = vmax.f32 %v13065, 0.0
    %v13130 = vmax.f32 %v13066, 0.0
    %v13131 = vmax.f32 %v13067, 0.0
    %v13132 = vmax.f32 %v13068, 0.0
    %v13133 = vmax.f32 %v13069, 0.0
    %v13134 = vmax.f32 %v13070, 0.0
    %v13135 = vmax.f32 %v13071, 0.0
    %v13136 = vmax.f32 %v13072, 0.0
    %v13137 = vmax.f32 %v13073, 0.0
    %13138 = vst.msk [vmem:[#allocation3] sm:$0xff] %vm165, %v13074
    %13139 = vst.msk [vmem:[#allocation3 + $0x8] sm:$0xff] %vm165, %v13075
    %13140 = vst.msk [vmem:[#allocation3 + $0x10] sm:$0xff] %vm165, %v13076
    %13141 = vst.msk [vmem:[#allocation3 + $0x18] sm:$0xff] %vm165, %v13077
    %13142 = vst.msk [vmem:[#allocation3 + $0x20] sm:$0xff] %vm165, %v13078
    %13143 = vst.msk [vmem:[#allocation3 + $0x28] sm:$0xff] %vm165, %v13079
    %13144 = vst.msk [vmem:[#allocation3 + $0x30] sm:$0xff] %vm165, %v13080
    %13145 = vst.msk [vmem:[#allocation3 + $0x38] sm:$0xff] %vm165, %v13081
    %13146 = vst.msk [vmem:[#allocation3 + $0x40] sm:$0xff] %vm165, %v13082
    %13147 = vst.msk [vmem:[#allocation3 + $0x48] sm:$0xff] %vm165, %v13083
    %13148 = vst.msk [vmem:[#allocation3 + $0x50] sm:$0xff] %vm165, %v13084
    %13149 = vst.msk [vmem:[#allocation3 + $0x58] sm:$0xff] %vm165, %v13085
    %13150 = vst.msk [vmem:[#allocation3 + $0x60] sm:$0xff] %vm165, %v13086
    %13151 = vst.msk [vmem:[#allocation3 + $0x68] sm:$0xff] %vm165, %v13087
    %13152 = vst.msk [vmem:[#allocation3 + $0x70] sm:$0xff] %vm165, %v13088
    %13153 = vst.msk [vmem:[#allocation3 + $0x78] sm:$0xff] %vm165, %v13089
    %13154 = vst.msk [vmem:[#allocation3 + $0x80] sm:$0xff] %vm165, %v13090
    %13155 = vst.msk [vmem:[#allocation3 + $0x88] sm:$0xff] %vm165, %v13091
    %13156 = vst.msk [vmem:[#allocation3 + $0x90] sm:$0xff] %vm165, %v13092
    %13157 = vst.msk [vmem:[#allocation3 + $0x98] sm:$0xff] %vm165, %v13093
    %13158 = vst.msk [vmem:[#allocation3 + $0xa0] sm:$0xff] %vm165, %v13094
    %13159 = vst.msk [vmem:[#allocation3 + $0xa8] sm:$0xff] %vm165, %v13095
    %13160 = vst.msk [vmem:[#allocation3 + $0xb0] sm:$0xff] %vm165, %v13096
    %13161 = vst.msk [vmem:[#allocation3 + $0xb8] sm:$0xff] %vm165, %v13097
    %13162 = vst.msk [vmem:[#allocation3 + $0xc0] sm:$0xff] %vm165, %v13098
    %13163 = vst.msk [vmem:[#allocation3 + $0xc8] sm:$0xff] %vm165, %v13099
    %13164 = vst.msk [vmem:[#allocation3 + $0xd0] sm:$0xff] %vm165, %v13100
    %13165 = vst.msk [vmem:[#allocation3 + $0xd8] sm:$0xff] %vm165, %v13101
    %13166 = vst.msk [vmem:[#allocation3 + $0xe0] sm:$0xff] %vm165, %v13102
    %13167 = vst.msk [vmem:[#allocation3 + $0xe8] sm:$0xff] %vm165, %v13103
    %13168 = vst.msk [vmem:[#allocation3 + $0xf0] sm:$0xff] %vm165, %v13104
    %13169 = vst.msk [vmem:[#allocation3 + $0xf8] sm:$0xff] %vm165, %v13105
    %13170 = vst.msk [vmem:[#allocation3 + $0x100] sm:$0xff] %vm165, %v13106
    %13171 = vst.msk [vmem:[#allocation3 + $0x108] sm:$0xff] %vm165, %v13107
    %13172 = vst.msk [vmem:[#allocation3 + $0x110] sm:$0xff] %vm165, %v13108
    %13173 = vst.msk [vmem:[#allocation3 + $0x118] sm:$0xff] %vm165, %v13109
    %13174 = vst.msk [vmem:[#allocation3 + $0x120] sm:$0xff] %vm165, %v13110
    %13175 = vst.msk [vmem:[#allocation3 + $0x128] sm:$0xff] %vm165, %v13111
    %13176 = vst.msk [vmem:[#allocation3 + $0x130] sm:$0xff] %vm165, %v13112
    %13177 = vst.msk [vmem:[#allocation3 + $0x138] sm:$0xff] %vm165, %v13113
    %13178 = vst.msk [vmem:[#allocation3 + $0x140] sm:$0xff] %vm165, %v13114
    %13179 = vst.msk [vmem:[#allocation3 + $0x148] sm:$0xff] %vm165, %v13115
    %13180 = vst.msk [vmem:[#allocation3 + $0x150] sm:$0xff] %vm165, %v13116
    %13181 = vst.msk [vmem:[#allocation3 + $0x158] sm:$0xff] %vm165, %v13117
    %13182 = vst.msk [vmem:[#allocation3 + $0x160] sm:$0xff] %vm165, %v13118
    %13183 = vst.msk [vmem:[#allocation3 + $0x168] sm:$0xff] %vm165, %v13119
    %13184 = vst.msk [vmem:[#allocation3 + $0x170] sm:$0xff] %vm165, %v13120
    %13185 = vst.msk [vmem:[#allocation3 + $0x178] sm:$0xff] %vm165, %v13121
    %13186 = vst.msk [vmem:[#allocation3 + $0x180] sm:$0xff] %vm165, %v13122
    %13187 = vst.msk [vmem:[#allocation3 + $0x188] sm:$0xff] %vm165, %v13123
    %13188 = vst.msk [vmem:[#allocation3 + $0x190] sm:$0xff] %vm165, %v13124
    %13189 = vst.msk [vmem:[#allocation3 + $0x198] sm:$0xff] %vm165, %v13125
    %13190 = vst.msk [vmem:[#allocation3 + $0x1a0] sm:$0xff] %vm165, %v13126
    %13191 = vst.msk [vmem:[#allocation3 + $0x1a8] sm:$0xff] %vm165, %v13127
    %13192 = vst.msk [vmem:[#allocation3 + $0x1b0] sm:$0xff] %vm165, %v13128
    %13193 = vst.msk [vmem:[#allocation3 + $0x1b8] sm:$0xff] %vm165, %v13129
    %13194 = vst.msk [vmem:[#allocation3 + $0x1c0] sm:$0xff] %vm165, %v13130
    %13195 = vst.msk [vmem:[#allocation3 + $0x1c8] sm:$0xff] %vm165, %v13131
    %13196 = vst.msk [vmem:[#allocation3 + $0x1d0] sm:$0xff] %vm165, %v13132
    %13197 = vst.msk [vmem:[#allocation3 + $0x1d8] sm:$0xff] %vm165, %v13133
    %13198 = vst.msk [vmem:[#allocation3 + $0x1e0] sm:$0xff] %vm165, %v13134
    %13199 = vst.msk [vmem:[#allocation3 + $0x1e8] sm:$0xff] %vm165, %v13135
    %13200 = vst.msk [vmem:[#allocation3 + $0x1f0] sm:$0xff] %vm165, %v13136
    %13201 = vst.msk [vmem:[#allocation3 + $0x1f8] sm:$0xff] %vm165, %v13137
    // Predicated region
    $region22: #{alt_filter_forward.1} parent=1 // pred_check
      _
    $region23: #{alt_filter_forward.1} parent=1 // pred_check_branch
      %13203 = sbr.rel (0) target = $region25
    $region24: #{alt_filter_forward.1} parent=1 // pred_region
      %s13205 = ssub.s32 8192, 8192
      %13206 = vsyncadd [#allocation4], %s13205
      %s13207 = sshll.u32 [#allocation3], 4
      %s13208 = int_to_ptr.vmem [resolvable:$true] %s13207
      %13213 = dma.vmem_to_hbm [thread:$0]  %s13208, 8192, %s5, [#allocation4], 128, 128, 8
    $region25: #{alt_filter_forward.1} parent=1 // pred_fallthru
      _
    // Predicated region
    $region26: #{alt_filter_forward.1} parent=1 // pred_check
      _
    $region27: #{alt_filter_forward.1} parent=1 // pred_check_branch
      %13215 = sbr.rel (0) target = $region29
    $region28: #{alt_filter_forward.1} parent=1 // pred_region
      %13216 = dma.done [#allocation4], 8192
    $region29: #{alt_filter_forward.1} parent=1 // pred_fallthru
      _
    %13217 = vsyncpa [#allocation4], 1

</llo_original>
